<compile_context>
chip_gen: v7x
topology: tpu7x:2x2x1
jax: 0.10.0
libtpu: 0.0.40
codegen_flags: <defaults>
</compile_context>

<pallas_src>
import functools

import jax
import jax.numpy as jnp
from jax.experimental import pallas as pl
from jax.experimental.pallas import tpu as pltpu


# ---------------------------------------------------------------------------
# Fused kernel: 4x (3x3 conv + bias + act) + squeeze-excite rescale
# ---------------------------------------------------------------------------
def fused_se_attention_kernel(x_ref,
                              w1_ref, b1_ref, w2_ref, b2_ref,
                              w3_ref, b3_ref, w4_ref, b4_ref,
                              fc1_ref, fc2_ref,
                              o_ref, pad_ref, *,
                              bblk, H, W, chans, dtype):
    """One grid step processes `bblk` images end-to-end.

    x_ref   : (bblk, H, W, C0)       input activations (dtype)
    w*_ref  : (9*Cin, Cout)          im2col conv weights (dtype)
    b*_ref  : (1, Cout)              conv biases (f32)
    fc1_ref : (C4, C4//r), fc2_ref: (C4//r, C4)   SE weights (dtype, no bias)
    o_ref   : (bblk, H, W, C4)       output (f32)
    pad_ref : (bblk, H+2, W+2, Cmax) VMEM halo scratch (dtype)
    """
    C0, C1, C2, C3, C4 = chans
    HW = H * W
    M = bblk * HW

    # The 1-pixel halo border must be zero.  The interior is overwritten
    # before every read, so one fill per grid step suffices; it is done
    # unconditionally (not only at program_id 0) so each core's private
    # scratch is initialized under megacore sharding.
    pad_ref[...] = jnp.zeros_like(pad_ref)

    def conv3x3(act, w_ref, b_ref, cin, nonlin):
        # act: (bblk, H, W, cin) in `dtype`; returns (M, cout) f32.
        pad_ref[:, 1:H + 1, 1:W + 1, :cin] = act
        cols = [pad_ref[:, dy:dy + H, dx:dx + W, :cin].reshape(M, cin)
                for dy in range(3) for dx in range(3)]
        col = jnp.concatenate(cols, axis=-1)                   # (M, 9*cin)
        y = jnp.dot(col, w_ref[...], preferred_element_type=jnp.float32)
        y = y + b_ref[0]
        return jnp.maximum(y, 0.0) if nonlin == "relu" else jax.nn.sigmoid(y)

    h = conv3x3(x_ref[...], w1_ref, b1_ref, C0, "relu")
    h = conv3x3(h.astype(dtype).reshape(bblk, H, W, C1), w2_ref, b2_ref, C1, "relu")
    h = conv3x3(h.astype(dtype).reshape(bblk, H, W, C2), w3_ref, b3_ref, C2, "relu")
    d = conv3x3(h.astype(dtype).reshape(bblk, H, W, C3), w4_ref, b4_ref, C3, "sigmoid")
    # d: (M, C4) f32 denoised features.

    # Squeeze-excite: avg-pool -> fc1 -> ReLU -> fc2 -> sigmoid, fully
    # batched over the image block (one reduce + two small matmuls).
    d_blk = d.reshape(bblk, HW, C4)                            # (bblk, HW, C4)
    pooled = jnp.sum(d_blk, axis=1) * (1.0 / HW)               # (bblk, C4)
    hfc = jnp.maximum(
        jnp.dot(pooled.astype(dtype), fc1_ref[...],
                preferred_element_type=jnp.float32), 0.0)
    scale = jax.nn.sigmoid(
        jnp.dot(hfc.astype(dtype), fc2_ref[...],
                preferred_element_type=jnp.float32))           # (bblk, C4)

    # Channel rescale + single store of the whole block tile.
    out = d_blk * scale[:, None, :]                            # (bblk, HW, C4)
    o_ref[...] = out.reshape(bblk, H, W, C4).astype(o_ref.dtype)


# ---------------------------------------------------------------------------
# Pallas wrapper
# ---------------------------------------------------------------------------
def _pick_batch_block(B):
    for cand in (4, 2, 1):
        if B % cand == 0:
            return cand
    return 1


def _fused_forward_nhwc(x_nhwc, params, dtype):
    B, H, W, C = x_nhwc.shape
    mid = params["enc1_w"].shape[-1]
    latent = params["enc2_w"].shape[-1]
    cmax = max(C, mid, latent)
    bblk = _pick_batch_block(B)

    def conv_w(w):   # (3, 3, Cin, Cout) -> (9*Cin, Cout)  (im2col layout)
        kh, kw, cin, cout = w.shape
        return w.reshape(kh * kw * cin, cout).astype(dtype)

    def bias(b):
        return b.reshape(1, -1).astype(jnp.float32)

    w1, b1 = conv_w(params["enc1_w"]), bias(params["enc1_b"])
    w2, b2 = conv_w(params["enc2_w"]), bias(params["enc2_b"])
    w3, b3 = conv_w(params["dec1_w"]), bias(params["dec1_b"])
    w4, b4 = conv_w(params["dec2_w"]), bias(params["dec2_b"])
    fc1 = params["fc1_w"].astype(dtype)
    fc2 = params["fc2_w"].astype(dtype)

    kernel = functools.partial(
        fused_se_attention_kernel, bblk=bblk, H=H, W=W,
        chans=(C, mid, latent, mid, C), dtype=dtype)

    def const_spec(arr):
        nd = arr.ndim
        return pl.BlockSpec(arr.shape, lambda *_, _nd=nd: (0,) * _nd)

    return pl.pallas_call(
        kernel,
        out_shape=jax.ShapeDtypeStruct((B, H, W, C), jnp.float32),
        grid_spec=pltpu.PrefetchScalarGridSpec(
            num_scalar_prefetch=0,
            grid=(B // bblk,),
            in_specs=[
                pl.BlockSpec((bblk, H, W, C), lambda i: (i, 0, 0, 0)),
                const_spec(w1), const_spec(b1),
                const_spec(w2), const_spec(b2),
                const_spec(w3), const_spec(b3),
                const_spec(w4), const_spec(b4),
                const_spec(fc1), const_spec(fc2),
            ],
            out_specs=pl.BlockSpec((bblk, H, W, C), lambda i: (i, 0, 0, 0)),
            scratch_shapes=[pltpu.VMEM((bblk, H + 2, W + 2, cmax), dtype)],
        ),
        compiler_params=pltpu.CompilerParams(
            dimension_semantics=("parallel",)),
    )(x_nhwc.astype(dtype), w1, b1, w2, b2, w3, b3, w4, b4, fc1, fc2)


@functools.partial(jax.jit, static_argnames=("dtype",))
def se_attention_forward(x_nchw, params, dtype=jnp.float32):
    """NCHW in / NCHW out, matching the PyTorch SEAttention module."""
    x = jnp.transpose(x_nchw, (0, 2, 3, 1))          # NCHW -> NHWC
    out = _fused_forward_nhwc(x, params, dtype)
    return jnp.transpose(out, (0, 3, 1, 2))          # NHWC -> NCHW


# ---------------------------------------------------------------------------
# Parameter init (deterministic, synthetic — not a checkpoint load)
# ---------------------------------------------------------------------------
def init_params(key, channel=64, latent_dim=128, reduction=16):
    ks = jax.random.split(key, 6)
    mid = channel // 2
    red = max(channel // reduction, 1)

    def conv_w(k, cin, cout):
        # kaiming-normal-ish, fan_out mode, stored as (kh, kw, Cin, Cout)
        std = (2.0 / (cout * 9)) ** 0.5
        return std * jax.random.normal(k, (3, 3, cin, cout), jnp.float32)

    return {
        "enc1_w": conv_w(ks[0], channel, mid),
        "enc1_b": jnp.zeros((mid,), jnp.float32),
        "enc2_w": conv_w(ks[1], mid, latent_dim),
        "enc2_b": jnp.zeros((latent_dim,), jnp.float32),
        "dec1_w": conv_w(ks[2], latent_dim, mid),
        "dec1_b": jnp.zeros((mid,), jnp.float32),
        "dec2_w": conv_w(ks[3], mid, channel),
        "dec2_b": jnp.zeros((channel,), jnp.float32),
        # Linear weights pre-transposed to (in, out); bias=False in the module.
        "fc1_w": 0.001 * jax.random.normal(ks[4], (channel, red), jnp.float32),
        "fc2_w": 0.001 * jax.random.normal(ks[5], (red, channel), jnp.float32),
    }


# ---------------------------------------------------------------------------
# Pure-JAX reference for correctness checking
# ---------------------------------------------------------------------------
def _ref_forward(x_nchw, params):
    x = jnp.transpose(x_nchw, (0, 2, 3, 1))

    def conv(h, w, b, act):
        y = jax.lax.conv_general_dilated(
            h, w, window_strides=(1, 1), padding="SAME",
            dimension_numbers=("NHWC", "HWIO", "NHWC")) + b
        return jnp.maximum(y, 0.0) if act == "relu" else jax.nn.sigmoid(y)

    h = conv(x, params["enc1_w"], params["enc1_b"], "relu")
    h = conv(h, params["enc2_w"], params["enc2_b"], "relu")
    h = conv(h, params["dec1_w"], params["dec1_b"], "relu")
    d = conv(h, params["dec2_w"], params["dec2_b"], "sigmoid")
    y = jnp.mean(d, axis=(1, 2))                     # (B, C)
    y = jnp.maximum(y @ params["fc1_w"], 0.0)
    y = jax.nn.sigmoid(y @ params["fc2_w"])
    out = d * y[:, None, None, :]
    return jnp.transpose(out, (0, 3, 1, 2))


if __name__ == "__main__":
    B, C, H, W = 8, 64, 8, 8
    key = jax.random.PRNGKey(0)
    kx, kp = jax.random.split(key)
    x = jax.random.normal(kx, (B, C, H, W), jnp.float32)
    params = init_params(kp, channel=C, latent_dim=128, reduction=16)

    ref = _ref_forward(x, params)

    # f32 path (exact numerics vs. reference)
    out = jax.block_until_ready(se_attention_forward(x, params))
    assert out.shape == (B, C, H, W)
    assert jnp.allclose(out, ref, atol=1e-4, rtol=1e-4), (
        float(jnp.max(jnp.abs(out - ref))))

    # bf16 fast path for v6e/v7x (bf16 weights/activations, f32 accumulation)
    out_bf16 = jax.block_until_ready(
        se_attention_forward(x, params, dtype=jnp.bfloat16))
    err_bf16 = float(jnp.max(jnp.abs(out_bf16 - ref)))
    assert err_bf16 < 5e-2, err_bf16

    print("KERNEL_OK")
</pallas_src>

<mosaic_0001>
module attributes {stable_mosaic.version = 11 : i64} {
  func.func @fused_se_attention_kernel(%arg0: i32, %arg1: memref<4x8x8x64xf32, #tpu.memory_space<vmem>>, %arg2: memref<576x32xf32, #tpu.memory_space<vmem>>, %arg3: memref<1x32xf32, #tpu.memory_space<vmem>>, %arg4: memref<288x128xf32, #tpu.memory_space<vmem>>, %arg5: memref<1x128xf32, #tpu.memory_space<vmem>>, %arg6: memref<1152x32xf32, #tpu.memory_space<vmem>>, %arg7: memref<1x32xf32, #tpu.memory_space<vmem>>, %arg8: memref<288x64xf32, #tpu.memory_space<vmem>>, %arg9: memref<1x64xf32, #tpu.memory_space<vmem>>, %arg10: memref<64x4xf32, #tpu.memory_space<vmem>>, %arg11: memref<4x64xf32, #tpu.memory_space<vmem>>, %arg12: memref<4x8x8x64xf32, #tpu.memory_space<vmem>>, %arg13: memref<4x10x10x128xf32, #tpu.memory_space<vmem>>) attributes {dimension_semantics = [#tpu.dimension_semantics<parallel>], iteration_bounds = array<i64: 2>, scalar_prefetch = 0 : i64, scratch_operands = 1 : i64, tpu.core_type = #tpu.core_type<tc>, window_params = [{transform_indices = @transform_0, window_bounds = array<i64: 4, 8, 8, 64>}, {pipeline_mode = #tpu.pipeline_mode<synchronous>, transform_indices = @transform_1, window_bounds = array<i64: 576, 32>}, {pipeline_mode = #tpu.pipeline_mode<synchronous>, transform_indices = @transform_2, window_bounds = array<i64: 1, 32>}, {pipeline_mode = #tpu.pipeline_mode<synchronous>, transform_indices = @transform_3, window_bounds = array<i64: 288, 128>}, {pipeline_mode = #tpu.pipeline_mode<synchronous>, transform_indices = @transform_4, window_bounds = array<i64: 1, 128>}, {pipeline_mode = #tpu.pipeline_mode<synchronous>, transform_indices = @transform_5, window_bounds = array<i64: 1152, 32>}, {pipeline_mode = #tpu.pipeline_mode<synchronous>, transform_indices = @transform_6, window_bounds = array<i64: 1, 32>}, {pipeline_mode = #tpu.pipeline_mode<synchronous>, transform_indices = @transform_7, window_bounds = array<i64: 288, 64>}, {pipeline_mode = #tpu.pipeline_mode<synchronous>, transform_indices = @transform_8, window_bounds = array<i64: 1, 64>}, {pipeline_mode = #tpu.pipeline_mode<synchronous>, transform_indices = @transform_9, window_bounds = array<i64: 64, 4>}, {pipeline_mode = #tpu.pipeline_mode<synchronous>, transform_indices = @transform_10, window_bounds = array<i64: 4, 64>}, {transform_indices = @transform_11, window_bounds = array<i64: 4, 8, 8, 64>}]} {
    %cst = arith.constant 0.000000e+00 : f32
    %0 = vector.broadcast %cst : f32 to vector<4x10x10x128xf32>
    %c0 = arith.constant 0 : index
    %c0_0 = arith.constant 0 : index
    %c0_1 = arith.constant 0 : index
    %c0_2 = arith.constant 0 : index
    %1 = vector.load %arg13[%c0, %c0_0, %c0_1, %c0_2] : memref<4x10x10x128xf32, #tpu.memory_space<vmem>>, vector<4x10x10x128xf32>
    tpu.vector_store %arg13[%c0, %c0_0, %c0_1, %c0_2], %0 {strides = array<i32>} : memref<4x10x10x128xf32, #tpu.memory_space<vmem>>, vector<4x10x10x128xf32>,
    %c0_3 = arith.constant 0 : index
    %c0_4 = arith.constant 0 : index
    %c0_5 = arith.constant 0 : index
    %c0_6 = arith.constant 0 : index
    %2 = vector.load %arg1[%c0_3, %c0_4, %c0_5, %c0_6] : memref<4x8x8x64xf32, #tpu.memory_space<vmem>>, vector<4x8x8x64xf32>
    %c0_7 = arith.constant 0 : index
    %c1 = arith.constant 1 : index
    %c1_8 = arith.constant 1 : index
    %c0_9 = arith.constant 0 : index
    %3 = vector.load %arg13[%c0_7, %c1, %c1_8, %c0_9] : memref<4x10x10x128xf32, #tpu.memory_space<vmem>>, vector<4x8x8x64xf32>
    tpu.vector_store %arg13[%c0_7, %c1, %c1_8, %c0_9], %2 {strides = array<i32>} : memref<4x10x10x128xf32, #tpu.memory_space<vmem>>, vector<4x8x8x64xf32>,
    %c0_10 = arith.constant 0 : index
    %c0_11 = arith.constant 0 : index
    %c0_12 = arith.constant 0 : index
    %c0_13 = arith.constant 0 : index
    %4 = vector.load %arg13[%c0_10, %c0_11, %c0_12, %c0_13] : memref<4x10x10x128xf32, #tpu.memory_space<vmem>>, vector<4x8x8x64xf32>
    %5 = vector.shape_cast %4 : vector<4x8x8x64xf32> to vector<256x64xf32>
    %c0_14 = arith.constant 0 : index
    %c0_15 = arith.constant 0 : index
    %c1_16 = arith.constant 1 : index
    %c0_17 = arith.constant 0 : index
    %6 = vector.load %arg13[%c0_14, %c0_15, %c1_16, %c0_17] : memref<4x10x10x128xf32, #tpu.memory_space<vmem>>, vector<4x8x8x64xf32>
    %7 = vector.shape_cast %6 : vector<4x8x8x64xf32> to vector<256x64xf32>
    %c0_18 = arith.constant 0 : index
    %c0_19 = arith.constant 0 : index
    %c2 = arith.constant 2 : index
    %c0_20 = arith.constant 0 : index
    %8 = vector.load %arg13[%c0_18, %c0_19, %c2, %c0_20] : memref<4x10x10x128xf32, #tpu.memory_space<vmem>>, vector<4x8x8x64xf32>
    %9 = vector.shape_cast %8 : vector<4x8x8x64xf32> to vector<256x64xf32>
    %c0_21 = arith.constant 0 : index
    %c1_22 = arith.constant 1 : index
    %c0_23 = arith.constant 0 : index
    %c0_24 = arith.constant 0 : index
    %10 = vector.load %arg13[%c0_21, %c1_22, %c0_23, %c0_24] : memref<4x10x10x128xf32, #tpu.memory_space<vmem>>, vector<4x8x8x64xf32>
    %11 = vector.shape_cast %10 : vector<4x8x8x64xf32> to vector<256x64xf32>
    %c0_25 = arith.constant 0 : index
    %c1_26 = arith.constant 1 : index
    %c1_27 = arith.constant 1 : index
    %c0_28 = arith.constant 0 : index
    %12 = vector.load %arg13[%c0_25, %c1_26, %c1_27, %c0_28] : memref<4x10x10x128xf32, #tpu.memory_space<vmem>>, vector<4x8x8x64xf32>
    %13 = vector.shape_cast %12 : vector<4x8x8x64xf32> to vector<256x64xf32>
    %c0_29 = arith.constant 0 : index
    %c1_30 = arith.constant 1 : index
    %c2_31 = arith.constant 2 : index
    %c0_32 = arith.constant 0 : index
    %14 = vector.load %arg13[%c0_29, %c1_30, %c2_31, %c0_32] : memref<4x10x10x128xf32, #tpu.memory_space<vmem>>, vector<4x8x8x64xf32>
    %15 = vector.shape_cast %14 : vector<4x8x8x64xf32> to vector<256x64xf32>
    %c0_33 = arith.constant 0 : index
    %c2_34 = arith.constant 2 : index
    %c0_35 = arith.constant 0 : index
    %c0_36 = arith.constant 0 : index
    %16 = vector.load %arg13[%c0_33, %c2_34, %c0_35, %c0_36] : memref<4x10x10x128xf32, #tpu.memory_space<vmem>>, vector<4x8x8x64xf32>
    %17 = vector.shape_cast %16 : vector<4x8x8x64xf32> to vector<256x64xf32>
    %c0_37 = arith.constant 0 : index
    %c2_38 = arith.constant 2 : index
    %c1_39 = arith.constant 1 : index
    %c0_40 = arith.constant 0 : index
    %18 = vector.load %arg13[%c0_37, %c2_38, %c1_39, %c0_40] : memref<4x10x10x128xf32, #tpu.memory_space<vmem>>, vector<4x8x8x64xf32>
    %19 = vector.shape_cast %18 : vector<4x8x8x64xf32> to vector<256x64xf32>
    %c0_41 = arith.constant 0 : index
    %c2_42 = arith.constant 2 : index
    %c2_43 = arith.constant 2 : index
    %c0_44 = arith.constant 0 : index
    %20 = vector.load %arg13[%c0_41, %c2_42, %c2_43, %c0_44] : memref<4x10x10x128xf32, #tpu.memory_space<vmem>>, vector<4x8x8x64xf32>
    %21 = vector.shape_cast %20 : vector<4x8x8x64xf32> to vector<256x64xf32>
    %22 = tpu.concatenate %5, %7, %9, %11, %13, %15, %17, %19, %21 in 1 : vector<256x64xf32>, vector<256x64xf32>, vector<256x64xf32>, vector<256x64xf32>, vector<256x64xf32>, vector<256x64xf32>, vector<256x64xf32>, vector<256x64xf32>, vector<256x64xf32> -> vector<256x576xf32>
    %c0_45 = arith.constant 0 : index
    %c0_46 = arith.constant 0 : index
    %23 = vector.load %arg2[%c0_45, %c0_46] : memref<576x32xf32, #tpu.memory_space<vmem>>, vector<576x32xf32>
    %cst_47 = arith.constant dense<0.000000e+00> : vector<256x32xf32>
    %24 = tpu.matmul %22, %23, %cst_47 {dimension_numbers = #tpu.dot_dimension_numbers<[1], [0], [0], [1], [0, 0, 1, 1], [], []>} : vector<256x576xf32>, vector<576x32xf32>, vector<256x32xf32> -> vector<256x32xf32>
    %c0_48 = arith.constant 0 : index
    %c0_49 = arith.constant 0 : index
    %25 = vector.load %arg3[%c0_48, %c0_49] : memref<1x32xf32, #tpu.memory_space<vmem>>, vector<1x32xf32>
    %26 = vector.shape_cast %25 : vector<1x32xf32> to vector<32xf32>
    %27 = vector.shape_cast %26 : vector<32xf32> to vector<1x32xf32>
    %28 = vector.broadcast %27 : vector<1x32xf32> to vector<256x32xf32>
    %29 = arith.addf %24, %28 : vector<256x32xf32>
    %cst_50 = arith.constant 0.000000e+00 : f32
    %30 = vector.broadcast %cst_50 : f32 to vector<256x32xf32>
    %31 = arith.maximumf %29, %30 : vector<256x32xf32>
    %32 = vector.shape_cast %31 : vector<256x32xf32> to vector<4x8x8x32xf32>
    %c0_51 = arith.constant 0 : index
    %c1_52 = arith.constant 1 : index
    %c1_53 = arith.constant 1 : index
    %c0_54 = arith.constant 0 : index
    %33 = vector.load %arg13[%c0_51, %c1_52, %c1_53, %c0_54] : memref<4x10x10x128xf32, #tpu.memory_space<vmem>>, vector<4x8x8x32xf32>
    tpu.vector_store %arg13[%c0_51, %c1_52, %c1_53, %c0_54], %32 {strides = array<i32>} : memref<4x10x10x128xf32, #tpu.memory_space<vmem>>, vector<4x8x8x32xf32>,
    %c0_55 = arith.constant 0 : index
    %c0_56 = arith.constant 0 : index
    %c0_57 = arith.constant 0 : index
    %c0_58 = arith.constant 0 : index
    %34 = vector.load %arg13[%c0_55, %c0_56, %c0_57, %c0_58] : memref<4x10x10x128xf32, #tpu.memory_space<vmem>>, vector<4x8x8x32xf32>
    %35 = vector.shape_cast %34 : vector<4x8x8x32xf32> to vector<256x32xf32>
    %c0_59 = arith.constant 0 : index
    %c0_60 = arith.constant 0 : index
    %c1_61 = arith.constant 1 : index
    %c0_62 = arith.constant 0 : index
    %36 = vector.load %arg13[%c0_59, %c0_60, %c1_61, %c0_62] : memref<4x10x10x128xf32, #tpu.memory_space<vmem>>, vector<4x8x8x32xf32>
    %37 = vector.shape_cast %36 : vector<4x8x8x32xf32> to vector<256x32xf32>
    %c0_63 = arith.constant 0 : index
    %c0_64 = arith.constant 0 : index
    %c2_65 = arith.constant 2 : index
    %c0_66 = arith.constant 0 : index
    %38 = vector.load %arg13[%c0_63, %c0_64, %c2_65, %c0_66] : memref<4x10x10x128xf32, #tpu.memory_space<vmem>>, vector<4x8x8x32xf32>
    %39 = vector.shape_cast %38 : vector<4x8x8x32xf32> to vector<256x32xf32>
    %c0_67 = arith.constant 0 : index
    %c1_68 = arith.constant 1 : index
    %c0_69 = arith.constant 0 : index
    %c0_70 = arith.constant 0 : index
    %40 = vector.load %arg13[%c0_67, %c1_68, %c0_69, %c0_70] : memref<4x10x10x128xf32, #tpu.memory_space<vmem>>, vector<4x8x8x32xf32>
    %41 = vector.shape_cast %40 : vector<4x8x8x32xf32> to vector<256x32xf32>
    %c0_71 = arith.constant 0 : index
    %c1_72 = arith.constant 1 : index
    %c1_73 = arith.constant 1 : index
    %c0_74 = arith.constant 0 : index
    %42 = vector.load %arg13[%c0_71, %c1_72, %c1_73, %c0_74] : memref<4x10x10x128xf32, #tpu.memory_space<vmem>>, vector<4x8x8x32xf32>
    %43 = vector.shape_cast %42 : vector<4x8x8x32xf32> to vector<256x32xf32>
    %c0_75 = arith.constant 0 : index
    %c1_76 = arith.constant 1 : index
    %c2_77 = arith.constant 2 : index
    %c0_78 = arith.constant 0 : index
    %44 = vector.load %arg13[%c0_75, %c1_76, %c2_77, %c0_78] : memref<4x10x10x128xf32, #tpu.memory_space<vmem>>, vector<4x8x8x32xf32>
    %45 = vector.shape_cast %44 : vector<4x8x8x32xf32> to vector<256x32xf32>
    %c0_79 = arith.constant 0 : index
    %c2_80 = arith.constant 2 : index
    %c0_81 = arith.constant 0 : index
    %c0_82 = arith.constant 0 : index
    %46 = vector.load %arg13[%c0_79, %c2_80, %c0_81, %c0_82] : memref<4x10x10x128xf32, #tpu.memory_space<vmem>>, vector<4x8x8x32xf32>
    %47 = vector.shape_cast %46 : vector<4x8x8x32xf32> to vector<256x32xf32>
    %c0_83 = arith.constant 0 : index
    %c2_84 = arith.constant 2 : index
    %c1_85 = arith.constant 1 : index
    %c0_86 = arith.constant 0 : index
    %48 = vector.load %arg13[%c0_83, %c2_84, %c1_85, %c0_86] : memref<4x10x10x128xf32, #tpu.memory_space<vmem>>, vector<4x8x8x32xf32>
    %49 = vector.shape_cast %48 : vector<4x8x8x32xf32> to vector<256x32xf32>
    %c0_87 = arith.constant 0 : index
    %c2_88 = arith.constant 2 : index
    %c2_89 = arith.constant 2 : index
    %c0_90 = arith.constant 0 : index
    %50 = vector.load %arg13[%c0_87, %c2_88, %c2_89, %c0_90] : memref<4x10x10x128xf32, #tpu.memory_space<vmem>>, vector<4x8x8x32xf32>
    %51 = vector.shape_cast %50 : vector<4x8x8x32xf32> to vector<256x32xf32>
    %52 = tpu.concatenate %35, %37, %39, %41, %43, %45, %47, %49, %51 in 1 : vector<256x32xf32>, vector<256x32xf32>, vector<256x32xf32>, vector<256x32xf32>, vector<256x32xf32>, vector<256x32xf32>, vector<256x32xf32>, vector<256x32xf32>, vector<256x32xf32> -> vector<256x288xf32>
    %c0_91 = arith.constant 0 : index
    %c0_92 = arith.constant 0 : index
    %53 = vector.load %arg4[%c0_91, %c0_92] : memref<288x128xf32, #tpu.memory_space<vmem>>, vector<288x128xf32>
    %cst_93 = arith.constant dense<0.000000e+00> : vector<256x128xf32>
    %54 = tpu.matmul %52, %53, %cst_93 {dimension_numbers = #tpu.dot_dimension_numbers<[1], [0], [0], [1], [0, 0, 1, 1], [], []>} : vector<256x288xf32>, vector<288x128xf32>, vector<256x128xf32> -> vector<256x128xf32>
    %c0_94 = arith.constant 0 : index
    %c0_95 = arith.constant 0 : index
    %55 = vector.load %arg5[%c0_94, %c0_95] : memref<1x128xf32, #tpu.memory_space<vmem>>, vector<1x128xf32>
    %56 = vector.shape_cast %55 : vector<1x128xf32> to vector<128xf32>
    %57 = vector.shape_cast %56 : vector<128xf32> to vector<1x128xf32>
    %58 = vector.broadcast %57 : vector<1x128xf32> to vector<256x128xf32>
    %59 = arith.addf %54, %58 : vector<256x128xf32>
    %cst_96 = arith.constant 0.000000e+00 : f32
    %60 = vector.broadcast %cst_96 : f32 to vector<256x128xf32>
    %61 = arith.maximumf %59, %60 : vector<256x128xf32>
    %62 = vector.shape_cast %61 : vector<256x128xf32> to vector<4x8x8x128xf32>
    %c0_97 = arith.constant 0 : index
    %c1_98 = arith.constant 1 : index
    %c1_99 = arith.constant 1 : index
    %c0_100 = arith.constant 0 : index
    %63 = vector.load %arg13[%c0_97, %c1_98, %c1_99, %c0_100] : memref<4x10x10x128xf32, #tpu.memory_space<vmem>>, vector<4x8x8x128xf32>
    tpu.vector_store %arg13[%c0_97, %c1_98, %c1_99, %c0_100], %62 {strides = array<i32>} : memref<4x10x10x128xf32, #tpu.memory_space<vmem>>, vector<4x8x8x128xf32>,
    %c0_101 = arith.constant 0 : index
    %c0_102 = arith.constant 0 : index
    %c0_103 = arith.constant 0 : index
    %c0_104 = arith.constant 0 : index
    %64 = vector.load %arg13[%c0_101, %c0_102, %c0_103, %c0_104] : memref<4x10x10x128xf32, #tpu.memory_space<vmem>>, vector<4x8x8x128xf32>
    %65 = vector.shape_cast %64 : vector<4x8x8x128xf32> to vector<256x128xf32>
    %c0_105 = arith.constant 0 : index
    %c0_106 = arith.constant 0 : index
    %c1_107 = arith.constant 1 : index
    %c0_108 = arith.constant 0 : index
    %66 = vector.load %arg13[%c0_105, %c0_106, %c1_107, %c0_108] : memref<4x10x10x128xf32, #tpu.memory_space<vmem>>, vector<4x8x8x128xf32>
    %67 = vector.shape_cast %66 : vector<4x8x8x128xf32> to vector<256x128xf32>
    %c0_109 = arith.constant 0 : index
    %c0_110 = arith.constant 0 : index
    %c2_111 = arith.constant 2 : index
    %c0_112 = arith.constant 0 : index
    %68 = vector.load %arg13[%c0_109, %c0_110, %c2_111, %c0_112] : memref<4x10x10x128xf32, #tpu.memory_space<vmem>>, vector<4x8x8x128xf32>
    %69 = vector.shape_cast %68 : vector<4x8x8x128xf32> to vector<256x128xf32>
    %c0_113 = arith.constant 0 : index
    %c1_114 = arith.constant 1 : index
    %c0_115 = arith.constant 0 : index
    %c0_116 = arith.constant 0 : index
    %70 = vector.load %arg13[%c0_113, %c1_114, %c0_115, %c0_116] : memref<4x10x10x128xf32, #tpu.memory_space<vmem>>, vector<4x8x8x128xf32>
    %71 = vector.shape_cast %70 : vector<4x8x8x128xf32> to vector<256x128xf32>
    %c0_117 = arith.constant 0 : index
    %c1_118 = arith.constant 1 : index
    %c1_119 = arith.constant 1 : index
    %c0_120 = arith.constant 0 : index
    %72 = vector.load %arg13[%c0_117, %c1_118, %c1_119, %c0_120] : memref<4x10x10x128xf32, #tpu.memory_space<vmem>>, vector<4x8x8x128xf32>
    %73 = vector.shape_cast %72 : vector<4x8x8x128xf32> to vector<256x128xf32>
    %c0_121 = arith.constant 0 : index
    %c1_122 = arith.constant 1 : index
    %c2_123 = arith.constant 2 : index
    %c0_124 = arith.constant 0 : index
    %74 = vector.load %arg13[%c0_121, %c1_122, %c2_123, %c0_124] : memref<4x10x10x128xf32, #tpu.memory_space<vmem>>, vector<4x8x8x128xf32>
    %75 = vector.shape_cast %74 : vector<4x8x8x128xf32> to vector<256x128xf32>
    %c0_125 = arith.constant 0 : index
    %c2_126 = arith.constant 2 : index
    %c0_127 = arith.constant 0 : index
    %c0_128 = arith.constant 0 : index
    %76 = vector.load %arg13[%c0_125, %c2_126, %c0_127, %c0_128] : memref<4x10x10x128xf32, #tpu.memory_space<vmem>>, vector<4x8x8x128xf32>
    %77 = vector.shape_cast %76 : vector<4x8x8x128xf32> to vector<256x128xf32>
    %c0_129 = arith.constant 0 : index
    %c2_130 = arith.constant 2 : index
    %c1_131 = arith.constant 1 : index
    %c0_132 = arith.constant 0 : index
    %78 = vector.load %arg13[%c0_129, %c2_130, %c1_131, %c0_132] : memref<4x10x10x128xf32, #tpu.memory_space<vmem>>, vector<4x8x8x128xf32>
    %79 = vector.shape_cast %78 : vector<4x8x8x128xf32> to vector<256x128xf32>
    %c0_133 = arith.constant 0 : index
    %c2_134 = arith.constant 2 : index
    %c2_135 = arith.constant 2 : index
    %c0_136 = arith.constant 0 : index
    %80 = vector.load %arg13[%c0_133, %c2_134, %c2_135, %c0_136] : memref<4x10x10x128xf32, #tpu.memory_space<vmem>>, vector<4x8x8x128xf32>
    %81 = vector.shape_cast %80 : vector<4x8x8x128xf32> to vector<256x128xf32>
    %82 = tpu.concatenate %65, %67, %69, %71, %73, %75, %77, %79, %81 in 1 : vector<256x128xf32>, vector<256x128xf32>, vector<256x128xf32>, vector<256x128xf32>, vector<256x128xf32>, vector<256x128xf32>, vector<256x128xf32>, vector<256x128xf32>, vector<256x128xf32> -> vector<256x1152xf32>
    %c0_137 = arith.constant 0 : index
    %c0_138 = arith.constant 0 : index
    %83 = vector.load %arg6[%c0_137, %c0_138] : memref<1152x32xf32, #tpu.memory_space<vmem>>, vector<1152x32xf32>
    %cst_139 = arith.constant dense<0.000000e+00> : vector<256x32xf32>
    %84 = tpu.matmul %82, %83, %cst_139 {dimension_numbers = #tpu.dot_dimension_numbers<[1], [0], [0], [1], [0, 0, 1, 1], [], []>} : vector<256x1152xf32>, vector<1152x32xf32>, vector<256x32xf32> -> vector<256x32xf32>
    %c0_140 = arith.constant 0 : index
    %c0_141 = arith.constant 0 : index
    %85 = vector.load %arg7[%c0_140, %c0_141] : memref<1x32xf32, #tpu.memory_space<vmem>>, vector<1x32xf32>
    %86 = vector.shape_cast %85 : vector<1x32xf32> to vector<32xf32>
    %87 = vector.shape_cast %86 : vector<32xf32> to vector<1x32xf32>
    %88 = vector.broadcast %87 : vector<1x32xf32> to vector<256x32xf32>
    %89 = arith.addf %84, %88 : vector<256x32xf32>
    %cst_142 = arith.constant 0.000000e+00 : f32
    %90 = vector.broadcast %cst_142 : f32 to vector<256x32xf32>
    %91 = arith.maximumf %89, %90 : vector<256x32xf32>
    %92 = vector.shape_cast %91 : vector<256x32xf32> to vector<4x8x8x32xf32>
    %c0_143 = arith.constant 0 : index
    %c1_144 = arith.constant 1 : index
    %c1_145 = arith.constant 1 : index
    %c0_146 = arith.constant 0 : index
    %93 = vector.load %arg13[%c0_143, %c1_144, %c1_145, %c0_146] : memref<4x10x10x128xf32, #tpu.memory_space<vmem>>, vector<4x8x8x32xf32>
    tpu.vector_store %arg13[%c0_143, %c1_144, %c1_145, %c0_146], %92 {strides = array<i32>} : memref<4x10x10x128xf32, #tpu.memory_space<vmem>>, vector<4x8x8x32xf32>,
    %c0_147 = arith.constant 0 : index
    %c0_148 = arith.constant 0 : index
    %c0_149 = arith.constant 0 : index
    %c0_150 = arith.constant 0 : index
    %94 = vector.load %arg13[%c0_147, %c0_148, %c0_149, %c0_150] : memref<4x10x10x128xf32, #tpu.memory_space<vmem>>, vector<4x8x8x32xf32>
    %95 = vector.shape_cast %94 : vector<4x8x8x32xf32> to vector<256x32xf32>
    %c0_151 = arith.constant 0 : index
    %c0_152 = arith.constant 0 : index
    %c1_153 = arith.constant 1 : index
    %c0_154 = arith.constant 0 : index
    %96 = vector.load %arg13[%c0_151, %c0_152, %c1_153, %c0_154] : memref<4x10x10x128xf32, #tpu.memory_space<vmem>>, vector<4x8x8x32xf32>
    %97 = vector.shape_cast %96 : vector<4x8x8x32xf32> to vector<256x32xf32>
    %c0_155 = arith.constant 0 : index
    %c0_156 = arith.constant 0 : index
    %c2_157 = arith.constant 2 : index
    %c0_158 = arith.constant 0 : index
    %98 = vector.load %arg13[%c0_155, %c0_156, %c2_157, %c0_158] : memref<4x10x10x128xf32, #tpu.memory_space<vmem>>, vector<4x8x8x32xf32>
    %99 = vector.shape_cast %98 : vector<4x8x8x32xf32> to vector<256x32xf32>
    %c0_159 = arith.constant 0 : index
    %c1_160 = arith.constant 1 : index
    %c0_161 = arith.constant 0 : index
    %c0_162 = arith.constant 0 : index
    %100 = vector.load %arg13[%c0_159, %c1_160, %c0_161, %c0_162] : memref<4x10x10x128xf32, #tpu.memory_space<vmem>>, vector<4x8x8x32xf32>
    %101 = vector.shape_cast %100 : vector<4x8x8x32xf32> to vector<256x32xf32>
    %c0_163 = arith.constant 0 : index
    %c1_164 = arith.constant 1 : index
    %c1_165 = arith.constant 1 : index
    %c0_166 = arith.constant 0 : index
    %102 = vector.load %arg13[%c0_163, %c1_164, %c1_165, %c0_166] : memref<4x10x10x128xf32, #tpu.memory_space<vmem>>, vector<4x8x8x32xf32>
    %103 = vector.shape_cast %102 : vector<4x8x8x32xf32> to vector<256x32xf32>
    %c0_167 = arith.constant 0 : index
    %c1_168 = arith.constant 1 : index
    %c2_169 = arith.constant 2 : index
    %c0_170 = arith.constant 0 : index
    %104 = vector.load %arg13[%c0_167, %c1_168, %c2_169, %c0_170] : memref<4x10x10x128xf32, #tpu.memory_space<vmem>>, vector<4x8x8x32xf32>
    %105 = vector.shape_cast %104 : vector<4x8x8x32xf32> to vector<256x32xf32>
    %c0_171 = arith.constant 0 : index
    %c2_172 = arith.constant 2 : index
    %c0_173 = arith.constant 0 : index
    %c0_174 = arith.constant 0 : index
    %106 = vector.load %arg13[%c0_171, %c2_172, %c0_173, %c0_174] : memref<4x10x10x128xf32, #tpu.memory_space<vmem>>, vector<4x8x8x32xf32>
    %107 = vector.shape_cast %106 : vector<4x8x8x32xf32> to vector<256x32xf32>
    %c0_175 = arith.constant 0 : index
    %c2_176 = arith.constant 2 : index
    %c1_177 = arith.constant 1 : index
    %c0_178 = arith.constant 0 : index
    %108 = vector.load %arg13[%c0_175, %c2_176, %c1_177, %c0_178] : memref<4x10x10x128xf32, #tpu.memory_space<vmem>>, vector<4x8x8x32xf32>
    %109 = vector.shape_cast %108 : vector<4x8x8x32xf32> to vector<256x32xf32>
    %c0_179 = arith.constant 0 : index
    %c2_180 = arith.constant 2 : index
    %c2_181 = arith.constant 2 : index
    %c0_182 = arith.constant 0 : index
    %110 = vector.load %arg13[%c0_179, %c2_180, %c2_181, %c0_182] : memref<4x10x10x128xf32, #tpu.memory_space<vmem>>, vector<4x8x8x32xf32>
    %111 = vector.shape_cast %110 : vector<4x8x8x32xf32> to vector<256x32xf32>
    %112 = tpu.concatenate %95, %97, %99, %101, %103, %105, %107, %109, %111 in 1 : vector<256x32xf32>, vector<256x32xf32>, vector<256x32xf32>, vector<256x32xf32>, vector<256x32xf32>, vector<256x32xf32>, vector<256x32xf32>, vector<256x32xf32>, vector<256x32xf32> -> vector<256x288xf32>
    %c0_183 = arith.constant 0 : index
    %c0_184 = arith.constant 0 : index
    %113 = vector.load %arg8[%c0_183, %c0_184] : memref<288x64xf32, #tpu.memory_space<vmem>>, vector<288x64xf32>
    %cst_185 = arith.constant dense<0.000000e+00> : vector<256x64xf32>
    %114 = tpu.matmul %112, %113, %cst_185 {dimension_numbers = #tpu.dot_dimension_numbers<[1], [0], [0], [1], [0, 0, 1, 1], [], []>} : vector<256x288xf32>, vector<288x64xf32>, vector<256x64xf32> -> vector<256x64xf32>
    %c0_186 = arith.constant 0 : index
    %c0_187 = arith.constant 0 : index
    %115 = vector.load %arg9[%c0_186, %c0_187] : memref<1x64xf32, #tpu.memory_space<vmem>>, vector<1x64xf32>
    %116 = vector.shape_cast %115 : vector<1x64xf32> to vector<64xf32>
    %117 = vector.shape_cast %116 : vector<64xf32> to vector<1x64xf32>
    %118 = vector.broadcast %117 : vector<1x64xf32> to vector<256x64xf32>
    %119 = arith.addf %114, %118 : vector<256x64xf32>
    %120 = arith.negf %119 : vector<256x64xf32>
    %121 = math.exp %120 : vector<256x64xf32>
    %cst_188 = arith.constant 1.000000e+00 : f32
    %122 = vector.broadcast %cst_188 : f32 to vector<256x64xf32>
    %123 = arith.addf %122, %121 : vector<256x64xf32>
    %124 = arith.divf %122, %123 : vector<256x64xf32>
    %125 = vector.shape_cast %124 : vector<256x64xf32> to vector<4x64x64xf32>
    %cst_189 = arith.constant dense<0.000000e+00> : vector<4x64xf32>
    %126 = vector.multi_reduction <add>, %125, %cst_189 [1] : vector<4x64x64xf32> to vector<4x64xf32>
    %cst_190 = arith.constant 1.562500e-02 : f32
    %127 = vector.broadcast %cst_190 : f32 to vector<4x64xf32>
    %128 = arith.mulf %126, %127 : vector<4x64xf32>
    %c0_191 = arith.constant 0 : index
    %c0_192 = arith.constant 0 : index
    %129 = vector.load %arg10[%c0_191, %c0_192] : memref<64x4xf32, #tpu.memory_space<vmem>>, vector<64x4xf32>
    %cst_193 = arith.constant dense<0.000000e+00> : vector<4x4xf32>
    %130 = tpu.matmul %128, %129, %cst_193 {dimension_numbers = #tpu.dot_dimension_numbers<[1], [0], [0], [1], [0, 0, 1, 1], [], []>} : vector<4x64xf32>, vector<64x4xf32>, vector<4x4xf32> -> vector<4x4xf32>
    %cst_194 = arith.constant 0.000000e+00 : f32
    %131 = vector.broadcast %cst_194 : f32 to vector<4x4xf32>
    %132 = arith.maximumf %130, %131 : vector<4x4xf32>
    %c0_195 = arith.constant 0 : index
    %c0_196 = arith.constant 0 : index
    %133 = vector.load %arg11[%c0_195, %c0_196] : memref<4x64xf32, #tpu.memory_space<vmem>>, vector<4x64xf32>
    %cst_197 = arith.constant dense<0.000000e+00> : vector<4x64xf32>
    %134 = tpu.matmul %132, %133, %cst_197 {dimension_numbers = #tpu.dot_dimension_numbers<[1], [0], [0], [1], [0, 0, 1, 1], [], []>} : vector<4x4xf32>, vector<4x64xf32>, vector<4x64xf32> -> vector<4x64xf32>
    %135 = arith.negf %134 : vector<4x64xf32>
    %136 = math.exp %135 : vector<4x64xf32>
    %cst_198 = arith.constant 1.000000e+00 : f32
    %137 = vector.broadcast %cst_198 : f32 to vector<4x64xf32>
    %138 = arith.addf %137, %136 : vector<4x64xf32>
    %139 = arith.divf %137, %138 : vector<4x64xf32>
    %140 = vector.shape_cast %139 : vector<4x64xf32> to vector<4x1x64xf32>
    %141 = vector.broadcast %140 : vector<4x1x64xf32> to vector<4x64x64xf32>
    %142 = arith.mulf %125, %141 : vector<4x64x64xf32>
    %143 = vector.shape_cast %142 : vector<4x64x64xf32> to vector<4x8x8x64xf32>
    %c0_199 = arith.constant 0 : index
    %c0_200 = arith.constant 0 : index
    %c0_201 = arith.constant 0 : index
    %c0_202 = arith.constant 0 : index
    %144 = vector.load %arg12[%c0_199, %c0_200, %c0_201, %c0_202] : memref<4x8x8x64xf32, #tpu.memory_space<vmem>>, vector<4x8x8x64xf32>
    tpu.vector_store %arg12[%c0_199, %c0_200, %c0_201, %c0_202], %143 {strides = array<i32>} : memref<4x8x8x64xf32, #tpu.memory_space<vmem>>, vector<4x8x8x64xf32>,
    return
  }
  func.func @transform_0(%arg0: i32) -> (i32, i32, i32, i32) {
    %c0_i32 = arith.constant 0 : i32
    %c0_i32_0 = arith.constant 0 : i32
    %c0_i32_1 = arith.constant 0 : i32
    %c0_i32_2 = arith.constant 0 : i32
    return %arg0, %c0_i32, %c0_i32_0, %c0_i32_1 : i32, i32, i32, i32
  }
  func.func @transform_1(%arg0: i32) -> (i32, i32) {
    %c0_i32 = arith.constant 0 : i32
    %c0_i32_0 = arith.constant 0 : i32
    %c0_i32_1 = arith.constant 0 : i32
    return %c0_i32, %c0_i32_0 : i32, i32
  }
  func.func @transform_2(%arg0: i32) -> (i32, i32) {
    %c0_i32 = arith.constant 0 : i32
    %c0_i32_0 = arith.constant 0 : i32
    %c0_i32_1 = arith.constant 0 : i32
    return %c0_i32, %c0_i32_0 : i32, i32
  }
  func.func @transform_3(%arg0: i32) -> (i32, i32) {
    %c0_i32 = arith.constant 0 : i32
    %c0_i32_0 = arith.constant 0 : i32
    %c0_i32_1 = arith.constant 0 : i32
    return %c0_i32, %c0_i32_0 : i32, i32
  }
  func.func @transform_4(%arg0: i32) -> (i32, i32) {
    %c0_i32 = arith.constant 0 : i32
    %c0_i32_0 = arith.constant 0 : i32
    %c0_i32_1 = arith.constant 0 : i32
    return %c0_i32, %c0_i32_0 : i32, i32
  }
  func.func @transform_5(%arg0: i32) -> (i32, i32) {
    %c0_i32 = arith.constant 0 : i32
    %c0_i32_0 = arith.constant 0 : i32
    %c0_i32_1 = arith.constant 0 : i32
    return %c0_i32, %c0_i32_0 : i32, i32
  }
  func.func @transform_6(%arg0: i32) -> (i32, i32) {
    %c0_i32 = arith.constant 0 : i32
    %c0_i32_0 = arith.constant 0 : i32
    %c0_i32_1 = arith.constant 0 : i32
    return %c0_i32, %c0_i32_0 : i32, i32
  }
  func.func @transform_7(%arg0: i32) -> (i32, i32) {
    %c0_i32 = arith.constant 0 : i32
    %c0_i32_0 = arith.constant 0 : i32
    %c0_i32_1 = arith.constant 0 : i32
    return %c0_i32, %c0_i32_0 : i32, i32
  }
  func.func @transform_8(%arg0: i32) -> (i32, i32) {
    %c0_i32 = arith.constant 0 : i32
    %c0_i32_0 = arith.constant 0 : i32
    %c0_i32_1 = arith.constant 0 : i32
    return %c0_i32, %c0_i32_0 : i32, i32
  }
  func.func @transform_9(%arg0: i32) -> (i32, i32) {
    %c0_i32 = arith.constant 0 : i32
    %c0_i32_0 = arith.constant 0 : i32
    %c0_i32_1 = arith.constant 0 : i32
    return %c0_i32, %c0_i32_0 : i32, i32
  }
  func.func @transform_10(%arg0: i32) -> (i32, i32) {
    %c0_i32 = arith.constant 0 : i32
    %c0_i32_0 = arith.constant 0 : i32
    %c0_i32_1 = arith.constant 0 : i32
    return %c0_i32, %c0_i32_0 : i32, i32
  }
  func.func @transform_11(%arg0: i32) -> (i32, i32, i32, i32) {
    %c0_i32 = arith.constant 0 : i32
    %c0_i32_0 = arith.constant 0 : i32
    %c0_i32_1 = arith.constant 0 : i32
    %c0_i32_2 = arith.constant 0 : i32
    return %arg0, %c0_i32, %c0_i32_0, %c0_i32_1 : i32, i32, i32, i32
  }
}

</mosaic_0001>

<llo_original>
// kernel: se_attention_forward.1
$region0: #{se_attention_forward.1}
  #allocation0 [shape = 'u32[]', space=smem, size = 0x4, offset = 0x4, fixed_abs, tag = 'smem constant byte address 0x4 - core index']
  #allocation1 [shape = 'u32[144,128]{1,0:T(1,128)}', space=vmem, size = 0x12000, scoped, tag = 'internal scratch']
  #allocation2 [shape = 'f32[4,10,10,128]{3,2,1,0:T(8,128)}', space=vmem, size = 0x50000, scoped, tag = 'scratch operand']
  %s0 = inlined_call_operand.vmem [shape: f32[8,8,8,64], index: 0, kind: input, shape index: {}]
  %s1 = inlined_call_operand.vmem [shape: f32[576,32], index: 1, kind: input, shape index: {}]
  %s2 = inlined_call_operand.vmem [shape: f32[1,32], index: 2, kind: input, shape index: {}]
  %s3 = inlined_call_operand.vmem [shape: f32[288,128], index: 3, kind: input, shape index: {}]
  %s4 = inlined_call_operand.vmem [shape: f32[1,128], index: 4, kind: input, shape index: {}]
  %s5 = inlined_call_operand.vmem [shape: f32[1152,32], index: 5, kind: input, shape index: {}]
  %s6 = inlined_call_operand.vmem [shape: f32[1,32], index: 6, kind: input, shape index: {}]
  %s7 = inlined_call_operand.vmem [shape: f32[288,64], index: 7, kind: input, shape index: {}]
  %s8 = inlined_call_operand.vmem [shape: f32[1,64], index: 8, kind: input, shape index: {}]
  %s9 = inlined_call_operand.vmem [shape: f32[64,4], index: 9, kind: input, shape index: {}]
  %s10 = inlined_call_operand.vmem [shape: f32[4,64], index: 10, kind: input, shape index: {}]
  %s11 = inlined_call_operand.hbm [shape: f32[8,8,8,64], index: 11, kind: output, shape index: {}]
  %s12 = sld [smem:[#allocation0]]
  $region77: #{se_attention_forward.1} parent=0
    _
  %s14 = ssub.s32 1, %s12
  %s15 = scalar_select 0, %s14, %s12
  $region1: #{se_attention_forward.1} parent=0
    #allocation3 [shape = 'u8[262144]{0}', space=vmem, size = 0x40000, scoped, tag = 'output window, operand 0']
    #allocation4 [shape = 's32[2]{0}', space=sflag, size = 0x8, scoped, tag = 'scoped memory for se_attention_forward.1']
    %16 = vsyncpa [#allocation4], 0
    %s17 = scalar_lea.sflag [#allocation4], 1
    %18 = vsyncpa %s17, 0
    loop: start=0, step=1, limit=4
    $region2: #{se_attention_forward.1} parent=1 // loop_pre_header
      _
    $region3: #{se_attention_forward.1} parent=1 // loop_header
      %s20 = sphi 0, %s24
      %p21 = scmp.ge.s32.totalorder %s20, 4
      %s30 = sphi 0, %s32
      %s33 = sphi 0, %s30
      %s34 = sphi 0, %s33
      %s50 = sphi 0, %s34
      %s54 = sphi 0, %s54
      %s56 = sphi 0, %s54
      %s57 = sphi 0, %s56
      %s71 = sphi 0, %s57
      %s75 = sphi 0, %s75
      %s77 = sphi 0, %s75
      %s78 = sphi 0, %s77
      %s92 = sphi 0, %s78
      %s96 = sphi 0, %s96
      %s98 = sphi 0, %s96
      %s99 = sphi 0, %s98
      %s113 = sphi 0, %s99
      %s117 = sphi 0, %s117
      %s119 = sphi 0, %s117
      %s120 = sphi 0, %s119
      %s134 = sphi 0, %s120
      %s138 = sphi 0, %s138
      %s140 = sphi 0, %s138
      %s141 = sphi 0, %s140
      %s155 = sphi 0, %s141
      %s159 = sphi 0, %s159
      %s161 = sphi 0, %s159
      %s162 = sphi 0, %s161
      %s176 = sphi 0, %s162
      %s180 = sphi 0, %s180
      %s182 = sphi 0, %s180
      %s183 = sphi 0, %s182
      %s197 = sphi 0, %s183
      %s201 = sphi 0, %s201
      %s203 = sphi 0, %s201
      %s204 = sphi 0, %s203
      %s218 = sphi 0, %s204
      %s222 = sphi 0, %s222
      %s224 = sphi 0, %s222
      %s225 = sphi 0, %s224
      %s239 = sphi 0, %s225
      %s243 = sphi 0, %s243
      %s245 = sphi 0, %s243
      %s246 = sphi 0, %s245
      %s260 = sphi 0, %s246
      %s266 = sphi 0, %s268
      %s269 = sphi 0, %s266
      %s270 = sphi 0, %s269
      %s286 = sphi 0, %s270
    $region4: #{se_attention_forward.1} parent=1 // loop_header_branch
      %23 = sbr.rel (%p21) target = $region8
    $region5: #{se_attention_forward.1} parent=1 // loop_body
      %s25 = ssub.s32 %s20, 1
      %s26 = ssub.s32 %s20, 2
      %s27 = sadd.s32 %s20, 1
      %s28 = ssub.s32 %s20, %s27
      %p29 = scmp.eq.s32.totalorder %s28, 0
      %s31 = sadd.s32 %s30, 1
      %s32 = scalar_select %p29, %s30, %s31
      %p35 = pneg %p29
      %p36 = scmp.eq.s32.totalorder %s20, 1
      %p37 = por %p35, %p36
      %p38 = scmp.ne.s32.totalorder %s30, %s33
      %p39 = scmp.eq.s32.totalorder %s20, 0
      %p40 = por %p38, %p39
      %p41 = scmp.ne.s32.totalorder %s30, %s33
      %p42 = scmp.eq.s32.totalorder %s25, 1
      %p43 = por %p41, %p42
      %p44 = scmp.ne.s32.totalorder %s33, %s34
      %p45 = scmp.eq.s32.totalorder %s25, 0
      %p46 = por %p44, %p45
      %p47 = scmp.ne.s32.totalorder %s33, %s34
      %p48 = scmp.eq.s32.totalorder %s26, 1
      %p49 = por %p47, %p48
      %p51 = scmp.ne.s32.totalorder %s34, %s50
      %p52 = scmp.eq.s32.totalorder %s26, 0
      %p53 = por %p51, %p52
      %s55 = sadd.s32 %s54, 1
      %p58 = scmp.eq.s32.totalorder %s20, 1
      %p59 = scmp.ne.s32.totalorder %s54, %s56
      %p60 = scmp.eq.s32.totalorder %s20, 0
      %p61 = por %p59, %p60
      %p62 = scmp.ne.s32.totalorder %s54, %s56
      %p63 = scmp.eq.s32.totalorder %s25, 1
      %p64 = por %p62, %p63
      %p65 = scmp.ne.s32.totalorder %s56, %s57
      %p66 = scmp.eq.s32.totalorder %s25, 0
      %p67 = por %p65, %p66
      %p68 = scmp.ne.s32.totalorder %s56, %s57
      %p69 = scmp.eq.s32.totalorder %s26, 1
      %p70 = por %p68, %p69
      %p72 = scmp.ne.s32.totalorder %s57, %s71
      %p73 = scmp.eq.s32.totalorder %s26, 0
      %p74 = por %p72, %p73
      %s76 = sadd.s32 %s75, 1
      %p79 = scmp.eq.s32.totalorder %s20, 1
      %p80 = scmp.ne.s32.totalorder %s75, %s77
      %p81 = scmp.eq.s32.totalorder %s20, 0
      %p82 = por %p80, %p81
      %p83 = scmp.ne.s32.totalorder %s75, %s77
      %p84 = scmp.eq.s32.totalorder %s25, 1
      %p85 = por %p83, %p84
      %p86 = scmp.ne.s32.totalorder %s77, %s78
      %p87 = scmp.eq.s32.totalorder %s25, 0
      %p88 = por %p86, %p87
      %p89 = scmp.ne.s32.totalorder %s77, %s78
      %p90 = scmp.eq.s32.totalorder %s26, 1
      %p91 = por %p89, %p90
      %p93 = scmp.ne.s32.totalorder %s78, %s92
      %p94 = scmp.eq.s32.totalorder %s26, 0
      %p95 = por %p93, %p94
      %s97 = sadd.s32 %s96, 1
      %p100 = scmp.eq.s32.totalorder %s20, 1
      %p101 = scmp.ne.s32.totalorder %s96, %s98
      %p102 = scmp.eq.s32.totalorder %s20, 0
      %p103 = por %p101, %p102
      %p104 = scmp.ne.s32.totalorder %s96, %s98
      %p105 = scmp.eq.s32.totalorder %s25, 1
      %p106 = por %p104, %p105
      %p107 = scmp.ne.s32.totalorder %s98, %s99
      %p108 = scmp.eq.s32.totalorder %s25, 0
      %p109 = por %p107, %p108
      %p110 = scmp.ne.s32.totalorder %s98, %s99
      %p111 = scmp.eq.s32.totalorder %s26, 1
      %p112 = por %p110, %p111
      %p114 = scmp.ne.s32.totalorder %s99, %s113
      %p115 = scmp.eq.s32.totalorder %s26, 0
      %p116 = por %p114, %p115
      %s118 = sadd.s32 %s117, 1
      %p121 = scmp.eq.s32.totalorder %s20, 1
      %p122 = scmp.ne.s32.totalorder %s117, %s119
      %p123 = scmp.eq.s32.totalorder %s20, 0
      %p124 = por %p122, %p123
      %p125 = scmp.ne.s32.totalorder %s117, %s119
      %p126 = scmp.eq.s32.totalorder %s25, 1
      %p127 = por %p125, %p126
      %p128 = scmp.ne.s32.totalorder %s119, %s120
      %p129 = scmp.eq.s32.totalorder %s25, 0
      %p130 = por %p128, %p129
      %p131 = scmp.ne.s32.totalorder %s119, %s120
      %p132 = scmp.eq.s32.totalorder %s26, 1
      %p133 = por %p131, %p132
      %p135 = scmp.ne.s32.totalorder %s120, %s134
      %p136 = scmp.eq.s32.totalorder %s26, 0
      %p137 = por %p135, %p136
      %s139 = sadd.s32 %s138, 1
      %p142 = scmp.eq.s32.totalorder %s20, 1
      %p143 = scmp.ne.s32.totalorder %s138, %s140
      %p144 = scmp.eq.s32.totalorder %s20, 0
      %p145 = por %p143, %p144
      %p146 = scmp.ne.s32.totalorder %s138, %s140
      %p147 = scmp.eq.s32.totalorder %s25, 1
      %p148 = por %p146, %p147
      %p149 = scmp.ne.s32.totalorder %s140, %s141
      %p150 = scmp.eq.s32.totalorder %s25, 0
      %p151 = por %p149, %p150
      %p152 = scmp.ne.s32.totalorder %s140, %s141
      %p153 = scmp.eq.s32.totalorder %s26, 1
      %p154 = por %p152, %p153
      %p156 = scmp.ne.s32.totalorder %s141, %s155
      %p157 = scmp.eq.s32.totalorder %s26, 0
      %p158 = por %p156, %p157
      %s160 = sadd.s32 %s159, 1
      %p163 = scmp.eq.s32.totalorder %s20, 1
      %p164 = scmp.ne.s32.totalorder %s159, %s161
      %p165 = scmp.eq.s32.totalorder %s20, 0
      %p166 = por %p164, %p165
      %p167 = scmp.ne.s32.totalorder %s159, %s161
      %p168 = scmp.eq.s32.totalorder %s25, 1
      %p169 = por %p167, %p168
      %p170 = scmp.ne.s32.totalorder %s161, %s162
      %p171 = scmp.eq.s32.totalorder %s25, 0
      %p172 = por %p170, %p171
      %p173 = scmp.ne.s32.totalorder %s161, %s162
      %p174 = scmp.eq.s32.totalorder %s26, 1
      %p175 = por %p173, %p174
      %p177 = scmp.ne.s32.totalorder %s162, %s176
      %p178 = scmp.eq.s32.totalorder %s26, 0
      %p179 = por %p177, %p178
      %s181 = sadd.s32 %s180, 1
      %p184 = scmp.eq.s32.totalorder %s20, 1
      %p185 = scmp.ne.s32.totalorder %s180, %s182
      %p186 = scmp.eq.s32.totalorder %s20, 0
      %p187 = por %p185, %p186
      %p188 = scmp.ne.s32.totalorder %s180, %s182
      %p189 = scmp.eq.s32.totalorder %s25, 1
      %p190 = por %p188, %p189
      %p191 = scmp.ne.s32.totalorder %s182, %s183
      %p192 = scmp.eq.s32.totalorder %s25, 0
      %p193 = por %p191, %p192
      %p194 = scmp.ne.s32.totalorder %s182, %s183
      %p195 = scmp.eq.s32.totalorder %s26, 1
      %p196 = por %p194, %p195
      %p198 = scmp.ne.s32.totalorder %s183, %s197
      %p199 = scmp.eq.s32.totalorder %s26, 0
      %p200 = por %p198, %p199
      %s202 = sadd.s32 %s201, 1
      %p205 = scmp.eq.s32.totalorder %s20, 1
      %p206 = scmp.ne.s32.totalorder %s201, %s203
      %p207 = scmp.eq.s32.totalorder %s20, 0
      %p208 = por %p206, %p207
      %p209 = scmp.ne.s32.totalorder %s201, %s203
      %p210 = scmp.eq.s32.totalorder %s25, 1
      %p211 = por %p209, %p210
      %p212 = scmp.ne.s32.totalorder %s203, %s204
      %p213 = scmp.eq.s32.totalorder %s25, 0
      %p214 = por %p212, %p213
      %p215 = scmp.ne.s32.totalorder %s203, %s204
      %p216 = scmp.eq.s32.totalorder %s26, 1
      %p217 = por %p215, %p216
      %p219 = scmp.ne.s32.totalorder %s204, %s218
      %p220 = scmp.eq.s32.totalorder %s26, 0
      %p221 = por %p219, %p220
      %s223 = sadd.s32 %s222, 1
      %p226 = scmp.eq.s32.totalorder %s20, 1
      %p227 = scmp.ne.s32.totalorder %s222, %s224
      %p228 = scmp.eq.s32.totalorder %s20, 0
      %p229 = por %p227, %p228
      %p230 = scmp.ne.s32.totalorder %s222, %s224
      %p231 = scmp.eq.s32.totalorder %s25, 1
      %p232 = por %p230, %p231
      %p233 = scmp.ne.s32.totalorder %s224, %s225
      %p234 = scmp.eq.s32.totalorder %s25, 0
      %p235 = por %p233, %p234
      %p236 = scmp.ne.s32.totalorder %s224, %s225
      %p237 = scmp.eq.s32.totalorder %s26, 1
      %p238 = por %p236, %p237
      %p240 = scmp.ne.s32.totalorder %s225, %s239
      %p241 = scmp.eq.s32.totalorder %s26, 0
      %p242 = por %p240, %p241
      %s244 = sadd.s32 %s243, 1
      %p247 = scmp.eq.s32.totalorder %s20, 1
      %p248 = scmp.ne.s32.totalorder %s243, %s245
      %p249 = scmp.eq.s32.totalorder %s20, 0
      %p250 = por %p248, %p249
      %p251 = scmp.ne.s32.totalorder %s243, %s245
      %p252 = scmp.eq.s32.totalorder %s25, 1
      %p253 = por %p251, %p252
      %p254 = scmp.ne.s32.totalorder %s245, %s246
      %p255 = scmp.eq.s32.totalorder %s25, 0
      %p256 = por %p254, %p255
      %p257 = scmp.ne.s32.totalorder %s245, %s246
      %p258 = scmp.eq.s32.totalorder %s26, 1
      %p259 = por %p257, %p258
      %p261 = scmp.ne.s32.totalorder %s246, %s260
      %p262 = scmp.eq.s32.totalorder %s26, 0
      %p263 = por %p261, %p262
      %s264 = ssub.s32 %s20, %s27
      %p265 = scmp.eq.s32.totalorder %s264, 0
      %s267 = sadd.s32 %s266, 1
      %s268 = scalar_select %p265, %s266, %s267
      %p271 = pneg %p265
      %p272 = scmp.eq.s32.totalorder %s20, 1
      %p273 = por %p271, %p272
      %p274 = scmp.ne.s32.totalorder %s266, %s269
      %p275 = scmp.eq.s32.totalorder %s20, 0
      %p276 = por %p274, %p275
      %p277 = scmp.ne.s32.totalorder %s266, %s269
      %p278 = scmp.eq.s32.totalorder %s25, 1
      %p279 = por %p277, %p278
      %p280 = scmp.ne.s32.totalorder %s269, %s270
      %p281 = scmp.eq.s32.totalorder %s25, 0
      %p282 = por %p280, %p281
      %p283 = scmp.ne.s32.totalorder %s269, %s270
      %p284 = scmp.eq.s32.totalorder %s26, 1
      %p285 = por %p283, %p284
      %p287 = scmp.ne.s32.totalorder %s270, %s286
      %p288 = scmp.eq.s32.totalorder %s26, 0
      %p289 = por %p287, %p288
      %p290 = scmp.le.s32.totalorder 1, %s20
      %p291 = scmp.lt.s32.totalorder %s20, 3
      %p292 = pnand %p290, %p291
      %p293 = pneg %p292
      // Predicated region
      $region9: #{se_attention_forward.1} parent=5 // pred_check
        _
      $region10: #{se_attention_forward.1} parent=5 // pred_check_branch
        %295 = sbr.rel (%p292) target = $region12
      $region11: #{se_attention_forward.1} parent=5 // pred_region
        %s296 = ssub.s32 %s20, 1
        // Predicated region
        $region13: #{se_attention_forward.1} parent=11 // pred_check
          %p297 = pneg %p67
        $region14: #{se_attention_forward.1} parent=11 // pred_check_branch
          %299 = sbr.rel (%p297) target = $region16
        $region15: #{se_attention_forward.1} parent=11 // pred_region
          _
        $region16: #{se_attention_forward.1} parent=11 // pred_fallthru
          _
        // Predicated region
        $region17: #{se_attention_forward.1} parent=11 // pred_check
          %p300 = pneg %p88
        $region18: #{se_attention_forward.1} parent=11 // pred_check_branch
          %302 = sbr.rel (%p300) target = $region20
        $region19: #{se_attention_forward.1} parent=11 // pred_region
          _
        $region20: #{se_attention_forward.1} parent=11 // pred_fallthru
          _
        // Predicated region
        $region21: #{se_attention_forward.1} parent=11 // pred_check
          %p303 = pneg %p109
        $region22: #{se_attention_forward.1} parent=11 // pred_check_branch
          %305 = sbr.rel (%p303) target = $region24
        $region23: #{se_attention_forward.1} parent=11 // pred_region
          _
        $region24: #{se_attention_forward.1} parent=11 // pred_fallthru
          _
        // Predicated region
        $region25: #{se_attention_forward.1} parent=11 // pred_check
          %p306 = pneg %p130
        $region26: #{se_attention_forward.1} parent=11 // pred_check_branch
          %308 = sbr.rel (%p306) target = $region28
        $region27: #{se_attention_forward.1} parent=11 // pred_region
          _
        $region28: #{se_attention_forward.1} parent=11 // pred_fallthru
          _
        // Predicated region
        $region29: #{se_attention_forward.1} parent=11 // pred_check
          %p309 = pneg %p151
        $region30: #{se_attention_forward.1} parent=11 // pred_check_branch
          %311 = sbr.rel (%p309) target = $region32
        $region31: #{se_attention_forward.1} parent=11 // pred_region
          _
        $region32: #{se_attention_forward.1} parent=11 // pred_fallthru
          _
        // Predicated region
        $region33: #{se_attention_forward.1} parent=11 // pred_check
          %p312 = pneg %p172
        $region34: #{se_attention_forward.1} parent=11 // pred_check_branch
          %314 = sbr.rel (%p312) target = $region36
        $region35: #{se_attention_forward.1} parent=11 // pred_region
          _
        $region36: #{se_attention_forward.1} parent=11 // pred_fallthru
          _
        // Predicated region
        $region37: #{se_attention_forward.1} parent=11 // pred_check
          %p315 = pneg %p193
        $region38: #{se_attention_forward.1} parent=11 // pred_check_branch
          %317 = sbr.rel (%p315) target = $region40
        $region39: #{se_attention_forward.1} parent=11 // pred_region
          _
        $region40: #{se_attention_forward.1} parent=11 // pred_fallthru
          _
        // Predicated region
        $region41: #{se_attention_forward.1} parent=11 // pred_check
          %p318 = pneg %p214
        $region42: #{se_attention_forward.1} parent=11 // pred_check_branch
          %320 = sbr.rel (%p318) target = $region44
        $region43: #{se_attention_forward.1} parent=11 // pred_region
          _
        $region44: #{se_attention_forward.1} parent=11 // pred_fallthru
          _
        // Predicated region
        $region45: #{se_attention_forward.1} parent=11 // pred_check
          %p321 = pneg %p235
        $region46: #{se_attention_forward.1} parent=11 // pred_check_branch
          %323 = sbr.rel (%p321) target = $region48
        $region47: #{se_attention_forward.1} parent=11 // pred_region
          _
        $region48: #{se_attention_forward.1} parent=11 // pred_fallthru
          _
        // Predicated region
        $region49: #{se_attention_forward.1} parent=11 // pred_check
          %p324 = pneg %p256
        $region50: #{se_attention_forward.1} parent=11 // pred_check_branch
          %326 = sbr.rel (%p324) target = $region52
        $region51: #{se_attention_forward.1} parent=11 // pred_region
          _
        $region52: #{se_attention_forward.1} parent=11 // pred_fallthru
          _
      $region12: #{se_attention_forward.1} parent=5 // pred_fallthru
        _
      %p327 = scmp.lt.s32.totalorder %s20, 2
      // Predicated region
      $region53: #{se_attention_forward.1} parent=5 // pred_check
        %p328 = pneg %p327
      $region54: #{se_attention_forward.1} parent=5 // pred_check_branch
        %330 = sbr.rel (%p328) target = $region56
      $region55: #{se_attention_forward.1} parent=5 // pred_region
        // Predicated region
        $region57: #{se_attention_forward.1} parent=55 // pred_check
          %p331 = pneg %p40
        $region58: #{se_attention_forward.1} parent=55 // pred_check_branch
          %333 = sbr.rel (%p331) target = $region60
        $region59: #{se_attention_forward.1} parent=55 // pred_region
          %s334 = smul.u32 4, %s20
          %p335 = scmp.lt.s32.totalorder %s334, 7
          %s336 = scalar_select %p335, %s334, 7
          %s337 = smul.addr %s336, 8
          %s338 = smul.addr %s337, 8
          %s339 = scalar_lea.vmem %s0, %s338
          %s340 = smul.u32 4, %s20
        $region60: #{se_attention_forward.1} parent=55 // pred_fallthru
          _
      $region56: #{se_attention_forward.1} parent=5 // pred_fallthru
        _
      %p341 = scmp.le.s32.totalorder 1, %s20
      %p342 = scmp.lt.s32.totalorder %s20, 3
      %p343 = pnand %p341, %p342
      %p344 = pneg %p343
      // Predicated region
      $region61: #{se_attention_forward.1} parent=5 // pred_check
        _
      $region62: #{se_attention_forward.1} parent=5 // pred_check_branch
        %346 = sbr.rel (%p343) target = $region64
      $region63: #{se_attention_forward.1} parent=5 // pred_region
        %s347 = ssub.s32 %s20, 1
        %s348 = smul.u32 4, %s25
        %p349 = scmp.lt.s32.totalorder %s348, 7
        %s350 = scalar_select %p349, %s348, 7
        %s351 = smul.addr %s350, 8
        %s352 = smul.addr %s351, 8
        %s353 = scalar_lea.vmem %s0, %s352
        %p354 = pneg %p46
        %p355 = pneg %p43
        %p356 = pneg %p67
        %p357 = pneg %p64
        %p358 = pneg %p88
        %p359 = pneg %p85
        %p360 = pneg %p109
        %p361 = pneg %p106
        %p362 = pneg %p130
        %p363 = pneg %p127
        %p364 = pneg %p151
        %p365 = pneg %p148
        %p366 = pneg %p172
        %p367 = pneg %p169
        %p368 = pneg %p193
        %p369 = pneg %p190
        %p370 = pneg %p214
        %p371 = pneg %p211
        %p372 = pneg %p235
        %p373 = pneg %p232
        %p374 = pneg %p256
        %p375 = pneg %p253
        %p376 = pneg %p282
        %p377 = pneg %p279
        %s378 = sand.u32 %s269, 1
        %s379 = scalar_lea.sflag [#allocation4], %s378
        %s380 = sand.u32 %s269, 1
        %s381 = smul.addr %s380, 256
        %s382 = scalar_lea.vmem [#allocation3], %s381
        %s383 = smul.u32 4, %s25
        %p384 = scmp.lt.s32.totalorder %s383, 7
        %s385 = scalar_select %p384, %s383, 7
        %s386 = smul.addr %s385, 8
        %s387 = smul.addr %s386, 8
        %s388 = scalar_lea.vmem %s0, %s387
        %s389 = smul.u32 4, %s25
        %s390 = smul.u32 4, %s25
        %391 = vst [vmem:[#allocation2] sm:$0xff] 0.0
        %392 = vst [vmem:[#allocation2 + $0x8] sm:$0x3] 0.0
        %393 = vst [vmem:[#allocation2 + $0x10] sm:$0xff] 0.0
        %394 = vst [vmem:[#allocation2 + $0x18] sm:$0x3] 0.0
        %395 = vst [vmem:[#allocation2 + $0x20] sm:$0xff] 0.0
        %396 = vst [vmem:[#allocation2 + $0x28] sm:$0x3] 0.0
        %397 = vst [vmem:[#allocation2 + $0x30] sm:$0xff] 0.0
        %398 = vst [vmem:[#allocation2 + $0x38] sm:$0x3] 0.0
        %399 = vst [vmem:[#allocation2 + $0x40] sm:$0xff] 0.0
        %400 = vst [vmem:[#allocation2 + $0x48] sm:$0x3] 0.0
        %401 = vst [vmem:[#allocation2 + $0x50] sm:$0xff] 0.0
        %402 = vst [vmem:[#allocation2 + $0x58] sm:$0x3] 0.0
        %403 = vst [vmem:[#allocation2 + $0x60] sm:$0xff] 0.0
        %404 = vst [vmem:[#allocation2 + $0x68] sm:$0x3] 0.0
        %405 = vst [vmem:[#allocation2 + $0x70] sm:$0xff] 0.0
        %406 = vst [vmem:[#allocation2 + $0x78] sm:$0x3] 0.0
        %407 = vst [vmem:[#allocation2 + $0x80] sm:$0xff] 0.0
        %408 = vst [vmem:[#allocation2 + $0x88] sm:$0x3] 0.0
        %409 = vst [vmem:[#allocation2 + $0x90] sm:$0xff] 0.0
        %410 = vst [vmem:[#allocation2 + $0x98] sm:$0x3] 0.0
        %411 = vst [vmem:[#allocation2 + $0xa0] sm:$0xff] 0.0
        %412 = vst [vmem:[#allocation2 + $0xa8] sm:$0x3] 0.0
        %413 = vst [vmem:[#allocation2 + $0xb0] sm:$0xff] 0.0
        %414 = vst [vmem:[#allocation2 + $0xb8] sm:$0x3] 0.0
        %415 = vst [vmem:[#allocation2 + $0xc0] sm:$0xff] 0.0
        %416 = vst [vmem:[#allocation2 + $0xc8] sm:$0x3] 0.0
        %417 = vst [vmem:[#allocation2 + $0xd0] sm:$0xff] 0.0
        %418 = vst [vmem:[#allocation2 + $0xd8] sm:$0x3] 0.0
        %419 = vst [vmem:[#allocation2 + $0xe0] sm:$0xff] 0.0
        %420 = vst [vmem:[#allocation2 + $0xe8] sm:$0x3] 0.0
        %421 = vst [vmem:[#allocation2 + $0xf0] sm:$0xff] 0.0
        %422 = vst [vmem:[#allocation2 + $0xf8] sm:$0x3] 0.0
        %423 = vst [vmem:[#allocation2 + $0x100] sm:$0xff] 0.0
        %424 = vst [vmem:[#allocation2 + $0x108] sm:$0x3] 0.0
        %425 = vst [vmem:[#allocation2 + $0x110] sm:$0xff] 0.0
        %426 = vst [vmem:[#allocation2 + $0x118] sm:$0x3] 0.0
        %427 = vst [vmem:[#allocation2 + $0x120] sm:$0xff] 0.0
        %428 = vst [vmem:[#allocation2 + $0x128] sm:$0x3] 0.0
        %429 = vst [vmem:[#allocation2 + $0x130] sm:$0xff] 0.0
        %430 = vst [vmem:[#allocation2 + $0x138] sm:$0x3] 0.0
        %431 = vst [vmem:[#allocation2 + $0x140] sm:$0xff] 0.0
        %432 = vst [vmem:[#allocation2 + $0x148] sm:$0x3] 0.0
        %433 = vst [vmem:[#allocation2 + $0x150] sm:$0xff] 0.0
        %434 = vst [vmem:[#allocation2 + $0x158] sm:$0x3] 0.0
        %435 = vst [vmem:[#allocation2 + $0x160] sm:$0xff] 0.0
        %436 = vst [vmem:[#allocation2 + $0x168] sm:$0x3] 0.0
        %437 = vst [vmem:[#allocation2 + $0x170] sm:$0xff] 0.0
        %438 = vst [vmem:[#allocation2 + $0x178] sm:$0x3] 0.0
        %439 = vst [vmem:[#allocation2 + $0x180] sm:$0xff] 0.0
        %440 = vst [vmem:[#allocation2 + $0x188] sm:$0x3] 0.0
        %441 = vst [vmem:[#allocation2 + $0x190] sm:$0xff] 0.0
        %442 = vst [vmem:[#allocation2 + $0x198] sm:$0x3] 0.0
        %443 = vst [vmem:[#allocation2 + $0x1a0] sm:$0xff] 0.0
        %444 = vst [vmem:[#allocation2 + $0x1a8] sm:$0x3] 0.0
        %445 = vst [vmem:[#allocation2 + $0x1b0] sm:$0xff] 0.0
        %446 = vst [vmem:[#allocation2 + $0x1b8] sm:$0x3] 0.0
        %447 = vst [vmem:[#allocation2 + $0x1c0] sm:$0xff] 0.0
        %448 = vst [vmem:[#allocation2 + $0x1c8] sm:$0x3] 0.0
        %449 = vst [vmem:[#allocation2 + $0x1d0] sm:$0xff] 0.0
        %450 = vst [vmem:[#allocation2 + $0x1d8] sm:$0x3] 0.0
        %451 = vst [vmem:[#allocation2 + $0x1e0] sm:$0xff] 0.0
        %452 = vst [vmem:[#allocation2 + $0x1e8] sm:$0x3] 0.0
        %453 = vst [vmem:[#allocation2 + $0x1f0] sm:$0xff] 0.0
        %454 = vst [vmem:[#allocation2 + $0x1f8] sm:$0x3] 0.0
        %455 = vst [vmem:[#allocation2 + $0x200] sm:$0xff] 0.0
        %456 = vst [vmem:[#allocation2 + $0x208] sm:$0x3] 0.0
        %457 = vst [vmem:[#allocation2 + $0x210] sm:$0xff] 0.0
        %458 = vst [vmem:[#allocation2 + $0x218] sm:$0x3] 0.0
        %459 = vst [vmem:[#allocation2 + $0x220] sm:$0xff] 0.0
        %460 = vst [vmem:[#allocation2 + $0x228] sm:$0x3] 0.0
        %461 = vst [vmem:[#allocation2 + $0x230] sm:$0xff] 0.0
        %462 = vst [vmem:[#allocation2 + $0x238] sm:$0x3] 0.0
        %463 = vst [vmem:[#allocation2 + $0x240] sm:$0xff] 0.0
        %464 = vst [vmem:[#allocation2 + $0x248] sm:$0x3] 0.0
        %465 = vst [vmem:[#allocation2 + $0x250] sm:$0xff] 0.0
        %466 = vst [vmem:[#allocation2 + $0x258] sm:$0x3] 0.0
        %467 = vst [vmem:[#allocation2 + $0x260] sm:$0xff] 0.0
        %468 = vst [vmem:[#allocation2 + $0x268] sm:$0x3] 0.0
        %469 = vst [vmem:[#allocation2 + $0x270] sm:$0xff] 0.0
        %470 = vst [vmem:[#allocation2 + $0x278] sm:$0x3] 0.0
        %v471 = vld [vmem:[%s388] sm:$0xff]
        %v472 = vld [vmem:[%s388 + $0x8] sm:$0xff]
        %v473 = vld [vmem:[%s388 + $0x10] sm:$0xff]
        %v474 = vld [vmem:[%s388 + $0x18] sm:$0xff]
        %v475 = vld [vmem:[%s388 + $0x20] sm:$0xff]
        %v476 = vld [vmem:[%s388 + $0x28] sm:$0xff]
        %v477 = vld [vmem:[%s388 + $0x30] sm:$0xff]
        %v478 = vld [vmem:[%s388 + $0x38] sm:$0xff]
        %v479 = vld [vmem:[%s388 + $0x40] sm:$0xff]
        %v480 = vld [vmem:[%s388 + $0x48] sm:$0xff]
        %v481 = vld [vmem:[%s388 + $0x50] sm:$0xff]
        %v482 = vld [vmem:[%s388 + $0x58] sm:$0xff]
        %v483 = vld [vmem:[%s388 + $0x60] sm:$0xff]
        %v484 = vld [vmem:[%s388 + $0x68] sm:$0xff]
        %v485 = vld [vmem:[%s388 + $0x70] sm:$0xff]
        %v486 = vld [vmem:[%s388 + $0x78] sm:$0xff]
        %v487 = vld [vmem:[%s388 + $0x80] sm:$0xff]
        %v488 = vld [vmem:[%s388 + $0x88] sm:$0xff]
        %v489 = vld [vmem:[%s388 + $0x90] sm:$0xff]
        %v490 = vld [vmem:[%s388 + $0x98] sm:$0xff]
        %v491 = vld [vmem:[%s388 + $0xa0] sm:$0xff]
        %v492 = vld [vmem:[%s388 + $0xa8] sm:$0xff]
        %v493 = vld [vmem:[%s388 + $0xb0] sm:$0xff]
        %v494 = vld [vmem:[%s388 + $0xb8] sm:$0xff]
        %v495 = vld [vmem:[%s388 + $0xc0] sm:$0xff]
        %v496 = vld [vmem:[%s388 + $0xc8] sm:$0xff]
        %v497 = vld [vmem:[%s388 + $0xd0] sm:$0xff]
        %v498 = vld [vmem:[%s388 + $0xd8] sm:$0xff]
        %v499 = vld [vmem:[%s388 + $0xe0] sm:$0xff]
        %v500 = vld [vmem:[%s388 + $0xe8] sm:$0xff]
        %v501 = vld [vmem:[%s388 + $0xf0] sm:$0xff]
        %v502 = vld [vmem:[%s388 + $0xf8] sm:$0xff]
        %s503 = scalar_lea.vmem [#allocation2], 16
        %vm504 = vcmask 523264
        %505 = vst.msk [vmem:[%s503 + $0x1] sm:$0xff] %vm504, %v471
        %506 = vst.msk [vmem:[%s503 + $0x11] sm:$0xff] %vm504, %v472
        %507 = vst.msk [vmem:[%s503 + $0x21] sm:$0xff] %vm504, %v473
        %508 = vst.msk [vmem:[%s503 + $0x31] sm:$0xff] %vm504, %v474
        %509 = vst.msk [vmem:[%s503 + $0x41] sm:$0xff] %vm504, %v475
        %510 = vst.msk [vmem:[%s503 + $0x51] sm:$0xff] %vm504, %v476
        %511 = vst.msk [vmem:[%s503 + $0x61] sm:$0xff] %vm504, %v477
        %512 = vst.msk [vmem:[%s503 + $0x71] sm:$0xff] %vm504, %v478
        %513 = vst.msk [vmem:[%s503 + $0xa1] sm:$0xff] %vm504, %v479
        %514 = vst.msk [vmem:[%s503 + $0xb1] sm:$0xff] %vm504, %v480
        %515 = vst.msk [vmem:[%s503 + $0xc1] sm:$0xff] %vm504, %v481
        %516 = vst.msk [vmem:[%s503 + $0xd1] sm:$0xff] %vm504, %v482
        %517 = vst.msk [vmem:[%s503 + $0xe1] sm:$0xff] %vm504, %v483
        %518 = vst.msk [vmem:[%s503 + $0xf1] sm:$0xff] %vm504, %v484
        %519 = vst.msk [vmem:[%s503 + $0x101] sm:$0xff] %vm504, %v485
        %520 = vst.msk [vmem:[%s503 + $0x111] sm:$0xff] %vm504, %v486
        %521 = vst.msk [vmem:[%s503 + $0x141] sm:$0xff] %vm504, %v487
        %522 = vst.msk [vmem:[%s503 + $0x151] sm:$0xff] %vm504, %v488
        %523 = vst.msk [vmem:[%s503 + $0x161] sm:$0xff] %vm504, %v489
        %524 = vst.msk [vmem:[%s503 + $0x171] sm:$0xff] %vm504, %v490
        %525 = vst.msk [vmem:[%s503 + $0x181] sm:$0xff] %vm504, %v491
        %526 = vst.msk [vmem:[%s503 + $0x191] sm:$0xff] %vm504, %v492
        %527 = vst.msk [vmem:[%s503 + $0x1a1] sm:$0xff] %vm504, %v493
        %528 = vst.msk [vmem:[%s503 + $0x1b1] sm:$0xff] %vm504, %v494
        %529 = vst.msk [vmem:[%s503 + $0x1e1] sm:$0xff] %vm504, %v495
        %530 = vst.msk [vmem:[%s503 + $0x1f1] sm:$0xff] %vm504, %v496
        %531 = vst.msk [vmem:[%s503 + $0x201] sm:$0xff] %vm504, %v497
        %532 = vst.msk [vmem:[%s503 + $0x211] sm:$0xff] %vm504, %v498
        %533 = vst.msk [vmem:[%s503 + $0x221] sm:$0xff] %vm504, %v499
        %534 = vst.msk [vmem:[%s503 + $0x231] sm:$0xff] %vm504, %v500
        %535 = vst.msk [vmem:[%s503 + $0x241] sm:$0xff] %vm504, %v501
        %536 = vst.msk [vmem:[%s503 + $0x251] sm:$0xff] %vm504, %v502
        %v537 = vld [vmem:[#allocation2] sm:$0xff]
        %v538 = vld [vmem:[#allocation2 + $0x10] sm:$0xff]
        %v539 = vld [vmem:[#allocation2 + $0x20] sm:$0xff]
        %v540 = vld [vmem:[#allocation2 + $0x30] sm:$0xff]
        %v541 = vld [vmem:[#allocation2 + $0x40] sm:$0xff]
        %v542 = vld [vmem:[#allocation2 + $0x50] sm:$0xff]
        %v543 = vld [vmem:[#allocation2 + $0x60] sm:$0xff]
        %v544 = vld [vmem:[#allocation2 + $0x70] sm:$0xff]
        %v545 = vld [vmem:[#allocation2 + $0xa0] sm:$0xff]
        %v546 = vld [vmem:[#allocation2 + $0xb0] sm:$0xff]
        %v547 = vld [vmem:[#allocation2 + $0xc0] sm:$0xff]
        %v548 = vld [vmem:[#allocation2 + $0xd0] sm:$0xff]
        %v549 = vld [vmem:[#allocation2 + $0xe0] sm:$0xff]
        %v550 = vld [vmem:[#allocation2 + $0xf0] sm:$0xff]
        %v551 = vld [vmem:[#allocation2 + $0x100] sm:$0xff]
        %v552 = vld [vmem:[#allocation2 + $0x110] sm:$0xff]
        %v553 = vld [vmem:[#allocation2 + $0x140] sm:$0xff]
        %v554 = vld [vmem:[#allocation2 + $0x150] sm:$0xff]
        %v555 = vld [vmem:[#allocation2 + $0x160] sm:$0xff]
        %v556 = vld [vmem:[#allocation2 + $0x170] sm:$0xff]
        %v557 = vld [vmem:[#allocation2 + $0x180] sm:$0xff]
        %v558 = vld [vmem:[#allocation2 + $0x190] sm:$0xff]
        %v559 = vld [vmem:[#allocation2 + $0x1a0] sm:$0xff]
        %v560 = vld [vmem:[#allocation2 + $0x1b0] sm:$0xff]
        %v561 = vld [vmem:[#allocation2 + $0x1e0] sm:$0xff]
        %v562 = vld [vmem:[#allocation2 + $0x1f0] sm:$0xff]
        %v563 = vld [vmem:[#allocation2 + $0x200] sm:$0xff]
        %v564 = vld [vmem:[#allocation2 + $0x210] sm:$0xff]
        %v565 = vld [vmem:[#allocation2 + $0x220] sm:$0xff]
        %v566 = vld [vmem:[#allocation2 + $0x230] sm:$0xff]
        %v567 = vld [vmem:[#allocation2 + $0x240] sm:$0xff]
        %v568 = vld [vmem:[#allocation2 + $0x250] sm:$0xff]
        %v569 = vld [vmem:[#allocation2 + $0x1] sm:$0xff]
        %v570 = vld [vmem:[#allocation2 + $0x11] sm:$0xff]
        %v571 = vld [vmem:[#allocation2 + $0x21] sm:$0xff]
        %v572 = vld [vmem:[#allocation2 + $0x31] sm:$0xff]
        %v573 = vld [vmem:[#allocation2 + $0x41] sm:$0xff]
        %v574 = vld [vmem:[#allocation2 + $0x51] sm:$0xff]
        %v575 = vld [vmem:[#allocation2 + $0x61] sm:$0xff]
        %v576 = vld [vmem:[#allocation2 + $0x71] sm:$0xff]
        %v577 = vld [vmem:[#allocation2 + $0xa1] sm:$0xff]
        %v578 = vld [vmem:[#allocation2 + $0xb1] sm:$0xff]
        %v579 = vld [vmem:[#allocation2 + $0xc1] sm:$0xff]
        %v580 = vld [vmem:[#allocation2 + $0xd1] sm:$0xff]
        %v581 = vld [vmem:[#allocation2 + $0xe1] sm:$0xff]
        %v582 = vld [vmem:[#allocation2 + $0xf1] sm:$0xff]
        %v583 = vld [vmem:[#allocation2 + $0x101] sm:$0xff]
        %v584 = vld [vmem:[#allocation2 + $0x111] sm:$0xff]
        %v585 = vld [vmem:[#allocation2 + $0x141] sm:$0xff]
        %v586 = vld [vmem:[#allocation2 + $0x151] sm:$0xff]
        %v587 = vld [vmem:[#allocation2 + $0x161] sm:$0xff]
        %v588 = vld [vmem:[#allocation2 + $0x171] sm:$0xff]
        %v589 = vld [vmem:[#allocation2 + $0x181] sm:$0xff]
        %v590 = vld [vmem:[#allocation2 + $0x191] sm:$0xff]
        %v591 = vld [vmem:[#allocation2 + $0x1a1] sm:$0xff]
        %v592 = vld [vmem:[#allocation2 + $0x1b1] sm:$0xff]
        %v593 = vld [vmem:[#allocation2 + $0x1e1] sm:$0xff]
        %v594 = vld [vmem:[#allocation2 + $0x1f1] sm:$0xff]
        %v595 = vld [vmem:[#allocation2 + $0x201] sm:$0xff]
        %v596 = vld [vmem:[#allocation2 + $0x211] sm:$0xff]
        %v597 = vld [vmem:[#allocation2 + $0x221] sm:$0xff]
        %v598 = vld [vmem:[#allocation2 + $0x231] sm:$0xff]
        %v599 = vld [vmem:[#allocation2 + $0x241] sm:$0xff]
        %v600 = vld [vmem:[#allocation2 + $0x251] sm:$0xff]
        %v601 = vld [vmem:[#allocation2 + $0x2] sm:$0xff]
        %v602 = vld [vmem:[#allocation2 + $0x12] sm:$0xff]
        %v603 = vld [vmem:[#allocation2 + $0x22] sm:$0xff]
        %v604 = vld [vmem:[#allocation2 + $0x32] sm:$0xff]
        %v605 = vld [vmem:[#allocation2 + $0x42] sm:$0xff]
        %v606 = vld [vmem:[#allocation2 + $0x52] sm:$0xff]
        %v607 = vld [vmem:[#allocation2 + $0x62] sm:$0xff]
        %v608 = vld [vmem:[#allocation2 + $0x72] sm:$0xff]
        %v609 = vld [vmem:[#allocation2 + $0xa2] sm:$0xff]
        %v610 = vld [vmem:[#allocation2 + $0xb2] sm:$0xff]
        %v611 = vld [vmem:[#allocation2 + $0xc2] sm:$0xff]
        %v612 = vld [vmem:[#allocation2 + $0xd2] sm:$0xff]
        %v613 = vld [vmem:[#allocation2 + $0xe2] sm:$0xff]
        %v614 = vld [vmem:[#allocation2 + $0xf2] sm:$0xff]
        %v615 = vld [vmem:[#allocation2 + $0x102] sm:$0xff]
        %v616 = vld [vmem:[#allocation2 + $0x112] sm:$0xff]
        %v617 = vld [vmem:[#allocation2 + $0x142] sm:$0xff]
        %v618 = vld [vmem:[#allocation2 + $0x152] sm:$0xff]
        %v619 = vld [vmem:[#allocation2 + $0x162] sm:$0xff]
        %v620 = vld [vmem:[#allocation2 + $0x172] sm:$0xff]
        %v621 = vld [vmem:[#allocation2 + $0x182] sm:$0xff]
        %v622 = vld [vmem:[#allocation2 + $0x192] sm:$0xff]
        %v623 = vld [vmem:[#allocation2 + $0x1a2] sm:$0xff]
        %v624 = vld [vmem:[#allocation2 + $0x1b2] sm:$0xff]
        %v625 = vld [vmem:[#allocation2 + $0x1e2] sm:$0xff]
        %v626 = vld [vmem:[#allocation2 + $0x1f2] sm:$0xff]
        %v627 = vld [vmem:[#allocation2 + $0x202] sm:$0xff]
        %v628 = vld [vmem:[#allocation2 + $0x212] sm:$0xff]
        %v629 = vld [vmem:[#allocation2 + $0x222] sm:$0xff]
        %v630 = vld [vmem:[#allocation2 + $0x232] sm:$0xff]
        %v631 = vld [vmem:[#allocation2 + $0x242] sm:$0xff]
        %v632 = vld [vmem:[#allocation2 + $0x252] sm:$0xff]
        %v633 = vld [vmem:[%s503] sm:$0xff]
        %v634 = vld [vmem:[%s503 + $0x10] sm:$0xff]
        %v635 = vld [vmem:[%s503 + $0x20] sm:$0xff]
        %v636 = vld [vmem:[%s503 + $0x30] sm:$0xff]
        %v637 = vld [vmem:[%s503 + $0x40] sm:$0xff]
        %v638 = vld [vmem:[%s503 + $0x50] sm:$0xff]
        %v639 = vld [vmem:[%s503 + $0x60] sm:$0xff]
        %v640 = vld [vmem:[%s503 + $0x70] sm:$0xff]
        %v641 = vld [vmem:[%s503 + $0xa0] sm:$0xff]
        %v642 = vld [vmem:[%s503 + $0xb0] sm:$0xff]
        %v643 = vld [vmem:[%s503 + $0xc0] sm:$0xff]
        %v644 = vld [vmem:[%s503 + $0xd0] sm:$0xff]
        %v645 = vld [vmem:[%s503 + $0xe0] sm:$0xff]
        %v646 = vld [vmem:[%s503 + $0xf0] sm:$0xff]
        %v647 = vld [vmem:[%s503 + $0x100] sm:$0xff]
        %v648 = vld [vmem:[%s503 + $0x110] sm:$0xff]
        %v649 = vld [vmem:[%s503 + $0x140] sm:$0xff]
        %v650 = vld [vmem:[%s503 + $0x150] sm:$0xff]
        %v651 = vld [vmem:[%s503 + $0x160] sm:$0xff]
        %v652 = vld [vmem:[%s503 + $0x170] sm:$0xff]
        %v653 = vld [vmem:[%s503 + $0x180] sm:$0xff]
        %v654 = vld [vmem:[%s503 + $0x190] sm:$0xff]
        %v655 = vld [vmem:[%s503 + $0x1a0] sm:$0xff]
        %v656 = vld [vmem:[%s503 + $0x1b0] sm:$0xff]
        %v657 = vld [vmem:[%s503 + $0x1e0] sm:$0xff]
        %v658 = vld [vmem:[%s503 + $0x1f0] sm:$0xff]
        %v659 = vld [vmem:[%s503 + $0x200] sm:$0xff]
        %v660 = vld [vmem:[%s503 + $0x210] sm:$0xff]
        %v661 = vld [vmem:[%s503 + $0x220] sm:$0xff]
        %v662 = vld [vmem:[%s503 + $0x230] sm:$0xff]
        %v663 = vld [vmem:[%s503 + $0x240] sm:$0xff]
        %v664 = vld [vmem:[%s503 + $0x250] sm:$0xff]
        %v665 = vld [vmem:[%s503 + $0x1] sm:$0xff]
        %v666 = vld [vmem:[%s503 + $0x11] sm:$0xff]
        %v667 = vld [vmem:[%s503 + $0x21] sm:$0xff]
        %v668 = vld [vmem:[%s503 + $0x31] sm:$0xff]
        %v669 = vld [vmem:[%s503 + $0x41] sm:$0xff]
        %v670 = vld [vmem:[%s503 + $0x51] sm:$0xff]
        %v671 = vld [vmem:[%s503 + $0x61] sm:$0xff]
        %v672 = vld [vmem:[%s503 + $0x71] sm:$0xff]
        %v673 = vld [vmem:[%s503 + $0xa1] sm:$0xff]
        %v674 = vld [vmem:[%s503 + $0xb1] sm:$0xff]
        %v675 = vld [vmem:[%s503 + $0xc1] sm:$0xff]
        %v676 = vld [vmem:[%s503 + $0xd1] sm:$0xff]
        %v677 = vld [vmem:[%s503 + $0xe1] sm:$0xff]
        %v678 = vld [vmem:[%s503 + $0xf1] sm:$0xff]
        %v679 = vld [vmem:[%s503 + $0x101] sm:$0xff]
        %v680 = vld [vmem:[%s503 + $0x111] sm:$0xff]
        %v681 = vld [vmem:[%s503 + $0x141] sm:$0xff]
        %v682 = vld [vmem:[%s503 + $0x151] sm:$0xff]
        %v683 = vld [vmem:[%s503 + $0x161] sm:$0xff]
        %v684 = vld [vmem:[%s503 + $0x171] sm:$0xff]
        %v685 = vld [vmem:[%s503 + $0x181] sm:$0xff]
        %v686 = vld [vmem:[%s503 + $0x191] sm:$0xff]
        %v687 = vld [vmem:[%s503 + $0x1a1] sm:$0xff]
        %v688 = vld [vmem:[%s503 + $0x1b1] sm:$0xff]
        %v689 = vld [vmem:[%s503 + $0x1e1] sm:$0xff]
        %v690 = vld [vmem:[%s503 + $0x1f1] sm:$0xff]
        %v691 = vld [vmem:[%s503 + $0x201] sm:$0xff]
        %v692 = vld [vmem:[%s503 + $0x211] sm:$0xff]
        %v693 = vld [vmem:[%s503 + $0x221] sm:$0xff]
        %v694 = vld [vmem:[%s503 + $0x231] sm:$0xff]
        %v695 = vld [vmem:[%s503 + $0x241] sm:$0xff]
        %v696 = vld [vmem:[%s503 + $0x251] sm:$0xff]
        %v697 = vld [vmem:[%s503 + $0x2] sm:$0xff]
        %v698 = vld [vmem:[%s503 + $0x12] sm:$0xff]
        %v699 = vld [vmem:[%s503 + $0x22] sm:$0xff]
        %v700 = vld [vmem:[%s503 + $0x32] sm:$0xff]
        %v701 = vld [vmem:[%s503 + $0x42] sm:$0xff]
        %v702 = vld [vmem:[%s503 + $0x52] sm:$0xff]
        %v703 = vld [vmem:[%s503 + $0x62] sm:$0xff]
        %v704 = vld [vmem:[%s503 + $0x72] sm:$0xff]
        %v705 = vld [vmem:[%s503 + $0xa2] sm:$0xff]
        %v706 = vld [vmem:[%s503 + $0xb2] sm:$0xff]
        %v707 = vld [vmem:[%s503 + $0xc2] sm:$0xff]
        %v708 = vld [vmem:[%s503 + $0xd2] sm:$0xff]
        %v709 = vld [vmem:[%s503 + $0xe2] sm:$0xff]
        %v710 = vld [vmem:[%s503 + $0xf2] sm:$0xff]
        %v711 = vld [vmem:[%s503 + $0x102] sm:$0xff]
        %v712 = vld [vmem:[%s503 + $0x112] sm:$0xff]
        %v713 = vld [vmem:[%s503 + $0x142] sm:$0xff]
        %v714 = vld [vmem:[%s503 + $0x152] sm:$0xff]
        %v715 = vld [vmem:[%s503 + $0x162] sm:$0xff]
        %v716 = vld [vmem:[%s503 + $0x172] sm:$0xff]
        %v717 = vld [vmem:[%s503 + $0x182] sm:$0xff]
        %v718 = vld [vmem:[%s503 + $0x192] sm:$0xff]
        %v719 = vld [vmem:[%s503 + $0x1a2] sm:$0xff]
        %v720 = vld [vmem:[%s503 + $0x1b2] sm:$0xff]
        %v721 = vld [vmem:[%s503 + $0x1e2] sm:$0xff]
        %v722 = vld [vmem:[%s503 + $0x1f2] sm:$0xff]
        %v723 = vld [vmem:[%s503 + $0x202] sm:$0xff]
        %v724 = vld [vmem:[%s503 + $0x212] sm:$0xff]
        %v725 = vld [vmem:[%s503 + $0x222] sm:$0xff]
        %v726 = vld [vmem:[%s503 + $0x232] sm:$0xff]
        %v727 = vld [vmem:[%s503 + $0x242] sm:$0xff]
        %v728 = vld [vmem:[%s503 + $0x252] sm:$0xff]
        %s729 = scalar_lea.vmem [#allocation2], 32
        %v730 = vld [vmem:[%s729] sm:$0xff]
        %v731 = vld [vmem:[%s729 + $0x10] sm:$0xff]
        %v732 = vld [vmem:[%s729 + $0x20] sm:$0xff]
        %v733 = vld [vmem:[%s729 + $0x30] sm:$0xff]
        %v734 = vld [vmem:[%s729 + $0x40] sm:$0xff]
        %v735 = vld [vmem:[%s729 + $0x50] sm:$0xff]
        %v736 = vld [vmem:[%s729 + $0x60] sm:$0xff]
        %v737 = vld [vmem:[%s729 + $0x70] sm:$0xff]
        %v738 = vld [vmem:[%s729 + $0xa0] sm:$0xff]
        %v739 = vld [vmem:[%s729 + $0xb0] sm:$0xff]
        %v740 = vld [vmem:[%s729 + $0xc0] sm:$0xff]
        %v741 = vld [vmem:[%s729 + $0xd0] sm:$0xff]
        %v742 = vld [vmem:[%s729 + $0xe0] sm:$0xff]
        %v743 = vld [vmem:[%s729 + $0xf0] sm:$0xff]
        %v744 = vld [vmem:[%s729 + $0x100] sm:$0xff]
        %v745 = vld [vmem:[%s729 + $0x110] sm:$0xff]
        %v746 = vld [vmem:[%s729 + $0x140] sm:$0xff]
        %v747 = vld [vmem:[%s729 + $0x150] sm:$0xff]
        %v748 = vld [vmem:[%s729 + $0x160] sm:$0xff]
        %v749 = vld [vmem:[%s729 + $0x170] sm:$0xff]
        %v750 = vld [vmem:[%s729 + $0x180] sm:$0xff]
        %v751 = vld [vmem:[%s729 + $0x190] sm:$0xff]
        %v752 = vld [vmem:[%s729 + $0x1a0] sm:$0xff]
        %v753 = vld [vmem:[%s729 + $0x1b0] sm:$0xff]
        %v754 = vld [vmem:[%s729 + $0x1e0] sm:$0xff]
        %v755 = vld [vmem:[%s729 + $0x1f0] sm:$0xff]
        %v756 = vld [vmem:[%s729 + $0x200] sm:$0xff]
        %v757 = vld [vmem:[%s729 + $0x210] sm:$0xff]
        %v758 = vld [vmem:[%s729 + $0x220] sm:$0xff]
        %v759 = vld [vmem:[%s729 + $0x230] sm:$0xff]
        %v760 = vld [vmem:[%s729 + $0x240] sm:$0xff]
        %v761 = vld [vmem:[%s729 + $0x250] sm:$0xff]
        %v762 = vld [vmem:[%s729 + $0x1] sm:$0xff]
        %v763 = vld [vmem:[%s729 + $0x11] sm:$0xff]
        %v764 = vld [vmem:[%s729 + $0x21] sm:$0xff]
        %v765 = vld [vmem:[%s729 + $0x31] sm:$0xff]
        %v766 = vld [vmem:[%s729 + $0x41] sm:$0xff]
        %v767 = vld [vmem:[%s729 + $0x51] sm:$0xff]
        %v768 = vld [vmem:[%s729 + $0x61] sm:$0xff]
        %v769 = vld [vmem:[%s729 + $0x71] sm:$0xff]
        %v770 = vld [vmem:[%s729 + $0xa1] sm:$0xff]
        %v771 = vld [vmem:[%s729 + $0xb1] sm:$0xff]
        %v772 = vld [vmem:[%s729 + $0xc1] sm:$0xff]
        %v773 = vld [vmem:[%s729 + $0xd1] sm:$0xff]
        %v774 = vld [vmem:[%s729 + $0xe1] sm:$0xff]
        %v775 = vld [vmem:[%s729 + $0xf1] sm:$0xff]
        %v776 = vld [vmem:[%s729 + $0x101] sm:$0xff]
        %v777 = vld [vmem:[%s729 + $0x111] sm:$0xff]
        %v778 = vld [vmem:[%s729 + $0x141] sm:$0xff]
        %v779 = vld [vmem:[%s729 + $0x151] sm:$0xff]
        %v780 = vld [vmem:[%s729 + $0x161] sm:$0xff]
        %v781 = vld [vmem:[%s729 + $0x171] sm:$0xff]
        %v782 = vld [vmem:[%s729 + $0x181] sm:$0xff]
        %v783 = vld [vmem:[%s729 + $0x191] sm:$0xff]
        %v784 = vld [vmem:[%s729 + $0x1a1] sm:$0xff]
        %v785 = vld [vmem:[%s729 + $0x1b1] sm:$0xff]
        %v786 = vld [vmem:[%s729 + $0x1e1] sm:$0xff]
        %v787 = vld [vmem:[%s729 + $0x1f1] sm:$0xff]
        %v788 = vld [vmem:[%s729 + $0x201] sm:$0xff]
        %v789 = vld [vmem:[%s729 + $0x211] sm:$0xff]
        %v790 = vld [vmem:[%s729 + $0x221] sm:$0xff]
        %v791 = vld [vmem:[%s729 + $0x231] sm:$0xff]
        %v792 = vld [vmem:[%s729 + $0x241] sm:$0xff]
        %v793 = vld [vmem:[%s729 + $0x251] sm:$0xff]
        %v794 = vld [vmem:[%s729 + $0x2] sm:$0xff]
        %v795 = vld [vmem:[%s729 + $0x12] sm:$0xff]
        %v796 = vld [vmem:[%s729 + $0x22] sm:$0xff]
        %v797 = vld [vmem:[%s729 + $0x32] sm:$0xff]
        %v798 = vld [vmem:[%s729 + $0x42] sm:$0xff]
        %v799 = vld [vmem:[%s729 + $0x52] sm:$0xff]
        %v800 = vld [vmem:[%s729 + $0x62] sm:$0xff]
        %v801 = vld [vmem:[%s729 + $0x72] sm:$0xff]
        %v802 = vld [vmem:[%s729 + $0xa2] sm:$0xff]
        %v803 = vld [vmem:[%s729 + $0xb2] sm:$0xff]
        %v804 = vld [vmem:[%s729 + $0xc2] sm:$0xff]
        %v805 = vld [vmem:[%s729 + $0xd2] sm:$0xff]
        %v806 = vld [vmem:[%s729 + $0xe2] sm:$0xff]
        %v807 = vld [vmem:[%s729 + $0xf2] sm:$0xff]
        %v808 = vld [vmem:[%s729 + $0x102] sm:$0xff]
        %v809 = vld [vmem:[%s729 + $0x112] sm:$0xff]
        %v810 = vld [vmem:[%s729 + $0x142] sm:$0xff]
        %v811 = vld [vmem:[%s729 + $0x152] sm:$0xff]
        %v812 = vld [vmem:[%s729 + $0x162] sm:$0xff]
        %v813 = vld [vmem:[%s729 + $0x172] sm:$0xff]
        %v814 = vld [vmem:[%s729 + $0x182] sm:$0xff]
        %v815 = vld [vmem:[%s729 + $0x192] sm:$0xff]
        %v816 = vld [vmem:[%s729 + $0x1a2] sm:$0xff]
        %v817 = vld [vmem:[%s729 + $0x1b2] sm:$0xff]
        %v818 = vld [vmem:[%s729 + $0x1e2] sm:$0xff]
        %v819 = vld [vmem:[%s729 + $0x1f2] sm:$0xff]
        %v820 = vld [vmem:[%s729 + $0x202] sm:$0xff]
        %v821 = vld [vmem:[%s729 + $0x212] sm:$0xff]
        %v822 = vld [vmem:[%s729 + $0x222] sm:$0xff]
        %v823 = vld [vmem:[%s729 + $0x232] sm:$0xff]
        %v824 = vld [vmem:[%s729 + $0x242] sm:$0xff]
        %v825 = vld [vmem:[%s729 + $0x252] sm:$0xff]
        %858 = vrot.lane.b32.xlu0 %v569, 64
        %v859 = vpop.permute.xlu0 %858
        %860 = vrot.lane.b32.xlu0 %v570, 64
        %v861 = vpop.permute.xlu0 %860
        %862 = vrot.lane.b32.xlu0 %v571, 64
        %v863 = vpop.permute.xlu0 %862
        %864 = vrot.lane.b32.xlu0 %v572, 64
        %v865 = vpop.permute.xlu0 %864
        %866 = vrot.lane.b32.xlu0 %v573, 64
        %v867 = vpop.permute.xlu0 %866
        %868 = vrot.lane.b32.xlu0 %v574, 64
        %v869 = vpop.permute.xlu0 %868
        %870 = vrot.lane.b32.xlu0 %v575, 64
        %v871 = vpop.permute.xlu0 %870
        %872 = vrot.lane.b32.xlu0 %v576, 64
        %v873 = vpop.permute.xlu0 %872
        %874 = vrot.lane.b32.xlu0 %v577, 64
        %v875 = vpop.permute.xlu0 %874
        %876 = vrot.lane.b32.xlu0 %v578, 64
        %v877 = vpop.permute.xlu0 %876
        %878 = vrot.lane.b32.xlu0 %v579, 64
        %v879 = vpop.permute.xlu0 %878
        %880 = vrot.lane.b32.xlu0 %v580, 64
        %v881 = vpop.permute.xlu0 %880
        %882 = vrot.lane.b32.xlu0 %v581, 64
        %v883 = vpop.permute.xlu0 %882
        %884 = vrot.lane.b32.xlu0 %v582, 64
        %v885 = vpop.permute.xlu0 %884
        %886 = vrot.lane.b32.xlu0 %v583, 64
        %v887 = vpop.permute.xlu0 %886
        %888 = vrot.lane.b32.xlu0 %v584, 64
        %v889 = vpop.permute.xlu0 %888
        %890 = vrot.lane.b32.xlu0 %v585, 64
        %v891 = vpop.permute.xlu0 %890
        %892 = vrot.lane.b32.xlu0 %v586, 64
        %v893 = vpop.permute.xlu0 %892
        %894 = vrot.lane.b32.xlu0 %v587, 64
        %v895 = vpop.permute.xlu0 %894
        %896 = vrot.lane.b32.xlu0 %v588, 64
        %v897 = vpop.permute.xlu0 %896
        %898 = vrot.lane.b32.xlu0 %v589, 64
        %v899 = vpop.permute.xlu0 %898
        %900 = vrot.lane.b32.xlu0 %v590, 64
        %v901 = vpop.permute.xlu0 %900
        %902 = vrot.lane.b32.xlu0 %v591, 64
        %v903 = vpop.permute.xlu0 %902
        %904 = vrot.lane.b32.xlu0 %v592, 64
        %v905 = vpop.permute.xlu0 %904
        %906 = vrot.lane.b32.xlu0 %v593, 64
        %v907 = vpop.permute.xlu0 %906
        %908 = vrot.lane.b32.xlu0 %v594, 64
        %v909 = vpop.permute.xlu0 %908
        %910 = vrot.lane.b32.xlu0 %v595, 64
        %v911 = vpop.permute.xlu0 %910
        %912 = vrot.lane.b32.xlu0 %v596, 64
        %v913 = vpop.permute.xlu0 %912
        %914 = vrot.lane.b32.xlu0 %v597, 64
        %v915 = vpop.permute.xlu0 %914
        %916 = vrot.lane.b32.xlu0 %v598, 64
        %v917 = vpop.permute.xlu0 %916
        %918 = vrot.lane.b32.xlu0 %v599, 64
        %v919 = vpop.permute.xlu0 %918
        %920 = vrot.lane.b32.xlu0 %v600, 64
        %v921 = vpop.permute.xlu0 %920
        %986 = vrot.lane.b32.xlu0 %v633, 64
        %v987 = vpop.permute.xlu0 %986
        %988 = vrot.lane.b32.xlu0 %v634, 64
        %v989 = vpop.permute.xlu0 %988
        %990 = vrot.lane.b32.xlu0 %v635, 64
        %v991 = vpop.permute.xlu0 %990
        %992 = vrot.lane.b32.xlu0 %v636, 64
        %v993 = vpop.permute.xlu0 %992
        %994 = vrot.lane.b32.xlu0 %v637, 64
        %v995 = vpop.permute.xlu0 %994
        %996 = vrot.lane.b32.xlu0 %v638, 64
        %v997 = vpop.permute.xlu0 %996
        %998 = vrot.lane.b32.xlu0 %v639, 64
        %v999 = vpop.permute.xlu0 %998
        %1000 = vrot.lane.b32.xlu0 %v640, 64
        %v1001 = vpop.permute.xlu0 %1000
        %1002 = vrot.lane.b32.xlu0 %v641, 64
        %v1003 = vpop.permute.xlu0 %1002
        %1004 = vrot.lane.b32.xlu0 %v642, 64
        %v1005 = vpop.permute.xlu0 %1004
        %1006 = vrot.lane.b32.xlu0 %v643, 64
        %v1007 = vpop.permute.xlu0 %1006
        %1008 = vrot.lane.b32.xlu0 %v644, 64
        %v1009 = vpop.permute.xlu0 %1008
        %1010 = vrot.lane.b32.xlu0 %v645, 64
        %v1011 = vpop.permute.xlu0 %1010
        %1012 = vrot.lane.b32.xlu0 %v646, 64
        %v1013 = vpop.permute.xlu0 %1012
        %1014 = vrot.lane.b32.xlu0 %v647, 64
        %v1015 = vpop.permute.xlu0 %1014
        %1016 = vrot.lane.b32.xlu0 %v648, 64
        %v1017 = vpop.permute.xlu0 %1016
        %1018 = vrot.lane.b32.xlu0 %v649, 64
        %v1019 = vpop.permute.xlu0 %1018
        %1020 = vrot.lane.b32.xlu0 %v650, 64
        %v1021 = vpop.permute.xlu0 %1020
        %1022 = vrot.lane.b32.xlu0 %v651, 64
        %v1023 = vpop.permute.xlu0 %1022
        %1024 = vrot.lane.b32.xlu0 %v652, 64
        %v1025 = vpop.permute.xlu0 %1024
        %1026 = vrot.lane.b32.xlu0 %v653, 64
        %v1027 = vpop.permute.xlu0 %1026
        %1028 = vrot.lane.b32.xlu0 %v654, 64
        %v1029 = vpop.permute.xlu0 %1028
        %1030 = vrot.lane.b32.xlu0 %v655, 64
        %v1031 = vpop.permute.xlu0 %1030
        %1032 = vrot.lane.b32.xlu0 %v656, 64
        %v1033 = vpop.permute.xlu0 %1032
        %1034 = vrot.lane.b32.xlu0 %v657, 64
        %v1035 = vpop.permute.xlu0 %1034
        %1036 = vrot.lane.b32.xlu0 %v658, 64
        %v1037 = vpop.permute.xlu0 %1036
        %1038 = vrot.lane.b32.xlu0 %v659, 64
        %v1039 = vpop.permute.xlu0 %1038
        %1040 = vrot.lane.b32.xlu0 %v660, 64
        %v1041 = vpop.permute.xlu0 %1040
        %1042 = vrot.lane.b32.xlu0 %v661, 64
        %v1043 = vpop.permute.xlu0 %1042
        %1044 = vrot.lane.b32.xlu0 %v662, 64
        %v1045 = vpop.permute.xlu0 %1044
        %1046 = vrot.lane.b32.xlu0 %v663, 64
        %v1047 = vpop.permute.xlu0 %1046
        %1048 = vrot.lane.b32.xlu0 %v664, 64
        %v1049 = vpop.permute.xlu0 %1048
        %1114 = vrot.lane.b32.xlu0 %v697, 64
        %v1115 = vpop.permute.xlu0 %1114
        %1116 = vrot.lane.b32.xlu0 %v698, 64
        %v1117 = vpop.permute.xlu0 %1116
        %1118 = vrot.lane.b32.xlu0 %v699, 64
        %v1119 = vpop.permute.xlu0 %1118
        %1120 = vrot.lane.b32.xlu0 %v700, 64
        %v1121 = vpop.permute.xlu0 %1120
        %1122 = vrot.lane.b32.xlu0 %v701, 64
        %v1123 = vpop.permute.xlu0 %1122
        %1124 = vrot.lane.b32.xlu0 %v702, 64
        %v1125 = vpop.permute.xlu0 %1124
        %1126 = vrot.lane.b32.xlu0 %v703, 64
        %v1127 = vpop.permute.xlu0 %1126
        %1128 = vrot.lane.b32.xlu0 %v704, 64
        %v1129 = vpop.permute.xlu0 %1128
        %1130 = vrot.lane.b32.xlu0 %v705, 64
        %v1131 = vpop.permute.xlu0 %1130
        %1132 = vrot.lane.b32.xlu0 %v706, 64
        %v1133 = vpop.permute.xlu0 %1132
        %1134 = vrot.lane.b32.xlu0 %v707, 64
        %v1135 = vpop.permute.xlu0 %1134
        %1136 = vrot.lane.b32.xlu0 %v708, 64
        %v1137 = vpop.permute.xlu0 %1136
        %1138 = vrot.lane.b32.xlu0 %v709, 64
        %v1139 = vpop.permute.xlu0 %1138
        %1140 = vrot.lane.b32.xlu0 %v710, 64
        %v1141 = vpop.permute.xlu0 %1140
        %1142 = vrot.lane.b32.xlu0 %v711, 64
        %v1143 = vpop.permute.xlu0 %1142
        %1144 = vrot.lane.b32.xlu0 %v712, 64
        %v1145 = vpop.permute.xlu0 %1144
        %1146 = vrot.lane.b32.xlu0 %v713, 64
        %v1147 = vpop.permute.xlu0 %1146
        %1148 = vrot.lane.b32.xlu0 %v714, 64
        %v1149 = vpop.permute.xlu0 %1148
        %1150 = vrot.lane.b32.xlu0 %v715, 64
        %v1151 = vpop.permute.xlu0 %1150
        %1152 = vrot.lane.b32.xlu0 %v716, 64
        %v1153 = vpop.permute.xlu0 %1152
        %1154 = vrot.lane.b32.xlu0 %v717, 64
        %v1155 = vpop.permute.xlu0 %1154
        %1156 = vrot.lane.b32.xlu0 %v718, 64
        %v1157 = vpop.permute.xlu0 %1156
        %1158 = vrot.lane.b32.xlu0 %v719, 64
        %v1159 = vpop.permute.xlu0 %1158
        %1160 = vrot.lane.b32.xlu0 %v720, 64
        %v1161 = vpop.permute.xlu0 %1160
        %1162 = vrot.lane.b32.xlu0 %v721, 64
        %v1163 = vpop.permute.xlu0 %1162
        %1164 = vrot.lane.b32.xlu0 %v722, 64
        %v1165 = vpop.permute.xlu0 %1164
        %1166 = vrot.lane.b32.xlu0 %v723, 64
        %v1167 = vpop.permute.xlu0 %1166
        %1168 = vrot.lane.b32.xlu0 %v724, 64
        %v1169 = vpop.permute.xlu0 %1168
        %1170 = vrot.lane.b32.xlu0 %v725, 64
        %v1171 = vpop.permute.xlu0 %1170
        %1172 = vrot.lane.b32.xlu0 %v726, 64
        %v1173 = vpop.permute.xlu0 %1172
        %1174 = vrot.lane.b32.xlu0 %v727, 64
        %v1175 = vpop.permute.xlu0 %1174
        %1176 = vrot.lane.b32.xlu0 %v728, 64
        %v1177 = vpop.permute.xlu0 %1176
        %1242 = vrot.lane.b32.xlu0 %v762, 64
        %v1243 = vpop.permute.xlu0 %1242
        %1244 = vrot.lane.b32.xlu0 %v763, 64
        %v1245 = vpop.permute.xlu0 %1244
        %1246 = vrot.lane.b32.xlu0 %v764, 64
        %v1247 = vpop.permute.xlu0 %1246
        %1248 = vrot.lane.b32.xlu0 %v765, 64
        %v1249 = vpop.permute.xlu0 %1248
        %1250 = vrot.lane.b32.xlu0 %v766, 64
        %v1251 = vpop.permute.xlu0 %1250
        %1252 = vrot.lane.b32.xlu0 %v767, 64
        %v1253 = vpop.permute.xlu0 %1252
        %1254 = vrot.lane.b32.xlu0 %v768, 64
        %v1255 = vpop.permute.xlu0 %1254
        %1256 = vrot.lane.b32.xlu0 %v769, 64
        %v1257 = vpop.permute.xlu0 %1256
        %1258 = vrot.lane.b32.xlu0 %v770, 64
        %v1259 = vpop.permute.xlu0 %1258
        %1260 = vrot.lane.b32.xlu0 %v771, 64
        %v1261 = vpop.permute.xlu0 %1260
        %1262 = vrot.lane.b32.xlu0 %v772, 64
        %v1263 = vpop.permute.xlu0 %1262
        %1264 = vrot.lane.b32.xlu0 %v773, 64
        %v1265 = vpop.permute.xlu0 %1264
        %1266 = vrot.lane.b32.xlu0 %v774, 64
        %v1267 = vpop.permute.xlu0 %1266
        %1268 = vrot.lane.b32.xlu0 %v775, 64
        %v1269 = vpop.permute.xlu0 %1268
        %1270 = vrot.lane.b32.xlu0 %v776, 64
        %v1271 = vpop.permute.xlu0 %1270
        %1272 = vrot.lane.b32.xlu0 %v777, 64
        %v1273 = vpop.permute.xlu0 %1272
        %1274 = vrot.lane.b32.xlu0 %v778, 64
        %v1275 = vpop.permute.xlu0 %1274
        %1276 = vrot.lane.b32.xlu0 %v779, 64
        %v1277 = vpop.permute.xlu0 %1276
        %1278 = vrot.lane.b32.xlu0 %v780, 64
        %v1279 = vpop.permute.xlu0 %1278
        %1280 = vrot.lane.b32.xlu0 %v781, 64
        %v1281 = vpop.permute.xlu0 %1280
        %1282 = vrot.lane.b32.xlu0 %v782, 64
        %v1283 = vpop.permute.xlu0 %1282
        %1284 = vrot.lane.b32.xlu0 %v783, 64
        %v1285 = vpop.permute.xlu0 %1284
        %1286 = vrot.lane.b32.xlu0 %v784, 64
        %v1287 = vpop.permute.xlu0 %1286
        %1288 = vrot.lane.b32.xlu0 %v785, 64
        %v1289 = vpop.permute.xlu0 %1288
        %1290 = vrot.lane.b32.xlu0 %v786, 64
        %v1291 = vpop.permute.xlu0 %1290
        %1292 = vrot.lane.b32.xlu0 %v787, 64
        %v1293 = vpop.permute.xlu0 %1292
        %1294 = vrot.lane.b32.xlu0 %v788, 64
        %v1295 = vpop.permute.xlu0 %1294
        %1296 = vrot.lane.b32.xlu0 %v789, 64
        %v1297 = vpop.permute.xlu0 %1296
        %1298 = vrot.lane.b32.xlu0 %v790, 64
        %v1299 = vpop.permute.xlu0 %1298
        %1300 = vrot.lane.b32.xlu0 %v791, 64
        %v1301 = vpop.permute.xlu0 %1300
        %1302 = vrot.lane.b32.xlu0 %v792, 64
        %v1303 = vpop.permute.xlu0 %1302
        %1304 = vrot.lane.b32.xlu0 %v793, 64
        %v1305 = vpop.permute.xlu0 %1304
        %v1338 = vsel %vm504, %v537, %v859
        %v1339 = vsel %vm504, %v538, %v861
        %v1340 = vsel %vm504, %v539, %v863
        %v1341 = vsel %vm504, %v540, %v865
        %v1342 = vsel %vm504, %v541, %v867
        %v1343 = vsel %vm504, %v542, %v869
        %v1344 = vsel %vm504, %v543, %v871
        %v1345 = vsel %vm504, %v544, %v873
        %v1346 = vsel %vm504, %v545, %v875
        %v1347 = vsel %vm504, %v546, %v877
        %v1348 = vsel %vm504, %v547, %v879
        %v1349 = vsel %vm504, %v548, %v881
        %v1350 = vsel %vm504, %v549, %v883
        %v1351 = vsel %vm504, %v550, %v885
        %v1352 = vsel %vm504, %v551, %v887
        %v1353 = vsel %vm504, %v552, %v889
        %v1354 = vsel %vm504, %v553, %v891
        %v1355 = vsel %vm504, %v554, %v893
        %v1356 = vsel %vm504, %v555, %v895
        %v1357 = vsel %vm504, %v556, %v897
        %v1358 = vsel %vm504, %v557, %v899
        %v1359 = vsel %vm504, %v558, %v901
        %v1360 = vsel %vm504, %v559, %v903
        %v1361 = vsel %vm504, %v560, %v905
        %v1362 = vsel %vm504, %v561, %v907
        %v1363 = vsel %vm504, %v562, %v909
        %v1364 = vsel %vm504, %v563, %v911
        %v1365 = vsel %vm504, %v564, %v913
        %v1366 = vsel %vm504, %v565, %v915
        %v1367 = vsel %vm504, %v566, %v917
        %v1368 = vsel %vm504, %v567, %v919
        %v1369 = vsel %vm504, %v568, %v921
        %v1370 = vsel %vm504, %v601, %v987
        %v1371 = vsel %vm504, %v602, %v989
        %v1372 = vsel %vm504, %v603, %v991
        %v1373 = vsel %vm504, %v604, %v993
        %v1374 = vsel %vm504, %v605, %v995
        %v1375 = vsel %vm504, %v606, %v997
        %v1376 = vsel %vm504, %v607, %v999
        %v1377 = vsel %vm504, %v608, %v1001
        %v1378 = vsel %vm504, %v609, %v1003
        %v1379 = vsel %vm504, %v610, %v1005
        %v1380 = vsel %vm504, %v611, %v1007
        %v1381 = vsel %vm504, %v612, %v1009
        %v1382 = vsel %vm504, %v613, %v1011
        %v1383 = vsel %vm504, %v614, %v1013
        %v1384 = vsel %vm504, %v615, %v1015
        %v1385 = vsel %vm504, %v616, %v1017
        %v1386 = vsel %vm504, %v617, %v1019
        %v1387 = vsel %vm504, %v618, %v1021
        %v1388 = vsel %vm504, %v619, %v1023
        %v1389 = vsel %vm504, %v620, %v1025
        %v1390 = vsel %vm504, %v621, %v1027
        %v1391 = vsel %vm504, %v622, %v1029
        %v1392 = vsel %vm504, %v623, %v1031
        %v1393 = vsel %vm504, %v624, %v1033
        %v1394 = vsel %vm504, %v625, %v1035
        %v1395 = vsel %vm504, %v626, %v1037
        %v1396 = vsel %vm504, %v627, %v1039
        %v1397 = vsel %vm504, %v628, %v1041
        %v1398 = vsel %vm504, %v629, %v1043
        %v1399 = vsel %vm504, %v630, %v1045
        %v1400 = vsel %vm504, %v631, %v1047
        %v1401 = vsel %vm504, %v632, %v1049
        %v1402 = vsel %vm504, %v665, %v1115
        %v1403 = vsel %vm504, %v666, %v1117
        %v1404 = vsel %vm504, %v667, %v1119
        %v1405 = vsel %vm504, %v668, %v1121
        %v1406 = vsel %vm504, %v669, %v1123
        %v1407 = vsel %vm504, %v670, %v1125
        %v1408 = vsel %vm504, %v671, %v1127
        %v1409 = vsel %vm504, %v672, %v1129
        %v1410 = vsel %vm504, %v673, %v1131
        %v1411 = vsel %vm504, %v674, %v1133
        %v1412 = vsel %vm504, %v675, %v1135
        %v1413 = vsel %vm504, %v676, %v1137
        %v1414 = vsel %vm504, %v677, %v1139
        %v1415 = vsel %vm504, %v678, %v1141
        %v1416 = vsel %vm504, %v679, %v1143
        %v1417 = vsel %vm504, %v680, %v1145
        %v1418 = vsel %vm504, %v681, %v1147
        %v1419 = vsel %vm504, %v682, %v1149
        %v1420 = vsel %vm504, %v683, %v1151
        %v1421 = vsel %vm504, %v684, %v1153
        %v1422 = vsel %vm504, %v685, %v1155
        %v1423 = vsel %vm504, %v686, %v1157
        %v1424 = vsel %vm504, %v687, %v1159
        %v1425 = vsel %vm504, %v688, %v1161
        %v1426 = vsel %vm504, %v689, %v1163
        %v1427 = vsel %vm504, %v690, %v1165
        %v1428 = vsel %vm504, %v691, %v1167
        %v1429 = vsel %vm504, %v692, %v1169
        %v1430 = vsel %vm504, %v693, %v1171
        %v1431 = vsel %vm504, %v694, %v1173
        %v1432 = vsel %vm504, %v695, %v1175
        %v1433 = vsel %vm504, %v696, %v1177
        %v1434 = vsel %vm504, %v730, %v1243
        %v1435 = vsel %vm504, %v731, %v1245
        %v1436 = vsel %vm504, %v732, %v1247
        %v1437 = vsel %vm504, %v733, %v1249
        %v1438 = vsel %vm504, %v734, %v1251
        %v1439 = vsel %vm504, %v735, %v1253
        %v1440 = vsel %vm504, %v736, %v1255
        %v1441 = vsel %vm504, %v737, %v1257
        %v1442 = vsel %vm504, %v738, %v1259
        %v1443 = vsel %vm504, %v739, %v1261
        %v1444 = vsel %vm504, %v740, %v1263
        %v1445 = vsel %vm504, %v741, %v1265
        %v1446 = vsel %vm504, %v742, %v1267
        %v1447 = vsel %vm504, %v743, %v1269
        %v1448 = vsel %vm504, %v744, %v1271
        %v1449 = vsel %vm504, %v745, %v1273
        %v1450 = vsel %vm504, %v746, %v1275
        %v1451 = vsel %vm504, %v747, %v1277
        %v1452 = vsel %vm504, %v748, %v1279
        %v1453 = vsel %vm504, %v749, %v1281
        %v1454 = vsel %vm504, %v750, %v1283
        %v1455 = vsel %vm504, %v751, %v1285
        %v1456 = vsel %vm504, %v752, %v1287
        %v1457 = vsel %vm504, %v753, %v1289
        %v1458 = vsel %vm504, %v754, %v1291
        %v1459 = vsel %vm504, %v755, %v1293
        %v1460 = vsel %vm504, %v756, %v1295
        %v1461 = vsel %vm504, %v757, %v1297
        %v1462 = vsel %vm504, %v758, %v1299
        %v1463 = vsel %vm504, %v759, %v1301
        %v1464 = vsel %vm504, %v760, %v1303
        %v1465 = vsel %vm504, %v761, %v1305
        %v1466 = vld [vmem:[%s1] sm:$0xff]
        %v1467 = vld [vmem:[%s1 + $0x8] sm:$0xff]
        %v1468 = vld [vmem:[%s1 + $0x10] sm:$0xff]
        %v1469 = vld [vmem:[%s1 + $0x18] sm:$0xff]
        %v1470 = vld [vmem:[%s1 + $0x20] sm:$0xff]
        %v1471 = vld [vmem:[%s1 + $0x28] sm:$0xff]
        %v1472 = vld [vmem:[%s1 + $0x30] sm:$0xff]
        %v1473 = vld [vmem:[%s1 + $0x38] sm:$0xff]
        %v1474 = vld [vmem:[%s1 + $0x40] sm:$0xff]
        %v1475 = vld [vmem:[%s1 + $0x48] sm:$0xff]
        %v1476 = vld [vmem:[%s1 + $0x50] sm:$0xff]
        %v1477 = vld [vmem:[%s1 + $0x58] sm:$0xff]
        %v1478 = vld [vmem:[%s1 + $0x60] sm:$0xff]
        %v1479 = vld [vmem:[%s1 + $0x68] sm:$0xff]
        %v1480 = vld [vmem:[%s1 + $0x70] sm:$0xff]
        %v1481 = vld [vmem:[%s1 + $0x78] sm:$0xff]
        %v1482 = vld [vmem:[%s1 + $0x80] sm:$0xff]
        %v1483 = vld [vmem:[%s1 + $0x88] sm:$0xff]
        %v1484 = vld [vmem:[%s1 + $0x90] sm:$0xff]
        %v1485 = vld [vmem:[%s1 + $0x98] sm:$0xff]
        %v1486 = vld [vmem:[%s1 + $0xa0] sm:$0xff]
        %v1487 = vld [vmem:[%s1 + $0xa8] sm:$0xff]
        %v1488 = vld [vmem:[%s1 + $0xb0] sm:$0xff]
        %v1489 = vld [vmem:[%s1 + $0xb8] sm:$0xff]
        %v1490 = vld [vmem:[%s1 + $0xc0] sm:$0xff]
        %v1491 = vld [vmem:[%s1 + $0xc8] sm:$0xff]
        %v1492 = vld [vmem:[%s1 + $0xd0] sm:$0xff]
        %v1493 = vld [vmem:[%s1 + $0xd8] sm:$0xff]
        %v1494 = vld [vmem:[%s1 + $0xe0] sm:$0xff]
        %v1495 = vld [vmem:[%s1 + $0xe8] sm:$0xff]
        %v1496 = vld [vmem:[%s1 + $0xf0] sm:$0xff]
        %v1497 = vld [vmem:[%s1 + $0xf8] sm:$0xff]
        %v1498 = vld [vmem:[%s1 + $0x100] sm:$0xff]
        %v1499 = vld [vmem:[%s1 + $0x108] sm:$0xff]
        %v1500 = vld [vmem:[%s1 + $0x110] sm:$0xff]
        %v1501 = vld [vmem:[%s1 + $0x118] sm:$0xff]
        %v1502 = vld [vmem:[%s1 + $0x120] sm:$0xff]
        %v1503 = vld [vmem:[%s1 + $0x128] sm:$0xff]
        %v1504 = vld [vmem:[%s1 + $0x130] sm:$0xff]
        %v1505 = vld [vmem:[%s1 + $0x138] sm:$0xff]
        %v1506 = vld [vmem:[%s1 + $0x140] sm:$0xff]
        %v1507 = vld [vmem:[%s1 + $0x148] sm:$0xff]
        %v1508 = vld [vmem:[%s1 + $0x150] sm:$0xff]
        %v1509 = vld [vmem:[%s1 + $0x158] sm:$0xff]
        %v1510 = vld [vmem:[%s1 + $0x160] sm:$0xff]
        %v1511 = vld [vmem:[%s1 + $0x168] sm:$0xff]
        %v1512 = vld [vmem:[%s1 + $0x170] sm:$0xff]
        %v1513 = vld [vmem:[%s1 + $0x178] sm:$0xff]
        %v1514 = vld [vmem:[%s1 + $0x180] sm:$0xff]
        %v1515 = vld [vmem:[%s1 + $0x188] sm:$0xff]
        %v1516 = vld [vmem:[%s1 + $0x190] sm:$0xff]
        %v1517 = vld [vmem:[%s1 + $0x198] sm:$0xff]
        %v1518 = vld [vmem:[%s1 + $0x1a0] sm:$0xff]
        %v1519 = vld [vmem:[%s1 + $0x1a8] sm:$0xff]
        %v1520 = vld [vmem:[%s1 + $0x1b0] sm:$0xff]
        %v1521 = vld [vmem:[%s1 + $0x1b8] sm:$0xff]
        %v1522 = vld [vmem:[%s1 + $0x1c0] sm:$0xff]
        %v1523 = vld [vmem:[%s1 + $0x1c8] sm:$0xff]
        %v1524 = vld [vmem:[%s1 + $0x1d0] sm:$0xff]
        %v1525 = vld [vmem:[%s1 + $0x1d8] sm:$0xff]
        %v1526 = vld [vmem:[%s1 + $0x1e0] sm:$0xff]
        %v1527 = vld [vmem:[%s1 + $0x1e8] sm:$0xff]
        %v1528 = vld [vmem:[%s1 + $0x1f0] sm:$0xff]
        %v1529 = vld [vmem:[%s1 + $0x1f8] sm:$0xff]
        %v1530 = vld [vmem:[%s1 + $0x200] sm:$0xff]
        %v1531 = vld [vmem:[%s1 + $0x208] sm:$0xff]
        %v1532 = vld [vmem:[%s1 + $0x210] sm:$0xff]
        %v1533 = vld [vmem:[%s1 + $0x218] sm:$0xff]
        %v1534 = vld [vmem:[%s1 + $0x220] sm:$0xff]
        %v1535 = vld [vmem:[%s1 + $0x228] sm:$0xff]
        %v1536 = vld [vmem:[%s1 + $0x230] sm:$0xff]
        %v1537 = vld [vmem:[%s1 + $0x238] sm:$0xff]
        %v1538 = vld [vmem:[%s2] sm:$0x1]
        %v1540 = vlaneseq
        %v1541 = vshrl.u32 %v1540, 7
        %v1542 = vsub.s32 0, %v1541
        %v1543 = vrot.slane %v1538, %v1542
        %v1546 = vsel %vm504, %v794, 0
        %v1549 = vsel %vm504, %v795, 0
        %v1552 = vsel %vm504, %v796, 0
        %v1555 = vsel %vm504, %v797, 0
        %v1558 = vsel %vm504, %v798, 0
        %v1561 = vsel %vm504, %v799, 0
        %v1564 = vsel %vm504, %v800, 0
        %v1567 = vsel %vm504, %v801, 0
        %v1570 = vsel %vm504, %v802, 0
        %v1573 = vsel %vm504, %v803, 0
        %v1576 = vsel %vm504, %v804, 0
        %v1579 = vsel %vm504, %v805, 0
        %v1582 = vsel %vm504, %v806, 0
        %v1585 = vsel %vm504, %v807, 0
        %v1588 = vsel %vm504, %v808, 0
        %v1591 = vsel %vm504, %v809, 0
        %v1594 = vsel %vm504, %v810, 0
        %v1597 = vsel %vm504, %v811, 0
        %v1600 = vsel %vm504, %v812, 0
        %v1603 = vsel %vm504, %v813, 0
        %v1606 = vsel %vm504, %v814, 0
        %v1609 = vsel %vm504, %v815, 0
        %v1612 = vsel %vm504, %v816, 0
        %v1615 = vsel %vm504, %v817, 0
        %v1618 = vsel %vm504, %v818, 0
        %v1621 = vsel %vm504, %v819, 0
        %v1624 = vsel %vm504, %v820, 0
        %v1627 = vsel %vm504, %v821, 0
        %v1630 = vsel %vm504, %v822, 0
        %v1633 = vsel %vm504, %v823, 0
        %v1636 = vsel %vm504, %v824, 0
        %v1639 = vsel %vm504, %v825, 0
        %1641 = vmatprep.subr.mxu0 0.0
        %1642 = vmatpush1.msra.mxu0 %v1466
        %1643 = vmatprep.subr.mxu0 0.0
        %1644 = vmatpush1.msra.mxu0 %v1467
        %1645 = vmatprep.subr.mxu0 0.0
        %1646 = vmatpush1.msra.mxu0 %v1468
        %1647 = vmatprep.subr.mxu0 0.0
        %1648 = vmatpush1.msra.mxu0 %v1469
        %1649 = vmatprep.subr.mxu0 0.0
        %1650 = vmatpush1.msra.mxu0 %v1470
        %1651 = vmatprep.subr.mxu0 0.0
        %1652 = vmatpush1.msra.mxu0 %v1471
        %1653 = vmatprep.subr.mxu0 0.0
        %1654 = vmatpush1.msra.mxu0 %v1472
        %1655 = vmatprep.subr.mxu0 0.0
        %1656 = vmatpush1.msra.mxu0 %v1473
        %1657 = vmatprep.subr.mxu0 0.0
        %1658 = vmatpush1.msra.mxu0 %v1474
        %1659 = vmatprep.subr.mxu0 0.0
        %1660 = vmatpush1.msra.mxu0 %v1475
        %1661 = vmatprep.subr.mxu0 0.0
        %1662 = vmatpush1.msra.mxu0 %v1476
        %1663 = vmatprep.subr.mxu0 0.0
        %1664 = vmatpush1.msra.mxu0 %v1477
        %1665 = vmatprep.subr.mxu0 0.0
        %1666 = vmatpush1.msra.mxu0 %v1478
        %1667 = vmatprep.subr.mxu0 0.0
        %1668 = vmatpush1.msra.mxu0 %v1479
        %1669 = vmatprep.subr.mxu0 0.0
        %1670 = vmatpush1.msra.mxu0 %v1480
        %1671 = vmatprep.subr.mxu0 0.0
        %1672 = vmatpush1.msra.mxu0 %v1481
        %1673 = vmatprep.subr.mxu0 0.0
        %1674 = vmatpush1.msra.mxu0 %v1482
        %1675 = vmatprep.subr.mxu0 0.0
        %1676 = vmatpush1.msra.mxu0 %v1483
        %1677 = vmatprep.subr.mxu0 0.0
        %1678 = vmatpush1.msra.mxu0 %v1484
        %1679 = vmatprep.subr.mxu0 0.0
        %1680 = vmatpush1.msra.mxu0 %v1485
        %1681 = vmatprep.subr.mxu0 0.0
        %1682 = vmatpush1.msra.mxu0 %v1486
        %1683 = vmatprep.subr.mxu0 0.0
        %1684 = vmatpush1.msra.mxu0 %v1487
        %1685 = vmatprep.subr.mxu0 0.0
        %1686 = vmatpush1.msra.mxu0 %v1488
        %1687 = vmatprep.subr.mxu0 0.0
        %1688 = vmatpush1.msra.mxu0 %v1489
        %1689 = vmatprep.subr.mxu0 0.0
        %1690 = vmatpush1.msra.mxu0 %v1490
        %1691 = vmatprep.subr.mxu0 0.0
        %1692 = vmatpush1.msra.mxu0 %v1491
        %1693 = vmatprep.subr.mxu0 0.0
        %1694 = vmatpush1.msra.mxu0 %v1492
        %1695 = vmatprep.subr.mxu0 0.0
        %1696 = vmatpush1.msra.mxu0 %v1493
        %1697 = vmatprep.subr.mxu0 0.0
        %1698 = vmatpush1.msra.mxu0 %v1494
        %1699 = vmatprep.subr.mxu0 0.0
        %1700 = vmatpush1.msra.mxu0 %v1495
        %1701 = vmatprep.subr.mxu0 0.0
        %1702 = vmatpush1.msra.mxu0 %v1496
        %1703 = vmatprep.subr.mxu0 0.0
        %1704 = vmatpush1.msra.mxu0 %v1497
        %1705 = vmatprep.mubr.f32.mxu0 %v1370
        %1706 = vmatmul.mubr.f32.gmra.mrb[0].mxu0 %v1338
        %v1707 = vpop.f32.mrb[0].mxu0
        %v1708 = vadd.f32 %v1543, %v1707
        %v1709 = vpop.f32.mrb[0].mxu0
        %1710 = vmatprep.mubr.f32.mxu0 %v1371
        %1711 = vmatmul.mubr.f32.gmra.mrb[0].mxu0 %v1339
        %v1712 = vpop.f32.mrb[0].mxu0
        %v1713 = vadd.f32 %v1543, %v1712
        %v1714 = vpop.f32.mrb[0].mxu0
        %1715 = vmatprep.mubr.f32.mxu0 %v1372
        %1716 = vmatmul.mubr.f32.gmra.mrb[0].mxu0 %v1340
        %v1717 = vpop.f32.mrb[0].mxu0
        %v1718 = vadd.f32 %v1543, %v1717
        %v1719 = vpop.f32.mrb[0].mxu0
        %1720 = vmatprep.mubr.f32.mxu0 %v1373
        %1721 = vmatmul.mubr.f32.gmra.mrb[0].mxu0 %v1341
        %v1722 = vpop.f32.mrb[0].mxu0
        %v1723 = vadd.f32 %v1543, %v1722
        %v1724 = vpop.f32.mrb[0].mxu0
        %1725 = vmatprep.mubr.f32.mxu0 %v1374
        %1726 = vmatmul.mubr.f32.gmra.mrb[0].mxu0 %v1342
        %v1727 = vpop.f32.mrb[0].mxu0
        %v1728 = vadd.f32 %v1543, %v1727
        %v1729 = vpop.f32.mrb[0].mxu0
        %1730 = vmatprep.mubr.f32.mxu0 %v1375
        %1731 = vmatmul.mubr.f32.gmra.mrb[0].mxu0 %v1343
        %v1732 = vpop.f32.mrb[0].mxu0
        %v1733 = vadd.f32 %v1543, %v1732
        %v1734 = vpop.f32.mrb[0].mxu0
        %1735 = vmatprep.mubr.f32.mxu0 %v1376
        %1736 = vmatmul.mubr.f32.gmra.mrb[0].mxu0 %v1344
        %v1737 = vpop.f32.mrb[0].mxu0
        %v1738 = vadd.f32 %v1543, %v1737
        %v1739 = vpop.f32.mrb[0].mxu0
        %1740 = vmatprep.mubr.f32.mxu0 %v1377
        %1741 = vmatmul.mubr.f32.gmra.mrb[0].mxu0 %v1345
        %v1742 = vpop.f32.mrb[0].mxu0
        %v1743 = vadd.f32 %v1543, %v1742
        %v1744 = vpop.f32.mrb[0].mxu0
        %1745 = vmatprep.mubr.f32.mxu0 %v1378
        %1746 = vmatmul.mubr.f32.gmra.mrb[0].mxu0 %v1346
        %v1747 = vpop.f32.mrb[0].mxu0
        %v1748 = vadd.f32 %v1543, %v1747
        %v1749 = vpop.f32.mrb[0].mxu0
        %1750 = vmatprep.mubr.f32.mxu0 %v1379
        %1751 = vmatmul.mubr.f32.gmra.mrb[0].mxu0 %v1347
        %v1752 = vpop.f32.mrb[0].mxu0
        %v1753 = vadd.f32 %v1543, %v1752
        %v1754 = vpop.f32.mrb[0].mxu0
        %1755 = vmatprep.mubr.f32.mxu0 %v1380
        %1756 = vmatmul.mubr.f32.gmra.mrb[0].mxu0 %v1348
        %v1757 = vpop.f32.mrb[0].mxu0
        %v1758 = vadd.f32 %v1543, %v1757
        %v1759 = vpop.f32.mrb[0].mxu0
        %1760 = vmatprep.mubr.f32.mxu0 %v1381
        %1761 = vmatmul.mubr.f32.gmra.mrb[0].mxu0 %v1349
        %v1762 = vpop.f32.mrb[0].mxu0
        %v1763 = vadd.f32 %v1543, %v1762
        %v1764 = vpop.f32.mrb[0].mxu0
        %1765 = vmatprep.mubr.f32.mxu0 %v1382
        %1766 = vmatmul.mubr.f32.gmra.mrb[0].mxu0 %v1350
        %v1767 = vpop.f32.mrb[0].mxu0
        %v1768 = vadd.f32 %v1543, %v1767
        %v1769 = vpop.f32.mrb[0].mxu0
        %1770 = vmatprep.mubr.f32.mxu0 %v1383
        %1771 = vmatmul.mubr.f32.gmra.mrb[0].mxu0 %v1351
        %v1772 = vpop.f32.mrb[0].mxu0
        %v1773 = vadd.f32 %v1543, %v1772
        %v1774 = vpop.f32.mrb[0].mxu0
        %1775 = vmatprep.mubr.f32.mxu0 %v1384
        %1776 = vmatmul.mubr.f32.gmra.mrb[0].mxu0 %v1352
        %v1777 = vpop.f32.mrb[0].mxu0
        %v1778 = vadd.f32 %v1543, %v1777
        %v1779 = vpop.f32.mrb[0].mxu0
        %1780 = vmatprep.mubr.f32.mxu0 %v1385
        %1781 = vmatmul.mubr.f32.gmra.mrb[0].mxu0 %v1353
        %v1782 = vpop.f32.mrb[0].mxu0
        %v1783 = vadd.f32 %v1543, %v1782
        %v1784 = vpop.f32.mrb[0].mxu0
        %1785 = vmatprep.mubr.f32.mxu0 %v1386
        %1786 = vmatmul.mubr.f32.gmra.mrb[0].mxu0 %v1354
        %v1787 = vpop.f32.mrb[0].mxu0
        %v1788 = vadd.f32 %v1543, %v1787
        %v1789 = vpop.f32.mrb[0].mxu0
        %1790 = vmatprep.mubr.f32.mxu0 %v1387
        %1791 = vmatmul.mubr.f32.gmra.mrb[0].mxu0 %v1355
        %v1792 = vpop.f32.mrb[0].mxu0
        %v1793 = vadd.f32 %v1543, %v1792
        %v1794 = vpop.f32.mrb[0].mxu0
        %1795 = vmatprep.mubr.f32.mxu0 %v1388
        %1796 = vmatmul.mubr.f32.gmra.mrb[0].mxu0 %v1356
        %v1797 = vpop.f32.mrb[0].mxu0
        %v1798 = vadd.f32 %v1543, %v1797
        %v1799 = vpop.f32.mrb[0].mxu0
        %1800 = vmatprep.mubr.f32.mxu0 %v1389
        %1801 = vmatmul.mubr.f32.gmra.mrb[0].mxu0 %v1357
        %v1802 = vpop.f32.mrb[0].mxu0
        %v1803 = vadd.f32 %v1543, %v1802
        %v1804 = vpop.f32.mrb[0].mxu0
        %1805 = vmatprep.mubr.f32.mxu0 %v1390
        %1806 = vmatmul.mubr.f32.gmra.mrb[0].mxu0 %v1358
        %v1807 = vpop.f32.mrb[0].mxu0
        %v1808 = vadd.f32 %v1543, %v1807
        %v1809 = vpop.f32.mrb[0].mxu0
        %1810 = vmatprep.mubr.f32.mxu0 %v1391
        %1811 = vmatmul.mubr.f32.gmra.mrb[0].mxu0 %v1359
        %v1812 = vpop.f32.mrb[0].mxu0
        %v1813 = vadd.f32 %v1543, %v1812
        %v1814 = vpop.f32.mrb[0].mxu0
        %1815 = vmatprep.mubr.f32.mxu0 %v1392
        %1816 = vmatmul.mubr.f32.gmra.mrb[0].mxu0 %v1360
        %v1817 = vpop.f32.mrb[0].mxu0
        %v1818 = vadd.f32 %v1543, %v1817
        %v1819 = vpop.f32.mrb[0].mxu0
        %1820 = vmatprep.mubr.f32.mxu0 %v1393
        %1821 = vmatmul.mubr.f32.gmra.mrb[0].mxu0 %v1361
        %v1822 = vpop.f32.mrb[0].mxu0
        %v1823 = vadd.f32 %v1543, %v1822
        %v1824 = vpop.f32.mrb[0].mxu0
        %1825 = vmatprep.mubr.f32.mxu0 %v1394
        %1826 = vmatmul.mubr.f32.gmra.mrb[0].mxu0 %v1362
        %v1827 = vpop.f32.mrb[0].mxu0
        %v1828 = vadd.f32 %v1543, %v1827
        %v1829 = vpop.f32.mrb[0].mxu0
        %1830 = vmatprep.mubr.f32.mxu0 %v1395
        %1831 = vmatmul.mubr.f32.gmra.mrb[0].mxu0 %v1363
        %v1832 = vpop.f32.mrb[0].mxu0
        %v1833 = vadd.f32 %v1543, %v1832
        %v1834 = vpop.f32.mrb[0].mxu0
        %1835 = vmatprep.mubr.f32.mxu0 %v1396
        %1836 = vmatmul.mubr.f32.gmra.mrb[0].mxu0 %v1364
        %v1837 = vpop.f32.mrb[0].mxu0
        %v1838 = vadd.f32 %v1543, %v1837
        %v1839 = vpop.f32.mrb[0].mxu0
        %1840 = vmatprep.mubr.f32.mxu0 %v1397
        %1841 = vmatmul.mubr.f32.gmra.mrb[0].mxu0 %v1365
        %v1842 = vpop.f32.mrb[0].mxu0
        %v1843 = vadd.f32 %v1543, %v1842
        %v1844 = vpop.f32.mrb[0].mxu0
        %1845 = vmatprep.mubr.f32.mxu0 %v1398
        %1846 = vmatmul.mubr.f32.gmra.mrb[0].mxu0 %v1366
        %v1847 = vpop.f32.mrb[0].mxu0
        %v1848 = vadd.f32 %v1543, %v1847
        %v1849 = vpop.f32.mrb[0].mxu0
        %1850 = vmatprep.mubr.f32.mxu0 %v1399
        %1851 = vmatmul.mubr.f32.gmra.mrb[0].mxu0 %v1367
        %v1852 = vpop.f32.mrb[0].mxu0
        %v1853 = vadd.f32 %v1543, %v1852
        %v1854 = vpop.f32.mrb[0].mxu0
        %1855 = vmatprep.mubr.f32.mxu0 %v1400
        %1856 = vmatmul.mubr.f32.gmra.mrb[0].mxu0 %v1368
        %v1857 = vpop.f32.mrb[0].mxu0
        %v1858 = vadd.f32 %v1543, %v1857
        %v1859 = vpop.f32.mrb[0].mxu0
        %1860 = vmatprep.mubr.f32.mxu0 %v1401
        %1861 = vmatmul.mubr.f32.gmra.mrb[0].mxu0 %v1369
        %v1862 = vpop.f32.mrb[0].mxu0
        %v1863 = vadd.f32 %v1543, %v1862
        %v1864 = vpop.f32.mrb[0].mxu0
        %1865 = vdwg.mxu0
        %1866 = vmatprep.subr.mxu0 0.0
        %1867 = vmatpush1.msra.mxu0 %v1498
        %1868 = vmatprep.subr.mxu0 0.0
        %1869 = vmatpush1.msra.mxu0 %v1499
        %1870 = vmatprep.subr.mxu0 0.0
        %1871 = vmatpush1.msra.mxu0 %v1500
        %1872 = vmatprep.subr.mxu0 0.0
        %1873 = vmatpush1.msra.mxu0 %v1501
        %1874 = vmatprep.subr.mxu0 0.0
        %1875 = vmatpush1.msra.mxu0 %v1502
        %1876 = vmatprep.subr.mxu0 0.0
        %1877 = vmatpush1.msra.mxu0 %v1503
        %1878 = vmatprep.subr.mxu0 0.0
        %1879 = vmatpush1.msra.mxu0 %v1504
        %1880 = vmatprep.subr.mxu0 0.0
        %1881 = vmatpush1.msra.mxu0 %v1505
        %1882 = vmatprep.subr.mxu0 0.0
        %1883 = vmatpush1.msra.mxu0 %v1506
        %1884 = vmatprep.subr.mxu0 0.0
        %1885 = vmatpush1.msra.mxu0 %v1507
        %1886 = vmatprep.subr.mxu0 0.0
        %1887 = vmatpush1.msra.mxu0 %v1508
        %1888 = vmatprep.subr.mxu0 0.0
        %1889 = vmatpush1.msra.mxu0 %v1509
        %1890 = vmatprep.subr.mxu0 0.0
        %1891 = vmatpush1.msra.mxu0 %v1510
        %1892 = vmatprep.subr.mxu0 0.0
        %1893 = vmatpush1.msra.mxu0 %v1511
        %1894 = vmatprep.subr.mxu0 0.0
        %1895 = vmatpush1.msra.mxu0 %v1512
        %1896 = vmatprep.subr.mxu0 0.0
        %1897 = vmatpush1.msra.mxu0 %v1513
        %1898 = vmatprep.subr.mxu0 0.0
        %1899 = vmatpush1.msra.mxu0 %v1514
        %1900 = vmatprep.subr.mxu0 0.0
        %1901 = vmatpush1.msra.mxu0 %v1515
        %1902 = vmatprep.subr.mxu0 0.0
        %1903 = vmatpush1.msra.mxu0 %v1516
        %1904 = vmatprep.subr.mxu0 0.0
        %1905 = vmatpush1.msra.mxu0 %v1517
        %1906 = vmatprep.subr.mxu0 0.0
        %1907 = vmatpush1.msra.mxu0 %v1518
        %1908 = vmatprep.subr.mxu0 0.0
        %1909 = vmatpush1.msra.mxu0 %v1519
        %1910 = vmatprep.subr.mxu0 0.0
        %1911 = vmatpush1.msra.mxu0 %v1520
        %1912 = vmatprep.subr.mxu0 0.0
        %1913 = vmatpush1.msra.mxu0 %v1521
        %1914 = vmatprep.subr.mxu0 0.0
        %1915 = vmatpush1.msra.mxu0 %v1522
        %1916 = vmatprep.subr.mxu0 0.0
        %1917 = vmatpush1.msra.mxu0 %v1523
        %1918 = vmatprep.subr.mxu0 0.0
        %1919 = vmatpush1.msra.mxu0 %v1524
        %1920 = vmatprep.subr.mxu0 0.0
        %1921 = vmatpush1.msra.mxu0 %v1525
        %1922 = vmatprep.subr.mxu0 0.0
        %1923 = vmatpush1.msra.mxu0 %v1526
        %1924 = vmatprep.subr.mxu0 0.0
        %1925 = vmatpush1.msra.mxu0 %v1527
        %1926 = vmatprep.subr.mxu0 0.0
        %1927 = vmatpush1.msra.mxu0 %v1528
        %1928 = vmatprep.subr.mxu0 0.0
        %1929 = vmatpush1.msra.mxu0 %v1529
        %1930 = vmatprep.mubr.f32.mxu0 %v1434
        %1931 = vmatmul.mubr.f32.gmra.mrb[0].mxu0 %v1402
        %v1932 = vpop.f32.mrb[0].mxu0
        %v1933 = vadd.f32 %v1708, %v1932
        %v1934 = vpop.f32.mrb[0].mxu0
        %1935 = vmatprep.mubr.f32.mxu0 %v1435
        %1936 = vmatmul.mubr.f32.gmra.mrb[0].mxu0 %v1403
        %v1937 = vpop.f32.mrb[0].mxu0
        %v1938 = vadd.f32 %v1713, %v1937
        %v1939 = vpop.f32.mrb[0].mxu0
        %1940 = vmatprep.mubr.f32.mxu0 %v1436
        %1941 = vmatmul.mubr.f32.gmra.mrb[0].mxu0 %v1404
        %v1942 = vpop.f32.mrb[0].mxu0
        %v1943 = vadd.f32 %v1718, %v1942
        %v1944 = vpop.f32.mrb[0].mxu0
        %1945 = vmatprep.mubr.f32.mxu0 %v1437
        %1946 = vmatmul.mubr.f32.gmra.mrb[0].mxu0 %v1405
        %v1947 = vpop.f32.mrb[0].mxu0
        %v1948 = vadd.f32 %v1723, %v1947
        %v1949 = vpop.f32.mrb[0].mxu0
        %1950 = vmatprep.mubr.f32.mxu0 %v1438
        %1951 = vmatmul.mubr.f32.gmra.mrb[0].mxu0 %v1406
        %v1952 = vpop.f32.mrb[0].mxu0
        %v1953 = vadd.f32 %v1728, %v1952
        %v1954 = vpop.f32.mrb[0].mxu0
        %1955 = vmatprep.mubr.f32.mxu0 %v1439
        %1956 = vmatmul.mubr.f32.gmra.mrb[0].mxu0 %v1407
        %v1957 = vpop.f32.mrb[0].mxu0
        %v1958 = vadd.f32 %v1733, %v1957
        %v1959 = vpop.f32.mrb[0].mxu0
        %1960 = vmatprep.mubr.f32.mxu0 %v1440
        %1961 = vmatmul.mubr.f32.gmra.mrb[0].mxu0 %v1408
        %v1962 = vpop.f32.mrb[0].mxu0
        %v1963 = vadd.f32 %v1738, %v1962
        %v1964 = vpop.f32.mrb[0].mxu0
        %1965 = vmatprep.mubr.f32.mxu0 %v1441
        %1966 = vmatmul.mubr.f32.gmra.mrb[0].mxu0 %v1409
        %v1967 = vpop.f32.mrb[0].mxu0
        %v1968 = vadd.f32 %v1743, %v1967
        %v1969 = vpop.f32.mrb[0].mxu0
        %1970 = vmatprep.mubr.f32.mxu0 %v1442
        %1971 = vmatmul.mubr.f32.gmra.mrb[0].mxu0 %v1410
        %v1972 = vpop.f32.mrb[0].mxu0
        %v1973 = vadd.f32 %v1748, %v1972
        %v1974 = vpop.f32.mrb[0].mxu0
        %1975 = vmatprep.mubr.f32.mxu0 %v1443
        %1976 = vmatmul.mubr.f32.gmra.mrb[0].mxu0 %v1411
        %v1977 = vpop.f32.mrb[0].mxu0
        %v1978 = vadd.f32 %v1753, %v1977
        %v1979 = vpop.f32.mrb[0].mxu0
        %1980 = vmatprep.mubr.f32.mxu0 %v1444
        %1981 = vmatmul.mubr.f32.gmra.mrb[0].mxu0 %v1412
        %v1982 = vpop.f32.mrb[0].mxu0
        %v1983 = vadd.f32 %v1758, %v1982
        %v1984 = vpop.f32.mrb[0].mxu0
        %1985 = vmatprep.mubr.f32.mxu0 %v1445
        %1986 = vmatmul.mubr.f32.gmra.mrb[0].mxu0 %v1413
        %v1987 = vpop.f32.mrb[0].mxu0
        %v1988 = vadd.f32 %v1763, %v1987
        %v1989 = vpop.f32.mrb[0].mxu0
        %1990 = vmatprep.mubr.f32.mxu0 %v1446
        %1991 = vmatmul.mubr.f32.gmra.mrb[0].mxu0 %v1414
        %v1992 = vpop.f32.mrb[0].mxu0
        %v1993 = vadd.f32 %v1768, %v1992
        %v1994 = vpop.f32.mrb[0].mxu0
        %1995 = vmatprep.mubr.f32.mxu0 %v1447
        %1996 = vmatmul.mubr.f32.gmra.mrb[0].mxu0 %v1415
        %v1997 = vpop.f32.mrb[0].mxu0
        %v1998 = vadd.f32 %v1773, %v1997
        %v1999 = vpop.f32.mrb[0].mxu0
        %2000 = vmatprep.mubr.f32.mxu0 %v1448
        %2001 = vmatmul.mubr.f32.gmra.mrb[0].mxu0 %v1416
        %v2002 = vpop.f32.mrb[0].mxu0
        %v2003 = vadd.f32 %v1778, %v2002
        %v2004 = vpop.f32.mrb[0].mxu0
        %2005 = vmatprep.mubr.f32.mxu0 %v1449
        %2006 = vmatmul.mubr.f32.gmra.mrb[0].mxu0 %v1417
        %v2007 = vpop.f32.mrb[0].mxu0
        %v2008 = vadd.f32 %v1783, %v2007
        %v2009 = vpop.f32.mrb[0].mxu0
        %2010 = vmatprep.mubr.f32.mxu0 %v1450
        %2011 = vmatmul.mubr.f32.gmra.mrb[0].mxu0 %v1418
        %v2012 = vpop.f32.mrb[0].mxu0
        %v2013 = vadd.f32 %v1788, %v2012
        %v2014 = vpop.f32.mrb[0].mxu0
        %2015 = vmatprep.mubr.f32.mxu0 %v1451
        %2016 = vmatmul.mubr.f32.gmra.mrb[0].mxu0 %v1419
        %v2017 = vpop.f32.mrb[0].mxu0
        %v2018 = vadd.f32 %v1793, %v2017
        %v2019 = vpop.f32.mrb[0].mxu0
        %2020 = vmatprep.mubr.f32.mxu0 %v1452
        %2021 = vmatmul.mubr.f32.gmra.mrb[0].mxu0 %v1420
        %v2022 = vpop.f32.mrb[0].mxu0
        %v2023 = vadd.f32 %v1798, %v2022
        %v2024 = vpop.f32.mrb[0].mxu0
        %2025 = vmatprep.mubr.f32.mxu0 %v1453
        %2026 = vmatmul.mubr.f32.gmra.mrb[0].mxu0 %v1421
        %v2027 = vpop.f32.mrb[0].mxu0
        %v2028 = vadd.f32 %v1803, %v2027
        %v2029 = vpop.f32.mrb[0].mxu0
        %2030 = vmatprep.mubr.f32.mxu0 %v1454
        %2031 = vmatmul.mubr.f32.gmra.mrb[0].mxu0 %v1422
        %v2032 = vpop.f32.mrb[0].mxu0
        %v2033 = vadd.f32 %v1808, %v2032
        %v2034 = vpop.f32.mrb[0].mxu0
        %2035 = vmatprep.mubr.f32.mxu0 %v1455
        %2036 = vmatmul.mubr.f32.gmra.mrb[0].mxu0 %v1423
        %v2037 = vpop.f32.mrb[0].mxu0
        %v2038 = vadd.f32 %v1813, %v2037
        %v2039 = vpop.f32.mrb[0].mxu0
        %2040 = vmatprep.mubr.f32.mxu0 %v1456
        %2041 = vmatmul.mubr.f32.gmra.mrb[0].mxu0 %v1424
        %v2042 = vpop.f32.mrb[0].mxu0
        %v2043 = vadd.f32 %v1818, %v2042
        %v2044 = vpop.f32.mrb[0].mxu0
        %2045 = vmatprep.mubr.f32.mxu0 %v1457
        %2046 = vmatmul.mubr.f32.gmra.mrb[0].mxu0 %v1425
        %v2047 = vpop.f32.mrb[0].mxu0
        %v2048 = vadd.f32 %v1823, %v2047
        %v2049 = vpop.f32.mrb[0].mxu0
        %2050 = vmatprep.mubr.f32.mxu0 %v1458
        %2051 = vmatmul.mubr.f32.gmra.mrb[0].mxu0 %v1426
        %v2052 = vpop.f32.mrb[0].mxu0
        %v2053 = vadd.f32 %v1828, %v2052
        %v2054 = vpop.f32.mrb[0].mxu0
        %2055 = vmatprep.mubr.f32.mxu0 %v1459
        %2056 = vmatmul.mubr.f32.gmra.mrb[0].mxu0 %v1427
        %v2057 = vpop.f32.mrb[0].mxu0
        %v2058 = vadd.f32 %v1833, %v2057
        %v2059 = vpop.f32.mrb[0].mxu0
        %2060 = vmatprep.mubr.f32.mxu0 %v1460
        %2061 = vmatmul.mubr.f32.gmra.mrb[0].mxu0 %v1428
        %v2062 = vpop.f32.mrb[0].mxu0
        %v2063 = vadd.f32 %v1838, %v2062
        %v2064 = vpop.f32.mrb[0].mxu0
        %2065 = vmatprep.mubr.f32.mxu0 %v1461
        %2066 = vmatmul.mubr.f32.gmra.mrb[0].mxu0 %v1429
        %v2067 = vpop.f32.mrb[0].mxu0
        %v2068 = vadd.f32 %v1843, %v2067
        %v2069 = vpop.f32.mrb[0].mxu0
        %2070 = vmatprep.mubr.f32.mxu0 %v1462
        %2071 = vmatmul.mubr.f32.gmra.mrb[0].mxu0 %v1430
        %v2072 = vpop.f32.mrb[0].mxu0
        %v2073 = vadd.f32 %v1848, %v2072
        %v2074 = vpop.f32.mrb[0].mxu0
        %2075 = vmatprep.mubr.f32.mxu0 %v1463
        %2076 = vmatmul.mubr.f32.gmra.mrb[0].mxu0 %v1431
        %v2077 = vpop.f32.mrb[0].mxu0
        %v2078 = vadd.f32 %v1853, %v2077
        %v2079 = vpop.f32.mrb[0].mxu0
        %2080 = vmatprep.mubr.f32.mxu0 %v1464
        %2081 = vmatmul.mubr.f32.gmra.mrb[0].mxu0 %v1432
        %v2082 = vpop.f32.mrb[0].mxu0
        %v2083 = vadd.f32 %v1858, %v2082
        %v2084 = vpop.f32.mrb[0].mxu0
        %2085 = vmatprep.mubr.f32.mxu0 %v1465
        %2086 = vmatmul.mubr.f32.gmra.mrb[0].mxu0 %v1433
        %v2087 = vpop.f32.mrb[0].mxu0
        %v2088 = vadd.f32 %v1863, %v2087
        %v2089 = vpop.f32.mrb[0].mxu0
        %2090 = vdwg.mxu0
        %2091 = vmatprep.subr.mxu0 0.0
        %2092 = vmatpush1.msra.mxu0 %v1530
        %2093 = vmatprep.subr.mxu0 0.0
        %2094 = vmatpush1.msra.mxu0 %v1531
        %2095 = vmatprep.subr.mxu0 0.0
        %2096 = vmatpush1.msra.mxu0 %v1532
        %2097 = vmatprep.subr.mxu0 0.0
        %2098 = vmatpush1.msra.mxu0 %v1533
        %2099 = vmatprep.subr.mxu0 0.0
        %2100 = vmatpush1.msra.mxu0 %v1534
        %2101 = vmatprep.subr.mxu0 0.0
        %2102 = vmatpush1.msra.mxu0 %v1535
        %2103 = vmatprep.subr.mxu0 0.0
        %2104 = vmatpush1.msra.mxu0 %v1536
        %2105 = vmatprep.subr.mxu0 0.0
        %2106 = vmatpush1.msra.mxu0 %v1537
        %2107 = vmatprep.subr.mxu0 0.0
        %2108 = vmatpush1.msra.mxu0 0.0
        %2109 = vmatprep.subr.mxu0 0.0
        %2110 = vmatpush1.msra.mxu0 0.0
        %2111 = vmatprep.subr.mxu0 0.0
        %2112 = vmatpush1.msra.mxu0 0.0
        %2113 = vmatprep.subr.mxu0 0.0
        %2114 = vmatpush1.msra.mxu0 0.0
        %2115 = vmatprep.subr.mxu0 0.0
        %2116 = vmatpush1.msra.mxu0 0.0
        %2117 = vmatprep.subr.mxu0 0.0
        %2118 = vmatpush1.msra.mxu0 0.0
        %2119 = vmatprep.subr.mxu0 0.0
        %2120 = vmatpush1.msra.mxu0 0.0
        %2121 = vmatprep.subr.mxu0 0.0
        %2122 = vmatpush1.msra.mxu0 0.0
        %2123 = vmatprep.subr.mxu0 0.0
        %2124 = vmatpush1.msra.mxu0 0.0
        %2125 = vmatprep.subr.mxu0 0.0
        %2126 = vmatpush1.msra.mxu0 0.0
        %2127 = vmatprep.subr.mxu0 0.0
        %2128 = vmatpush1.msra.mxu0 0.0
        %2129 = vmatprep.subr.mxu0 0.0
        %2130 = vmatpush1.msra.mxu0 0.0
        %2131 = vmatprep.subr.mxu0 0.0
        %2132 = vmatpush1.msra.mxu0 0.0
        %2133 = vmatprep.subr.mxu0 0.0
        %2134 = vmatpush1.msra.mxu0 0.0
        %2135 = vmatprep.subr.mxu0 0.0
        %2136 = vmatpush1.msra.mxu0 0.0
        %2137 = vmatprep.subr.mxu0 0.0
        %2138 = vmatpush1.msra.mxu0 0.0
        %2139 = vmatprep.subr.mxu0 0.0
        %2140 = vmatpush1.msra.mxu0 0.0
        %2141 = vmatprep.subr.mxu0 0.0
        %2142 = vmatpush1.msra.mxu0 0.0
        %2143 = vmatprep.subr.mxu0 0.0
        %2144 = vmatpush1.msra.mxu0 0.0
        %2145 = vmatprep.subr.mxu0 0.0
        %2146 = vmatpush1.msra.mxu0 0.0
        %2147 = vmatprep.subr.mxu0 0.0
        %2148 = vmatpush1.msra.mxu0 0.0
        %2149 = vmatprep.subr.mxu0 0.0
        %2150 = vmatpush1.msra.mxu0 0.0
        %2151 = vmatprep.subr.mxu0 0.0
        %2152 = vmatpush1.msra.mxu0 0.0
        %2153 = vmatprep.subr.mxu0 0.0
        %2154 = vmatpush1.msra.mxu0 0.0
        %2155 = vmatprep.mubr.f32.mxu0 0.0
        %2156 = vmatmul.mubr.f32.gmra.mrb[0].mxu0 %v1546
        %v2157 = vpop.f32.mrb[0].mxu0
        %v2158 = vadd.f32 %v1933, %v2157
        %v2159 = vpop.f32.mrb[0].mxu0
        %2160 = vmatprep.mubr.f32.mxu0 0.0
        %2161 = vmatmul.mubr.f32.gmra.mrb[0].mxu0 %v1549
        %v2162 = vpop.f32.mrb[0].mxu0
        %v2163 = vadd.f32 %v1938, %v2162
        %v2164 = vpop.f32.mrb[0].mxu0
        %2165 = vmatprep.mubr.f32.mxu0 0.0
        %2166 = vmatmul.mubr.f32.gmra.mrb[0].mxu0 %v1552
        %v2167 = vpop.f32.mrb[0].mxu0
        %v2168 = vadd.f32 %v1943, %v2167
        %v2169 = vpop.f32.mrb[0].mxu0
        %2170 = vmatprep.mubr.f32.mxu0 0.0
        %2171 = vmatmul.mubr.f32.gmra.mrb[0].mxu0 %v1555
        %v2172 = vpop.f32.mrb[0].mxu0
        %v2173 = vadd.f32 %v1948, %v2172
        %v2174 = vpop.f32.mrb[0].mxu0
        %2175 = vmatprep.mubr.f32.mxu0 0.0
        %2176 = vmatmul.mubr.f32.gmra.mrb[0].mxu0 %v1558
        %v2177 = vpop.f32.mrb[0].mxu0
        %v2178 = vadd.f32 %v1953, %v2177
        %v2179 = vpop.f32.mrb[0].mxu0
        %2180 = vmatprep.mubr.f32.mxu0 0.0
        %2181 = vmatmul.mubr.f32.gmra.mrb[0].mxu0 %v1561
        %v2182 = vpop.f32.mrb[0].mxu0
        %v2183 = vadd.f32 %v1958, %v2182
        %v2184 = vpop.f32.mrb[0].mxu0
        %2185 = vmatprep.mubr.f32.mxu0 0.0
        %2186 = vmatmul.mubr.f32.gmra.mrb[0].mxu0 %v1564
        %v2187 = vpop.f32.mrb[0].mxu0
        %v2188 = vadd.f32 %v1963, %v2187
        %v2189 = vpop.f32.mrb[0].mxu0
        %2190 = vmatprep.mubr.f32.mxu0 0.0
        %2191 = vmatmul.mubr.f32.gmra.mrb[0].mxu0 %v1567
        %v2192 = vpop.f32.mrb[0].mxu0
        %v2193 = vadd.f32 %v1968, %v2192
        %v2194 = vpop.f32.mrb[0].mxu0
        %2195 = vmatprep.mubr.f32.mxu0 0.0
        %2196 = vmatmul.mubr.f32.gmra.mrb[0].mxu0 %v1570
        %v2197 = vpop.f32.mrb[0].mxu0
        %v2198 = vadd.f32 %v1973, %v2197
        %v2199 = vpop.f32.mrb[0].mxu0
        %2200 = vmatprep.mubr.f32.mxu0 0.0
        %2201 = vmatmul.mubr.f32.gmra.mrb[0].mxu0 %v1573
        %v2202 = vpop.f32.mrb[0].mxu0
        %v2203 = vadd.f32 %v1978, %v2202
        %v2204 = vpop.f32.mrb[0].mxu0
        %2205 = vmatprep.mubr.f32.mxu0 0.0
        %2206 = vmatmul.mubr.f32.gmra.mrb[0].mxu0 %v1576
        %v2207 = vpop.f32.mrb[0].mxu0
        %v2208 = vadd.f32 %v1983, %v2207
        %v2209 = vpop.f32.mrb[0].mxu0
        %2210 = vmatprep.mubr.f32.mxu0 0.0
        %2211 = vmatmul.mubr.f32.gmra.mrb[0].mxu0 %v1579
        %v2212 = vpop.f32.mrb[0].mxu0
        %v2213 = vadd.f32 %v1988, %v2212
        %v2214 = vpop.f32.mrb[0].mxu0
        %2215 = vmatprep.mubr.f32.mxu0 0.0
        %2216 = vmatmul.mubr.f32.gmra.mrb[0].mxu0 %v1582
        %v2217 = vpop.f32.mrb[0].mxu0
        %v2218 = vadd.f32 %v1993, %v2217
        %v2219 = vpop.f32.mrb[0].mxu0
        %2220 = vmatprep.mubr.f32.mxu0 0.0
        %2221 = vmatmul.mubr.f32.gmra.mrb[0].mxu0 %v1585
        %v2222 = vpop.f32.mrb[0].mxu0
        %v2223 = vadd.f32 %v1998, %v2222
        %v2224 = vpop.f32.mrb[0].mxu0
        %2225 = vmatprep.mubr.f32.mxu0 0.0
        %2226 = vmatmul.mubr.f32.gmra.mrb[0].mxu0 %v1588
        %v2227 = vpop.f32.mrb[0].mxu0
        %v2228 = vadd.f32 %v2003, %v2227
        %v2229 = vpop.f32.mrb[0].mxu0
        %2230 = vmatprep.mubr.f32.mxu0 0.0
        %2231 = vmatmul.mubr.f32.gmra.mrb[0].mxu0 %v1591
        %v2232 = vpop.f32.mrb[0].mxu0
        %v2233 = vadd.f32 %v2008, %v2232
        %v2234 = vpop.f32.mrb[0].mxu0
        %2235 = vmatprep.mubr.f32.mxu0 0.0
        %2236 = vmatmul.mubr.f32.gmra.mrb[0].mxu0 %v1594
        %v2237 = vpop.f32.mrb[0].mxu0
        %v2238 = vadd.f32 %v2013, %v2237
        %v2239 = vpop.f32.mrb[0].mxu0
        %2240 = vmatprep.mubr.f32.mxu0 0.0
        %2241 = vmatmul.mubr.f32.gmra.mrb[0].mxu0 %v1597
        %v2242 = vpop.f32.mrb[0].mxu0
        %v2243 = vadd.f32 %v2018, %v2242
        %v2244 = vpop.f32.mrb[0].mxu0
        %2245 = vmatprep.mubr.f32.mxu0 0.0
        %2246 = vmatmul.mubr.f32.gmra.mrb[0].mxu0 %v1600
        %v2247 = vpop.f32.mrb[0].mxu0
        %v2248 = vadd.f32 %v2023, %v2247
        %v2249 = vpop.f32.mrb[0].mxu0
        %2250 = vmatprep.mubr.f32.mxu0 0.0
        %2251 = vmatmul.mubr.f32.gmra.mrb[0].mxu0 %v1603
        %v2252 = vpop.f32.mrb[0].mxu0
        %v2253 = vadd.f32 %v2028, %v2252
        %v2254 = vpop.f32.mrb[0].mxu0
        %2255 = vmatprep.mubr.f32.mxu0 0.0
        %2256 = vmatmul.mubr.f32.gmra.mrb[0].mxu0 %v1606
        %v2257 = vpop.f32.mrb[0].mxu0
        %v2258 = vadd.f32 %v2033, %v2257
        %v2259 = vpop.f32.mrb[0].mxu0
        %2260 = vmatprep.mubr.f32.mxu0 0.0
        %2261 = vmatmul.mubr.f32.gmra.mrb[0].mxu0 %v1609
        %v2262 = vpop.f32.mrb[0].mxu0
        %v2263 = vadd.f32 %v2038, %v2262
        %v2264 = vpop.f32.mrb[0].mxu0
        %2265 = vmatprep.mubr.f32.mxu0 0.0
        %2266 = vmatmul.mubr.f32.gmra.mrb[0].mxu0 %v1612
        %v2267 = vpop.f32.mrb[0].mxu0
        %v2268 = vadd.f32 %v2043, %v2267
        %v2269 = vpop.f32.mrb[0].mxu0
        %2270 = vmatprep.mubr.f32.mxu0 0.0
        %2271 = vmatmul.mubr.f32.gmra.mrb[0].mxu0 %v1615
        %v2272 = vpop.f32.mrb[0].mxu0
        %v2273 = vadd.f32 %v2048, %v2272
        %v2274 = vpop.f32.mrb[0].mxu0
        %2275 = vmatprep.mubr.f32.mxu0 0.0
        %2276 = vmatmul.mubr.f32.gmra.mrb[0].mxu0 %v1618
        %v2277 = vpop.f32.mrb[0].mxu0
        %v2278 = vadd.f32 %v2053, %v2277
        %v2279 = vpop.f32.mrb[0].mxu0
        %2280 = vmatprep.mubr.f32.mxu0 0.0
        %2281 = vmatmul.mubr.f32.gmra.mrb[0].mxu0 %v1621
        %v2282 = vpop.f32.mrb[0].mxu0
        %v2283 = vadd.f32 %v2058, %v2282
        %v2284 = vpop.f32.mrb[0].mxu0
        %2285 = vmatprep.mubr.f32.mxu0 0.0
        %2286 = vmatmul.mubr.f32.gmra.mrb[0].mxu0 %v1624
        %v2287 = vpop.f32.mrb[0].mxu0
        %v2288 = vadd.f32 %v2063, %v2287
        %v2289 = vpop.f32.mrb[0].mxu0
        %2290 = vmatprep.mubr.f32.mxu0 0.0
        %2291 = vmatmul.mubr.f32.gmra.mrb[0].mxu0 %v1627
        %v2292 = vpop.f32.mrb[0].mxu0
        %v2293 = vadd.f32 %v2068, %v2292
        %v2294 = vpop.f32.mrb[0].mxu0
        %2295 = vmatprep.mubr.f32.mxu0 0.0
        %2296 = vmatmul.mubr.f32.gmra.mrb[0].mxu0 %v1630
        %v2297 = vpop.f32.mrb[0].mxu0
        %v2298 = vadd.f32 %v2073, %v2297
        %v2299 = vpop.f32.mrb[0].mxu0
        %2300 = vmatprep.mubr.f32.mxu0 0.0
        %2301 = vmatmul.mubr.f32.gmra.mrb[0].mxu0 %v1633
        %v2302 = vpop.f32.mrb[0].mxu0
        %v2303 = vadd.f32 %v2078, %v2302
        %v2304 = vpop.f32.mrb[0].mxu0
        %2305 = vmatprep.mubr.f32.mxu0 0.0
        %2306 = vmatmul.mubr.f32.gmra.mrb[0].mxu0 %v1636
        %v2307 = vpop.f32.mrb[0].mxu0
        %v2308 = vadd.f32 %v2083, %v2307
        %v2309 = vpop.f32.mrb[0].mxu0
        %2310 = vmatprep.mubr.f32.mxu0 0.0
        %2311 = vmatmul.mubr.f32.gmra.mrb[0].mxu0 %v1639
        %v2312 = vpop.f32.mrb[0].mxu0
        %v2313 = vadd.f32 %v2088, %v2312
        %v2314 = vpop.f32.mrb[0].mxu0
        %2315 = vdwg.mxu0
        %v2316 = vmax.f32 %v2158, 0.0
        %v2317 = vmax.f32 %v2163, 0.0
        %v2318 = vmax.f32 %v2168, 0.0
        %v2319 = vmax.f32 %v2173, 0.0
        %v2320 = vmax.f32 %v2178, 0.0
        %v2321 = vmax.f32 %v2183, 0.0
        %v2322 = vmax.f32 %v2188, 0.0
        %v2323 = vmax.f32 %v2193, 0.0
        %v2324 = vmax.f32 %v2198, 0.0
        %v2325 = vmax.f32 %v2203, 0.0
        %v2326 = vmax.f32 %v2208, 0.0
        %v2327 = vmax.f32 %v2213, 0.0
        %v2328 = vmax.f32 %v2218, 0.0
        %v2329 = vmax.f32 %v2223, 0.0
        %v2330 = vmax.f32 %v2228, 0.0
        %v2331 = vmax.f32 %v2233, 0.0
        %v2332 = vmax.f32 %v2238, 0.0
        %v2333 = vmax.f32 %v2243, 0.0
        %v2334 = vmax.f32 %v2248, 0.0
        %v2335 = vmax.f32 %v2253, 0.0
        %v2336 = vmax.f32 %v2258, 0.0
        %v2337 = vmax.f32 %v2263, 0.0
        %v2338 = vmax.f32 %v2268, 0.0
        %v2339 = vmax.f32 %v2273, 0.0
        %v2340 = vmax.f32 %v2278, 0.0
        %v2341 = vmax.f32 %v2283, 0.0
        %v2342 = vmax.f32 %v2288, 0.0
        %v2343 = vmax.f32 %v2293, 0.0
        %v2344 = vmax.f32 %v2298, 0.0
        %v2345 = vmax.f32 %v2303, 0.0
        %v2346 = vmax.f32 %v2308, 0.0
        %v2347 = vmax.f32 %v2313, 0.0
        %vm2348 = vcmask 261120
        %2349 = vst.msk [vmem:[%s503 + $0x1] sm:$0xff] %vm2348, %v2316
        %2350 = vst.msk [vmem:[%s503 + $0x11] sm:$0xff] %vm2348, %v2317
        %2351 = vst.msk [vmem:[%s503 + $0x21] sm:$0xff] %vm2348, %v2318
        %2352 = vst.msk [vmem:[%s503 + $0x31] sm:$0xff] %vm2348, %v2319
        %2353 = vst.msk [vmem:[%s503 + $0x41] sm:$0xff] %vm2348, %v2320
        %2354 = vst.msk [vmem:[%s503 + $0x51] sm:$0xff] %vm2348, %v2321
        %2355 = vst.msk [vmem:[%s503 + $0x61] sm:$0xff] %vm2348, %v2322
        %2356 = vst.msk [vmem:[%s503 + $0x71] sm:$0xff] %vm2348, %v2323
        %2357 = vst.msk [vmem:[%s503 + $0xa1] sm:$0xff] %vm2348, %v2324
        %2358 = vst.msk [vmem:[%s503 + $0xb1] sm:$0xff] %vm2348, %v2325
        %2359 = vst.msk [vmem:[%s503 + $0xc1] sm:$0xff] %vm2348, %v2326
        %2360 = vst.msk [vmem:[%s503 + $0xd1] sm:$0xff] %vm2348, %v2327
        %2361 = vst.msk [vmem:[%s503 + $0xe1] sm:$0xff] %vm2348, %v2328
        %2362 = vst.msk [vmem:[%s503 + $0xf1] sm:$0xff] %vm2348, %v2329
        %2363 = vst.msk [vmem:[%s503 + $0x101] sm:$0xff] %vm2348, %v2330
        %2364 = vst.msk [vmem:[%s503 + $0x111] sm:$0xff] %vm2348, %v2331
        %2365 = vst.msk [vmem:[%s503 + $0x141] sm:$0xff] %vm2348, %v2332
        %2366 = vst.msk [vmem:[%s503 + $0x151] sm:$0xff] %vm2348, %v2333
        %2367 = vst.msk [vmem:[%s503 + $0x161] sm:$0xff] %vm2348, %v2334
        %2368 = vst.msk [vmem:[%s503 + $0x171] sm:$0xff] %vm2348, %v2335
        %2369 = vst.msk [vmem:[%s503 + $0x181] sm:$0xff] %vm2348, %v2336
        %2370 = vst.msk [vmem:[%s503 + $0x191] sm:$0xff] %vm2348, %v2337
        %2371 = vst.msk [vmem:[%s503 + $0x1a1] sm:$0xff] %vm2348, %v2338
        %2372 = vst.msk [vmem:[%s503 + $0x1b1] sm:$0xff] %vm2348, %v2339
        %2373 = vst.msk [vmem:[%s503 + $0x1e1] sm:$0xff] %vm2348, %v2340
        %2374 = vst.msk [vmem:[%s503 + $0x1f1] sm:$0xff] %vm2348, %v2341
        %2375 = vst.msk [vmem:[%s503 + $0x201] sm:$0xff] %vm2348, %v2342
        %2376 = vst.msk [vmem:[%s503 + $0x211] sm:$0xff] %vm2348, %v2343
        %2377 = vst.msk [vmem:[%s503 + $0x221] sm:$0xff] %vm2348, %v2344
        %2378 = vst.msk [vmem:[%s503 + $0x231] sm:$0xff] %vm2348, %v2345
        %2379 = vst.msk [vmem:[%s503 + $0x241] sm:$0xff] %vm2348, %v2346
        %2380 = vst.msk [vmem:[%s503 + $0x251] sm:$0xff] %vm2348, %v2347
        %v2381 = vld [vmem:[#allocation2] sm:$0xff]
        %v2382 = vld [vmem:[#allocation2 + $0x10] sm:$0xff]
        %v2383 = vld [vmem:[#allocation2 + $0x20] sm:$0xff]
        %v2384 = vld [vmem:[#allocation2 + $0x30] sm:$0xff]
        %v2385 = vld [vmem:[#allocation2 + $0x40] sm:$0xff]
        %v2386 = vld [vmem:[#allocation2 + $0x50] sm:$0xff]
        %v2387 = vld [vmem:[#allocation2 + $0x60] sm:$0xff]
        %v2388 = vld [vmem:[#allocation2 + $0x70] sm:$0xff]
        %v2389 = vld [vmem:[#allocation2 + $0xa0] sm:$0xff]
        %v2390 = vld [vmem:[#allocation2 + $0xb0] sm:$0xff]
        %v2391 = vld [vmem:[#allocation2 + $0xc0] sm:$0xff]
        %v2392 = vld [vmem:[#allocation2 + $0xd0] sm:$0xff]
        %v2393 = vld [vmem:[#allocation2 + $0xe0] sm:$0xff]
        %v2394 = vld [vmem:[#allocation2 + $0xf0] sm:$0xff]
        %v2395 = vld [vmem:[#allocation2 + $0x100] sm:$0xff]
        %v2396 = vld [vmem:[#allocation2 + $0x110] sm:$0xff]
        %v2397 = vld [vmem:[#allocation2 + $0x140] sm:$0xff]
        %v2398 = vld [vmem:[#allocation2 + $0x150] sm:$0xff]
        %v2399 = vld [vmem:[#allocation2 + $0x160] sm:$0xff]
        %v2400 = vld [vmem:[#allocation2 + $0x170] sm:$0xff]
        %v2401 = vld [vmem:[#allocation2 + $0x180] sm:$0xff]
        %v2402 = vld [vmem:[#allocation2 + $0x190] sm:$0xff]
        %v2403 = vld [vmem:[#allocation2 + $0x1a0] sm:$0xff]
        %v2404 = vld [vmem:[#allocation2 + $0x1b0] sm:$0xff]
        %v2405 = vld [vmem:[#allocation2 + $0x1e0] sm:$0xff]
        %v2406 = vld [vmem:[#allocation2 + $0x1f0] sm:$0xff]
        %v2407 = vld [vmem:[#allocation2 + $0x200] sm:$0xff]
        %v2408 = vld [vmem:[#allocation2 + $0x210] sm:$0xff]
        %v2409 = vld [vmem:[#allocation2 + $0x220] sm:$0xff]
        %v2410 = vld [vmem:[#allocation2 + $0x230] sm:$0xff]
        %v2411 = vld [vmem:[#allocation2 + $0x240] sm:$0xff]
        %v2412 = vld [vmem:[#allocation2 + $0x250] sm:$0xff]
        %v2413 = vld [vmem:[#allocation2 + $0x1] sm:$0xff]
        %v2414 = vld [vmem:[#allocation2 + $0x11] sm:$0xff]
        %v2415 = vld [vmem:[#allocation2 + $0x21] sm:$0xff]
        %v2416 = vld [vmem:[#allocation2 + $0x31] sm:$0xff]
        %v2417 = vld [vmem:[#allocation2 + $0x41] sm:$0xff]
        %v2418 = vld [vmem:[#allocation2 + $0x51] sm:$0xff]
        %v2419 = vld [vmem:[#allocation2 + $0x61] sm:$0xff]
        %v2420 = vld [vmem:[#allocation2 + $0x71] sm:$0xff]
        %v2421 = vld [vmem:[#allocation2 + $0xa1] sm:$0xff]
        %v2422 = vld [vmem:[#allocation2 + $0xb1] sm:$0xff]
        %v2423 = vld [vmem:[#allocation2 + $0xc1] sm:$0xff]
        %v2424 = vld [vmem:[#allocation2 + $0xd1] sm:$0xff]
        %v2425 = vld [vmem:[#allocation2 + $0xe1] sm:$0xff]
        %v2426 = vld [vmem:[#allocation2 + $0xf1] sm:$0xff]
        %v2427 = vld [vmem:[#allocation2 + $0x101] sm:$0xff]
        %v2428 = vld [vmem:[#allocation2 + $0x111] sm:$0xff]
        %v2429 = vld [vmem:[#allocation2 + $0x141] sm:$0xff]
        %v2430 = vld [vmem:[#allocation2 + $0x151] sm:$0xff]
        %v2431 = vld [vmem:[#allocation2 + $0x161] sm:$0xff]
        %v2432 = vld [vmem:[#allocation2 + $0x171] sm:$0xff]
        %v2433 = vld [vmem:[#allocation2 + $0x181] sm:$0xff]
        %v2434 = vld [vmem:[#allocation2 + $0x191] sm:$0xff]
        %v2435 = vld [vmem:[#allocation2 + $0x1a1] sm:$0xff]
        %v2436 = vld [vmem:[#allocation2 + $0x1b1] sm:$0xff]
        %v2437 = vld [vmem:[#allocation2 + $0x1e1] sm:$0xff]
        %v2438 = vld [vmem:[#allocation2 + $0x1f1] sm:$0xff]
        %v2439 = vld [vmem:[#allocation2 + $0x201] sm:$0xff]
        %v2440 = vld [vmem:[#allocation2 + $0x211] sm:$0xff]
        %v2441 = vld [vmem:[#allocation2 + $0x221] sm:$0xff]
        %v2442 = vld [vmem:[#allocation2 + $0x231] sm:$0xff]
        %v2443 = vld [vmem:[#allocation2 + $0x241] sm:$0xff]
        %v2444 = vld [vmem:[#allocation2 + $0x251] sm:$0xff]
        %v2445 = vld [vmem:[#allocation2 + $0x2] sm:$0xff]
        %v2446 = vld [vmem:[#allocation2 + $0x12] sm:$0xff]
        %v2447 = vld [vmem:[#allocation2 + $0x22] sm:$0xff]
        %v2448 = vld [vmem:[#allocation2 + $0x32] sm:$0xff]
        %v2449 = vld [vmem:[#allocation2 + $0x42] sm:$0xff]
        %v2450 = vld [vmem:[#allocation2 + $0x52] sm:$0xff]
        %v2451 = vld [vmem:[#allocation2 + $0x62] sm:$0xff]
        %v2452 = vld [vmem:[#allocation2 + $0x72] sm:$0xff]
        %v2453 = vld [vmem:[#allocation2 + $0xa2] sm:$0xff]
        %v2454 = vld [vmem:[#allocation2 + $0xb2] sm:$0xff]
        %v2455 = vld [vmem:[#allocation2 + $0xc2] sm:$0xff]
        %v2456 = vld [vmem:[#allocation2 + $0xd2] sm:$0xff]
        %v2457 = vld [vmem:[#allocation2 + $0xe2] sm:$0xff]
        %v2458 = vld [vmem:[#allocation2 + $0xf2] sm:$0xff]
        %v2459 = vld [vmem:[#allocation2 + $0x102] sm:$0xff]
        %v2460 = vld [vmem:[#allocation2 + $0x112] sm:$0xff]
        %v2461 = vld [vmem:[#allocation2 + $0x142] sm:$0xff]
        %v2462 = vld [vmem:[#allocation2 + $0x152] sm:$0xff]
        %v2463 = vld [vmem:[#allocation2 + $0x162] sm:$0xff]
        %v2464 = vld [vmem:[#allocation2 + $0x172] sm:$0xff]
        %v2465 = vld [vmem:[#allocation2 + $0x182] sm:$0xff]
        %v2466 = vld [vmem:[#allocation2 + $0x192] sm:$0xff]
        %v2467 = vld [vmem:[#allocation2 + $0x1a2] sm:$0xff]
        %v2468 = vld [vmem:[#allocation2 + $0x1b2] sm:$0xff]
        %v2469 = vld [vmem:[#allocation2 + $0x1e2] sm:$0xff]
        %v2470 = vld [vmem:[#allocation2 + $0x1f2] sm:$0xff]
        %v2471 = vld [vmem:[#allocation2 + $0x202] sm:$0xff]
        %v2472 = vld [vmem:[#allocation2 + $0x212] sm:$0xff]
        %v2473 = vld [vmem:[#allocation2 + $0x222] sm:$0xff]
        %v2474 = vld [vmem:[#allocation2 + $0x232] sm:$0xff]
        %v2475 = vld [vmem:[#allocation2 + $0x242] sm:$0xff]
        %v2476 = vld [vmem:[#allocation2 + $0x252] sm:$0xff]
        %v2477 = vld [vmem:[%s503] sm:$0xff]
        %v2478 = vld [vmem:[%s503 + $0x10] sm:$0xff]
        %v2479 = vld [vmem:[%s503 + $0x20] sm:$0xff]
        %v2480 = vld [vmem:[%s503 + $0x30] sm:$0xff]
        %v2481 = vld [vmem:[%s503 + $0x40] sm:$0xff]
        %v2482 = vld [vmem:[%s503 + $0x50] sm:$0xff]
        %v2483 = vld [vmem:[%s503 + $0x60] sm:$0xff]
        %v2484 = vld [vmem:[%s503 + $0x70] sm:$0xff]
        %v2485 = vld [vmem:[%s503 + $0xa0] sm:$0xff]
        %v2486 = vld [vmem:[%s503 + $0xb0] sm:$0xff]
        %v2487 = vld [vmem:[%s503 + $0xc0] sm:$0xff]
        %v2488 = vld [vmem:[%s503 + $0xd0] sm:$0xff]
        %v2489 = vld [vmem:[%s503 + $0xe0] sm:$0xff]
        %v2490 = vld [vmem:[%s503 + $0xf0] sm:$0xff]
        %v2491 = vld [vmem:[%s503 + $0x100] sm:$0xff]
        %v2492 = vld [vmem:[%s503 + $0x110] sm:$0xff]
        %v2493 = vld [vmem:[%s503 + $0x140] sm:$0xff]
        %v2494 = vld [vmem:[%s503 + $0x150] sm:$0xff]
        %v2495 = vld [vmem:[%s503 + $0x160] sm:$0xff]
        %v2496 = vld [vmem:[%s503 + $0x170] sm:$0xff]
        %v2497 = vld [vmem:[%s503 + $0x180] sm:$0xff]
        %v2498 = vld [vmem:[%s503 + $0x190] sm:$0xff]
        %v2499 = vld [vmem:[%s503 + $0x1a0] sm:$0xff]
        %v2500 = vld [vmem:[%s503 + $0x1b0] sm:$0xff]
        %v2501 = vld [vmem:[%s503 + $0x1e0] sm:$0xff]
        %v2502 = vld [vmem:[%s503 + $0x1f0] sm:$0xff]
        %v2503 = vld [vmem:[%s503 + $0x200] sm:$0xff]
        %v2504 = vld [vmem:[%s503 + $0x210] sm:$0xff]
        %v2505 = vld [vmem:[%s503 + $0x220] sm:$0xff]
        %v2506 = vld [vmem:[%s503 + $0x230] sm:$0xff]
        %v2507 = vld [vmem:[%s503 + $0x240] sm:$0xff]
        %v2508 = vld [vmem:[%s503 + $0x250] sm:$0xff]
        %v2509 = vld [vmem:[%s503 + $0x1] sm:$0xff]
        %v2510 = vld [vmem:[%s503 + $0x11] sm:$0xff]
        %v2511 = vld [vmem:[%s503 + $0x21] sm:$0xff]
        %v2512 = vld [vmem:[%s503 + $0x31] sm:$0xff]
        %v2513 = vld [vmem:[%s503 + $0x41] sm:$0xff]
        %v2514 = vld [vmem:[%s503 + $0x51] sm:$0xff]
        %v2515 = vld [vmem:[%s503 + $0x61] sm:$0xff]
        %v2516 = vld [vmem:[%s503 + $0x71] sm:$0xff]
        %v2517 = vld [vmem:[%s503 + $0xa1] sm:$0xff]
        %v2518 = vld [vmem:[%s503 + $0xb1] sm:$0xff]
        %v2519 = vld [vmem:[%s503 + $0xc1] sm:$0xff]
        %v2520 = vld [vmem:[%s503 + $0xd1] sm:$0xff]
        %v2521 = vld [vmem:[%s503 + $0xe1] sm:$0xff]
        %v2522 = vld [vmem:[%s503 + $0xf1] sm:$0xff]
        %v2523 = vld [vmem:[%s503 + $0x101] sm:$0xff]
        %v2524 = vld [vmem:[%s503 + $0x111] sm:$0xff]
        %v2525 = vld [vmem:[%s503 + $0x141] sm:$0xff]
        %v2526 = vld [vmem:[%s503 + $0x151] sm:$0xff]
        %v2527 = vld [vmem:[%s503 + $0x161] sm:$0xff]
        %v2528 = vld [vmem:[%s503 + $0x171] sm:$0xff]
        %v2529 = vld [vmem:[%s503 + $0x181] sm:$0xff]
        %v2530 = vld [vmem:[%s503 + $0x191] sm:$0xff]
        %v2531 = vld [vmem:[%s503 + $0x1a1] sm:$0xff]
        %v2532 = vld [vmem:[%s503 + $0x1b1] sm:$0xff]
        %v2533 = vld [vmem:[%s503 + $0x1e1] sm:$0xff]
        %v2534 = vld [vmem:[%s503 + $0x1f1] sm:$0xff]
        %v2535 = vld [vmem:[%s503 + $0x201] sm:$0xff]
        %v2536 = vld [vmem:[%s503 + $0x211] sm:$0xff]
        %v2537 = vld [vmem:[%s503 + $0x221] sm:$0xff]
        %v2538 = vld [vmem:[%s503 + $0x231] sm:$0xff]
        %v2539 = vld [vmem:[%s503 + $0x241] sm:$0xff]
        %v2540 = vld [vmem:[%s503 + $0x251] sm:$0xff]
        %v2541 = vld [vmem:[%s503 + $0x2] sm:$0xff]
        %v2542 = vld [vmem:[%s503 + $0x12] sm:$0xff]
        %v2543 = vld [vmem:[%s503 + $0x22] sm:$0xff]
        %v2544 = vld [vmem:[%s503 + $0x32] sm:$0xff]
        %v2545 = vld [vmem:[%s503 + $0x42] sm:$0xff]
        %v2546 = vld [vmem:[%s503 + $0x52] sm:$0xff]
        %v2547 = vld [vmem:[%s503 + $0x62] sm:$0xff]
        %v2548 = vld [vmem:[%s503 + $0x72] sm:$0xff]
        %v2549 = vld [vmem:[%s503 + $0xa2] sm:$0xff]
        %v2550 = vld [vmem:[%s503 + $0xb2] sm:$0xff]
        %v2551 = vld [vmem:[%s503 + $0xc2] sm:$0xff]
        %v2552 = vld [vmem:[%s503 + $0xd2] sm:$0xff]
        %v2553 = vld [vmem:[%s503 + $0xe2] sm:$0xff]
        %v2554 = vld [vmem:[%s503 + $0xf2] sm:$0xff]
        %v2555 = vld [vmem:[%s503 + $0x102] sm:$0xff]
        %v2556 = vld [vmem:[%s503 + $0x112] sm:$0xff]
        %v2557 = vld [vmem:[%s503 + $0x142] sm:$0xff]
        %v2558 = vld [vmem:[%s503 + $0x152] sm:$0xff]
        %v2559 = vld [vmem:[%s503 + $0x162] sm:$0xff]
        %v2560 = vld [vmem:[%s503 + $0x172] sm:$0xff]
        %v2561 = vld [vmem:[%s503 + $0x182] sm:$0xff]
        %v2562 = vld [vmem:[%s503 + $0x192] sm:$0xff]
        %v2563 = vld [vmem:[%s503 + $0x1a2] sm:$0xff]
        %v2564 = vld [vmem:[%s503 + $0x1b2] sm:$0xff]
        %v2565 = vld [vmem:[%s503 + $0x1e2] sm:$0xff]
        %v2566 = vld [vmem:[%s503 + $0x1f2] sm:$0xff]
        %v2567 = vld [vmem:[%s503 + $0x202] sm:$0xff]
        %v2568 = vld [vmem:[%s503 + $0x212] sm:$0xff]
        %v2569 = vld [vmem:[%s503 + $0x222] sm:$0xff]
        %v2570 = vld [vmem:[%s503 + $0x232] sm:$0xff]
        %v2571 = vld [vmem:[%s503 + $0x242] sm:$0xff]
        %v2572 = vld [vmem:[%s503 + $0x252] sm:$0xff]
        %v2573 = vld [vmem:[%s729] sm:$0xff]
        %v2574 = vld [vmem:[%s729 + $0x10] sm:$0xff]
        %v2575 = vld [vmem:[%s729 + $0x20] sm:$0xff]
        %v2576 = vld [vmem:[%s729 + $0x30] sm:$0xff]
        %v2577 = vld [vmem:[%s729 + $0x40] sm:$0xff]
        %v2578 = vld [vmem:[%s729 + $0x50] sm:$0xff]
        %v2579 = vld [vmem:[%s729 + $0x60] sm:$0xff]
        %v2580 = vld [vmem:[%s729 + $0x70] sm:$0xff]
        %v2581 = vld [vmem:[%s729 + $0xa0] sm:$0xff]
        %v2582 = vld [vmem:[%s729 + $0xb0] sm:$0xff]
        %v2583 = vld [vmem:[%s729 + $0xc0] sm:$0xff]
        %v2584 = vld [vmem:[%s729 + $0xd0] sm:$0xff]
        %v2585 = vld [vmem:[%s729 + $0xe0] sm:$0xff]
        %v2586 = vld [vmem:[%s729 + $0xf0] sm:$0xff]
        %v2587 = vld [vmem:[%s729 + $0x100] sm:$0xff]
        %v2588 = vld [vmem:[%s729 + $0x110] sm:$0xff]
        %v2589 = vld [vmem:[%s729 + $0x140] sm:$0xff]
        %v2590 = vld [vmem:[%s729 + $0x150] sm:$0xff]
        %v2591 = vld [vmem:[%s729 + $0x160] sm:$0xff]
        %v2592 = vld [vmem:[%s729 + $0x170] sm:$0xff]
        %v2593 = vld [vmem:[%s729 + $0x180] sm:$0xff]
        %v2594 = vld [vmem:[%s729 + $0x190] sm:$0xff]
        %v2595 = vld [vmem:[%s729 + $0x1a0] sm:$0xff]
        %v2596 = vld [vmem:[%s729 + $0x1b0] sm:$0xff]
        %v2597 = vld [vmem:[%s729 + $0x1e0] sm:$0xff]
        %v2598 = vld [vmem:[%s729 + $0x1f0] sm:$0xff]
        %v2599 = vld [vmem:[%s729 + $0x200] sm:$0xff]
        %v2600 = vld [vmem:[%s729 + $0x210] sm:$0xff]
        %v2601 = vld [vmem:[%s729 + $0x220] sm:$0xff]
        %v2602 = vld [vmem:[%s729 + $0x230] sm:$0xff]
        %v2603 = vld [vmem:[%s729 + $0x240] sm:$0xff]
        %v2604 = vld [vmem:[%s729 + $0x250] sm:$0xff]
        %v2605 = vld [vmem:[%s729 + $0x1] sm:$0xff]
        %v2606 = vld [vmem:[%s729 + $0x11] sm:$0xff]
        %v2607 = vld [vmem:[%s729 + $0x21] sm:$0xff]
        %v2608 = vld [vmem:[%s729 + $0x31] sm:$0xff]
        %v2609 = vld [vmem:[%s729 + $0x41] sm:$0xff]
        %v2610 = vld [vmem:[%s729 + $0x51] sm:$0xff]
        %v2611 = vld [vmem:[%s729 + $0x61] sm:$0xff]
        %v2612 = vld [vmem:[%s729 + $0x71] sm:$0xff]
        %v2613 = vld [vmem:[%s729 + $0xa1] sm:$0xff]
        %v2614 = vld [vmem:[%s729 + $0xb1] sm:$0xff]
        %v2615 = vld [vmem:[%s729 + $0xc1] sm:$0xff]
        %v2616 = vld [vmem:[%s729 + $0xd1] sm:$0xff]
        %v2617 = vld [vmem:[%s729 + $0xe1] sm:$0xff]
        %v2618 = vld [vmem:[%s729 + $0xf1] sm:$0xff]
        %v2619 = vld [vmem:[%s729 + $0x101] sm:$0xff]
        %v2620 = vld [vmem:[%s729 + $0x111] sm:$0xff]
        %v2621 = vld [vmem:[%s729 + $0x141] sm:$0xff]
        %v2622 = vld [vmem:[%s729 + $0x151] sm:$0xff]
        %v2623 = vld [vmem:[%s729 + $0x161] sm:$0xff]
        %v2624 = vld [vmem:[%s729 + $0x171] sm:$0xff]
        %v2625 = vld [vmem:[%s729 + $0x181] sm:$0xff]
        %v2626 = vld [vmem:[%s729 + $0x191] sm:$0xff]
        %v2627 = vld [vmem:[%s729 + $0x1a1] sm:$0xff]
        %v2628 = vld [vmem:[%s729 + $0x1b1] sm:$0xff]
        %v2629 = vld [vmem:[%s729 + $0x1e1] sm:$0xff]
        %v2630 = vld [vmem:[%s729 + $0x1f1] sm:$0xff]
        %v2631 = vld [vmem:[%s729 + $0x201] sm:$0xff]
        %v2632 = vld [vmem:[%s729 + $0x211] sm:$0xff]
        %v2633 = vld [vmem:[%s729 + $0x221] sm:$0xff]
        %v2634 = vld [vmem:[%s729 + $0x231] sm:$0xff]
        %v2635 = vld [vmem:[%s729 + $0x241] sm:$0xff]
        %v2636 = vld [vmem:[%s729 + $0x251] sm:$0xff]
        %v2637 = vld [vmem:[%s729 + $0x2] sm:$0xff]
        %v2638 = vld [vmem:[%s729 + $0x12] sm:$0xff]
        %v2639 = vld [vmem:[%s729 + $0x22] sm:$0xff]
        %v2640 = vld [vmem:[%s729 + $0x32] sm:$0xff]
        %v2641 = vld [vmem:[%s729 + $0x42] sm:$0xff]
        %v2642 = vld [vmem:[%s729 + $0x52] sm:$0xff]
        %v2643 = vld [vmem:[%s729 + $0x62] sm:$0xff]
        %v2644 = vld [vmem:[%s729 + $0x72] sm:$0xff]
        %v2645 = vld [vmem:[%s729 + $0xa2] sm:$0xff]
        %v2646 = vld [vmem:[%s729 + $0xb2] sm:$0xff]
        %v2647 = vld [vmem:[%s729 + $0xc2] sm:$0xff]
        %v2648 = vld [vmem:[%s729 + $0xd2] sm:$0xff]
        %v2649 = vld [vmem:[%s729 + $0xe2] sm:$0xff]
        %v2650 = vld [vmem:[%s729 + $0xf2] sm:$0xff]
        %v2651 = vld [vmem:[%s729 + $0x102] sm:$0xff]
        %v2652 = vld [vmem:[%s729 + $0x112] sm:$0xff]
        %v2653 = vld [vmem:[%s729 + $0x142] sm:$0xff]
        %v2654 = vld [vmem:[%s729 + $0x152] sm:$0xff]
        %v2655 = vld [vmem:[%s729 + $0x162] sm:$0xff]
        %v2656 = vld [vmem:[%s729 + $0x172] sm:$0xff]
        %v2657 = vld [vmem:[%s729 + $0x182] sm:$0xff]
        %v2658 = vld [vmem:[%s729 + $0x192] sm:$0xff]
        %v2659 = vld [vmem:[%s729 + $0x1a2] sm:$0xff]
        %v2660 = vld [vmem:[%s729 + $0x1b2] sm:$0xff]
        %v2661 = vld [vmem:[%s729 + $0x1e2] sm:$0xff]
        %v2662 = vld [vmem:[%s729 + $0x1f2] sm:$0xff]
        %v2663 = vld [vmem:[%s729 + $0x202] sm:$0xff]
        %v2664 = vld [vmem:[%s729 + $0x212] sm:$0xff]
        %v2665 = vld [vmem:[%s729 + $0x222] sm:$0xff]
        %v2666 = vld [vmem:[%s729 + $0x232] sm:$0xff]
        %v2667 = vld [vmem:[%s729 + $0x242] sm:$0xff]
        %v2668 = vld [vmem:[%s729 + $0x252] sm:$0xff]
        %2701 = vrot.lane.b32.xlu0 %v2413, 32
        %v2702 = vpop.permute.xlu0 %2701
        %2703 = vrot.lane.b32.xlu0 %v2414, 32
        %v2704 = vpop.permute.xlu0 %2703
        %2705 = vrot.lane.b32.xlu0 %v2415, 32
        %v2706 = vpop.permute.xlu0 %2705
        %2707 = vrot.lane.b32.xlu0 %v2416, 32
        %v2708 = vpop.permute.xlu0 %2707
        %2709 = vrot.lane.b32.xlu0 %v2417, 32
        %v2710 = vpop.permute.xlu0 %2709
        %2711 = vrot.lane.b32.xlu0 %v2418, 32
        %v2712 = vpop.permute.xlu0 %2711
        %2713 = vrot.lane.b32.xlu0 %v2419, 32
        %v2714 = vpop.permute.xlu0 %2713
        %2715 = vrot.lane.b32.xlu0 %v2420, 32
        %v2716 = vpop.permute.xlu0 %2715
        %2717 = vrot.lane.b32.xlu0 %v2421, 32
        %v2718 = vpop.permute.xlu0 %2717
        %2719 = vrot.lane.b32.xlu0 %v2422, 32
        %v2720 = vpop.permute.xlu0 %2719
        %2721 = vrot.lane.b32.xlu0 %v2423, 32
        %v2722 = vpop.permute.xlu0 %2721
        %2723 = vrot.lane.b32.xlu0 %v2424, 32
        %v2724 = vpop.permute.xlu0 %2723
        %2725 = vrot.lane.b32.xlu0 %v2425, 32
        %v2726 = vpop.permute.xlu0 %2725
        %2727 = vrot.lane.b32.xlu0 %v2426, 32
        %v2728 = vpop.permute.xlu0 %2727
        %2729 = vrot.lane.b32.xlu0 %v2427, 32
        %v2730 = vpop.permute.xlu0 %2729
        %2731 = vrot.lane.b32.xlu0 %v2428, 32
        %v2732 = vpop.permute.xlu0 %2731
        %2733 = vrot.lane.b32.xlu0 %v2429, 32
        %v2734 = vpop.permute.xlu0 %2733
        %2735 = vrot.lane.b32.xlu0 %v2430, 32
        %v2736 = vpop.permute.xlu0 %2735
        %2737 = vrot.lane.b32.xlu0 %v2431, 32
        %v2738 = vpop.permute.xlu0 %2737
        %2739 = vrot.lane.b32.xlu0 %v2432, 32
        %v2740 = vpop.permute.xlu0 %2739
        %2741 = vrot.lane.b32.xlu0 %v2433, 32
        %v2742 = vpop.permute.xlu0 %2741
        %2743 = vrot.lane.b32.xlu0 %v2434, 32
        %v2744 = vpop.permute.xlu0 %2743
        %2745 = vrot.lane.b32.xlu0 %v2435, 32
        %v2746 = vpop.permute.xlu0 %2745
        %2747 = vrot.lane.b32.xlu0 %v2436, 32
        %v2748 = vpop.permute.xlu0 %2747
        %2749 = vrot.lane.b32.xlu0 %v2437, 32
        %v2750 = vpop.permute.xlu0 %2749
        %2751 = vrot.lane.b32.xlu0 %v2438, 32
        %v2752 = vpop.permute.xlu0 %2751
        %2753 = vrot.lane.b32.xlu0 %v2439, 32
        %v2754 = vpop.permute.xlu0 %2753
        %2755 = vrot.lane.b32.xlu0 %v2440, 32
        %v2756 = vpop.permute.xlu0 %2755
        %2757 = vrot.lane.b32.xlu0 %v2441, 32
        %v2758 = vpop.permute.xlu0 %2757
        %2759 = vrot.lane.b32.xlu0 %v2442, 32
        %v2760 = vpop.permute.xlu0 %2759
        %2761 = vrot.lane.b32.xlu0 %v2443, 32
        %v2762 = vpop.permute.xlu0 %2761
        %2763 = vrot.lane.b32.xlu0 %v2444, 32
        %v2764 = vpop.permute.xlu0 %2763
        %2829 = vrot.lane.b32.xlu0 %v2445, 64
        %v2830 = vpop.permute.xlu0 %2829
        %2831 = vrot.lane.b32.xlu0 %v2446, 64
        %v2832 = vpop.permute.xlu0 %2831
        %2833 = vrot.lane.b32.xlu0 %v2447, 64
        %v2834 = vpop.permute.xlu0 %2833
        %2835 = vrot.lane.b32.xlu0 %v2448, 64
        %v2836 = vpop.permute.xlu0 %2835
        %2837 = vrot.lane.b32.xlu0 %v2449, 64
        %v2838 = vpop.permute.xlu0 %2837
        %2839 = vrot.lane.b32.xlu0 %v2450, 64
        %v2840 = vpop.permute.xlu0 %2839
        %2841 = vrot.lane.b32.xlu0 %v2451, 64
        %v2842 = vpop.permute.xlu0 %2841
        %2843 = vrot.lane.b32.xlu0 %v2452, 64
        %v2844 = vpop.permute.xlu0 %2843
        %2845 = vrot.lane.b32.xlu0 %v2453, 64
        %v2846 = vpop.permute.xlu0 %2845
        %2847 = vrot.lane.b32.xlu0 %v2454, 64
        %v2848 = vpop.permute.xlu0 %2847
        %2849 = vrot.lane.b32.xlu0 %v2455, 64
        %v2850 = vpop.permute.xlu0 %2849
        %2851 = vrot.lane.b32.xlu0 %v2456, 64
        %v2852 = vpop.permute.xlu0 %2851
        %2853 = vrot.lane.b32.xlu0 %v2457, 64
        %v2854 = vpop.permute.xlu0 %2853
        %2855 = vrot.lane.b32.xlu0 %v2458, 64
        %v2856 = vpop.permute.xlu0 %2855
        %2857 = vrot.lane.b32.xlu0 %v2459, 64
        %v2858 = vpop.permute.xlu0 %2857
        %2859 = vrot.lane.b32.xlu0 %v2460, 64
        %v2860 = vpop.permute.xlu0 %2859
        %2861 = vrot.lane.b32.xlu0 %v2461, 64
        %v2862 = vpop.permute.xlu0 %2861
        %2863 = vrot.lane.b32.xlu0 %v2462, 64
        %v2864 = vpop.permute.xlu0 %2863
        %2865 = vrot.lane.b32.xlu0 %v2463, 64
        %v2866 = vpop.permute.xlu0 %2865
        %2867 = vrot.lane.b32.xlu0 %v2464, 64
        %v2868 = vpop.permute.xlu0 %2867
        %2869 = vrot.lane.b32.xlu0 %v2465, 64
        %v2870 = vpop.permute.xlu0 %2869
        %2871 = vrot.lane.b32.xlu0 %v2466, 64
        %v2872 = vpop.permute.xlu0 %2871
        %2873 = vrot.lane.b32.xlu0 %v2467, 64
        %v2874 = vpop.permute.xlu0 %2873
        %2875 = vrot.lane.b32.xlu0 %v2468, 64
        %v2876 = vpop.permute.xlu0 %2875
        %2877 = vrot.lane.b32.xlu0 %v2469, 64
        %v2878 = vpop.permute.xlu0 %2877
        %2879 = vrot.lane.b32.xlu0 %v2470, 64
        %v2880 = vpop.permute.xlu0 %2879
        %2881 = vrot.lane.b32.xlu0 %v2471, 64
        %v2882 = vpop.permute.xlu0 %2881
        %2883 = vrot.lane.b32.xlu0 %v2472, 64
        %v2884 = vpop.permute.xlu0 %2883
        %2885 = vrot.lane.b32.xlu0 %v2473, 64
        %v2886 = vpop.permute.xlu0 %2885
        %2887 = vrot.lane.b32.xlu0 %v2474, 64
        %v2888 = vpop.permute.xlu0 %2887
        %2889 = vrot.lane.b32.xlu0 %v2475, 64
        %v2890 = vpop.permute.xlu0 %2889
        %2891 = vrot.lane.b32.xlu0 %v2476, 64
        %v2892 = vpop.permute.xlu0 %2891
        %2957 = vrot.lane.b32.xlu0 %v2477, 96
        %v2958 = vpop.permute.xlu0 %2957
        %2959 = vrot.lane.b32.xlu0 %v2478, 96
        %v2960 = vpop.permute.xlu0 %2959
        %2961 = vrot.lane.b32.xlu0 %v2479, 96
        %v2962 = vpop.permute.xlu0 %2961
        %2963 = vrot.lane.b32.xlu0 %v2480, 96
        %v2964 = vpop.permute.xlu0 %2963
        %2965 = vrot.lane.b32.xlu0 %v2481, 96
        %v2966 = vpop.permute.xlu0 %2965
        %2967 = vrot.lane.b32.xlu0 %v2482, 96
        %v2968 = vpop.permute.xlu0 %2967
        %2969 = vrot.lane.b32.xlu0 %v2483, 96
        %v2970 = vpop.permute.xlu0 %2969
        %2971 = vrot.lane.b32.xlu0 %v2484, 96
        %v2972 = vpop.permute.xlu0 %2971
        %2973 = vrot.lane.b32.xlu0 %v2485, 96
        %v2974 = vpop.permute.xlu0 %2973
        %2975 = vrot.lane.b32.xlu0 %v2486, 96
        %v2976 = vpop.permute.xlu0 %2975
        %2977 = vrot.lane.b32.xlu0 %v2487, 96
        %v2978 = vpop.permute.xlu0 %2977
        %2979 = vrot.lane.b32.xlu0 %v2488, 96
        %v2980 = vpop.permute.xlu0 %2979
        %2981 = vrot.lane.b32.xlu0 %v2489, 96
        %v2982 = vpop.permute.xlu0 %2981
        %2983 = vrot.lane.b32.xlu0 %v2490, 96
        %v2984 = vpop.permute.xlu0 %2983
        %2985 = vrot.lane.b32.xlu0 %v2491, 96
        %v2986 = vpop.permute.xlu0 %2985
        %2987 = vrot.lane.b32.xlu0 %v2492, 96
        %v2988 = vpop.permute.xlu0 %2987
        %2989 = vrot.lane.b32.xlu0 %v2493, 96
        %v2990 = vpop.permute.xlu0 %2989
        %2991 = vrot.lane.b32.xlu0 %v2494, 96
        %v2992 = vpop.permute.xlu0 %2991
        %2993 = vrot.lane.b32.xlu0 %v2495, 96
        %v2994 = vpop.permute.xlu0 %2993
        %2995 = vrot.lane.b32.xlu0 %v2496, 96
        %v2996 = vpop.permute.xlu0 %2995
        %2997 = vrot.lane.b32.xlu0 %v2497, 96
        %v2998 = vpop.permute.xlu0 %2997
        %2999 = vrot.lane.b32.xlu0 %v2498, 96
        %v3000 = vpop.permute.xlu0 %2999
        %3001 = vrot.lane.b32.xlu0 %v2499, 96
        %v3002 = vpop.permute.xlu0 %3001
        %3003 = vrot.lane.b32.xlu0 %v2500, 96
        %v3004 = vpop.permute.xlu0 %3003
        %3005 = vrot.lane.b32.xlu0 %v2501, 96
        %v3006 = vpop.permute.xlu0 %3005
        %3007 = vrot.lane.b32.xlu0 %v2502, 96
        %v3008 = vpop.permute.xlu0 %3007
        %3009 = vrot.lane.b32.xlu0 %v2503, 96
        %v3010 = vpop.permute.xlu0 %3009
        %3011 = vrot.lane.b32.xlu0 %v2504, 96
        %v3012 = vpop.permute.xlu0 %3011
        %3013 = vrot.lane.b32.xlu0 %v2505, 96
        %v3014 = vpop.permute.xlu0 %3013
        %3015 = vrot.lane.b32.xlu0 %v2506, 96
        %v3016 = vpop.permute.xlu0 %3015
        %3017 = vrot.lane.b32.xlu0 %v2507, 96
        %v3018 = vpop.permute.xlu0 %3017
        %3019 = vrot.lane.b32.xlu0 %v2508, 96
        %v3020 = vpop.permute.xlu0 %3019
        %3085 = vrot.lane.b32.xlu0 %v2541, 32
        %v3086 = vpop.permute.xlu0 %3085
        %3087 = vrot.lane.b32.xlu0 %v2542, 32
        %v3088 = vpop.permute.xlu0 %3087
        %3089 = vrot.lane.b32.xlu0 %v2543, 32
        %v3090 = vpop.permute.xlu0 %3089
        %3091 = vrot.lane.b32.xlu0 %v2544, 32
        %v3092 = vpop.permute.xlu0 %3091
        %3093 = vrot.lane.b32.xlu0 %v2545, 32
        %v3094 = vpop.permute.xlu0 %3093
        %3095 = vrot.lane.b32.xlu0 %v2546, 32
        %v3096 = vpop.permute.xlu0 %3095
        %3097 = vrot.lane.b32.xlu0 %v2547, 32
        %v3098 = vpop.permute.xlu0 %3097
        %3099 = vrot.lane.b32.xlu0 %v2548, 32
        %v3100 = vpop.permute.xlu0 %3099
        %3101 = vrot.lane.b32.xlu0 %v2549, 32
        %v3102 = vpop.permute.xlu0 %3101
        %3103 = vrot.lane.b32.xlu0 %v2550, 32
        %v3104 = vpop.permute.xlu0 %3103
        %3105 = vrot.lane.b32.xlu0 %v2551, 32
        %v3106 = vpop.permute.xlu0 %3105
        %3107 = vrot.lane.b32.xlu0 %v2552, 32
        %v3108 = vpop.permute.xlu0 %3107
        %3109 = vrot.lane.b32.xlu0 %v2553, 32
        %v3110 = vpop.permute.xlu0 %3109
        %3111 = vrot.lane.b32.xlu0 %v2554, 32
        %v3112 = vpop.permute.xlu0 %3111
        %3113 = vrot.lane.b32.xlu0 %v2555, 32
        %v3114 = vpop.permute.xlu0 %3113
        %3115 = vrot.lane.b32.xlu0 %v2556, 32
        %v3116 = vpop.permute.xlu0 %3115
        %3117 = vrot.lane.b32.xlu0 %v2557, 32
        %v3118 = vpop.permute.xlu0 %3117
        %3119 = vrot.lane.b32.xlu0 %v2558, 32
        %v3120 = vpop.permute.xlu0 %3119
        %3121 = vrot.lane.b32.xlu0 %v2559, 32
        %v3122 = vpop.permute.xlu0 %3121
        %3123 = vrot.lane.b32.xlu0 %v2560, 32
        %v3124 = vpop.permute.xlu0 %3123
        %3125 = vrot.lane.b32.xlu0 %v2561, 32
        %v3126 = vpop.permute.xlu0 %3125
        %3127 = vrot.lane.b32.xlu0 %v2562, 32
        %v3128 = vpop.permute.xlu0 %3127
        %3129 = vrot.lane.b32.xlu0 %v2563, 32
        %v3130 = vpop.permute.xlu0 %3129
        %3131 = vrot.lane.b32.xlu0 %v2564, 32
        %v3132 = vpop.permute.xlu0 %3131
        %3133 = vrot.lane.b32.xlu0 %v2565, 32
        %v3134 = vpop.permute.xlu0 %3133
        %3135 = vrot.lane.b32.xlu0 %v2566, 32
        %v3136 = vpop.permute.xlu0 %3135
        %3137 = vrot.lane.b32.xlu0 %v2567, 32
        %v3138 = vpop.permute.xlu0 %3137
        %3139 = vrot.lane.b32.xlu0 %v2568, 32
        %v3140 = vpop.permute.xlu0 %3139
        %3141 = vrot.lane.b32.xlu0 %v2569, 32
        %v3142 = vpop.permute.xlu0 %3141
        %3143 = vrot.lane.b32.xlu0 %v2570, 32
        %v3144 = vpop.permute.xlu0 %3143
        %3145 = vrot.lane.b32.xlu0 %v2571, 32
        %v3146 = vpop.permute.xlu0 %3145
        %3147 = vrot.lane.b32.xlu0 %v2572, 32
        %v3148 = vpop.permute.xlu0 %3147
        %3213 = vrot.lane.b32.xlu0 %v2573, 64
        %v3214 = vpop.permute.xlu0 %3213
        %3215 = vrot.lane.b32.xlu0 %v2574, 64
        %v3216 = vpop.permute.xlu0 %3215
        %3217 = vrot.lane.b32.xlu0 %v2575, 64
        %v3218 = vpop.permute.xlu0 %3217
        %3219 = vrot.lane.b32.xlu0 %v2576, 64
        %v3220 = vpop.permute.xlu0 %3219
        %3221 = vrot.lane.b32.xlu0 %v2577, 64
        %v3222 = vpop.permute.xlu0 %3221
        %3223 = vrot.lane.b32.xlu0 %v2578, 64
        %v3224 = vpop.permute.xlu0 %3223
        %3225 = vrot.lane.b32.xlu0 %v2579, 64
        %v3226 = vpop.permute.xlu0 %3225
        %3227 = vrot.lane.b32.xlu0 %v2580, 64
        %v3228 = vpop.permute.xlu0 %3227
        %3229 = vrot.lane.b32.xlu0 %v2581, 64
        %v3230 = vpop.permute.xlu0 %3229
        %3231 = vrot.lane.b32.xlu0 %v2582, 64
        %v3232 = vpop.permute.xlu0 %3231
        %3233 = vrot.lane.b32.xlu0 %v2583, 64
        %v3234 = vpop.permute.xlu0 %3233
        %3235 = vrot.lane.b32.xlu0 %v2584, 64
        %v3236 = vpop.permute.xlu0 %3235
        %3237 = vrot.lane.b32.xlu0 %v2585, 64
        %v3238 = vpop.permute.xlu0 %3237
        %3239 = vrot.lane.b32.xlu0 %v2586, 64
        %v3240 = vpop.permute.xlu0 %3239
        %3241 = vrot.lane.b32.xlu0 %v2587, 64
        %v3242 = vpop.permute.xlu0 %3241
        %3243 = vrot.lane.b32.xlu0 %v2588, 64
        %v3244 = vpop.permute.xlu0 %3243
        %3245 = vrot.lane.b32.xlu0 %v2589, 64
        %v3246 = vpop.permute.xlu0 %3245
        %3247 = vrot.lane.b32.xlu0 %v2590, 64
        %v3248 = vpop.permute.xlu0 %3247
        %3249 = vrot.lane.b32.xlu0 %v2591, 64
        %v3250 = vpop.permute.xlu0 %3249
        %3251 = vrot.lane.b32.xlu0 %v2592, 64
        %v3252 = vpop.permute.xlu0 %3251
        %3253 = vrot.lane.b32.xlu0 %v2593, 64
        %v3254 = vpop.permute.xlu0 %3253
        %3255 = vrot.lane.b32.xlu0 %v2594, 64
        %v3256 = vpop.permute.xlu0 %3255
        %3257 = vrot.lane.b32.xlu0 %v2595, 64
        %v3258 = vpop.permute.xlu0 %3257
        %3259 = vrot.lane.b32.xlu0 %v2596, 64
        %v3260 = vpop.permute.xlu0 %3259
        %3261 = vrot.lane.b32.xlu0 %v2597, 64
        %v3262 = vpop.permute.xlu0 %3261
        %3263 = vrot.lane.b32.xlu0 %v2598, 64
        %v3264 = vpop.permute.xlu0 %3263
        %3265 = vrot.lane.b32.xlu0 %v2599, 64
        %v3266 = vpop.permute.xlu0 %3265
        %3267 = vrot.lane.b32.xlu0 %v2600, 64
        %v3268 = vpop.permute.xlu0 %3267
        %3269 = vrot.lane.b32.xlu0 %v2601, 64
        %v3270 = vpop.permute.xlu0 %3269
        %3271 = vrot.lane.b32.xlu0 %v2602, 64
        %v3272 = vpop.permute.xlu0 %3271
        %3273 = vrot.lane.b32.xlu0 %v2603, 64
        %v3274 = vpop.permute.xlu0 %3273
        %3275 = vrot.lane.b32.xlu0 %v2604, 64
        %v3276 = vpop.permute.xlu0 %3275
        %3341 = vrot.lane.b32.xlu0 %v2605, 96
        %v3342 = vpop.permute.xlu0 %3341
        %3343 = vrot.lane.b32.xlu0 %v2606, 96
        %v3344 = vpop.permute.xlu0 %3343
        %3345 = vrot.lane.b32.xlu0 %v2607, 96
        %v3346 = vpop.permute.xlu0 %3345
        %3347 = vrot.lane.b32.xlu0 %v2608, 96
        %v3348 = vpop.permute.xlu0 %3347
        %3349 = vrot.lane.b32.xlu0 %v2609, 96
        %v3350 = vpop.permute.xlu0 %3349
        %3351 = vrot.lane.b32.xlu0 %v2610, 96
        %v3352 = vpop.permute.xlu0 %3351
        %3353 = vrot.lane.b32.xlu0 %v2611, 96
        %v3354 = vpop.permute.xlu0 %3353
        %3355 = vrot.lane.b32.xlu0 %v2612, 96
        %v3356 = vpop.permute.xlu0 %3355
        %3357 = vrot.lane.b32.xlu0 %v2613, 96
        %v3358 = vpop.permute.xlu0 %3357
        %3359 = vrot.lane.b32.xlu0 %v2614, 96
        %v3360 = vpop.permute.xlu0 %3359
        %3361 = vrot.lane.b32.xlu0 %v2615, 96
        %v3362 = vpop.permute.xlu0 %3361
        %3363 = vrot.lane.b32.xlu0 %v2616, 96
        %v3364 = vpop.permute.xlu0 %3363
        %3365 = vrot.lane.b32.xlu0 %v2617, 96
        %v3366 = vpop.permute.xlu0 %3365
        %3367 = vrot.lane.b32.xlu0 %v2618, 96
        %v3368 = vpop.permute.xlu0 %3367
        %3369 = vrot.lane.b32.xlu0 %v2619, 96
        %v3370 = vpop.permute.xlu0 %3369
        %3371 = vrot.lane.b32.xlu0 %v2620, 96
        %v3372 = vpop.permute.xlu0 %3371
        %3373 = vrot.lane.b32.xlu0 %v2621, 96
        %v3374 = vpop.permute.xlu0 %3373
        %3375 = vrot.lane.b32.xlu0 %v2622, 96
        %v3376 = vpop.permute.xlu0 %3375
        %3377 = vrot.lane.b32.xlu0 %v2623, 96
        %v3378 = vpop.permute.xlu0 %3377
        %3379 = vrot.lane.b32.xlu0 %v2624, 96
        %v3380 = vpop.permute.xlu0 %3379
        %3381 = vrot.lane.b32.xlu0 %v2625, 96
        %v3382 = vpop.permute.xlu0 %3381
        %3383 = vrot.lane.b32.xlu0 %v2626, 96
        %v3384 = vpop.permute.xlu0 %3383
        %3385 = vrot.lane.b32.xlu0 %v2627, 96
        %v3386 = vpop.permute.xlu0 %3385
        %3387 = vrot.lane.b32.xlu0 %v2628, 96
        %v3388 = vpop.permute.xlu0 %3387
        %3389 = vrot.lane.b32.xlu0 %v2629, 96
        %v3390 = vpop.permute.xlu0 %3389
        %3391 = vrot.lane.b32.xlu0 %v2630, 96
        %v3392 = vpop.permute.xlu0 %3391
        %3393 = vrot.lane.b32.xlu0 %v2631, 96
        %v3394 = vpop.permute.xlu0 %3393
        %3395 = vrot.lane.b32.xlu0 %v2632, 96
        %v3396 = vpop.permute.xlu0 %3395
        %3397 = vrot.lane.b32.xlu0 %v2633, 96
        %v3398 = vpop.permute.xlu0 %3397
        %3399 = vrot.lane.b32.xlu0 %v2634, 96
        %v3400 = vpop.permute.xlu0 %3399
        %3401 = vrot.lane.b32.xlu0 %v2635, 96
        %v3402 = vpop.permute.xlu0 %3401
        %3403 = vrot.lane.b32.xlu0 %v2636, 96
        %v3404 = vpop.permute.xlu0 %3403
        %v3437 = vsel %vm2348, %v2381, %v2702
        %v3438 = vsel %vm2348, %v2382, %v2704
        %v3439 = vsel %vm2348, %v2383, %v2706
        %v3440 = vsel %vm2348, %v2384, %v2708
        %v3441 = vsel %vm2348, %v2385, %v2710
        %v3442 = vsel %vm2348, %v2386, %v2712
        %v3443 = vsel %vm2348, %v2387, %v2714
        %v3444 = vsel %vm2348, %v2388, %v2716
        %v3445 = vsel %vm2348, %v2389, %v2718
        %v3446 = vsel %vm2348, %v2390, %v2720
        %v3447 = vsel %vm2348, %v2391, %v2722
        %v3448 = vsel %vm2348, %v2392, %v2724
        %v3449 = vsel %vm2348, %v2393, %v2726
        %v3450 = vsel %vm2348, %v2394, %v2728
        %v3451 = vsel %vm2348, %v2395, %v2730
        %v3452 = vsel %vm2348, %v2396, %v2732
        %v3453 = vsel %vm2348, %v2397, %v2734
        %v3454 = vsel %vm2348, %v2398, %v2736
        %v3455 = vsel %vm2348, %v2399, %v2738
        %v3456 = vsel %vm2348, %v2400, %v2740
        %v3457 = vsel %vm2348, %v2401, %v2742
        %v3458 = vsel %vm2348, %v2402, %v2744
        %v3459 = vsel %vm2348, %v2403, %v2746
        %v3460 = vsel %vm2348, %v2404, %v2748
        %v3461 = vsel %vm2348, %v2405, %v2750
        %v3462 = vsel %vm2348, %v2406, %v2752
        %v3463 = vsel %vm2348, %v2407, %v2754
        %v3464 = vsel %vm2348, %v2408, %v2756
        %v3465 = vsel %vm2348, %v2409, %v2758
        %v3466 = vsel %vm2348, %v2410, %v2760
        %v3467 = vsel %vm2348, %v2411, %v2762
        %v3468 = vsel %vm2348, %v2412, %v2764
        %v3469 = vsel %vm504, %v3437, %v2830
        %v3470 = vsel %vm504, %v3438, %v2832
        %v3471 = vsel %vm504, %v3439, %v2834
        %v3472 = vsel %vm504, %v3440, %v2836
        %v3473 = vsel %vm504, %v3441, %v2838
        %v3474 = vsel %vm504, %v3442, %v2840
        %v3475 = vsel %vm504, %v3443, %v2842
        %v3476 = vsel %vm504, %v3444, %v2844
        %v3477 = vsel %vm504, %v3445, %v2846
        %v3478 = vsel %vm504, %v3446, %v2848
        %v3479 = vsel %vm504, %v3447, %v2850
        %v3480 = vsel %vm504, %v3448, %v2852
        %v3481 = vsel %vm504, %v3449, %v2854
        %v3482 = vsel %vm504, %v3450, %v2856
        %v3483 = vsel %vm504, %v3451, %v2858
        %v3484 = vsel %vm504, %v3452, %v2860
        %v3485 = vsel %vm504, %v3453, %v2862
        %v3486 = vsel %vm504, %v3454, %v2864
        %v3487 = vsel %vm504, %v3455, %v2866
        %v3488 = vsel %vm504, %v3456, %v2868
        %v3489 = vsel %vm504, %v3457, %v2870
        %v3490 = vsel %vm504, %v3458, %v2872
        %v3491 = vsel %vm504, %v3459, %v2874
        %v3492 = vsel %vm504, %v3460, %v2876
        %v3493 = vsel %vm504, %v3461, %v2878
        %v3494 = vsel %vm504, %v3462, %v2880
        %v3495 = vsel %vm504, %v3463, %v2882
        %v3496 = vsel %vm504, %v3464, %v2884
        %v3497 = vsel %vm504, %v3465, %v2886
        %v3498 = vsel %vm504, %v3466, %v2888
        %v3499 = vsel %vm504, %v3467, %v2890
        %v3500 = vsel %vm504, %v3468, %v2892
        %vm3501 = vcmask 785408
        %v3502 = vsel %vm3501, %v3469, %v2958
        %v3503 = vsel %vm3501, %v3470, %v2960
        %v3504 = vsel %vm3501, %v3471, %v2962
        %v3505 = vsel %vm3501, %v3472, %v2964
        %v3506 = vsel %vm3501, %v3473, %v2966
        %v3507 = vsel %vm3501, %v3474, %v2968
        %v3508 = vsel %vm3501, %v3475, %v2970
        %v3509 = vsel %vm3501, %v3476, %v2972
        %v3510 = vsel %vm3501, %v3477, %v2974
        %v3511 = vsel %vm3501, %v3478, %v2976
        %v3512 = vsel %vm3501, %v3479, %v2978
        %v3513 = vsel %vm3501, %v3480, %v2980
        %v3514 = vsel %vm3501, %v3481, %v2982
        %v3515 = vsel %vm3501, %v3482, %v2984
        %v3516 = vsel %vm3501, %v3483, %v2986
        %v3517 = vsel %vm3501, %v3484, %v2988
        %v3518 = vsel %vm3501, %v3485, %v2990
        %v3519 = vsel %vm3501, %v3486, %v2992
        %v3520 = vsel %vm3501, %v3487, %v2994
        %v3521 = vsel %vm3501, %v3488, %v2996
        %v3522 = vsel %vm3501, %v3489, %v2998
        %v3523 = vsel %vm3501, %v3490, %v3000
        %v3524 = vsel %vm3501, %v3491, %v3002
        %v3525 = vsel %vm3501, %v3492, %v3004
        %v3526 = vsel %vm3501, %v3493, %v3006
        %v3527 = vsel %vm3501, %v3494, %v3008
        %v3528 = vsel %vm3501, %v3495, %v3010
        %v3529 = vsel %vm3501, %v3496, %v3012
        %v3530 = vsel %vm3501, %v3497, %v3014
        %v3531 = vsel %vm3501, %v3498, %v3016
        %v3532 = vsel %vm3501, %v3499, %v3018
        %v3533 = vsel %vm3501, %v3500, %v3020
        %v3534 = vsel %vm2348, %v2509, %v3086
        %v3535 = vsel %vm2348, %v2510, %v3088
        %v3536 = vsel %vm2348, %v2511, %v3090
        %v3537 = vsel %vm2348, %v2512, %v3092
        %v3538 = vsel %vm2348, %v2513, %v3094
        %v3539 = vsel %vm2348, %v2514, %v3096
        %v3540 = vsel %vm2348, %v2515, %v3098
        %v3541 = vsel %vm2348, %v2516, %v3100
        %v3542 = vsel %vm2348, %v2517, %v3102
        %v3543 = vsel %vm2348, %v2518, %v3104
        %v3544 = vsel %vm2348, %v2519, %v3106
        %v3545 = vsel %vm2348, %v2520, %v3108
        %v3546 = vsel %vm2348, %v2521, %v3110
        %v3547 = vsel %vm2348, %v2522, %v3112
        %v3548 = vsel %vm2348, %v2523, %v3114
        %v3549 = vsel %vm2348, %v2524, %v3116
        %v3550 = vsel %vm2348, %v2525, %v3118
        %v3551 = vsel %vm2348, %v2526, %v3120
        %v3552 = vsel %vm2348, %v2527, %v3122
        %v3553 = vsel %vm2348, %v2528, %v3124
        %v3554 = vsel %vm2348, %v2529, %v3126
        %v3555 = vsel %vm2348, %v2530, %v3128
        %v3556 = vsel %vm2348, %v2531, %v3130
        %v3557 = vsel %vm2348, %v2532, %v3132
        %v3558 = vsel %vm2348, %v2533, %v3134
        %v3559 = vsel %vm2348, %v2534, %v3136
        %v3560 = vsel %vm2348, %v2535, %v3138
        %v3561 = vsel %vm2348, %v2536, %v3140
        %v3562 = vsel %vm2348, %v2537, %v3142
        %v3563 = vsel %vm2348, %v2538, %v3144
        %v3564 = vsel %vm2348, %v2539, %v3146
        %v3565 = vsel %vm2348, %v2540, %v3148
        %v3566 = vsel %vm504, %v3534, %v3214
        %v3567 = vsel %vm504, %v3535, %v3216
        %v3568 = vsel %vm504, %v3536, %v3218
        %v3569 = vsel %vm504, %v3537, %v3220
        %v3570 = vsel %vm504, %v3538, %v3222
        %v3571 = vsel %vm504, %v3539, %v3224
        %v3572 = vsel %vm504, %v3540, %v3226
        %v3573 = vsel %vm504, %v3541, %v3228
        %v3574 = vsel %vm504, %v3542, %v3230
        %v3575 = vsel %vm504, %v3543, %v3232
        %v3576 = vsel %vm504, %v3544, %v3234
        %v3577 = vsel %vm504, %v3545, %v3236
        %v3578 = vsel %vm504, %v3546, %v3238
        %v3579 = vsel %vm504, %v3547, %v3240
        %v3580 = vsel %vm504, %v3548, %v3242
        %v3581 = vsel %vm504, %v3549, %v3244
        %v3582 = vsel %vm504, %v3550, %v3246
        %v3583 = vsel %vm504, %v3551, %v3248
        %v3584 = vsel %vm504, %v3552, %v3250
        %v3585 = vsel %vm504, %v3553, %v3252
        %v3586 = vsel %vm504, %v3554, %v3254
        %v3587 = vsel %vm504, %v3555, %v3256
        %v3588 = vsel %vm504, %v3556, %v3258
        %v3589 = vsel %vm504, %v3557, %v3260
        %v3590 = vsel %vm504, %v3558, %v3262
        %v3591 = vsel %vm504, %v3559, %v3264
        %v3592 = vsel %vm504, %v3560, %v3266
        %v3593 = vsel %vm504, %v3561, %v3268
        %v3594 = vsel %vm504, %v3562, %v3270
        %v3595 = vsel %vm504, %v3563, %v3272
        %v3596 = vsel %vm504, %v3564, %v3274
        %v3597 = vsel %vm504, %v3565, %v3276
        %v3598 = vsel %vm3501, %v3566, %v3342
        %v3599 = vsel %vm3501, %v3567, %v3344
        %v3600 = vsel %vm3501, %v3568, %v3346
        %v3601 = vsel %vm3501, %v3569, %v3348
        %v3602 = vsel %vm3501, %v3570, %v3350
        %v3603 = vsel %vm3501, %v3571, %v3352
        %v3604 = vsel %vm3501, %v3572, %v3354
        %v3605 = vsel %vm3501, %v3573, %v3356
        %v3606 = vsel %vm3501, %v3574, %v3358
        %v3607 = vsel %vm3501, %v3575, %v3360
        %v3608 = vsel %vm3501, %v3576, %v3362
        %v3609 = vsel %vm3501, %v3577, %v3364
        %v3610 = vsel %vm3501, %v3578, %v3366
        %v3611 = vsel %vm3501, %v3579, %v3368
        %v3612 = vsel %vm3501, %v3580, %v3370
        %v3613 = vsel %vm3501, %v3581, %v3372
        %v3614 = vsel %vm3501, %v3582, %v3374
        %v3615 = vsel %vm3501, %v3583, %v3376
        %v3616 = vsel %vm3501, %v3584, %v3378
        %v3617 = vsel %vm3501, %v3585, %v3380
        %v3618 = vsel %vm3501, %v3586, %v3382
        %v3619 = vsel %vm3501, %v3587, %v3384
        %v3620 = vsel %vm3501, %v3588, %v3386
        %v3621 = vsel %vm3501, %v3589, %v3388
        %v3622 = vsel %vm3501, %v3590, %v3390
        %v3623 = vsel %vm3501, %v3591, %v3392
        %v3624 = vsel %vm3501, %v3592, %v3394
        %v3625 = vsel %vm3501, %v3593, %v3396
        %v3626 = vsel %vm3501, %v3594, %v3398
        %v3627 = vsel %vm3501, %v3595, %v3400
        %v3628 = vsel %vm3501, %v3596, %v3402
        %v3629 = vsel %vm3501, %v3597, %v3404
        %v3630 = vld [vmem:[%s3] sm:$0xff]
        %v3631 = vld [vmem:[%s3 + $0x8] sm:$0xff]
        %v3632 = vld [vmem:[%s3 + $0x10] sm:$0xff]
        %v3633 = vld [vmem:[%s3 + $0x18] sm:$0xff]
        %v3634 = vld [vmem:[%s3 + $0x20] sm:$0xff]
        %v3635 = vld [vmem:[%s3 + $0x28] sm:$0xff]
        %v3636 = vld [vmem:[%s3 + $0x30] sm:$0xff]
        %v3637 = vld [vmem:[%s3 + $0x38] sm:$0xff]
        %v3638 = vld [vmem:[%s3 + $0x40] sm:$0xff]
        %v3639 = vld [vmem:[%s3 + $0x48] sm:$0xff]
        %v3640 = vld [vmem:[%s3 + $0x50] sm:$0xff]
        %v3641 = vld [vmem:[%s3 + $0x58] sm:$0xff]
        %v3642 = vld [vmem:[%s3 + $0x60] sm:$0xff]
        %v3643 = vld [vmem:[%s3 + $0x68] sm:$0xff]
        %v3644 = vld [vmem:[%s3 + $0x70] sm:$0xff]
        %v3645 = vld [vmem:[%s3 + $0x78] sm:$0xff]
        %v3646 = vld [vmem:[%s3 + $0x80] sm:$0xff]
        %v3647 = vld [vmem:[%s3 + $0x88] sm:$0xff]
        %v3648 = vld [vmem:[%s3 + $0x90] sm:$0xff]
        %v3649 = vld [vmem:[%s3 + $0x98] sm:$0xff]
        %v3650 = vld [vmem:[%s3 + $0xa0] sm:$0xff]
        %v3651 = vld [vmem:[%s3 + $0xa8] sm:$0xff]
        %v3652 = vld [vmem:[%s3 + $0xb0] sm:$0xff]
        %v3653 = vld [vmem:[%s3 + $0xb8] sm:$0xff]
        %v3654 = vld [vmem:[%s3 + $0xc0] sm:$0xff]
        %v3655 = vld [vmem:[%s3 + $0xc8] sm:$0xff]
        %v3656 = vld [vmem:[%s3 + $0xd0] sm:$0xff]
        %v3657 = vld [vmem:[%s3 + $0xd8] sm:$0xff]
        %v3658 = vld [vmem:[%s3 + $0xe0] sm:$0xff]
        %v3659 = vld [vmem:[%s3 + $0xe8] sm:$0xff]
        %v3660 = vld [vmem:[%s3 + $0xf0] sm:$0xff]
        %v3661 = vld [vmem:[%s3 + $0xf8] sm:$0xff]
        %v3662 = vld [vmem:[%s3 + $0x100] sm:$0xff]
        %v3663 = vld [vmem:[%s3 + $0x108] sm:$0xff]
        %v3664 = vld [vmem:[%s3 + $0x110] sm:$0xff]
        %v3665 = vld [vmem:[%s3 + $0x118] sm:$0xff]
        %v3666 = vld [vmem:[%s4] sm:$0x1]
        %v3668 = vlaneseq
        %v3669 = vshrl.u32 %v3668, 7
        %v3670 = vsub.s32 0, %v3669
        %v3671 = vrot.slane %v3666, %v3670
        %v3674 = vsel %vm2348, %v2637, 0
        %v3677 = vsel %vm2348, %v2638, 0
        %v3680 = vsel %vm2348, %v2639, 0
        %v3683 = vsel %vm2348, %v2640, 0
        %v3686 = vsel %vm2348, %v2641, 0
        %v3689 = vsel %vm2348, %v2642, 0
        %v3692 = vsel %vm2348, %v2643, 0
        %v3695 = vsel %vm2348, %v2644, 0
        %v3698 = vsel %vm2348, %v2645, 0
        %v3701 = vsel %vm2348, %v2646, 0
        %v3704 = vsel %vm2348, %v2647, 0
        %v3707 = vsel %vm2348, %v2648, 0
        %v3710 = vsel %vm2348, %v2649, 0
        %v3713 = vsel %vm2348, %v2650, 0
        %v3716 = vsel %vm2348, %v2651, 0
        %v3719 = vsel %vm2348, %v2652, 0
        %v3722 = vsel %vm2348, %v2653, 0
        %v3725 = vsel %vm2348, %v2654, 0
        %v3728 = vsel %vm2348, %v2655, 0
        %v3731 = vsel %vm2348, %v2656, 0
        %v3734 = vsel %vm2348, %v2657, 0
        %v3737 = vsel %vm2348, %v2658, 0
        %v3740 = vsel %vm2348, %v2659, 0
        %v3743 = vsel %vm2348, %v2660, 0
        %v3746 = vsel %vm2348, %v2661, 0
        %v3749 = vsel %vm2348, %v2662, 0
        %v3752 = vsel %vm2348, %v2663, 0
        %v3755 = vsel %vm2348, %v2664, 0
        %v3758 = vsel %vm2348, %v2665, 0
        %v3761 = vsel %vm2348, %v2666, 0
        %v3764 = vsel %vm2348, %v2667, 0
        %v3767 = vsel %vm2348, %v2668, 0
        %3769 = vmatprep.subr.mxu0 0.0
        %3770 = vmatpush1.msra.mxu0 %v3630
        %3771 = vmatprep.subr.mxu0 0.0
        %3772 = vmatpush1.msra.mxu0 %v3631
        %3773 = vmatprep.subr.mxu0 0.0
        %3774 = vmatpush1.msra.mxu0 %v3632
        %3775 = vmatprep.subr.mxu0 0.0
        %3776 = vmatpush1.msra.mxu0 %v3633
        %3777 = vmatprep.subr.mxu0 0.0
        %3778 = vmatpush1.msra.mxu0 %v3634
        %3779 = vmatprep.subr.mxu0 0.0
        %3780 = vmatpush1.msra.mxu0 %v3635
        %3781 = vmatprep.subr.mxu0 0.0
        %3782 = vmatpush1.msra.mxu0 %v3636
        %3783 = vmatprep.subr.mxu0 0.0
        %3784 = vmatpush1.msra.mxu0 %v3637
        %3785 = vmatprep.subr.mxu0 0.0
        %3786 = vmatpush1.msra.mxu0 %v3638
        %3787 = vmatprep.subr.mxu0 0.0
        %3788 = vmatpush1.msra.mxu0 %v3639
        %3789 = vmatprep.subr.mxu0 0.0
        %3790 = vmatpush1.msra.mxu0 %v3640
        %3791 = vmatprep.subr.mxu0 0.0
        %3792 = vmatpush1.msra.mxu0 %v3641
        %3793 = vmatprep.subr.mxu0 0.0
        %3794 = vmatpush1.msra.mxu0 %v3642
        %3795 = vmatprep.subr.mxu0 0.0
        %3796 = vmatpush1.msra.mxu0 %v3643
        %3797 = vmatprep.subr.mxu0 0.0
        %3798 = vmatpush1.msra.mxu0 %v3644
        %3799 = vmatprep.subr.mxu0 0.0
        %3800 = vmatpush1.msra.mxu0 %v3645
        %3801 = vmatprep.subr.mxu0 0.0
        %3802 = vmatpush1.msra.mxu0 %v3646
        %3803 = vmatprep.subr.mxu0 0.0
        %3804 = vmatpush1.msra.mxu0 %v3647
        %3805 = vmatprep.subr.mxu0 0.0
        %3806 = vmatpush1.msra.mxu0 %v3648
        %3807 = vmatprep.subr.mxu0 0.0
        %3808 = vmatpush1.msra.mxu0 %v3649
        %3809 = vmatprep.subr.mxu0 0.0
        %3810 = vmatpush1.msra.mxu0 %v3650
        %3811 = vmatprep.subr.mxu0 0.0
        %3812 = vmatpush1.msra.mxu0 %v3651
        %3813 = vmatprep.subr.mxu0 0.0
        %3814 = vmatpush1.msra.mxu0 %v3652
        %3815 = vmatprep.subr.mxu0 0.0
        %3816 = vmatpush1.msra.mxu0 %v3653
        %3817 = vmatprep.subr.mxu0 0.0
        %3818 = vmatpush1.msra.mxu0 %v3654
        %3819 = vmatprep.subr.mxu0 0.0
        %3820 = vmatpush1.msra.mxu0 %v3655
        %3821 = vmatprep.subr.mxu0 0.0
        %3822 = vmatpush1.msra.mxu0 %v3656
        %3823 = vmatprep.subr.mxu0 0.0
        %3824 = vmatpush1.msra.mxu0 %v3657
        %3825 = vmatprep.subr.mxu0 0.0
        %3826 = vmatpush1.msra.mxu0 %v3658
        %3827 = vmatprep.subr.mxu0 0.0
        %3828 = vmatpush1.msra.mxu0 %v3659
        %3829 = vmatprep.subr.mxu0 0.0
        %3830 = vmatpush1.msra.mxu0 %v3660
        %3831 = vmatprep.subr.mxu0 0.0
        %3832 = vmatpush1.msra.mxu0 %v3661
        %3833 = vmatprep.mubr.f32.mxu0 %v3598
        %3834 = vmatmul.mubr.f32.gmra.mrb[0].mxu0 %v3502
        %v3835 = vpop.f32.mrb[0].mxu0
        %v3836 = vadd.f32 %v3671, %v3835
        %v3837 = vpop.f32.mrb[0].mxu0
        %3838 = vmatprep.mubr.f32.mxu0 %v3599
        %3839 = vmatmul.mubr.f32.gmra.mrb[0].mxu0 %v3503
        %v3840 = vpop.f32.mrb[0].mxu0
        %v3841 = vadd.f32 %v3671, %v3840
        %v3842 = vpop.f32.mrb[0].mxu0
        %3843 = vmatprep.mubr.f32.mxu0 %v3600
        %3844 = vmatmul.mubr.f32.gmra.mrb[0].mxu0 %v3504
        %v3845 = vpop.f32.mrb[0].mxu0
        %v3846 = vadd.f32 %v3671, %v3845
        %v3847 = vpop.f32.mrb[0].mxu0
        %3848 = vmatprep.mubr.f32.mxu0 %v3601
        %3849 = vmatmul.mubr.f32.gmra.mrb[0].mxu0 %v3505
        %v3850 = vpop.f32.mrb[0].mxu0
        %v3851 = vadd.f32 %v3671, %v3850
        %v3852 = vpop.f32.mrb[0].mxu0
        %3853 = vmatprep.mubr.f32.mxu0 %v3602
        %3854 = vmatmul.mubr.f32.gmra.mrb[0].mxu0 %v3506
        %v3855 = vpop.f32.mrb[0].mxu0
        %v3856 = vadd.f32 %v3671, %v3855
        %v3857 = vpop.f32.mrb[0].mxu0
        %3858 = vmatprep.mubr.f32.mxu0 %v3603
        %3859 = vmatmul.mubr.f32.gmra.mrb[0].mxu0 %v3507
        %v3860 = vpop.f32.mrb[0].mxu0
        %v3861 = vadd.f32 %v3671, %v3860
        %v3862 = vpop.f32.mrb[0].mxu0
        %3863 = vmatprep.mubr.f32.mxu0 %v3604
        %3864 = vmatmul.mubr.f32.gmra.mrb[0].mxu0 %v3508
        %v3865 = vpop.f32.mrb[0].mxu0
        %v3866 = vadd.f32 %v3671, %v3865
        %v3867 = vpop.f32.mrb[0].mxu0
        %3868 = vmatprep.mubr.f32.mxu0 %v3605
        %3869 = vmatmul.mubr.f32.gmra.mrb[0].mxu0 %v3509
        %v3870 = vpop.f32.mrb[0].mxu0
        %v3871 = vadd.f32 %v3671, %v3870
        %v3872 = vpop.f32.mrb[0].mxu0
        %3873 = vmatprep.mubr.f32.mxu0 %v3606
        %3874 = vmatmul.mubr.f32.gmra.mrb[0].mxu0 %v3510
        %v3875 = vpop.f32.mrb[0].mxu0
        %v3876 = vadd.f32 %v3671, %v3875
        %v3877 = vpop.f32.mrb[0].mxu0
        %3878 = vmatprep.mubr.f32.mxu0 %v3607
        %3879 = vmatmul.mubr.f32.gmra.mrb[0].mxu0 %v3511
        %v3880 = vpop.f32.mrb[0].mxu0
        %v3881 = vadd.f32 %v3671, %v3880
        %v3882 = vpop.f32.mrb[0].mxu0
        %3883 = vmatprep.mubr.f32.mxu0 %v3608
        %3884 = vmatmul.mubr.f32.gmra.mrb[0].mxu0 %v3512
        %v3885 = vpop.f32.mrb[0].mxu0
        %v3886 = vadd.f32 %v3671, %v3885
        %v3887 = vpop.f32.mrb[0].mxu0
        %3888 = vmatprep.mubr.f32.mxu0 %v3609
        %3889 = vmatmul.mubr.f32.gmra.mrb[0].mxu0 %v3513
        %v3890 = vpop.f32.mrb[0].mxu0
        %v3891 = vadd.f32 %v3671, %v3890
        %v3892 = vpop.f32.mrb[0].mxu0
        %3893 = vmatprep.mubr.f32.mxu0 %v3610
        %3894 = vmatmul.mubr.f32.gmra.mrb[0].mxu0 %v3514
        %v3895 = vpop.f32.mrb[0].mxu0
        %v3896 = vadd.f32 %v3671, %v3895
        %v3897 = vpop.f32.mrb[0].mxu0
        %3898 = vmatprep.mubr.f32.mxu0 %v3611
        %3899 = vmatmul.mubr.f32.gmra.mrb[0].mxu0 %v3515
        %v3900 = vpop.f32.mrb[0].mxu0
        %v3901 = vadd.f32 %v3671, %v3900
        %v3902 = vpop.f32.mrb[0].mxu0
        %3903 = vmatprep.mubr.f32.mxu0 %v3612
        %3904 = vmatmul.mubr.f32.gmra.mrb[0].mxu0 %v3516
        %v3905 = vpop.f32.mrb[0].mxu0
        %v3906 = vadd.f32 %v3671, %v3905
        %v3907 = vpop.f32.mrb[0].mxu0
        %3908 = vmatprep.mubr.f32.mxu0 %v3613
        %3909 = vmatmul.mubr.f32.gmra.mrb[0].mxu0 %v3517
        %v3910 = vpop.f32.mrb[0].mxu0
        %v3911 = vadd.f32 %v3671, %v3910
        %v3912 = vpop.f32.mrb[0].mxu0
        %3913 = vmatprep.mubr.f32.mxu0 %v3614
        %3914 = vmatmul.mubr.f32.gmra.mrb[0].mxu0 %v3518
        %v3915 = vpop.f32.mrb[0].mxu0
        %v3916 = vadd.f32 %v3671, %v3915
        %v3917 = vpop.f32.mrb[0].mxu0
        %3918 = vmatprep.mubr.f32.mxu0 %v3615
        %3919 = vmatmul.mubr.f32.gmra.mrb[0].mxu0 %v3519
        %v3920 = vpop.f32.mrb[0].mxu0
        %v3921 = vadd.f32 %v3671, %v3920
        %v3922 = vpop.f32.mrb[0].mxu0
        %3923 = vmatprep.mubr.f32.mxu0 %v3616
        %3924 = vmatmul.mubr.f32.gmra.mrb[0].mxu0 %v3520
        %v3925 = vpop.f32.mrb[0].mxu0
        %v3926 = vadd.f32 %v3671, %v3925
        %v3927 = vpop.f32.mrb[0].mxu0
        %3928 = vmatprep.mubr.f32.mxu0 %v3617
        %3929 = vmatmul.mubr.f32.gmra.mrb[0].mxu0 %v3521
        %v3930 = vpop.f32.mrb[0].mxu0
        %v3931 = vadd.f32 %v3671, %v3930
        %v3932 = vpop.f32.mrb[0].mxu0
        %3933 = vmatprep.mubr.f32.mxu0 %v3618
        %3934 = vmatmul.mubr.f32.gmra.mrb[0].mxu0 %v3522
        %v3935 = vpop.f32.mrb[0].mxu0
        %v3936 = vadd.f32 %v3671, %v3935
        %v3937 = vpop.f32.mrb[0].mxu0
        %3938 = vmatprep.mubr.f32.mxu0 %v3619
        %3939 = vmatmul.mubr.f32.gmra.mrb[0].mxu0 %v3523
        %v3940 = vpop.f32.mrb[0].mxu0
        %v3941 = vadd.f32 %v3671, %v3940
        %v3942 = vpop.f32.mrb[0].mxu0
        %3943 = vmatprep.mubr.f32.mxu0 %v3620
        %3944 = vmatmul.mubr.f32.gmra.mrb[0].mxu0 %v3524
        %v3945 = vpop.f32.mrb[0].mxu0
        %v3946 = vadd.f32 %v3671, %v3945
        %v3947 = vpop.f32.mrb[0].mxu0
        %3948 = vmatprep.mubr.f32.mxu0 %v3621
        %3949 = vmatmul.mubr.f32.gmra.mrb[0].mxu0 %v3525
        %v3950 = vpop.f32.mrb[0].mxu0
        %v3951 = vadd.f32 %v3671, %v3950
        %v3952 = vpop.f32.mrb[0].mxu0
        %3953 = vmatprep.mubr.f32.mxu0 %v3622
        %3954 = vmatmul.mubr.f32.gmra.mrb[0].mxu0 %v3526
        %v3955 = vpop.f32.mrb[0].mxu0
        %v3956 = vadd.f32 %v3671, %v3955
        %v3957 = vpop.f32.mrb[0].mxu0
        %3958 = vmatprep.mubr.f32.mxu0 %v3623
        %3959 = vmatmul.mubr.f32.gmra.mrb[0].mxu0 %v3527
        %v3960 = vpop.f32.mrb[0].mxu0
        %v3961 = vadd.f32 %v3671, %v3960
        %v3962 = vpop.f32.mrb[0].mxu0
        %3963 = vmatprep.mubr.f32.mxu0 %v3624
        %3964 = vmatmul.mubr.f32.gmra.mrb[0].mxu0 %v3528
        %v3965 = vpop.f32.mrb[0].mxu0
        %v3966 = vadd.f32 %v3671, %v3965
        %v3967 = vpop.f32.mrb[0].mxu0
        %3968 = vmatprep.mubr.f32.mxu0 %v3625
        %3969 = vmatmul.mubr.f32.gmra.mrb[0].mxu0 %v3529
        %v3970 = vpop.f32.mrb[0].mxu0
        %v3971 = vadd.f32 %v3671, %v3970
        %v3972 = vpop.f32.mrb[0].mxu0
        %3973 = vmatprep.mubr.f32.mxu0 %v3626
        %3974 = vmatmul.mubr.f32.gmra.mrb[0].mxu0 %v3530
        %v3975 = vpop.f32.mrb[0].mxu0
        %v3976 = vadd.f32 %v3671, %v3975
        %v3977 = vpop.f32.mrb[0].mxu0
        %3978 = vmatprep.mubr.f32.mxu0 %v3627
        %3979 = vmatmul.mubr.f32.gmra.mrb[0].mxu0 %v3531
        %v3980 = vpop.f32.mrb[0].mxu0
        %v3981 = vadd.f32 %v3671, %v3980
        %v3982 = vpop.f32.mrb[0].mxu0
        %3983 = vmatprep.mubr.f32.mxu0 %v3628
        %3984 = vmatmul.mubr.f32.gmra.mrb[0].mxu0 %v3532
        %v3985 = vpop.f32.mrb[0].mxu0
        %v3986 = vadd.f32 %v3671, %v3985
        %v3987 = vpop.f32.mrb[0].mxu0
        %3988 = vmatprep.mubr.f32.mxu0 %v3629
        %3989 = vmatmul.mubr.f32.gmra.mrb[0].mxu0 %v3533
        %v3990 = vpop.f32.mrb[0].mxu0
        %v3991 = vadd.f32 %v3671, %v3990
        %v3992 = vpop.f32.mrb[0].mxu0
        %3993 = vdwg.mxu0
        %3994 = vmatprep.subr.mxu0 0.0
        %3995 = vmatpush1.msra.mxu0 %v3662
        %3996 = vmatprep.subr.mxu0 0.0
        %3997 = vmatpush1.msra.mxu0 %v3663
        %3998 = vmatprep.subr.mxu0 0.0
        %3999 = vmatpush1.msra.mxu0 %v3664
        %4000 = vmatprep.subr.mxu0 0.0
        %4001 = vmatpush1.msra.mxu0 %v3665
        %4002 = vmatprep.subr.mxu0 0.0
        %4003 = vmatpush1.msra.mxu0 0.0
        %4004 = vmatprep.subr.mxu0 0.0
        %4005 = vmatpush1.msra.mxu0 0.0
        %4006 = vmatprep.subr.mxu0 0.0
        %4007 = vmatpush1.msra.mxu0 0.0
        %4008 = vmatprep.subr.mxu0 0.0
        %4009 = vmatpush1.msra.mxu0 0.0
        %4010 = vmatprep.subr.mxu0 0.0
        %4011 = vmatpush1.msra.mxu0 0.0
        %4012 = vmatprep.subr.mxu0 0.0
        %4013 = vmatpush1.msra.mxu0 0.0
        %4014 = vmatprep.subr.mxu0 0.0
        %4015 = vmatpush1.msra.mxu0 0.0
        %4016 = vmatprep.subr.mxu0 0.0
        %4017 = vmatpush1.msra.mxu0 0.0
        %4018 = vmatprep.subr.mxu0 0.0
        %4019 = vmatpush1.msra.mxu0 0.0
        %4020 = vmatprep.subr.mxu0 0.0
        %4021 = vmatpush1.msra.mxu0 0.0
        %4022 = vmatprep.subr.mxu0 0.0
        %4023 = vmatpush1.msra.mxu0 0.0
        %4024 = vmatprep.subr.mxu0 0.0
        %4025 = vmatpush1.msra.mxu0 0.0
        %4026 = vmatprep.subr.mxu0 0.0
        %4027 = vmatpush1.msra.mxu0 0.0
        %4028 = vmatprep.subr.mxu0 0.0
        %4029 = vmatpush1.msra.mxu0 0.0
        %4030 = vmatprep.subr.mxu0 0.0
        %4031 = vmatpush1.msra.mxu0 0.0
        %4032 = vmatprep.subr.mxu0 0.0
        %4033 = vmatpush1.msra.mxu0 0.0
        %4034 = vmatprep.subr.mxu0 0.0
        %4035 = vmatpush1.msra.mxu0 0.0
        %4036 = vmatprep.subr.mxu0 0.0
        %4037 = vmatpush1.msra.mxu0 0.0
        %4038 = vmatprep.subr.mxu0 0.0
        %4039 = vmatpush1.msra.mxu0 0.0
        %4040 = vmatprep.subr.mxu0 0.0
        %4041 = vmatpush1.msra.mxu0 0.0
        %4042 = vmatprep.subr.mxu0 0.0
        %4043 = vmatpush1.msra.mxu0 0.0
        %4044 = vmatprep.subr.mxu0 0.0
        %4045 = vmatpush1.msra.mxu0 0.0
        %4046 = vmatprep.subr.mxu0 0.0
        %4047 = vmatpush1.msra.mxu0 0.0
        %4048 = vmatprep.subr.mxu0 0.0
        %4049 = vmatpush1.msra.mxu0 0.0
        %4050 = vmatprep.subr.mxu0 0.0
        %4051 = vmatpush1.msra.mxu0 0.0
        %4052 = vmatprep.subr.mxu0 0.0
        %4053 = vmatpush1.msra.mxu0 0.0
        %4054 = vmatprep.subr.mxu0 0.0
        %4055 = vmatpush1.msra.mxu0 0.0
        %4056 = vmatprep.subr.mxu0 0.0
        %4057 = vmatpush1.msra.mxu0 0.0
        %4058 = vmatprep.mubr.f32.mxu0 0.0
        %4059 = vmatmul.mubr.f32.gmra.mrb[0].mxu0 %v3674
        %v4060 = vpop.f32.mrb[0].mxu0
        %v4061 = vadd.f32 %v3836, %v4060
        %v4062 = vpop.f32.mrb[0].mxu0
        %4063 = vmatprep.mubr.f32.mxu0 0.0
        %4064 = vmatmul.mubr.f32.gmra.mrb[0].mxu0 %v3677
        %v4065 = vpop.f32.mrb[0].mxu0
        %v4066 = vadd.f32 %v3841, %v4065
        %v4067 = vpop.f32.mrb[0].mxu0
        %4068 = vmatprep.mubr.f32.mxu0 0.0
        %4069 = vmatmul.mubr.f32.gmra.mrb[0].mxu0 %v3680
        %v4070 = vpop.f32.mrb[0].mxu0
        %v4071 = vadd.f32 %v3846, %v4070
        %v4072 = vpop.f32.mrb[0].mxu0
        %4073 = vmatprep.mubr.f32.mxu0 0.0
        %4074 = vmatmul.mubr.f32.gmra.mrb[0].mxu0 %v3683
        %v4075 = vpop.f32.mrb[0].mxu0
        %v4076 = vadd.f32 %v3851, %v4075
        %v4077 = vpop.f32.mrb[0].mxu0
        %4078 = vmatprep.mubr.f32.mxu0 0.0
        %4079 = vmatmul.mubr.f32.gmra.mrb[0].mxu0 %v3686
        %v4080 = vpop.f32.mrb[0].mxu0
        %v4081 = vadd.f32 %v3856, %v4080
        %v4082 = vpop.f32.mrb[0].mxu0
        %4083 = vmatprep.mubr.f32.mxu0 0.0
        %4084 = vmatmul.mubr.f32.gmra.mrb[0].mxu0 %v3689
        %v4085 = vpop.f32.mrb[0].mxu0
        %v4086 = vadd.f32 %v3861, %v4085
        %v4087 = vpop.f32.mrb[0].mxu0
        %4088 = vmatprep.mubr.f32.mxu0 0.0
        %4089 = vmatmul.mubr.f32.gmra.mrb[0].mxu0 %v3692
        %v4090 = vpop.f32.mrb[0].mxu0
        %v4091 = vadd.f32 %v3866, %v4090
        %v4092 = vpop.f32.mrb[0].mxu0
        %4093 = vmatprep.mubr.f32.mxu0 0.0
        %4094 = vmatmul.mubr.f32.gmra.mrb[0].mxu0 %v3695
        %v4095 = vpop.f32.mrb[0].mxu0
        %v4096 = vadd.f32 %v3871, %v4095
        %v4097 = vpop.f32.mrb[0].mxu0
        %4098 = vmatprep.mubr.f32.mxu0 0.0
        %4099 = vmatmul.mubr.f32.gmra.mrb[0].mxu0 %v3698
        %v4100 = vpop.f32.mrb[0].mxu0
        %v4101 = vadd.f32 %v3876, %v4100
        %v4102 = vpop.f32.mrb[0].mxu0
        %4103 = vmatprep.mubr.f32.mxu0 0.0
        %4104 = vmatmul.mubr.f32.gmra.mrb[0].mxu0 %v3701
        %v4105 = vpop.f32.mrb[0].mxu0
        %v4106 = vadd.f32 %v3881, %v4105
        %v4107 = vpop.f32.mrb[0].mxu0
        %4108 = vmatprep.mubr.f32.mxu0 0.0
        %4109 = vmatmul.mubr.f32.gmra.mrb[0].mxu0 %v3704
        %v4110 = vpop.f32.mrb[0].mxu0
        %v4111 = vadd.f32 %v3886, %v4110
        %v4112 = vpop.f32.mrb[0].mxu0
        %4113 = vmatprep.mubr.f32.mxu0 0.0
        %4114 = vmatmul.mubr.f32.gmra.mrb[0].mxu0 %v3707
        %v4115 = vpop.f32.mrb[0].mxu0
        %v4116 = vadd.f32 %v3891, %v4115
        %v4117 = vpop.f32.mrb[0].mxu0
        %4118 = vmatprep.mubr.f32.mxu0 0.0
        %4119 = vmatmul.mubr.f32.gmra.mrb[0].mxu0 %v3710
        %v4120 = vpop.f32.mrb[0].mxu0
        %v4121 = vadd.f32 %v3896, %v4120
        %v4122 = vpop.f32.mrb[0].mxu0
        %4123 = vmatprep.mubr.f32.mxu0 0.0
        %4124 = vmatmul.mubr.f32.gmra.mrb[0].mxu0 %v3713
        %v4125 = vpop.f32.mrb[0].mxu0
        %v4126 = vadd.f32 %v3901, %v4125
        %v4127 = vpop.f32.mrb[0].mxu0
        %4128 = vmatprep.mubr.f32.mxu0 0.0
        %4129 = vmatmul.mubr.f32.gmra.mrb[0].mxu0 %v3716
        %v4130 = vpop.f32.mrb[0].mxu0
        %v4131 = vadd.f32 %v3906, %v4130
        %v4132 = vpop.f32.mrb[0].mxu0
        %4133 = vmatprep.mubr.f32.mxu0 0.0
        %4134 = vmatmul.mubr.f32.gmra.mrb[0].mxu0 %v3719
        %v4135 = vpop.f32.mrb[0].mxu0
        %v4136 = vadd.f32 %v3911, %v4135
        %v4137 = vpop.f32.mrb[0].mxu0
        %4138 = vmatprep.mubr.f32.mxu0 0.0
        %4139 = vmatmul.mubr.f32.gmra.mrb[0].mxu0 %v3722
        %v4140 = vpop.f32.mrb[0].mxu0
        %v4141 = vadd.f32 %v3916, %v4140
        %v4142 = vpop.f32.mrb[0].mxu0
        %4143 = vmatprep.mubr.f32.mxu0 0.0
        %4144 = vmatmul.mubr.f32.gmra.mrb[0].mxu0 %v3725
        %v4145 = vpop.f32.mrb[0].mxu0
        %v4146 = vadd.f32 %v3921, %v4145
        %v4147 = vpop.f32.mrb[0].mxu0
        %4148 = vmatprep.mubr.f32.mxu0 0.0
        %4149 = vmatmul.mubr.f32.gmra.mrb[0].mxu0 %v3728
        %v4150 = vpop.f32.mrb[0].mxu0
        %v4151 = vadd.f32 %v3926, %v4150
        %v4152 = vpop.f32.mrb[0].mxu0
        %4153 = vmatprep.mubr.f32.mxu0 0.0
        %4154 = vmatmul.mubr.f32.gmra.mrb[0].mxu0 %v3731
        %v4155 = vpop.f32.mrb[0].mxu0
        %v4156 = vadd.f32 %v3931, %v4155
        %v4157 = vpop.f32.mrb[0].mxu0
        %4158 = vmatprep.mubr.f32.mxu0 0.0
        %4159 = vmatmul.mubr.f32.gmra.mrb[0].mxu0 %v3734
        %v4160 = vpop.f32.mrb[0].mxu0
        %v4161 = vadd.f32 %v3936, %v4160
        %v4162 = vpop.f32.mrb[0].mxu0
        %4163 = vmatprep.mubr.f32.mxu0 0.0
        %4164 = vmatmul.mubr.f32.gmra.mrb[0].mxu0 %v3737
        %v4165 = vpop.f32.mrb[0].mxu0
        %v4166 = vadd.f32 %v3941, %v4165
        %v4167 = vpop.f32.mrb[0].mxu0
        %4168 = vmatprep.mubr.f32.mxu0 0.0
        %4169 = vmatmul.mubr.f32.gmra.mrb[0].mxu0 %v3740
        %v4170 = vpop.f32.mrb[0].mxu0
        %v4171 = vadd.f32 %v3946, %v4170
        %v4172 = vpop.f32.mrb[0].mxu0
        %4173 = vmatprep.mubr.f32.mxu0 0.0
        %4174 = vmatmul.mubr.f32.gmra.mrb[0].mxu0 %v3743
        %v4175 = vpop.f32.mrb[0].mxu0
        %v4176 = vadd.f32 %v3951, %v4175
        %v4177 = vpop.f32.mrb[0].mxu0
        %4178 = vmatprep.mubr.f32.mxu0 0.0
        %4179 = vmatmul.mubr.f32.gmra.mrb[0].mxu0 %v3746
        %v4180 = vpop.f32.mrb[0].mxu0
        %v4181 = vadd.f32 %v3956, %v4180
        %v4182 = vpop.f32.mrb[0].mxu0
        %4183 = vmatprep.mubr.f32.mxu0 0.0
        %4184 = vmatmul.mubr.f32.gmra.mrb[0].mxu0 %v3749
        %v4185 = vpop.f32.mrb[0].mxu0
        %v4186 = vadd.f32 %v3961, %v4185
        %v4187 = vpop.f32.mrb[0].mxu0
        %4188 = vmatprep.mubr.f32.mxu0 0.0
        %4189 = vmatmul.mubr.f32.gmra.mrb[0].mxu0 %v3752
        %v4190 = vpop.f32.mrb[0].mxu0
        %v4191 = vadd.f32 %v3966, %v4190
        %v4192 = vpop.f32.mrb[0].mxu0
        %4193 = vmatprep.mubr.f32.mxu0 0.0
        %4194 = vmatmul.mubr.f32.gmra.mrb[0].mxu0 %v3755
        %v4195 = vpop.f32.mrb[0].mxu0
        %v4196 = vadd.f32 %v3971, %v4195
        %v4197 = vpop.f32.mrb[0].mxu0
        %4198 = vmatprep.mubr.f32.mxu0 0.0
        %4199 = vmatmul.mubr.f32.gmra.mrb[0].mxu0 %v3758
        %v4200 = vpop.f32.mrb[0].mxu0
        %v4201 = vadd.f32 %v3976, %v4200
        %v4202 = vpop.f32.mrb[0].mxu0
        %4203 = vmatprep.mubr.f32.mxu0 0.0
        %4204 = vmatmul.mubr.f32.gmra.mrb[0].mxu0 %v3761
        %v4205 = vpop.f32.mrb[0].mxu0
        %v4206 = vadd.f32 %v3981, %v4205
        %v4207 = vpop.f32.mrb[0].mxu0
        %4208 = vmatprep.mubr.f32.mxu0 0.0
        %4209 = vmatmul.mubr.f32.gmra.mrb[0].mxu0 %v3764
        %v4210 = vpop.f32.mrb[0].mxu0
        %v4211 = vadd.f32 %v3986, %v4210
        %v4212 = vpop.f32.mrb[0].mxu0
        %4213 = vmatprep.mubr.f32.mxu0 0.0
        %4214 = vmatmul.mubr.f32.gmra.mrb[0].mxu0 %v3767
        %v4215 = vpop.f32.mrb[0].mxu0
        %v4216 = vadd.f32 %v3991, %v4215
        %v4217 = vpop.f32.mrb[0].mxu0
        %4218 = vdwg.mxu0
        %v4219 = vmax.f32 %v4061, 0.0
        %v4220 = vmax.f32 %v4066, 0.0
        %v4221 = vmax.f32 %v4071, 0.0
        %v4222 = vmax.f32 %v4076, 0.0
        %v4223 = vmax.f32 %v4081, 0.0
        %v4224 = vmax.f32 %v4086, 0.0
        %v4225 = vmax.f32 %v4091, 0.0
        %v4226 = vmax.f32 %v4096, 0.0
        %v4227 = vmax.f32 %v4101, 0.0
        %v4228 = vmax.f32 %v4106, 0.0
        %v4229 = vmax.f32 %v4111, 0.0
        %v4230 = vmax.f32 %v4116, 0.0
        %v4231 = vmax.f32 %v4121, 0.0
        %v4232 = vmax.f32 %v4126, 0.0
        %v4233 = vmax.f32 %v4131, 0.0
        %v4234 = vmax.f32 %v4136, 0.0
        %v4235 = vmax.f32 %v4141, 0.0
        %v4236 = vmax.f32 %v4146, 0.0
        %v4237 = vmax.f32 %v4151, 0.0
        %v4238 = vmax.f32 %v4156, 0.0
        %v4239 = vmax.f32 %v4161, 0.0
        %v4240 = vmax.f32 %v4166, 0.0
        %v4241 = vmax.f32 %v4171, 0.0
        %v4242 = vmax.f32 %v4176, 0.0
        %v4243 = vmax.f32 %v4181, 0.0
        %v4244 = vmax.f32 %v4186, 0.0
        %v4245 = vmax.f32 %v4191, 0.0
        %v4246 = vmax.f32 %v4196, 0.0
        %v4247 = vmax.f32 %v4201, 0.0
        %v4248 = vmax.f32 %v4206, 0.0
        %v4249 = vmax.f32 %v4211, 0.0
        %v4250 = vmax.f32 %v4216, 0.0
        %4251 = vst [vmem:[%s503 + $0x1] sm:$0xff] %v4219
        %4252 = vst [vmem:[%s503 + $0x11] sm:$0xff] %v4220
        %4253 = vst [vmem:[%s503 + $0x21] sm:$0xff] %v4221
        %4254 = vst [vmem:[%s503 + $0x31] sm:$0xff] %v4222
        %4255 = vst [vmem:[%s503 + $0x41] sm:$0xff] %v4223
        %4256 = vst [vmem:[%s503 + $0x51] sm:$0xff] %v4224
        %4257 = vst [vmem:[%s503 + $0x61] sm:$0xff] %v4225
        %4258 = vst [vmem:[%s503 + $0x71] sm:$0xff] %v4226
        %4259 = vst [vmem:[%s503 + $0xa1] sm:$0xff] %v4227
        %4260 = vst [vmem:[%s503 + $0xb1] sm:$0xff] %v4228
        %4261 = vst [vmem:[%s503 + $0xc1] sm:$0xff] %v4229
        %4262 = vst [vmem:[%s503 + $0xd1] sm:$0xff] %v4230
        %4263 = vst [vmem:[%s503 + $0xe1] sm:$0xff] %v4231
        %4264 = vst [vmem:[%s503 + $0xf1] sm:$0xff] %v4232
        %4265 = vst [vmem:[%s503 + $0x101] sm:$0xff] %v4233
        %4266 = vst [vmem:[%s503 + $0x111] sm:$0xff] %v4234
        %4267 = vst [vmem:[%s503 + $0x141] sm:$0xff] %v4235
        %4268 = vst [vmem:[%s503 + $0x151] sm:$0xff] %v4236
        %4269 = vst [vmem:[%s503 + $0x161] sm:$0xff] %v4237
        %4270 = vst [vmem:[%s503 + $0x171] sm:$0xff] %v4238
        %4271 = vst [vmem:[%s503 + $0x181] sm:$0xff] %v4239
        %4272 = vst [vmem:[%s503 + $0x191] sm:$0xff] %v4240
        %4273 = vst [vmem:[%s503 + $0x1a1] sm:$0xff] %v4241
        %4274 = vst [vmem:[%s503 + $0x1b1] sm:$0xff] %v4242
        %4275 = vst [vmem:[%s503 + $0x1e1] sm:$0xff] %v4243
        %4276 = vst [vmem:[%s503 + $0x1f1] sm:$0xff] %v4244
        %4277 = vst [vmem:[%s503 + $0x201] sm:$0xff] %v4245
        %4278 = vst [vmem:[%s503 + $0x211] sm:$0xff] %v4246
        %4279 = vst [vmem:[%s503 + $0x221] sm:$0xff] %v4247
        %4280 = vst [vmem:[%s503 + $0x231] sm:$0xff] %v4248
        %4281 = vst [vmem:[%s503 + $0x241] sm:$0xff] %v4249
        %4282 = vst [vmem:[%s503 + $0x251] sm:$0xff] %v4250
        %v4283 = vld [vmem:[#allocation2] sm:$0xff]
        %v4284 = vld [vmem:[#allocation2 + $0x10] sm:$0xff]
        %v4285 = vld [vmem:[#allocation2 + $0x20] sm:$0xff]
        %v4286 = vld [vmem:[#allocation2 + $0x30] sm:$0xff]
        %v4287 = vld [vmem:[#allocation2 + $0x40] sm:$0xff]
        %v4288 = vld [vmem:[#allocation2 + $0x50] sm:$0xff]
        %v4289 = vld [vmem:[#allocation2 + $0x60] sm:$0xff]
        %v4290 = vld [vmem:[#allocation2 + $0x70] sm:$0xff]
        %v4291 = vld [vmem:[#allocation2 + $0xa0] sm:$0xff]
        %v4292 = vld [vmem:[#allocation2 + $0xb0] sm:$0xff]
        %v4293 = vld [vmem:[#allocation2 + $0xc0] sm:$0xff]
        %v4294 = vld [vmem:[#allocation2 + $0xd0] sm:$0xff]
        %v4295 = vld [vmem:[#allocation2 + $0xe0] sm:$0xff]
        %v4296 = vld [vmem:[#allocation2 + $0xf0] sm:$0xff]
        %v4297 = vld [vmem:[#allocation2 + $0x100] sm:$0xff]
        %v4298 = vld [vmem:[#allocation2 + $0x110] sm:$0xff]
        %v4299 = vld [vmem:[#allocation2 + $0x140] sm:$0xff]
        %v4300 = vld [vmem:[#allocation2 + $0x150] sm:$0xff]
        %v4301 = vld [vmem:[#allocation2 + $0x160] sm:$0xff]
        %v4302 = vld [vmem:[#allocation2 + $0x170] sm:$0xff]
        %v4303 = vld [vmem:[#allocation2 + $0x180] sm:$0xff]
        %v4304 = vld [vmem:[#allocation2 + $0x190] sm:$0xff]
        %v4305 = vld [vmem:[#allocation2 + $0x1a0] sm:$0xff]
        %v4306 = vld [vmem:[#allocation2 + $0x1b0] sm:$0xff]
        %v4307 = vld [vmem:[#allocation2 + $0x1e0] sm:$0xff]
        %v4308 = vld [vmem:[#allocation2 + $0x1f0] sm:$0xff]
        %v4309 = vld [vmem:[#allocation2 + $0x200] sm:$0xff]
        %v4310 = vld [vmem:[#allocation2 + $0x210] sm:$0xff]
        %v4311 = vld [vmem:[#allocation2 + $0x220] sm:$0xff]
        %v4312 = vld [vmem:[#allocation2 + $0x230] sm:$0xff]
        %v4313 = vld [vmem:[#allocation2 + $0x240] sm:$0xff]
        %v4314 = vld [vmem:[#allocation2 + $0x250] sm:$0xff]
        %v4315 = vld [vmem:[#allocation2 + $0x1] sm:$0xff]
        %v4316 = vld [vmem:[#allocation2 + $0x11] sm:$0xff]
        %v4317 = vld [vmem:[#allocation2 + $0x21] sm:$0xff]
        %v4318 = vld [vmem:[#allocation2 + $0x31] sm:$0xff]
        %v4319 = vld [vmem:[#allocation2 + $0x41] sm:$0xff]
        %v4320 = vld [vmem:[#allocation2 + $0x51] sm:$0xff]
        %v4321 = vld [vmem:[#allocation2 + $0x61] sm:$0xff]
        %v4322 = vld [vmem:[#allocation2 + $0x71] sm:$0xff]
        %v4323 = vld [vmem:[#allocation2 + $0xa1] sm:$0xff]
        %v4324 = vld [vmem:[#allocation2 + $0xb1] sm:$0xff]
        %v4325 = vld [vmem:[#allocation2 + $0xc1] sm:$0xff]
        %v4326 = vld [vmem:[#allocation2 + $0xd1] sm:$0xff]
        %v4327 = vld [vmem:[#allocation2 + $0xe1] sm:$0xff]
        %v4328 = vld [vmem:[#allocation2 + $0xf1] sm:$0xff]
        %v4329 = vld [vmem:[#allocation2 + $0x101] sm:$0xff]
        %v4330 = vld [vmem:[#allocation2 + $0x111] sm:$0xff]
        %v4331 = vld [vmem:[#allocation2 + $0x141] sm:$0xff]
        %v4332 = vld [vmem:[#allocation2 + $0x151] sm:$0xff]
        %v4333 = vld [vmem:[#allocation2 + $0x161] sm:$0xff]
        %v4334 = vld [vmem:[#allocation2 + $0x171] sm:$0xff]
        %v4335 = vld [vmem:[#allocation2 + $0x181] sm:$0xff]
        %v4336 = vld [vmem:[#allocation2 + $0x191] sm:$0xff]
        %v4337 = vld [vmem:[#allocation2 + $0x1a1] sm:$0xff]
        %v4338 = vld [vmem:[#allocation2 + $0x1b1] sm:$0xff]
        %v4339 = vld [vmem:[#allocation2 + $0x1e1] sm:$0xff]
        %v4340 = vld [vmem:[#allocation2 + $0x1f1] sm:$0xff]
        %v4341 = vld [vmem:[#allocation2 + $0x201] sm:$0xff]
        %v4342 = vld [vmem:[#allocation2 + $0x211] sm:$0xff]
        %v4343 = vld [vmem:[#allocation2 + $0x221] sm:$0xff]
        %v4344 = vld [vmem:[#allocation2 + $0x231] sm:$0xff]
        %v4345 = vld [vmem:[#allocation2 + $0x241] sm:$0xff]
        %v4346 = vld [vmem:[#allocation2 + $0x251] sm:$0xff]
        %v4347 = vld [vmem:[#allocation2 + $0x2] sm:$0xff]
        %v4348 = vld [vmem:[#allocation2 + $0x12] sm:$0xff]
        %v4349 = vld [vmem:[#allocation2 + $0x22] sm:$0xff]
        %v4350 = vld [vmem:[#allocation2 + $0x32] sm:$0xff]
        %v4351 = vld [vmem:[#allocation2 + $0x42] sm:$0xff]
        %v4352 = vld [vmem:[#allocation2 + $0x52] sm:$0xff]
        %v4353 = vld [vmem:[#allocation2 + $0x62] sm:$0xff]
        %v4354 = vld [vmem:[#allocation2 + $0x72] sm:$0xff]
        %v4355 = vld [vmem:[#allocation2 + $0xa2] sm:$0xff]
        %v4356 = vld [vmem:[#allocation2 + $0xb2] sm:$0xff]
        %v4357 = vld [vmem:[#allocation2 + $0xc2] sm:$0xff]
        %v4358 = vld [vmem:[#allocation2 + $0xd2] sm:$0xff]
        %v4359 = vld [vmem:[#allocation2 + $0xe2] sm:$0xff]
        %v4360 = vld [vmem:[#allocation2 + $0xf2] sm:$0xff]
        %v4361 = vld [vmem:[#allocation2 + $0x102] sm:$0xff]
        %v4362 = vld [vmem:[#allocation2 + $0x112] sm:$0xff]
        %v4363 = vld [vmem:[#allocation2 + $0x142] sm:$0xff]
        %v4364 = vld [vmem:[#allocation2 + $0x152] sm:$0xff]
        %v4365 = vld [vmem:[#allocation2 + $0x162] sm:$0xff]
        %v4366 = vld [vmem:[#allocation2 + $0x172] sm:$0xff]
        %v4367 = vld [vmem:[#allocation2 + $0x182] sm:$0xff]
        %v4368 = vld [vmem:[#allocation2 + $0x192] sm:$0xff]
        %v4369 = vld [vmem:[#allocation2 + $0x1a2] sm:$0xff]
        %v4370 = vld [vmem:[#allocation2 + $0x1b2] sm:$0xff]
        %v4371 = vld [vmem:[#allocation2 + $0x1e2] sm:$0xff]
        %v4372 = vld [vmem:[#allocation2 + $0x1f2] sm:$0xff]
        %v4373 = vld [vmem:[#allocation2 + $0x202] sm:$0xff]
        %v4374 = vld [vmem:[#allocation2 + $0x212] sm:$0xff]
        %v4375 = vld [vmem:[#allocation2 + $0x222] sm:$0xff]
        %v4376 = vld [vmem:[#allocation2 + $0x232] sm:$0xff]
        %v4377 = vld [vmem:[#allocation2 + $0x242] sm:$0xff]
        %v4378 = vld [vmem:[#allocation2 + $0x252] sm:$0xff]
        %v4379 = vld [vmem:[%s503] sm:$0xff]
        %v4380 = vld [vmem:[%s503 + $0x10] sm:$0xff]
        %v4381 = vld [vmem:[%s503 + $0x20] sm:$0xff]
        %v4382 = vld [vmem:[%s503 + $0x30] sm:$0xff]
        %v4383 = vld [vmem:[%s503 + $0x40] sm:$0xff]
        %v4384 = vld [vmem:[%s503 + $0x50] sm:$0xff]
        %v4385 = vld [vmem:[%s503 + $0x60] sm:$0xff]
        %v4386 = vld [vmem:[%s503 + $0x70] sm:$0xff]
        %v4387 = vld [vmem:[%s503 + $0xa0] sm:$0xff]
        %v4388 = vld [vmem:[%s503 + $0xb0] sm:$0xff]
        %v4389 = vld [vmem:[%s503 + $0xc0] sm:$0xff]
        %v4390 = vld [vmem:[%s503 + $0xd0] sm:$0xff]
        %v4391 = vld [vmem:[%s503 + $0xe0] sm:$0xff]
        %v4392 = vld [vmem:[%s503 + $0xf0] sm:$0xff]
        %v4393 = vld [vmem:[%s503 + $0x100] sm:$0xff]
        %v4394 = vld [vmem:[%s503 + $0x110] sm:$0xff]
        %v4395 = vld [vmem:[%s503 + $0x140] sm:$0xff]
        %v4396 = vld [vmem:[%s503 + $0x150] sm:$0xff]
        %v4397 = vld [vmem:[%s503 + $0x160] sm:$0xff]
        %v4398 = vld [vmem:[%s503 + $0x170] sm:$0xff]
        %v4399 = vld [vmem:[%s503 + $0x180] sm:$0xff]
        %v4400 = vld [vmem:[%s503 + $0x190] sm:$0xff]
        %v4401 = vld [vmem:[%s503 + $0x1a0] sm:$0xff]
        %v4402 = vld [vmem:[%s503 + $0x1b0] sm:$0xff]
        %v4403 = vld [vmem:[%s503 + $0x1e0] sm:$0xff]
        %v4404 = vld [vmem:[%s503 + $0x1f0] sm:$0xff]
        %v4405 = vld [vmem:[%s503 + $0x200] sm:$0xff]
        %v4406 = vld [vmem:[%s503 + $0x210] sm:$0xff]
        %v4407 = vld [vmem:[%s503 + $0x220] sm:$0xff]
        %v4408 = vld [vmem:[%s503 + $0x230] sm:$0xff]
        %v4409 = vld [vmem:[%s503 + $0x240] sm:$0xff]
        %v4410 = vld [vmem:[%s503 + $0x250] sm:$0xff]
        %v4411 = vld [vmem:[%s503 + $0x1] sm:$0xff]
        %v4412 = vld [vmem:[%s503 + $0x11] sm:$0xff]
        %v4413 = vld [vmem:[%s503 + $0x21] sm:$0xff]
        %v4414 = vld [vmem:[%s503 + $0x31] sm:$0xff]
        %v4415 = vld [vmem:[%s503 + $0x41] sm:$0xff]
        %v4416 = vld [vmem:[%s503 + $0x51] sm:$0xff]
        %v4417 = vld [vmem:[%s503 + $0x61] sm:$0xff]
        %v4418 = vld [vmem:[%s503 + $0x71] sm:$0xff]
        %v4419 = vld [vmem:[%s503 + $0xa1] sm:$0xff]
        %v4420 = vld [vmem:[%s503 + $0xb1] sm:$0xff]
        %v4421 = vld [vmem:[%s503 + $0xc1] sm:$0xff]
        %v4422 = vld [vmem:[%s503 + $0xd1] sm:$0xff]
        %v4423 = vld [vmem:[%s503 + $0xe1] sm:$0xff]
        %v4424 = vld [vmem:[%s503 + $0xf1] sm:$0xff]
        %v4425 = vld [vmem:[%s503 + $0x101] sm:$0xff]
        %v4426 = vld [vmem:[%s503 + $0x111] sm:$0xff]
        %v4427 = vld [vmem:[%s503 + $0x141] sm:$0xff]
        %v4428 = vld [vmem:[%s503 + $0x151] sm:$0xff]
        %v4429 = vld [vmem:[%s503 + $0x161] sm:$0xff]
        %v4430 = vld [vmem:[%s503 + $0x171] sm:$0xff]
        %v4431 = vld [vmem:[%s503 + $0x181] sm:$0xff]
        %v4432 = vld [vmem:[%s503 + $0x191] sm:$0xff]
        %v4433 = vld [vmem:[%s503 + $0x1a1] sm:$0xff]
        %v4434 = vld [vmem:[%s503 + $0x1b1] sm:$0xff]
        %v4435 = vld [vmem:[%s503 + $0x1e1] sm:$0xff]
        %v4436 = vld [vmem:[%s503 + $0x1f1] sm:$0xff]
        %v4437 = vld [vmem:[%s503 + $0x201] sm:$0xff]
        %v4438 = vld [vmem:[%s503 + $0x211] sm:$0xff]
        %v4439 = vld [vmem:[%s503 + $0x221] sm:$0xff]
        %v4440 = vld [vmem:[%s503 + $0x231] sm:$0xff]
        %v4441 = vld [vmem:[%s503 + $0x241] sm:$0xff]
        %v4442 = vld [vmem:[%s503 + $0x251] sm:$0xff]
        %v4443 = vld [vmem:[%s503 + $0x2] sm:$0xff]
        %v4444 = vld [vmem:[%s503 + $0x12] sm:$0xff]
        %v4445 = vld [vmem:[%s503 + $0x22] sm:$0xff]
        %v4446 = vld [vmem:[%s503 + $0x32] sm:$0xff]
        %v4447 = vld [vmem:[%s503 + $0x42] sm:$0xff]
        %v4448 = vld [vmem:[%s503 + $0x52] sm:$0xff]
        %v4449 = vld [vmem:[%s503 + $0x62] sm:$0xff]
        %v4450 = vld [vmem:[%s503 + $0x72] sm:$0xff]
        %v4451 = vld [vmem:[%s503 + $0xa2] sm:$0xff]
        %v4452 = vld [vmem:[%s503 + $0xb2] sm:$0xff]
        %v4453 = vld [vmem:[%s503 + $0xc2] sm:$0xff]
        %v4454 = vld [vmem:[%s503 + $0xd2] sm:$0xff]
        %v4455 = vld [vmem:[%s503 + $0xe2] sm:$0xff]
        %v4456 = vld [vmem:[%s503 + $0xf2] sm:$0xff]
        %v4457 = vld [vmem:[%s503 + $0x102] sm:$0xff]
        %v4458 = vld [vmem:[%s503 + $0x112] sm:$0xff]
        %v4459 = vld [vmem:[%s503 + $0x142] sm:$0xff]
        %v4460 = vld [vmem:[%s503 + $0x152] sm:$0xff]
        %v4461 = vld [vmem:[%s503 + $0x162] sm:$0xff]
        %v4462 = vld [vmem:[%s503 + $0x172] sm:$0xff]
        %v4463 = vld [vmem:[%s503 + $0x182] sm:$0xff]
        %v4464 = vld [vmem:[%s503 + $0x192] sm:$0xff]
        %v4465 = vld [vmem:[%s503 + $0x1a2] sm:$0xff]
        %v4466 = vld [vmem:[%s503 + $0x1b2] sm:$0xff]
        %v4467 = vld [vmem:[%s503 + $0x1e2] sm:$0xff]
        %v4468 = vld [vmem:[%s503 + $0x1f2] sm:$0xff]
        %v4469 = vld [vmem:[%s503 + $0x202] sm:$0xff]
        %v4470 = vld [vmem:[%s503 + $0x212] sm:$0xff]
        %v4471 = vld [vmem:[%s503 + $0x222] sm:$0xff]
        %v4472 = vld [vmem:[%s503 + $0x232] sm:$0xff]
        %v4473 = vld [vmem:[%s503 + $0x242] sm:$0xff]
        %v4474 = vld [vmem:[%s503 + $0x252] sm:$0xff]
        %v4475 = vld [vmem:[%s729] sm:$0xff]
        %v4476 = vld [vmem:[%s729 + $0x10] sm:$0xff]
        %v4477 = vld [vmem:[%s729 + $0x20] sm:$0xff]
        %v4478 = vld [vmem:[%s729 + $0x30] sm:$0xff]
        %v4479 = vld [vmem:[%s729 + $0x40] sm:$0xff]
        %v4480 = vld [vmem:[%s729 + $0x50] sm:$0xff]
        %v4481 = vld [vmem:[%s729 + $0x60] sm:$0xff]
        %v4482 = vld [vmem:[%s729 + $0x70] sm:$0xff]
        %v4483 = vld [vmem:[%s729 + $0xa0] sm:$0xff]
        %v4484 = vld [vmem:[%s729 + $0xb0] sm:$0xff]
        %v4485 = vld [vmem:[%s729 + $0xc0] sm:$0xff]
        %v4486 = vld [vmem:[%s729 + $0xd0] sm:$0xff]
        %v4487 = vld [vmem:[%s729 + $0xe0] sm:$0xff]
        %v4488 = vld [vmem:[%s729 + $0xf0] sm:$0xff]
        %v4489 = vld [vmem:[%s729 + $0x100] sm:$0xff]
        %v4490 = vld [vmem:[%s729 + $0x110] sm:$0xff]
        %v4491 = vld [vmem:[%s729 + $0x140] sm:$0xff]
        %v4492 = vld [vmem:[%s729 + $0x150] sm:$0xff]
        %v4493 = vld [vmem:[%s729 + $0x160] sm:$0xff]
        %v4494 = vld [vmem:[%s729 + $0x170] sm:$0xff]
        %v4495 = vld [vmem:[%s729 + $0x180] sm:$0xff]
        %v4496 = vld [vmem:[%s729 + $0x190] sm:$0xff]
        %v4497 = vld [vmem:[%s729 + $0x1a0] sm:$0xff]
        %v4498 = vld [vmem:[%s729 + $0x1b0] sm:$0xff]
        %v4499 = vld [vmem:[%s729 + $0x1e0] sm:$0xff]
        %v4500 = vld [vmem:[%s729 + $0x1f0] sm:$0xff]
        %v4501 = vld [vmem:[%s729 + $0x200] sm:$0xff]
        %v4502 = vld [vmem:[%s729 + $0x210] sm:$0xff]
        %v4503 = vld [vmem:[%s729 + $0x220] sm:$0xff]
        %v4504 = vld [vmem:[%s729 + $0x230] sm:$0xff]
        %v4505 = vld [vmem:[%s729 + $0x240] sm:$0xff]
        %v4506 = vld [vmem:[%s729 + $0x250] sm:$0xff]
        %v4507 = vld [vmem:[%s729 + $0x1] sm:$0xff]
        %v4508 = vld [vmem:[%s729 + $0x11] sm:$0xff]
        %v4509 = vld [vmem:[%s729 + $0x21] sm:$0xff]
        %v4510 = vld [vmem:[%s729 + $0x31] sm:$0xff]
        %v4511 = vld [vmem:[%s729 + $0x41] sm:$0xff]
        %v4512 = vld [vmem:[%s729 + $0x51] sm:$0xff]
        %v4513 = vld [vmem:[%s729 + $0x61] sm:$0xff]
        %v4514 = vld [vmem:[%s729 + $0x71] sm:$0xff]
        %v4515 = vld [vmem:[%s729 + $0xa1] sm:$0xff]
        %v4516 = vld [vmem:[%s729 + $0xb1] sm:$0xff]
        %v4517 = vld [vmem:[%s729 + $0xc1] sm:$0xff]
        %v4518 = vld [vmem:[%s729 + $0xd1] sm:$0xff]
        %v4519 = vld [vmem:[%s729 + $0xe1] sm:$0xff]
        %v4520 = vld [vmem:[%s729 + $0xf1] sm:$0xff]
        %v4521 = vld [vmem:[%s729 + $0x101] sm:$0xff]
        %v4522 = vld [vmem:[%s729 + $0x111] sm:$0xff]
        %v4523 = vld [vmem:[%s729 + $0x141] sm:$0xff]
        %v4524 = vld [vmem:[%s729 + $0x151] sm:$0xff]
        %v4525 = vld [vmem:[%s729 + $0x161] sm:$0xff]
        %v4526 = vld [vmem:[%s729 + $0x171] sm:$0xff]
        %v4527 = vld [vmem:[%s729 + $0x181] sm:$0xff]
        %v4528 = vld [vmem:[%s729 + $0x191] sm:$0xff]
        %v4529 = vld [vmem:[%s729 + $0x1a1] sm:$0xff]
        %v4530 = vld [vmem:[%s729 + $0x1b1] sm:$0xff]
        %v4531 = vld [vmem:[%s729 + $0x1e1] sm:$0xff]
        %v4532 = vld [vmem:[%s729 + $0x1f1] sm:$0xff]
        %v4533 = vld [vmem:[%s729 + $0x201] sm:$0xff]
        %v4534 = vld [vmem:[%s729 + $0x211] sm:$0xff]
        %v4535 = vld [vmem:[%s729 + $0x221] sm:$0xff]
        %v4536 = vld [vmem:[%s729 + $0x231] sm:$0xff]
        %v4537 = vld [vmem:[%s729 + $0x241] sm:$0xff]
        %v4538 = vld [vmem:[%s729 + $0x251] sm:$0xff]
        %v4539 = vld [vmem:[%s729 + $0x2] sm:$0xff]
        %v4540 = vld [vmem:[%s729 + $0x12] sm:$0xff]
        %v4541 = vld [vmem:[%s729 + $0x22] sm:$0xff]
        %v4542 = vld [vmem:[%s729 + $0x32] sm:$0xff]
        %v4543 = vld [vmem:[%s729 + $0x42] sm:$0xff]
        %v4544 = vld [vmem:[%s729 + $0x52] sm:$0xff]
        %v4545 = vld [vmem:[%s729 + $0x62] sm:$0xff]
        %v4546 = vld [vmem:[%s729 + $0x72] sm:$0xff]
        %v4547 = vld [vmem:[%s729 + $0xa2] sm:$0xff]
        %v4548 = vld [vmem:[%s729 + $0xb2] sm:$0xff]
        %v4549 = vld [vmem:[%s729 + $0xc2] sm:$0xff]
        %v4550 = vld [vmem:[%s729 + $0xd2] sm:$0xff]
        %v4551 = vld [vmem:[%s729 + $0xe2] sm:$0xff]
        %v4552 = vld [vmem:[%s729 + $0xf2] sm:$0xff]
        %v4553 = vld [vmem:[%s729 + $0x102] sm:$0xff]
        %v4554 = vld [vmem:[%s729 + $0x112] sm:$0xff]
        %v4555 = vld [vmem:[%s729 + $0x142] sm:$0xff]
        %v4556 = vld [vmem:[%s729 + $0x152] sm:$0xff]
        %v4557 = vld [vmem:[%s729 + $0x162] sm:$0xff]
        %v4558 = vld [vmem:[%s729 + $0x172] sm:$0xff]
        %v4559 = vld [vmem:[%s729 + $0x182] sm:$0xff]
        %v4560 = vld [vmem:[%s729 + $0x192] sm:$0xff]
        %v4561 = vld [vmem:[%s729 + $0x1a2] sm:$0xff]
        %v4562 = vld [vmem:[%s729 + $0x1b2] sm:$0xff]
        %v4563 = vld [vmem:[%s729 + $0x1e2] sm:$0xff]
        %v4564 = vld [vmem:[%s729 + $0x1f2] sm:$0xff]
        %v4565 = vld [vmem:[%s729 + $0x202] sm:$0xff]
        %v4566 = vld [vmem:[%s729 + $0x212] sm:$0xff]
        %v4567 = vld [vmem:[%s729 + $0x222] sm:$0xff]
        %v4568 = vld [vmem:[%s729 + $0x232] sm:$0xff]
        %v4569 = vld [vmem:[%s729 + $0x242] sm:$0xff]
        %v4570 = vld [vmem:[%s729 + $0x252] sm:$0xff]
        %v4571 = vld [vmem:[%s5] sm:$0xff]
        %v4572 = vld [vmem:[%s5 + $0x8] sm:$0xff]
        %v4573 = vld [vmem:[%s5 + $0x10] sm:$0xff]
        %v4574 = vld [vmem:[%s5 + $0x18] sm:$0xff]
        %v4575 = vld [vmem:[%s5 + $0x20] sm:$0xff]
        %v4576 = vld [vmem:[%s5 + $0x28] sm:$0xff]
        %v4577 = vld [vmem:[%s5 + $0x30] sm:$0xff]
        %v4578 = vld [vmem:[%s5 + $0x38] sm:$0xff]
        %v4579 = vld [vmem:[%s5 + $0x40] sm:$0xff]
        %v4580 = vld [vmem:[%s5 + $0x48] sm:$0xff]
        %v4581 = vld [vmem:[%s5 + $0x50] sm:$0xff]
        %v4582 = vld [vmem:[%s5 + $0x58] sm:$0xff]
        %v4583 = vld [vmem:[%s5 + $0x60] sm:$0xff]
        %v4584 = vld [vmem:[%s5 + $0x68] sm:$0xff]
        %v4585 = vld [vmem:[%s5 + $0x70] sm:$0xff]
        %v4586 = vld [vmem:[%s5 + $0x78] sm:$0xff]
        %v4587 = vld [vmem:[%s5 + $0x80] sm:$0xff]
        %v4588 = vld [vmem:[%s5 + $0x88] sm:$0xff]
        %v4589 = vld [vmem:[%s5 + $0x90] sm:$0xff]
        %v4590 = vld [vmem:[%s5 + $0x98] sm:$0xff]
        %v4591 = vld [vmem:[%s5 + $0xa0] sm:$0xff]
        %v4592 = vld [vmem:[%s5 + $0xa8] sm:$0xff]
        %v4593 = vld [vmem:[%s5 + $0xb0] sm:$0xff]
        %v4594 = vld [vmem:[%s5 + $0xb8] sm:$0xff]
        %v4595 = vld [vmem:[%s5 + $0xc0] sm:$0xff]
        %v4596 = vld [vmem:[%s5 + $0xc8] sm:$0xff]
        %v4597 = vld [vmem:[%s5 + $0xd0] sm:$0xff]
        %v4598 = vld [vmem:[%s5 + $0xd8] sm:$0xff]
        %v4599 = vld [vmem:[%s5 + $0xe0] sm:$0xff]
        %v4600 = vld [vmem:[%s5 + $0xe8] sm:$0xff]
        %v4601 = vld [vmem:[%s5 + $0xf0] sm:$0xff]
        %v4602 = vld [vmem:[%s5 + $0xf8] sm:$0xff]
        %v4603 = vld [vmem:[%s5 + $0x100] sm:$0xff]
        %v4604 = vld [vmem:[%s5 + $0x108] sm:$0xff]
        %v4605 = vld [vmem:[%s5 + $0x110] sm:$0xff]
        %v4606 = vld [vmem:[%s5 + $0x118] sm:$0xff]
        %v4607 = vld [vmem:[%s5 + $0x120] sm:$0xff]
        %v4608 = vld [vmem:[%s5 + $0x128] sm:$0xff]
        %v4609 = vld [vmem:[%s5 + $0x130] sm:$0xff]
        %v4610 = vld [vmem:[%s5 + $0x138] sm:$0xff]
        %v4611 = vld [vmem:[%s5 + $0x140] sm:$0xff]
        %v4612 = vld [vmem:[%s5 + $0x148] sm:$0xff]
        %v4613 = vld [vmem:[%s5 + $0x150] sm:$0xff]
        %v4614 = vld [vmem:[%s5 + $0x158] sm:$0xff]
        %v4615 = vld [vmem:[%s5 + $0x160] sm:$0xff]
        %v4616 = vld [vmem:[%s5 + $0x168] sm:$0xff]
        %v4617 = vld [vmem:[%s5 + $0x170] sm:$0xff]
        %v4618 = vld [vmem:[%s5 + $0x178] sm:$0xff]
        %v4619 = vld [vmem:[%s5 + $0x180] sm:$0xff]
        %v4620 = vld [vmem:[%s5 + $0x188] sm:$0xff]
        %v4621 = vld [vmem:[%s5 + $0x190] sm:$0xff]
        %v4622 = vld [vmem:[%s5 + $0x198] sm:$0xff]
        %v4623 = vld [vmem:[%s5 + $0x1a0] sm:$0xff]
        %v4624 = vld [vmem:[%s5 + $0x1a8] sm:$0xff]
        %v4625 = vld [vmem:[%s5 + $0x1b0] sm:$0xff]
        %v4626 = vld [vmem:[%s5 + $0x1b8] sm:$0xff]
        %v4627 = vld [vmem:[%s5 + $0x1c0] sm:$0xff]
        %v4628 = vld [vmem:[%s5 + $0x1c8] sm:$0xff]
        %v4629 = vld [vmem:[%s5 + $0x1d0] sm:$0xff]
        %v4630 = vld [vmem:[%s5 + $0x1d8] sm:$0xff]
        %v4631 = vld [vmem:[%s5 + $0x1e0] sm:$0xff]
        %v4632 = vld [vmem:[%s5 + $0x1e8] sm:$0xff]
        %v4633 = vld [vmem:[%s5 + $0x1f0] sm:$0xff]
        %v4634 = vld [vmem:[%s5 + $0x1f8] sm:$0xff]
        %v4635 = vld [vmem:[%s5 + $0x200] sm:$0xff]
        %v4636 = vld [vmem:[%s5 + $0x208] sm:$0xff]
        %v4637 = vld [vmem:[%s5 + $0x210] sm:$0xff]
        %v4638 = vld [vmem:[%s5 + $0x218] sm:$0xff]
        %v4639 = vld [vmem:[%s5 + $0x220] sm:$0xff]
        %v4640 = vld [vmem:[%s5 + $0x228] sm:$0xff]
        %v4641 = vld [vmem:[%s5 + $0x230] sm:$0xff]
        %v4642 = vld [vmem:[%s5 + $0x238] sm:$0xff]
        %v4643 = vld [vmem:[%s5 + $0x240] sm:$0xff]
        %v4644 = vld [vmem:[%s5 + $0x248] sm:$0xff]
        %v4645 = vld [vmem:[%s5 + $0x250] sm:$0xff]
        %v4646 = vld [vmem:[%s5 + $0x258] sm:$0xff]
        %v4647 = vld [vmem:[%s5 + $0x260] sm:$0xff]
        %v4648 = vld [vmem:[%s5 + $0x268] sm:$0xff]
        %v4649 = vld [vmem:[%s5 + $0x270] sm:$0xff]
        %v4650 = vld [vmem:[%s5 + $0x278] sm:$0xff]
        %v4651 = vld [vmem:[%s5 + $0x280] sm:$0xff]
        %v4652 = vld [vmem:[%s5 + $0x288] sm:$0xff]
        %v4653 = vld [vmem:[%s5 + $0x290] sm:$0xff]
        %v4654 = vld [vmem:[%s5 + $0x298] sm:$0xff]
        %v4655 = vld [vmem:[%s5 + $0x2a0] sm:$0xff]
        %v4656 = vld [vmem:[%s5 + $0x2a8] sm:$0xff]
        %v4657 = vld [vmem:[%s5 + $0x2b0] sm:$0xff]
        %v4658 = vld [vmem:[%s5 + $0x2b8] sm:$0xff]
        %v4659 = vld [vmem:[%s5 + $0x2c0] sm:$0xff]
        %v4660 = vld [vmem:[%s5 + $0x2c8] sm:$0xff]
        %v4661 = vld [vmem:[%s5 + $0x2d0] sm:$0xff]
        %v4662 = vld [vmem:[%s5 + $0x2d8] sm:$0xff]
        %v4663 = vld [vmem:[%s5 + $0x2e0] sm:$0xff]
        %v4664 = vld [vmem:[%s5 + $0x2e8] sm:$0xff]
        %v4665 = vld [vmem:[%s5 + $0x2f0] sm:$0xff]
        %v4666 = vld [vmem:[%s5 + $0x2f8] sm:$0xff]
        %v4667 = vld [vmem:[%s5 + $0x300] sm:$0xff]
        %v4668 = vld [vmem:[%s5 + $0x308] sm:$0xff]
        %v4669 = vld [vmem:[%s5 + $0x310] sm:$0xff]
        %v4670 = vld [vmem:[%s5 + $0x318] sm:$0xff]
        %v4671 = vld [vmem:[%s5 + $0x320] sm:$0xff]
        %v4672 = vld [vmem:[%s5 + $0x328] sm:$0xff]
        %v4673 = vld [vmem:[%s5 + $0x330] sm:$0xff]
        %v4674 = vld [vmem:[%s5 + $0x338] sm:$0xff]
        %v4675 = vld [vmem:[%s5 + $0x340] sm:$0xff]
        %v4676 = vld [vmem:[%s5 + $0x348] sm:$0xff]
        %v4677 = vld [vmem:[%s5 + $0x350] sm:$0xff]
        %v4678 = vld [vmem:[%s5 + $0x358] sm:$0xff]
        %v4679 = vld [vmem:[%s5 + $0x360] sm:$0xff]
        %v4680 = vld [vmem:[%s5 + $0x368] sm:$0xff]
        %v4681 = vld [vmem:[%s5 + $0x370] sm:$0xff]
        %v4682 = vld [vmem:[%s5 + $0x378] sm:$0xff]
        %v4683 = vld [vmem:[%s5 + $0x380] sm:$0xff]
        %v4684 = vld [vmem:[%s5 + $0x388] sm:$0xff]
        %v4685 = vld [vmem:[%s5 + $0x390] sm:$0xff]
        %v4686 = vld [vmem:[%s5 + $0x398] sm:$0xff]
        %v4687 = vld [vmem:[%s5 + $0x3a0] sm:$0xff]
        %v4688 = vld [vmem:[%s5 + $0x3a8] sm:$0xff]
        %v4689 = vld [vmem:[%s5 + $0x3b0] sm:$0xff]
        %v4690 = vld [vmem:[%s5 + $0x3b8] sm:$0xff]
        %v4691 = vld [vmem:[%s5 + $0x3c0] sm:$0xff]
        %v4692 = vld [vmem:[%s5 + $0x3c8] sm:$0xff]
        %v4693 = vld [vmem:[%s5 + $0x3d0] sm:$0xff]
        %v4694 = vld [vmem:[%s5 + $0x3d8] sm:$0xff]
        %v4695 = vld [vmem:[%s5 + $0x3e0] sm:$0xff]
        %v4696 = vld [vmem:[%s5 + $0x3e8] sm:$0xff]
        %v4697 = vld [vmem:[%s5 + $0x3f0] sm:$0xff]
        %v4698 = vld [vmem:[%s5 + $0x3f8] sm:$0xff]
        %v4699 = vld [vmem:[%s5 + $0x400] sm:$0xff]
        %v4700 = vld [vmem:[%s5 + $0x408] sm:$0xff]
        %v4701 = vld [vmem:[%s5 + $0x410] sm:$0xff]
        %v4702 = vld [vmem:[%s5 + $0x418] sm:$0xff]
        %v4703 = vld [vmem:[%s5 + $0x420] sm:$0xff]
        %v4704 = vld [vmem:[%s5 + $0x428] sm:$0xff]
        %v4705 = vld [vmem:[%s5 + $0x430] sm:$0xff]
        %v4706 = vld [vmem:[%s5 + $0x438] sm:$0xff]
        %v4707 = vld [vmem:[%s5 + $0x440] sm:$0xff]
        %v4708 = vld [vmem:[%s5 + $0x448] sm:$0xff]
        %v4709 = vld [vmem:[%s5 + $0x450] sm:$0xff]
        %v4710 = vld [vmem:[%s5 + $0x458] sm:$0xff]
        %v4711 = vld [vmem:[%s5 + $0x460] sm:$0xff]
        %v4712 = vld [vmem:[%s5 + $0x468] sm:$0xff]
        %v4713 = vld [vmem:[%s5 + $0x470] sm:$0xff]
        %v4714 = vld [vmem:[%s5 + $0x478] sm:$0xff]
        %v4715 = vld [vmem:[%s6] sm:$0x1]
        %v4717 = vlaneseq
        %v4718 = vshrl.u32 %v4717, 7
        %v4719 = vsub.s32 0, %v4718
        %v4720 = vrot.slane %v4715, %v4719
        %4722 = vmatprep.subr.mxu0 0.0
        %4723 = vmatpush1.msra.mxu0 %v4571
        %4724 = vmatprep.subr.mxu0 0.0
        %4725 = vmatpush1.msra.mxu0 %v4572
        %4726 = vmatprep.subr.mxu0 0.0
        %4727 = vmatpush1.msra.mxu0 %v4573
        %4728 = vmatprep.subr.mxu0 0.0
        %4729 = vmatpush1.msra.mxu0 %v4574
        %4730 = vmatprep.subr.mxu0 0.0
        %4731 = vmatpush1.msra.mxu0 %v4575
        %4732 = vmatprep.subr.mxu0 0.0
        %4733 = vmatpush1.msra.mxu0 %v4576
        %4734 = vmatprep.subr.mxu0 0.0
        %4735 = vmatpush1.msra.mxu0 %v4577
        %4736 = vmatprep.subr.mxu0 0.0
        %4737 = vmatpush1.msra.mxu0 %v4578
        %4738 = vmatprep.subr.mxu0 0.0
        %4739 = vmatpush1.msra.mxu0 %v4579
        %4740 = vmatprep.subr.mxu0 0.0
        %4741 = vmatpush1.msra.mxu0 %v4580
        %4742 = vmatprep.subr.mxu0 0.0
        %4743 = vmatpush1.msra.mxu0 %v4581
        %4744 = vmatprep.subr.mxu0 0.0
        %4745 = vmatpush1.msra.mxu0 %v4582
        %4746 = vmatprep.subr.mxu0 0.0
        %4747 = vmatpush1.msra.mxu0 %v4583
        %4748 = vmatprep.subr.mxu0 0.0
        %4749 = vmatpush1.msra.mxu0 %v4584
        %4750 = vmatprep.subr.mxu0 0.0
        %4751 = vmatpush1.msra.mxu0 %v4585
        %4752 = vmatprep.subr.mxu0 0.0
        %4753 = vmatpush1.msra.mxu0 %v4586
        %4754 = vmatprep.subr.mxu0 0.0
        %4755 = vmatpush1.msra.mxu0 %v4587
        %4756 = vmatprep.subr.mxu0 0.0
        %4757 = vmatpush1.msra.mxu0 %v4588
        %4758 = vmatprep.subr.mxu0 0.0
        %4759 = vmatpush1.msra.mxu0 %v4589
        %4760 = vmatprep.subr.mxu0 0.0
        %4761 = vmatpush1.msra.mxu0 %v4590
        %4762 = vmatprep.subr.mxu0 0.0
        %4763 = vmatpush1.msra.mxu0 %v4591
        %4764 = vmatprep.subr.mxu0 0.0
        %4765 = vmatpush1.msra.mxu0 %v4592
        %4766 = vmatprep.subr.mxu0 0.0
        %4767 = vmatpush1.msra.mxu0 %v4593
        %4768 = vmatprep.subr.mxu0 0.0
        %4769 = vmatpush1.msra.mxu0 %v4594
        %4770 = vmatprep.subr.mxu0 0.0
        %4771 = vmatpush1.msra.mxu0 %v4595
        %4772 = vmatprep.subr.mxu0 0.0
        %4773 = vmatpush1.msra.mxu0 %v4596
        %4774 = vmatprep.subr.mxu0 0.0
        %4775 = vmatpush1.msra.mxu0 %v4597
        %4776 = vmatprep.subr.mxu0 0.0
        %4777 = vmatpush1.msra.mxu0 %v4598
        %4778 = vmatprep.subr.mxu0 0.0
        %4779 = vmatpush1.msra.mxu0 %v4599
        %4780 = vmatprep.subr.mxu0 0.0
        %4781 = vmatpush1.msra.mxu0 %v4600
        %4782 = vmatprep.subr.mxu0 0.0
        %4783 = vmatpush1.msra.mxu0 %v4601
        %4784 = vmatprep.subr.mxu0 0.0
        %4785 = vmatpush1.msra.mxu0 %v4602
        %4786 = vmatprep.mubr.f32.mxu0 %v4315
        %4787 = vmatmul.mubr.f32.gmra.mrb[0].mxu0 %v4283
        %v4788 = vpop.f32.mrb[0].mxu0
        %v4789 = vadd.f32 %v4720, %v4788
        %v4790 = vpop.f32.mrb[0].mxu0
        %4791 = vmatprep.mubr.f32.mxu0 %v4316
        %4792 = vmatmul.mubr.f32.gmra.mrb[0].mxu0 %v4284
        %v4793 = vpop.f32.mrb[0].mxu0
        %v4794 = vadd.f32 %v4720, %v4793
        %v4795 = vpop.f32.mrb[0].mxu0
        %4796 = vmatprep.mubr.f32.mxu0 %v4317
        %4797 = vmatmul.mubr.f32.gmra.mrb[0].mxu0 %v4285
        %v4798 = vpop.f32.mrb[0].mxu0
        %v4799 = vadd.f32 %v4720, %v4798
        %v4800 = vpop.f32.mrb[0].mxu0
        %4801 = vmatprep.mubr.f32.mxu0 %v4318
        %4802 = vmatmul.mubr.f32.gmra.mrb[0].mxu0 %v4286
        %v4803 = vpop.f32.mrb[0].mxu0
        %v4804 = vadd.f32 %v4720, %v4803
        %v4805 = vpop.f32.mrb[0].mxu0
        %4806 = vmatprep.mubr.f32.mxu0 %v4319
        %4807 = vmatmul.mubr.f32.gmra.mrb[0].mxu0 %v4287
        %v4808 = vpop.f32.mrb[0].mxu0
        %v4809 = vadd.f32 %v4720, %v4808
        %v4810 = vpop.f32.mrb[0].mxu0
        %4811 = vmatprep.mubr.f32.mxu0 %v4320
        %4812 = vmatmul.mubr.f32.gmra.mrb[0].mxu0 %v4288
        %v4813 = vpop.f32.mrb[0].mxu0
        %v4814 = vadd.f32 %v4720, %v4813
        %v4815 = vpop.f32.mrb[0].mxu0
        %4816 = vmatprep.mubr.f32.mxu0 %v4321
        %4817 = vmatmul.mubr.f32.gmra.mrb[0].mxu0 %v4289
        %v4818 = vpop.f32.mrb[0].mxu0
        %v4819 = vadd.f32 %v4720, %v4818
        %v4820 = vpop.f32.mrb[0].mxu0
        %4821 = vmatprep.mubr.f32.mxu0 %v4322
        %4822 = vmatmul.mubr.f32.gmra.mrb[0].mxu0 %v4290
        %v4823 = vpop.f32.mrb[0].mxu0
        %v4824 = vadd.f32 %v4720, %v4823
        %v4825 = vpop.f32.mrb[0].mxu0
        %4826 = vmatprep.mubr.f32.mxu0 %v4323
        %4827 = vmatmul.mubr.f32.gmra.mrb[0].mxu0 %v4291
        %v4828 = vpop.f32.mrb[0].mxu0
        %v4829 = vadd.f32 %v4720, %v4828
        %v4830 = vpop.f32.mrb[0].mxu0
        %4831 = vmatprep.mubr.f32.mxu0 %v4324
        %4832 = vmatmul.mubr.f32.gmra.mrb[0].mxu0 %v4292
        %v4833 = vpop.f32.mrb[0].mxu0
        %v4834 = vadd.f32 %v4720, %v4833
        %v4835 = vpop.f32.mrb[0].mxu0
        %4836 = vmatprep.mubr.f32.mxu0 %v4325
        %4837 = vmatmul.mubr.f32.gmra.mrb[0].mxu0 %v4293
        %v4838 = vpop.f32.mrb[0].mxu0
        %v4839 = vadd.f32 %v4720, %v4838
        %v4840 = vpop.f32.mrb[0].mxu0
        %4841 = vmatprep.mubr.f32.mxu0 %v4326
        %4842 = vmatmul.mubr.f32.gmra.mrb[0].mxu0 %v4294
        %v4843 = vpop.f32.mrb[0].mxu0
        %v4844 = vadd.f32 %v4720, %v4843
        %v4845 = vpop.f32.mrb[0].mxu0
        %4846 = vmatprep.mubr.f32.mxu0 %v4327
        %4847 = vmatmul.mubr.f32.gmra.mrb[0].mxu0 %v4295
        %v4848 = vpop.f32.mrb[0].mxu0
        %v4849 = vadd.f32 %v4720, %v4848
        %v4850 = vpop.f32.mrb[0].mxu0
        %4851 = vmatprep.mubr.f32.mxu0 %v4328
        %4852 = vmatmul.mubr.f32.gmra.mrb[0].mxu0 %v4296
        %v4853 = vpop.f32.mrb[0].mxu0
        %v4854 = vadd.f32 %v4720, %v4853
        %v4855 = vpop.f32.mrb[0].mxu0
        %4856 = vmatprep.mubr.f32.mxu0 %v4329
        %4857 = vmatmul.mubr.f32.gmra.mrb[0].mxu0 %v4297
        %v4858 = vpop.f32.mrb[0].mxu0
        %v4859 = vadd.f32 %v4720, %v4858
        %v4860 = vpop.f32.mrb[0].mxu0
        %4861 = vmatprep.mubr.f32.mxu0 %v4330
        %4862 = vmatmul.mubr.f32.gmra.mrb[0].mxu0 %v4298
        %v4863 = vpop.f32.mrb[0].mxu0
        %v4864 = vadd.f32 %v4720, %v4863
        %v4865 = vpop.f32.mrb[0].mxu0
        %4866 = vmatprep.mubr.f32.mxu0 %v4331
        %4867 = vmatmul.mubr.f32.gmra.mrb[0].mxu0 %v4299
        %v4868 = vpop.f32.mrb[0].mxu0
        %v4869 = vadd.f32 %v4720, %v4868
        %v4870 = vpop.f32.mrb[0].mxu0
        %4871 = vmatprep.mubr.f32.mxu0 %v4332
        %4872 = vmatmul.mubr.f32.gmra.mrb[0].mxu0 %v4300
        %v4873 = vpop.f32.mrb[0].mxu0
        %v4874 = vadd.f32 %v4720, %v4873
        %v4875 = vpop.f32.mrb[0].mxu0
        %4876 = vmatprep.mubr.f32.mxu0 %v4333
        %4877 = vmatmul.mubr.f32.gmra.mrb[0].mxu0 %v4301
        %v4878 = vpop.f32.mrb[0].mxu0
        %v4879 = vadd.f32 %v4720, %v4878
        %v4880 = vpop.f32.mrb[0].mxu0
        %4881 = vmatprep.mubr.f32.mxu0 %v4334
        %4882 = vmatmul.mubr.f32.gmra.mrb[0].mxu0 %v4302
        %v4883 = vpop.f32.mrb[0].mxu0
        %v4884 = vadd.f32 %v4720, %v4883
        %v4885 = vpop.f32.mrb[0].mxu0
        %4886 = vmatprep.mubr.f32.mxu0 %v4335
        %4887 = vmatmul.mubr.f32.gmra.mrb[0].mxu0 %v4303
        %v4888 = vpop.f32.mrb[0].mxu0
        %v4889 = vadd.f32 %v4720, %v4888
        %v4890 = vpop.f32.mrb[0].mxu0
        %4891 = vmatprep.mubr.f32.mxu0 %v4336
        %4892 = vmatmul.mubr.f32.gmra.mrb[0].mxu0 %v4304
        %v4893 = vpop.f32.mrb[0].mxu0
        %v4894 = vadd.f32 %v4720, %v4893
        %v4895 = vpop.f32.mrb[0].mxu0
        %4896 = vmatprep.mubr.f32.mxu0 %v4337
        %4897 = vmatmul.mubr.f32.gmra.mrb[0].mxu0 %v4305
        %v4898 = vpop.f32.mrb[0].mxu0
        %v4899 = vadd.f32 %v4720, %v4898
        %v4900 = vpop.f32.mrb[0].mxu0
        %4901 = vmatprep.mubr.f32.mxu0 %v4338
        %4902 = vmatmul.mubr.f32.gmra.mrb[0].mxu0 %v4306
        %v4903 = vpop.f32.mrb[0].mxu0
        %v4904 = vadd.f32 %v4720, %v4903
        %v4905 = vpop.f32.mrb[0].mxu0
        %4906 = vmatprep.mubr.f32.mxu0 %v4339
        %4907 = vmatmul.mubr.f32.gmra.mrb[0].mxu0 %v4307
        %v4908 = vpop.f32.mrb[0].mxu0
        %v4909 = vadd.f32 %v4720, %v4908
        %v4910 = vpop.f32.mrb[0].mxu0
        %4911 = vmatprep.mubr.f32.mxu0 %v4340
        %4912 = vmatmul.mubr.f32.gmra.mrb[0].mxu0 %v4308
        %v4913 = vpop.f32.mrb[0].mxu0
        %v4914 = vadd.f32 %v4720, %v4913
        %v4915 = vpop.f32.mrb[0].mxu0
        %4916 = vmatprep.mubr.f32.mxu0 %v4341
        %4917 = vmatmul.mubr.f32.gmra.mrb[0].mxu0 %v4309
        %v4918 = vpop.f32.mrb[0].mxu0
        %v4919 = vadd.f32 %v4720, %v4918
        %v4920 = vpop.f32.mrb[0].mxu0
        %4921 = vmatprep.mubr.f32.mxu0 %v4342
        %4922 = vmatmul.mubr.f32.gmra.mrb[0].mxu0 %v4310
        %v4923 = vpop.f32.mrb[0].mxu0
        %v4924 = vadd.f32 %v4720, %v4923
        %v4925 = vpop.f32.mrb[0].mxu0
        %4926 = vmatprep.mubr.f32.mxu0 %v4343
        %4927 = vmatmul.mubr.f32.gmra.mrb[0].mxu0 %v4311
        %v4928 = vpop.f32.mrb[0].mxu0
        %v4929 = vadd.f32 %v4720, %v4928
        %v4930 = vpop.f32.mrb[0].mxu0
        %4931 = vmatprep.mubr.f32.mxu0 %v4344
        %4932 = vmatmul.mubr.f32.gmra.mrb[0].mxu0 %v4312
        %v4933 = vpop.f32.mrb[0].mxu0
        %v4934 = vadd.f32 %v4720, %v4933
        %v4935 = vpop.f32.mrb[0].mxu0
        %4936 = vmatprep.mubr.f32.mxu0 %v4345
        %4937 = vmatmul.mubr.f32.gmra.mrb[0].mxu0 %v4313
        %v4938 = vpop.f32.mrb[0].mxu0
        %v4939 = vadd.f32 %v4720, %v4938
        %v4940 = vpop.f32.mrb[0].mxu0
        %4941 = vmatprep.mubr.f32.mxu0 %v4346
        %4942 = vmatmul.mubr.f32.gmra.mrb[0].mxu0 %v4314
        %v4943 = vpop.f32.mrb[0].mxu0
        %v4944 = vadd.f32 %v4720, %v4943
        %v4945 = vpop.f32.mrb[0].mxu0
        %4946 = vdwg.mxu0
        %4947 = vmatprep.subr.mxu0 0.0
        %4948 = vmatpush1.msra.mxu0 %v4603
        %4949 = vmatprep.subr.mxu0 0.0
        %4950 = vmatpush1.msra.mxu0 %v4604
        %4951 = vmatprep.subr.mxu0 0.0
        %4952 = vmatpush1.msra.mxu0 %v4605
        %4953 = vmatprep.subr.mxu0 0.0
        %4954 = vmatpush1.msra.mxu0 %v4606
        %4955 = vmatprep.subr.mxu0 0.0
        %4956 = vmatpush1.msra.mxu0 %v4607
        %4957 = vmatprep.subr.mxu0 0.0
        %4958 = vmatpush1.msra.mxu0 %v4608
        %4959 = vmatprep.subr.mxu0 0.0
        %4960 = vmatpush1.msra.mxu0 %v4609
        %4961 = vmatprep.subr.mxu0 0.0
        %4962 = vmatpush1.msra.mxu0 %v4610
        %4963 = vmatprep.subr.mxu0 0.0
        %4964 = vmatpush1.msra.mxu0 %v4611
        %4965 = vmatprep.subr.mxu0 0.0
        %4966 = vmatpush1.msra.mxu0 %v4612
        %4967 = vmatprep.subr.mxu0 0.0
        %4968 = vmatpush1.msra.mxu0 %v4613
        %4969 = vmatprep.subr.mxu0 0.0
        %4970 = vmatpush1.msra.mxu0 %v4614
        %4971 = vmatprep.subr.mxu0 0.0
        %4972 = vmatpush1.msra.mxu0 %v4615
        %4973 = vmatprep.subr.mxu0 0.0
        %4974 = vmatpush1.msra.mxu0 %v4616
        %4975 = vmatprep.subr.mxu0 0.0
        %4976 = vmatpush1.msra.mxu0 %v4617
        %4977 = vmatprep.subr.mxu0 0.0
        %4978 = vmatpush1.msra.mxu0 %v4618
        %4979 = vmatprep.subr.mxu0 0.0
        %4980 = vmatpush1.msra.mxu0 %v4619
        %4981 = vmatprep.subr.mxu0 0.0
        %4982 = vmatpush1.msra.mxu0 %v4620
        %4983 = vmatprep.subr.mxu0 0.0
        %4984 = vmatpush1.msra.mxu0 %v4621
        %4985 = vmatprep.subr.mxu0 0.0
        %4986 = vmatpush1.msra.mxu0 %v4622
        %4987 = vmatprep.subr.mxu0 0.0
        %4988 = vmatpush1.msra.mxu0 %v4623
        %4989 = vmatprep.subr.mxu0 0.0
        %4990 = vmatpush1.msra.mxu0 %v4624
        %4991 = vmatprep.subr.mxu0 0.0
        %4992 = vmatpush1.msra.mxu0 %v4625
        %4993 = vmatprep.subr.mxu0 0.0
        %4994 = vmatpush1.msra.mxu0 %v4626
        %4995 = vmatprep.subr.mxu0 0.0
        %4996 = vmatpush1.msra.mxu0 %v4627
        %4997 = vmatprep.subr.mxu0 0.0
        %4998 = vmatpush1.msra.mxu0 %v4628
        %4999 = vmatprep.subr.mxu0 0.0
        %5000 = vmatpush1.msra.mxu0 %v4629
        %5001 = vmatprep.subr.mxu0 0.0
        %5002 = vmatpush1.msra.mxu0 %v4630
        %5003 = vmatprep.subr.mxu0 0.0
        %5004 = vmatpush1.msra.mxu0 %v4631
        %5005 = vmatprep.subr.mxu0 0.0
        %5006 = vmatpush1.msra.mxu0 %v4632
        %5007 = vmatprep.subr.mxu0 0.0
        %5008 = vmatpush1.msra.mxu0 %v4633
        %5009 = vmatprep.subr.mxu0 0.0
        %5010 = vmatpush1.msra.mxu0 %v4634
        %5011 = vmatprep.mubr.f32.mxu0 %v4379
        %5012 = vmatmul.mubr.f32.gmra.mrb[0].mxu0 %v4347
        %v5013 = vpop.f32.mrb[0].mxu0
        %v5014 = vadd.f32 %v4789, %v5013
        %v5015 = vpop.f32.mrb[0].mxu0
        %5016 = vmatprep.mubr.f32.mxu0 %v4380
        %5017 = vmatmul.mubr.f32.gmra.mrb[0].mxu0 %v4348
        %v5018 = vpop.f32.mrb[0].mxu0
        %v5019 = vadd.f32 %v4794, %v5018
        %v5020 = vpop.f32.mrb[0].mxu0
        %5021 = vmatprep.mubr.f32.mxu0 %v4381
        %5022 = vmatmul.mubr.f32.gmra.mrb[0].mxu0 %v4349
        %v5023 = vpop.f32.mrb[0].mxu0
        %v5024 = vadd.f32 %v4799, %v5023
        %v5025 = vpop.f32.mrb[0].mxu0
        %5026 = vmatprep.mubr.f32.mxu0 %v4382
        %5027 = vmatmul.mubr.f32.gmra.mrb[0].mxu0 %v4350
        %v5028 = vpop.f32.mrb[0].mxu0
        %v5029 = vadd.f32 %v4804, %v5028
        %v5030 = vpop.f32.mrb[0].mxu0
        %5031 = vmatprep.mubr.f32.mxu0 %v4383
        %5032 = vmatmul.mubr.f32.gmra.mrb[0].mxu0 %v4351
        %v5033 = vpop.f32.mrb[0].mxu0
        %v5034 = vadd.f32 %v4809, %v5033
        %v5035 = vpop.f32.mrb[0].mxu0
        %5036 = vmatprep.mubr.f32.mxu0 %v4384
        %5037 = vmatmul.mubr.f32.gmra.mrb[0].mxu0 %v4352
        %v5038 = vpop.f32.mrb[0].mxu0
        %v5039 = vadd.f32 %v4814, %v5038
        %v5040 = vpop.f32.mrb[0].mxu0
        %5041 = vmatprep.mubr.f32.mxu0 %v4385
        %5042 = vmatmul.mubr.f32.gmra.mrb[0].mxu0 %v4353
        %v5043 = vpop.f32.mrb[0].mxu0
        %v5044 = vadd.f32 %v4819, %v5043
        %v5045 = vpop.f32.mrb[0].mxu0
        %5046 = vmatprep.mubr.f32.mxu0 %v4386
        %5047 = vmatmul.mubr.f32.gmra.mrb[0].mxu0 %v4354
        %v5048 = vpop.f32.mrb[0].mxu0
        %v5049 = vadd.f32 %v4824, %v5048
        %v5050 = vpop.f32.mrb[0].mxu0
        %5051 = vmatprep.mubr.f32.mxu0 %v4387
        %5052 = vmatmul.mubr.f32.gmra.mrb[0].mxu0 %v4355
        %v5053 = vpop.f32.mrb[0].mxu0
        %v5054 = vadd.f32 %v4829, %v5053
        %v5055 = vpop.f32.mrb[0].mxu0
        %5056 = vmatprep.mubr.f32.mxu0 %v4388
        %5057 = vmatmul.mubr.f32.gmra.mrb[0].mxu0 %v4356
        %v5058 = vpop.f32.mrb[0].mxu0
        %v5059 = vadd.f32 %v4834, %v5058
        %v5060 = vpop.f32.mrb[0].mxu0
        %5061 = vmatprep.mubr.f32.mxu0 %v4389
        %5062 = vmatmul.mubr.f32.gmra.mrb[0].mxu0 %v4357
        %v5063 = vpop.f32.mrb[0].mxu0
        %v5064 = vadd.f32 %v4839, %v5063
        %v5065 = vpop.f32.mrb[0].mxu0
        %5066 = vmatprep.mubr.f32.mxu0 %v4390
        %5067 = vmatmul.mubr.f32.gmra.mrb[0].mxu0 %v4358
        %v5068 = vpop.f32.mrb[0].mxu0
        %v5069 = vadd.f32 %v4844, %v5068
        %v5070 = vpop.f32.mrb[0].mxu0
        %5071 = vmatprep.mubr.f32.mxu0 %v4391
        %5072 = vmatmul.mubr.f32.gmra.mrb[0].mxu0 %v4359
        %v5073 = vpop.f32.mrb[0].mxu0
        %v5074 = vadd.f32 %v4849, %v5073
        %v5075 = vpop.f32.mrb[0].mxu0
        %5076 = vmatprep.mubr.f32.mxu0 %v4392
        %5077 = vmatmul.mubr.f32.gmra.mrb[0].mxu0 %v4360
        %v5078 = vpop.f32.mrb[0].mxu0
        %v5079 = vadd.f32 %v4854, %v5078
        %v5080 = vpop.f32.mrb[0].mxu0
        %5081 = vmatprep.mubr.f32.mxu0 %v4393
        %5082 = vmatmul.mubr.f32.gmra.mrb[0].mxu0 %v4361
        %v5083 = vpop.f32.mrb[0].mxu0
        %v5084 = vadd.f32 %v4859, %v5083
        %v5085 = vpop.f32.mrb[0].mxu0
        %5086 = vmatprep.mubr.f32.mxu0 %v4394
        %5087 = vmatmul.mubr.f32.gmra.mrb[0].mxu0 %v4362
        %v5088 = vpop.f32.mrb[0].mxu0
        %v5089 = vadd.f32 %v4864, %v5088
        %v5090 = vpop.f32.mrb[0].mxu0
        %5091 = vmatprep.mubr.f32.mxu0 %v4395
        %5092 = vmatmul.mubr.f32.gmra.mrb[0].mxu0 %v4363
        %v5093 = vpop.f32.mrb[0].mxu0
        %v5094 = vadd.f32 %v4869, %v5093
        %v5095 = vpop.f32.mrb[0].mxu0
        %5096 = vmatprep.mubr.f32.mxu0 %v4396
        %5097 = vmatmul.mubr.f32.gmra.mrb[0].mxu0 %v4364
        %v5098 = vpop.f32.mrb[0].mxu0
        %v5099 = vadd.f32 %v4874, %v5098
        %v5100 = vpop.f32.mrb[0].mxu0
        %5101 = vmatprep.mubr.f32.mxu0 %v4397
        %5102 = vmatmul.mubr.f32.gmra.mrb[0].mxu0 %v4365
        %v5103 = vpop.f32.mrb[0].mxu0
        %v5104 = vadd.f32 %v4879, %v5103
        %v5105 = vpop.f32.mrb[0].mxu0
        %5106 = vmatprep.mubr.f32.mxu0 %v4398
        %5107 = vmatmul.mubr.f32.gmra.mrb[0].mxu0 %v4366
        %v5108 = vpop.f32.mrb[0].mxu0
        %v5109 = vadd.f32 %v4884, %v5108
        %v5110 = vpop.f32.mrb[0].mxu0
        %5111 = vmatprep.mubr.f32.mxu0 %v4399
        %5112 = vmatmul.mubr.f32.gmra.mrb[0].mxu0 %v4367
        %v5113 = vpop.f32.mrb[0].mxu0
        %v5114 = vadd.f32 %v4889, %v5113
        %v5115 = vpop.f32.mrb[0].mxu0
        %5116 = vmatprep.mubr.f32.mxu0 %v4400
        %5117 = vmatmul.mubr.f32.gmra.mrb[0].mxu0 %v4368
        %v5118 = vpop.f32.mrb[0].mxu0
        %v5119 = vadd.f32 %v4894, %v5118
        %v5120 = vpop.f32.mrb[0].mxu0
        %5121 = vmatprep.mubr.f32.mxu0 %v4401
        %5122 = vmatmul.mubr.f32.gmra.mrb[0].mxu0 %v4369
        %v5123 = vpop.f32.mrb[0].mxu0
        %v5124 = vadd.f32 %v4899, %v5123
        %v5125 = vpop.f32.mrb[0].mxu0
        %5126 = vmatprep.mubr.f32.mxu0 %v4402
        %5127 = vmatmul.mubr.f32.gmra.mrb[0].mxu0 %v4370
        %v5128 = vpop.f32.mrb[0].mxu0
        %v5129 = vadd.f32 %v4904, %v5128
        %v5130 = vpop.f32.mrb[0].mxu0
        %5131 = vmatprep.mubr.f32.mxu0 %v4403
        %5132 = vmatmul.mubr.f32.gmra.mrb[0].mxu0 %v4371
        %v5133 = vpop.f32.mrb[0].mxu0
        %v5134 = vadd.f32 %v4909, %v5133
        %v5135 = vpop.f32.mrb[0].mxu0
        %5136 = vmatprep.mubr.f32.mxu0 %v4404
        %5137 = vmatmul.mubr.f32.gmra.mrb[0].mxu0 %v4372
        %v5138 = vpop.f32.mrb[0].mxu0
        %v5139 = vadd.f32 %v4914, %v5138
        %v5140 = vpop.f32.mrb[0].mxu0
        %5141 = vmatprep.mubr.f32.mxu0 %v4405
        %5142 = vmatmul.mubr.f32.gmra.mrb[0].mxu0 %v4373
        %v5143 = vpop.f32.mrb[0].mxu0
        %v5144 = vadd.f32 %v4919, %v5143
        %v5145 = vpop.f32.mrb[0].mxu0
        %5146 = vmatprep.mubr.f32.mxu0 %v4406
        %5147 = vmatmul.mubr.f32.gmra.mrb[0].mxu0 %v4374
        %v5148 = vpop.f32.mrb[0].mxu0
        %v5149 = vadd.f32 %v4924, %v5148
        %v5150 = vpop.f32.mrb[0].mxu0
        %5151 = vmatprep.mubr.f32.mxu0 %v4407
        %5152 = vmatmul.mubr.f32.gmra.mrb[0].mxu0 %v4375
        %v5153 = vpop.f32.mrb[0].mxu0
        %v5154 = vadd.f32 %v4929, %v5153
        %v5155 = vpop.f32.mrb[0].mxu0
        %5156 = vmatprep.mubr.f32.mxu0 %v4408
        %5157 = vmatmul.mubr.f32.gmra.mrb[0].mxu0 %v4376
        %v5158 = vpop.f32.mrb[0].mxu0
        %v5159 = vadd.f32 %v4934, %v5158
        %v5160 = vpop.f32.mrb[0].mxu0
        %5161 = vmatprep.mubr.f32.mxu0 %v4409
        %5162 = vmatmul.mubr.f32.gmra.mrb[0].mxu0 %v4377
        %v5163 = vpop.f32.mrb[0].mxu0
        %v5164 = vadd.f32 %v4939, %v5163
        %v5165 = vpop.f32.mrb[0].mxu0
        %5166 = vmatprep.mubr.f32.mxu0 %v4410
        %5167 = vmatmul.mubr.f32.gmra.mrb[0].mxu0 %v4378
        %v5168 = vpop.f32.mrb[0].mxu0
        %v5169 = vadd.f32 %v4944, %v5168
        %v5170 = vpop.f32.mrb[0].mxu0
        %5171 = vdwg.mxu0
        %5172 = vmatprep.subr.mxu0 0.0
        %5173 = vmatpush1.msra.mxu0 %v4635
        %5174 = vmatprep.subr.mxu0 0.0
        %5175 = vmatpush1.msra.mxu0 %v4636
        %5176 = vmatprep.subr.mxu0 0.0
        %5177 = vmatpush1.msra.mxu0 %v4637
        %5178 = vmatprep.subr.mxu0 0.0
        %5179 = vmatpush1.msra.mxu0 %v4638
        %5180 = vmatprep.subr.mxu0 0.0
        %5181 = vmatpush1.msra.mxu0 %v4639
        %5182 = vmatprep.subr.mxu0 0.0
        %5183 = vmatpush1.msra.mxu0 %v4640
        %5184 = vmatprep.subr.mxu0 0.0
        %5185 = vmatpush1.msra.mxu0 %v4641
        %5186 = vmatprep.subr.mxu0 0.0
        %5187 = vmatpush1.msra.mxu0 %v4642
        %5188 = vmatprep.subr.mxu0 0.0
        %5189 = vmatpush1.msra.mxu0 %v4643
        %5190 = vmatprep.subr.mxu0 0.0
        %5191 = vmatpush1.msra.mxu0 %v4644
        %5192 = vmatprep.subr.mxu0 0.0
        %5193 = vmatpush1.msra.mxu0 %v4645
        %5194 = vmatprep.subr.mxu0 0.0
        %5195 = vmatpush1.msra.mxu0 %v4646
        %5196 = vmatprep.subr.mxu0 0.0
        %5197 = vmatpush1.msra.mxu0 %v4647
        %5198 = vmatprep.subr.mxu0 0.0
        %5199 = vmatpush1.msra.mxu0 %v4648
        %5200 = vmatprep.subr.mxu0 0.0
        %5201 = vmatpush1.msra.mxu0 %v4649
        %5202 = vmatprep.subr.mxu0 0.0
        %5203 = vmatpush1.msra.mxu0 %v4650
        %5204 = vmatprep.subr.mxu0 0.0
        %5205 = vmatpush1.msra.mxu0 %v4651
        %5206 = vmatprep.subr.mxu0 0.0
        %5207 = vmatpush1.msra.mxu0 %v4652
        %5208 = vmatprep.subr.mxu0 0.0
        %5209 = vmatpush1.msra.mxu0 %v4653
        %5210 = vmatprep.subr.mxu0 0.0
        %5211 = vmatpush1.msra.mxu0 %v4654
        %5212 = vmatprep.subr.mxu0 0.0
        %5213 = vmatpush1.msra.mxu0 %v4655
        %5214 = vmatprep.subr.mxu0 0.0
        %5215 = vmatpush1.msra.mxu0 %v4656
        %5216 = vmatprep.subr.mxu0 0.0
        %5217 = vmatpush1.msra.mxu0 %v4657
        %5218 = vmatprep.subr.mxu0 0.0
        %5219 = vmatpush1.msra.mxu0 %v4658
        %5220 = vmatprep.subr.mxu0 0.0
        %5221 = vmatpush1.msra.mxu0 %v4659
        %5222 = vmatprep.subr.mxu0 0.0
        %5223 = vmatpush1.msra.mxu0 %v4660
        %5224 = vmatprep.subr.mxu0 0.0
        %5225 = vmatpush1.msra.mxu0 %v4661
        %5226 = vmatprep.subr.mxu0 0.0
        %5227 = vmatpush1.msra.mxu0 %v4662
        %5228 = vmatprep.subr.mxu0 0.0
        %5229 = vmatpush1.msra.mxu0 %v4663
        %5230 = vmatprep.subr.mxu0 0.0
        %5231 = vmatpush1.msra.mxu0 %v4664
        %5232 = vmatprep.subr.mxu0 0.0
        %5233 = vmatpush1.msra.mxu0 %v4665
        %5234 = vmatprep.subr.mxu0 0.0
        %5235 = vmatpush1.msra.mxu0 %v4666
        %5236 = vmatprep.mubr.f32.mxu0 %v4443
        %5237 = vmatmul.mubr.f32.gmra.mrb[0].mxu0 %v4411
        %v5238 = vpop.f32.mrb[0].mxu0
        %v5239 = vadd.f32 %v5014, %v5238
        %v5240 = vpop.f32.mrb[0].mxu0
        %5241 = vmatprep.mubr.f32.mxu0 %v4444
        %5242 = vmatmul.mubr.f32.gmra.mrb[0].mxu0 %v4412
        %v5243 = vpop.f32.mrb[0].mxu0
        %v5244 = vadd.f32 %v5019, %v5243
        %v5245 = vpop.f32.mrb[0].mxu0
        %5246 = vmatprep.mubr.f32.mxu0 %v4445
        %5247 = vmatmul.mubr.f32.gmra.mrb[0].mxu0 %v4413
        %v5248 = vpop.f32.mrb[0].mxu0
        %v5249 = vadd.f32 %v5024, %v5248
        %v5250 = vpop.f32.mrb[0].mxu0
        %5251 = vmatprep.mubr.f32.mxu0 %v4446
        %5252 = vmatmul.mubr.f32.gmra.mrb[0].mxu0 %v4414
        %v5253 = vpop.f32.mrb[0].mxu0
        %v5254 = vadd.f32 %v5029, %v5253
        %v5255 = vpop.f32.mrb[0].mxu0
        %5256 = vmatprep.mubr.f32.mxu0 %v4447
        %5257 = vmatmul.mubr.f32.gmra.mrb[0].mxu0 %v4415
        %v5258 = vpop.f32.mrb[0].mxu0
        %v5259 = vadd.f32 %v5034, %v5258
        %v5260 = vpop.f32.mrb[0].mxu0
        %5261 = vmatprep.mubr.f32.mxu0 %v4448
        %5262 = vmatmul.mubr.f32.gmra.mrb[0].mxu0 %v4416
        %v5263 = vpop.f32.mrb[0].mxu0
        %v5264 = vadd.f32 %v5039, %v5263
        %v5265 = vpop.f32.mrb[0].mxu0
        %5266 = vmatprep.mubr.f32.mxu0 %v4449
        %5267 = vmatmul.mubr.f32.gmra.mrb[0].mxu0 %v4417
        %v5268 = vpop.f32.mrb[0].mxu0
        %v5269 = vadd.f32 %v5044, %v5268
        %v5270 = vpop.f32.mrb[0].mxu0
        %5271 = vmatprep.mubr.f32.mxu0 %v4450
        %5272 = vmatmul.mubr.f32.gmra.mrb[0].mxu0 %v4418
        %v5273 = vpop.f32.mrb[0].mxu0
        %v5274 = vadd.f32 %v5049, %v5273
        %v5275 = vpop.f32.mrb[0].mxu0
        %5276 = vmatprep.mubr.f32.mxu0 %v4451
        %5277 = vmatmul.mubr.f32.gmra.mrb[0].mxu0 %v4419
        %v5278 = vpop.f32.mrb[0].mxu0
        %v5279 = vadd.f32 %v5054, %v5278
        %v5280 = vpop.f32.mrb[0].mxu0
        %5281 = vmatprep.mubr.f32.mxu0 %v4452
        %5282 = vmatmul.mubr.f32.gmra.mrb[0].mxu0 %v4420
        %v5283 = vpop.f32.mrb[0].mxu0
        %v5284 = vadd.f32 %v5059, %v5283
        %v5285 = vpop.f32.mrb[0].mxu0
        %5286 = vmatprep.mubr.f32.mxu0 %v4453
        %5287 = vmatmul.mubr.f32.gmra.mrb[0].mxu0 %v4421
        %v5288 = vpop.f32.mrb[0].mxu0
        %v5289 = vadd.f32 %v5064, %v5288
        %v5290 = vpop.f32.mrb[0].mxu0
        %5291 = vmatprep.mubr.f32.mxu0 %v4454
        %5292 = vmatmul.mubr.f32.gmra.mrb[0].mxu0 %v4422
        %v5293 = vpop.f32.mrb[0].mxu0
        %v5294 = vadd.f32 %v5069, %v5293
        %v5295 = vpop.f32.mrb[0].mxu0
        %5296 = vmatprep.mubr.f32.mxu0 %v4455
        %5297 = vmatmul.mubr.f32.gmra.mrb[0].mxu0 %v4423
        %v5298 = vpop.f32.mrb[0].mxu0
        %v5299 = vadd.f32 %v5074, %v5298
        %v5300 = vpop.f32.mrb[0].mxu0
        %5301 = vmatprep.mubr.f32.mxu0 %v4456
        %5302 = vmatmul.mubr.f32.gmra.mrb[0].mxu0 %v4424
        %v5303 = vpop.f32.mrb[0].mxu0
        %v5304 = vadd.f32 %v5079, %v5303
        %v5305 = vpop.f32.mrb[0].mxu0
        %5306 = vmatprep.mubr.f32.mxu0 %v4457
        %5307 = vmatmul.mubr.f32.gmra.mrb[0].mxu0 %v4425
        %v5308 = vpop.f32.mrb[0].mxu0
        %v5309 = vadd.f32 %v5084, %v5308
        %v5310 = vpop.f32.mrb[0].mxu0
        %5311 = vmatprep.mubr.f32.mxu0 %v4458
        %5312 = vmatmul.mubr.f32.gmra.mrb[0].mxu0 %v4426
        %v5313 = vpop.f32.mrb[0].mxu0
        %v5314 = vadd.f32 %v5089, %v5313
        %v5315 = vpop.f32.mrb[0].mxu0
        %5316 = vmatprep.mubr.f32.mxu0 %v4459
        %5317 = vmatmul.mubr.f32.gmra.mrb[0].mxu0 %v4427
        %v5318 = vpop.f32.mrb[0].mxu0
        %v5319 = vadd.f32 %v5094, %v5318
        %v5320 = vpop.f32.mrb[0].mxu0
        %5321 = vmatprep.mubr.f32.mxu0 %v4460
        %5322 = vmatmul.mubr.f32.gmra.mrb[0].mxu0 %v4428
        %v5323 = vpop.f32.mrb[0].mxu0
        %v5324 = vadd.f32 %v5099, %v5323
        %v5325 = vpop.f32.mrb[0].mxu0
        %5326 = vmatprep.mubr.f32.mxu0 %v4461
        %5327 = vmatmul.mubr.f32.gmra.mrb[0].mxu0 %v4429
        %v5328 = vpop.f32.mrb[0].mxu0
        %v5329 = vadd.f32 %v5104, %v5328
        %v5330 = vpop.f32.mrb[0].mxu0
        %5331 = vmatprep.mubr.f32.mxu0 %v4462
        %5332 = vmatmul.mubr.f32.gmra.mrb[0].mxu0 %v4430
        %v5333 = vpop.f32.mrb[0].mxu0
        %v5334 = vadd.f32 %v5109, %v5333
        %v5335 = vpop.f32.mrb[0].mxu0
        %5336 = vmatprep.mubr.f32.mxu0 %v4463
        %5337 = vmatmul.mubr.f32.gmra.mrb[0].mxu0 %v4431
        %v5338 = vpop.f32.mrb[0].mxu0
        %v5339 = vadd.f32 %v5114, %v5338
        %v5340 = vpop.f32.mrb[0].mxu0
        %5341 = vmatprep.mubr.f32.mxu0 %v4464
        %5342 = vmatmul.mubr.f32.gmra.mrb[0].mxu0 %v4432
        %v5343 = vpop.f32.mrb[0].mxu0
        %v5344 = vadd.f32 %v5119, %v5343
        %v5345 = vpop.f32.mrb[0].mxu0
        %5346 = vmatprep.mubr.f32.mxu0 %v4465
        %5347 = vmatmul.mubr.f32.gmra.mrb[0].mxu0 %v4433
        %v5348 = vpop.f32.mrb[0].mxu0
        %v5349 = vadd.f32 %v5124, %v5348
        %v5350 = vpop.f32.mrb[0].mxu0
        %5351 = vmatprep.mubr.f32.mxu0 %v4466
        %5352 = vmatmul.mubr.f32.gmra.mrb[0].mxu0 %v4434
        %v5353 = vpop.f32.mrb[0].mxu0
        %v5354 = vadd.f32 %v5129, %v5353
        %v5355 = vpop.f32.mrb[0].mxu0
        %5356 = vmatprep.mubr.f32.mxu0 %v4467
        %5357 = vmatmul.mubr.f32.gmra.mrb[0].mxu0 %v4435
        %v5358 = vpop.f32.mrb[0].mxu0
        %v5359 = vadd.f32 %v5134, %v5358
        %v5360 = vpop.f32.mrb[0].mxu0
        %5361 = vmatprep.mubr.f32.mxu0 %v4468
        %5362 = vmatmul.mubr.f32.gmra.mrb[0].mxu0 %v4436
        %v5363 = vpop.f32.mrb[0].mxu0
        %v5364 = vadd.f32 %v5139, %v5363
        %v5365 = vpop.f32.mrb[0].mxu0
        %5366 = vmatprep.mubr.f32.mxu0 %v4469
        %5367 = vmatmul.mubr.f32.gmra.mrb[0].mxu0 %v4437
        %v5368 = vpop.f32.mrb[0].mxu0
        %v5369 = vadd.f32 %v5144, %v5368
        %v5370 = vpop.f32.mrb[0].mxu0
        %5371 = vmatprep.mubr.f32.mxu0 %v4470
        %5372 = vmatmul.mubr.f32.gmra.mrb[0].mxu0 %v4438
        %v5373 = vpop.f32.mrb[0].mxu0
        %v5374 = vadd.f32 %v5149, %v5373
        %v5375 = vpop.f32.mrb[0].mxu0
        %5376 = vmatprep.mubr.f32.mxu0 %v4471
        %5377 = vmatmul.mubr.f32.gmra.mrb[0].mxu0 %v4439
        %v5378 = vpop.f32.mrb[0].mxu0
        %v5379 = vadd.f32 %v5154, %v5378
        %v5380 = vpop.f32.mrb[0].mxu0
        %5381 = vmatprep.mubr.f32.mxu0 %v4472
        %5382 = vmatmul.mubr.f32.gmra.mrb[0].mxu0 %v4440
        %v5383 = vpop.f32.mrb[0].mxu0
        %v5384 = vadd.f32 %v5159, %v5383
        %v5385 = vpop.f32.mrb[0].mxu0
        %5386 = vmatprep.mubr.f32.mxu0 %v4473
        %5387 = vmatmul.mubr.f32.gmra.mrb[0].mxu0 %v4441
        %v5388 = vpop.f32.mrb[0].mxu0
        %v5389 = vadd.f32 %v5164, %v5388
        %v5390 = vpop.f32.mrb[0].mxu0
        %5391 = vmatprep.mubr.f32.mxu0 %v4474
        %5392 = vmatmul.mubr.f32.gmra.mrb[0].mxu0 %v4442
        %v5393 = vpop.f32.mrb[0].mxu0
        %v5394 = vadd.f32 %v5169, %v5393
        %v5395 = vpop.f32.mrb[0].mxu0
        %5396 = vdwg.mxu0
        %5397 = vmatprep.subr.mxu0 0.0
        %5398 = vmatpush1.msra.mxu0 %v4667
        %5399 = vmatprep.subr.mxu0 0.0
        %5400 = vmatpush1.msra.mxu0 %v4668
        %5401 = vmatprep.subr.mxu0 0.0
        %5402 = vmatpush1.msra.mxu0 %v4669
        %5403 = vmatprep.subr.mxu0 0.0
        %5404 = vmatpush1.msra.mxu0 %v4670
        %5405 = vmatprep.subr.mxu0 0.0
        %5406 = vmatpush1.msra.mxu0 %v4671
        %5407 = vmatprep.subr.mxu0 0.0
        %5408 = vmatpush1.msra.mxu0 %v4672
        %5409 = vmatprep.subr.mxu0 0.0
        %5410 = vmatpush1.msra.mxu0 %v4673
        %5411 = vmatprep.subr.mxu0 0.0
        %5412 = vmatpush1.msra.mxu0 %v4674
        %5413 = vmatprep.subr.mxu0 0.0
        %5414 = vmatpush1.msra.mxu0 %v4675
        %5415 = vmatprep.subr.mxu0 0.0
        %5416 = vmatpush1.msra.mxu0 %v4676
        %5417 = vmatprep.subr.mxu0 0.0
        %5418 = vmatpush1.msra.mxu0 %v4677
        %5419 = vmatprep.subr.mxu0 0.0
        %5420 = vmatpush1.msra.mxu0 %v4678
        %5421 = vmatprep.subr.mxu0 0.0
        %5422 = vmatpush1.msra.mxu0 %v4679
        %5423 = vmatprep.subr.mxu0 0.0
        %5424 = vmatpush1.msra.mxu0 %v4680
        %5425 = vmatprep.subr.mxu0 0.0
        %5426 = vmatpush1.msra.mxu0 %v4681
        %5427 = vmatprep.subr.mxu0 0.0
        %5428 = vmatpush1.msra.mxu0 %v4682
        %5429 = vmatprep.subr.mxu0 0.0
        %5430 = vmatpush1.msra.mxu0 %v4683
        %5431 = vmatprep.subr.mxu0 0.0
        %5432 = vmatpush1.msra.mxu0 %v4684
        %5433 = vmatprep.subr.mxu0 0.0
        %5434 = vmatpush1.msra.mxu0 %v4685
        %5435 = vmatprep.subr.mxu0 0.0
        %5436 = vmatpush1.msra.mxu0 %v4686
        %5437 = vmatprep.subr.mxu0 0.0
        %5438 = vmatpush1.msra.mxu0 %v4687
        %5439 = vmatprep.subr.mxu0 0.0
        %5440 = vmatpush1.msra.mxu0 %v4688
        %5441 = vmatprep.subr.mxu0 0.0
        %5442 = vmatpush1.msra.mxu0 %v4689
        %5443 = vmatprep.subr.mxu0 0.0
        %5444 = vmatpush1.msra.mxu0 %v4690
        %5445 = vmatprep.subr.mxu0 0.0
        %5446 = vmatpush1.msra.mxu0 %v4691
        %5447 = vmatprep.subr.mxu0 0.0
        %5448 = vmatpush1.msra.mxu0 %v4692
        %5449 = vmatprep.subr.mxu0 0.0
        %5450 = vmatpush1.msra.mxu0 %v4693
        %5451 = vmatprep.subr.mxu0 0.0
        %5452 = vmatpush1.msra.mxu0 %v4694
        %5453 = vmatprep.subr.mxu0 0.0
        %5454 = vmatpush1.msra.mxu0 %v4695
        %5455 = vmatprep.subr.mxu0 0.0
        %5456 = vmatpush1.msra.mxu0 %v4696
        %5457 = vmatprep.subr.mxu0 0.0
        %5458 = vmatpush1.msra.mxu0 %v4697
        %5459 = vmatprep.subr.mxu0 0.0
        %5460 = vmatpush1.msra.mxu0 %v4698
        %5461 = vmatprep.mubr.f32.mxu0 %v4507
        %5462 = vmatmul.mubr.f32.gmra.mrb[0].mxu0 %v4475
        %v5463 = vpop.f32.mrb[0].mxu0
        %v5464 = vadd.f32 %v5239, %v5463
        %v5465 = vpop.f32.mrb[0].mxu0
        %5466 = vmatprep.mubr.f32.mxu0 %v4508
        %5467 = vmatmul.mubr.f32.gmra.mrb[0].mxu0 %v4476
        %v5468 = vpop.f32.mrb[0].mxu0
        %v5469 = vadd.f32 %v5244, %v5468
        %v5470 = vpop.f32.mrb[0].mxu0
        %5471 = vmatprep.mubr.f32.mxu0 %v4509
        %5472 = vmatmul.mubr.f32.gmra.mrb[0].mxu0 %v4477
        %v5473 = vpop.f32.mrb[0].mxu0
        %v5474 = vadd.f32 %v5249, %v5473
        %v5475 = vpop.f32.mrb[0].mxu0
        %5476 = vmatprep.mubr.f32.mxu0 %v4510
        %5477 = vmatmul.mubr.f32.gmra.mrb[0].mxu0 %v4478
        %v5478 = vpop.f32.mrb[0].mxu0
        %v5479 = vadd.f32 %v5254, %v5478
        %v5480 = vpop.f32.mrb[0].mxu0
        %5481 = vmatprep.mubr.f32.mxu0 %v4511
        %5482 = vmatmul.mubr.f32.gmra.mrb[0].mxu0 %v4479
        %v5483 = vpop.f32.mrb[0].mxu0
        %v5484 = vadd.f32 %v5259, %v5483
        %v5485 = vpop.f32.mrb[0].mxu0
        %5486 = vmatprep.mubr.f32.mxu0 %v4512
        %5487 = vmatmul.mubr.f32.gmra.mrb[0].mxu0 %v4480
        %v5488 = vpop.f32.mrb[0].mxu0
        %v5489 = vadd.f32 %v5264, %v5488
        %v5490 = vpop.f32.mrb[0].mxu0
        %5491 = vmatprep.mubr.f32.mxu0 %v4513
        %5492 = vmatmul.mubr.f32.gmra.mrb[0].mxu0 %v4481
        %v5493 = vpop.f32.mrb[0].mxu0
        %v5494 = vadd.f32 %v5269, %v5493
        %v5495 = vpop.f32.mrb[0].mxu0
        %5496 = vmatprep.mubr.f32.mxu0 %v4514
        %5497 = vmatmul.mubr.f32.gmra.mrb[0].mxu0 %v4482
        %v5498 = vpop.f32.mrb[0].mxu0
        %v5499 = vadd.f32 %v5274, %v5498
        %v5500 = vpop.f32.mrb[0].mxu0
        %5501 = vmatprep.mubr.f32.mxu0 %v4515
        %5502 = vmatmul.mubr.f32.gmra.mrb[0].mxu0 %v4483
        %v5503 = vpop.f32.mrb[0].mxu0
        %v5504 = vadd.f32 %v5279, %v5503
        %v5505 = vpop.f32.mrb[0].mxu0
        %5506 = vmatprep.mubr.f32.mxu0 %v4516
        %5507 = vmatmul.mubr.f32.gmra.mrb[0].mxu0 %v4484
        %v5508 = vpop.f32.mrb[0].mxu0
        %v5509 = vadd.f32 %v5284, %v5508
        %v5510 = vpop.f32.mrb[0].mxu0
        %5511 = vmatprep.mubr.f32.mxu0 %v4517
        %5512 = vmatmul.mubr.f32.gmra.mrb[0].mxu0 %v4485
        %v5513 = vpop.f32.mrb[0].mxu0
        %v5514 = vadd.f32 %v5289, %v5513
        %v5515 = vpop.f32.mrb[0].mxu0
        %5516 = vmatprep.mubr.f32.mxu0 %v4518
        %5517 = vmatmul.mubr.f32.gmra.mrb[0].mxu0 %v4486
        %v5518 = vpop.f32.mrb[0].mxu0
        %v5519 = vadd.f32 %v5294, %v5518
        %v5520 = vpop.f32.mrb[0].mxu0
        %5521 = vmatprep.mubr.f32.mxu0 %v4519
        %5522 = vmatmul.mubr.f32.gmra.mrb[0].mxu0 %v4487
        %v5523 = vpop.f32.mrb[0].mxu0
        %v5524 = vadd.f32 %v5299, %v5523
        %v5525 = vpop.f32.mrb[0].mxu0
        %5526 = vmatprep.mubr.f32.mxu0 %v4520
        %5527 = vmatmul.mubr.f32.gmra.mrb[0].mxu0 %v4488
        %v5528 = vpop.f32.mrb[0].mxu0
        %v5529 = vadd.f32 %v5304, %v5528
        %v5530 = vpop.f32.mrb[0].mxu0
        %5531 = vmatprep.mubr.f32.mxu0 %v4521
        %5532 = vmatmul.mubr.f32.gmra.mrb[0].mxu0 %v4489
        %v5533 = vpop.f32.mrb[0].mxu0
        %v5534 = vadd.f32 %v5309, %v5533
        %v5535 = vpop.f32.mrb[0].mxu0
        %5536 = vmatprep.mubr.f32.mxu0 %v4522
        %5537 = vmatmul.mubr.f32.gmra.mrb[0].mxu0 %v4490
        %v5538 = vpop.f32.mrb[0].mxu0
        %v5539 = vadd.f32 %v5314, %v5538
        %v5540 = vpop.f32.mrb[0].mxu0
        %5541 = vmatprep.mubr.f32.mxu0 %v4523
        %5542 = vmatmul.mubr.f32.gmra.mrb[0].mxu0 %v4491
        %v5543 = vpop.f32.mrb[0].mxu0
        %v5544 = vadd.f32 %v5319, %v5543
        %v5545 = vpop.f32.mrb[0].mxu0
        %5546 = vmatprep.mubr.f32.mxu0 %v4524
        %5547 = vmatmul.mubr.f32.gmra.mrb[0].mxu0 %v4492
        %v5548 = vpop.f32.mrb[0].mxu0
        %v5549 = vadd.f32 %v5324, %v5548
        %v5550 = vpop.f32.mrb[0].mxu0
        %5551 = vmatprep.mubr.f32.mxu0 %v4525
        %5552 = vmatmul.mubr.f32.gmra.mrb[0].mxu0 %v4493
        %v5553 = vpop.f32.mrb[0].mxu0
        %v5554 = vadd.f32 %v5329, %v5553
        %v5555 = vpop.f32.mrb[0].mxu0
        %5556 = vmatprep.mubr.f32.mxu0 %v4526
        %5557 = vmatmul.mubr.f32.gmra.mrb[0].mxu0 %v4494
        %v5558 = vpop.f32.mrb[0].mxu0
        %v5559 = vadd.f32 %v5334, %v5558
        %v5560 = vpop.f32.mrb[0].mxu0
        %5561 = vmatprep.mubr.f32.mxu0 %v4527
        %5562 = vmatmul.mubr.f32.gmra.mrb[0].mxu0 %v4495
        %v5563 = vpop.f32.mrb[0].mxu0
        %v5564 = vadd.f32 %v5339, %v5563
        %v5565 = vpop.f32.mrb[0].mxu0
        %5566 = vmatprep.mubr.f32.mxu0 %v4528
        %5567 = vmatmul.mubr.f32.gmra.mrb[0].mxu0 %v4496
        %v5568 = vpop.f32.mrb[0].mxu0
        %v5569 = vadd.f32 %v5344, %v5568
        %v5570 = vpop.f32.mrb[0].mxu0
        %5571 = vmatprep.mubr.f32.mxu0 %v4529
        %5572 = vmatmul.mubr.f32.gmra.mrb[0].mxu0 %v4497
        %v5573 = vpop.f32.mrb[0].mxu0
        %v5574 = vadd.f32 %v5349, %v5573
        %v5575 = vpop.f32.mrb[0].mxu0
        %5576 = vmatprep.mubr.f32.mxu0 %v4530
        %5577 = vmatmul.mubr.f32.gmra.mrb[0].mxu0 %v4498
        %v5578 = vpop.f32.mrb[0].mxu0
        %v5579 = vadd.f32 %v5354, %v5578
        %v5580 = vpop.f32.mrb[0].mxu0
        %5581 = vmatprep.mubr.f32.mxu0 %v4531
        %5582 = vmatmul.mubr.f32.gmra.mrb[0].mxu0 %v4499
        %v5583 = vpop.f32.mrb[0].mxu0
        %v5584 = vadd.f32 %v5359, %v5583
        %v5585 = vpop.f32.mrb[0].mxu0
        %5586 = vmatprep.mubr.f32.mxu0 %v4532
        %5587 = vmatmul.mubr.f32.gmra.mrb[0].mxu0 %v4500
        %v5588 = vpop.f32.mrb[0].mxu0
        %v5589 = vadd.f32 %v5364, %v5588
        %v5590 = vpop.f32.mrb[0].mxu0
        %5591 = vmatprep.mubr.f32.mxu0 %v4533
        %5592 = vmatmul.mubr.f32.gmra.mrb[0].mxu0 %v4501
        %v5593 = vpop.f32.mrb[0].mxu0
        %v5594 = vadd.f32 %v5369, %v5593
        %v5595 = vpop.f32.mrb[0].mxu0
        %5596 = vmatprep.mubr.f32.mxu0 %v4534
        %5597 = vmatmul.mubr.f32.gmra.mrb[0].mxu0 %v4502
        %v5598 = vpop.f32.mrb[0].mxu0
        %v5599 = vadd.f32 %v5374, %v5598
        %v5600 = vpop.f32.mrb[0].mxu0
        %5601 = vmatprep.mubr.f32.mxu0 %v4535
        %5602 = vmatmul.mubr.f32.gmra.mrb[0].mxu0 %v4503
        %v5603 = vpop.f32.mrb[0].mxu0
        %v5604 = vadd.f32 %v5379, %v5603
        %v5605 = vpop.f32.mrb[0].mxu0
        %5606 = vmatprep.mubr.f32.mxu0 %v4536
        %5607 = vmatmul.mubr.f32.gmra.mrb[0].mxu0 %v4504
        %v5608 = vpop.f32.mrb[0].mxu0
        %v5609 = vadd.f32 %v5384, %v5608
        %v5610 = vpop.f32.mrb[0].mxu0
        %5611 = vmatprep.mubr.f32.mxu0 %v4537
        %5612 = vmatmul.mubr.f32.gmra.mrb[0].mxu0 %v4505
        %v5613 = vpop.f32.mrb[0].mxu0
        %v5614 = vadd.f32 %v5389, %v5613
        %v5615 = vpop.f32.mrb[0].mxu0
        %5616 = vmatprep.mubr.f32.mxu0 %v4538
        %5617 = vmatmul.mubr.f32.gmra.mrb[0].mxu0 %v4506
        %v5618 = vpop.f32.mrb[0].mxu0
        %v5619 = vadd.f32 %v5394, %v5618
        %v5620 = vpop.f32.mrb[0].mxu0
        %5621 = vdwg.mxu0
        %5622 = vmatprep.subr.mxu0 0.0
        %5623 = vmatpush1.msra.mxu0 %v4699
        %5624 = vmatprep.subr.mxu0 0.0
        %5625 = vmatpush1.msra.mxu0 %v4700
        %5626 = vmatprep.subr.mxu0 0.0
        %5627 = vmatpush1.msra.mxu0 %v4701
        %5628 = vmatprep.subr.mxu0 0.0
        %5629 = vmatpush1.msra.mxu0 %v4702
        %5630 = vmatprep.subr.mxu0 0.0
        %5631 = vmatpush1.msra.mxu0 %v4703
        %5632 = vmatprep.subr.mxu0 0.0
        %5633 = vmatpush1.msra.mxu0 %v4704
        %5634 = vmatprep.subr.mxu0 0.0
        %5635 = vmatpush1.msra.mxu0 %v4705
        %5636 = vmatprep.subr.mxu0 0.0
        %5637 = vmatpush1.msra.mxu0 %v4706
        %5638 = vmatprep.subr.mxu0 0.0
        %5639 = vmatpush1.msra.mxu0 %v4707
        %5640 = vmatprep.subr.mxu0 0.0
        %5641 = vmatpush1.msra.mxu0 %v4708
        %5642 = vmatprep.subr.mxu0 0.0
        %5643 = vmatpush1.msra.mxu0 %v4709
        %5644 = vmatprep.subr.mxu0 0.0
        %5645 = vmatpush1.msra.mxu0 %v4710
        %5646 = vmatprep.subr.mxu0 0.0
        %5647 = vmatpush1.msra.mxu0 %v4711
        %5648 = vmatprep.subr.mxu0 0.0
        %5649 = vmatpush1.msra.mxu0 %v4712
        %5650 = vmatprep.subr.mxu0 0.0
        %5651 = vmatpush1.msra.mxu0 %v4713
        %5652 = vmatprep.subr.mxu0 0.0
        %5653 = vmatpush1.msra.mxu0 %v4714
        %5654 = vmatprep.subr.mxu0 0.0
        %5655 = vmatpush1.msra.mxu0 0.0
        %5656 = vmatprep.subr.mxu0 0.0
        %5657 = vmatpush1.msra.mxu0 0.0
        %5658 = vmatprep.subr.mxu0 0.0
        %5659 = vmatpush1.msra.mxu0 0.0
        %5660 = vmatprep.subr.mxu0 0.0
        %5661 = vmatpush1.msra.mxu0 0.0
        %5662 = vmatprep.subr.mxu0 0.0
        %5663 = vmatpush1.msra.mxu0 0.0
        %5664 = vmatprep.subr.mxu0 0.0
        %5665 = vmatpush1.msra.mxu0 0.0
        %5666 = vmatprep.subr.mxu0 0.0
        %5667 = vmatpush1.msra.mxu0 0.0
        %5668 = vmatprep.subr.mxu0 0.0
        %5669 = vmatpush1.msra.mxu0 0.0
        %5670 = vmatprep.subr.mxu0 0.0
        %5671 = vmatpush1.msra.mxu0 0.0
        %5672 = vmatprep.subr.mxu0 0.0
        %5673 = vmatpush1.msra.mxu0 0.0
        %5674 = vmatprep.subr.mxu0 0.0
        %5675 = vmatpush1.msra.mxu0 0.0
        %5676 = vmatprep.subr.mxu0 0.0
        %5677 = vmatpush1.msra.mxu0 0.0
        %5678 = vmatprep.subr.mxu0 0.0
        %5679 = vmatpush1.msra.mxu0 0.0
        %5680 = vmatprep.subr.mxu0 0.0
        %5681 = vmatpush1.msra.mxu0 0.0
        %5682 = vmatprep.subr.mxu0 0.0
        %5683 = vmatpush1.msra.mxu0 0.0
        %5684 = vmatprep.subr.mxu0 0.0
        %5685 = vmatpush1.msra.mxu0 0.0
        %5686 = vmatprep.mubr.f32.mxu0 0.0
        %5687 = vmatmul.mubr.f32.gmra.mrb[0].mxu0 %v4539
        %v5688 = vpop.f32.mrb[0].mxu0
        %v5689 = vadd.f32 %v5464, %v5688
        %v5690 = vpop.f32.mrb[0].mxu0
        %5691 = vmatprep.mubr.f32.mxu0 0.0
        %5692 = vmatmul.mubr.f32.gmra.mrb[0].mxu0 %v4540
        %v5693 = vpop.f32.mrb[0].mxu0
        %v5694 = vadd.f32 %v5469, %v5693
        %v5695 = vpop.f32.mrb[0].mxu0
        %5696 = vmatprep.mubr.f32.mxu0 0.0
        %5697 = vmatmul.mubr.f32.gmra.mrb[0].mxu0 %v4541
        %v5698 = vpop.f32.mrb[0].mxu0
        %v5699 = vadd.f32 %v5474, %v5698
        %v5700 = vpop.f32.mrb[0].mxu0
        %5701 = vmatprep.mubr.f32.mxu0 0.0
        %5702 = vmatmul.mubr.f32.gmra.mrb[0].mxu0 %v4542
        %v5703 = vpop.f32.mrb[0].mxu0
        %v5704 = vadd.f32 %v5479, %v5703
        %v5705 = vpop.f32.mrb[0].mxu0
        %5706 = vmatprep.mubr.f32.mxu0 0.0
        %5707 = vmatmul.mubr.f32.gmra.mrb[0].mxu0 %v4543
        %v5708 = vpop.f32.mrb[0].mxu0
        %v5709 = vadd.f32 %v5484, %v5708
        %v5710 = vpop.f32.mrb[0].mxu0
        %5711 = vmatprep.mubr.f32.mxu0 0.0
        %5712 = vmatmul.mubr.f32.gmra.mrb[0].mxu0 %v4544
        %v5713 = vpop.f32.mrb[0].mxu0
        %v5714 = vadd.f32 %v5489, %v5713
        %v5715 = vpop.f32.mrb[0].mxu0
        %5716 = vmatprep.mubr.f32.mxu0 0.0
        %5717 = vmatmul.mubr.f32.gmra.mrb[0].mxu0 %v4545
        %v5718 = vpop.f32.mrb[0].mxu0
        %v5719 = vadd.f32 %v5494, %v5718
        %v5720 = vpop.f32.mrb[0].mxu0
        %5721 = vmatprep.mubr.f32.mxu0 0.0
        %5722 = vmatmul.mubr.f32.gmra.mrb[0].mxu0 %v4546
        %v5723 = vpop.f32.mrb[0].mxu0
        %v5724 = vadd.f32 %v5499, %v5723
        %v5725 = vpop.f32.mrb[0].mxu0
        %5726 = vmatprep.mubr.f32.mxu0 0.0
        %5727 = vmatmul.mubr.f32.gmra.mrb[0].mxu0 %v4547
        %v5728 = vpop.f32.mrb[0].mxu0
        %v5729 = vadd.f32 %v5504, %v5728
        %v5730 = vpop.f32.mrb[0].mxu0
        %5731 = vmatprep.mubr.f32.mxu0 0.0
        %5732 = vmatmul.mubr.f32.gmra.mrb[0].mxu0 %v4548
        %v5733 = vpop.f32.mrb[0].mxu0
        %v5734 = vadd.f32 %v5509, %v5733
        %v5735 = vpop.f32.mrb[0].mxu0
        %5736 = vmatprep.mubr.f32.mxu0 0.0
        %5737 = vmatmul.mubr.f32.gmra.mrb[0].mxu0 %v4549
        %v5738 = vpop.f32.mrb[0].mxu0
        %v5739 = vadd.f32 %v5514, %v5738
        %v5740 = vpop.f32.mrb[0].mxu0
        %5741 = vmatprep.mubr.f32.mxu0 0.0
        %5742 = vmatmul.mubr.f32.gmra.mrb[0].mxu0 %v4550
        %v5743 = vpop.f32.mrb[0].mxu0
        %v5744 = vadd.f32 %v5519, %v5743
        %v5745 = vpop.f32.mrb[0].mxu0
        %5746 = vmatprep.mubr.f32.mxu0 0.0
        %5747 = vmatmul.mubr.f32.gmra.mrb[0].mxu0 %v4551
        %v5748 = vpop.f32.mrb[0].mxu0
        %v5749 = vadd.f32 %v5524, %v5748
        %v5750 = vpop.f32.mrb[0].mxu0
        %5751 = vmatprep.mubr.f32.mxu0 0.0
        %5752 = vmatmul.mubr.f32.gmra.mrb[0].mxu0 %v4552
        %v5753 = vpop.f32.mrb[0].mxu0
        %v5754 = vadd.f32 %v5529, %v5753
        %v5755 = vpop.f32.mrb[0].mxu0
        %5756 = vmatprep.mubr.f32.mxu0 0.0
        %5757 = vmatmul.mubr.f32.gmra.mrb[0].mxu0 %v4553
        %v5758 = vpop.f32.mrb[0].mxu0
        %v5759 = vadd.f32 %v5534, %v5758
        %v5760 = vpop.f32.mrb[0].mxu0
        %5761 = vmatprep.mubr.f32.mxu0 0.0
        %5762 = vmatmul.mubr.f32.gmra.mrb[0].mxu0 %v4554
        %v5763 = vpop.f32.mrb[0].mxu0
        %v5764 = vadd.f32 %v5539, %v5763
        %v5765 = vpop.f32.mrb[0].mxu0
        %5766 = vmatprep.mubr.f32.mxu0 0.0
        %5767 = vmatmul.mubr.f32.gmra.mrb[0].mxu0 %v4555
        %v5768 = vpop.f32.mrb[0].mxu0
        %v5769 = vadd.f32 %v5544, %v5768
        %v5770 = vpop.f32.mrb[0].mxu0
        %5771 = vmatprep.mubr.f32.mxu0 0.0
        %5772 = vmatmul.mubr.f32.gmra.mrb[0].mxu0 %v4556
        %v5773 = vpop.f32.mrb[0].mxu0
        %v5774 = vadd.f32 %v5549, %v5773
        %v5775 = vpop.f32.mrb[0].mxu0
        %5776 = vmatprep.mubr.f32.mxu0 0.0
        %5777 = vmatmul.mubr.f32.gmra.mrb[0].mxu0 %v4557
        %v5778 = vpop.f32.mrb[0].mxu0
        %v5779 = vadd.f32 %v5554, %v5778
        %v5780 = vpop.f32.mrb[0].mxu0
        %5781 = vmatprep.mubr.f32.mxu0 0.0
        %5782 = vmatmul.mubr.f32.gmra.mrb[0].mxu0 %v4558
        %v5783 = vpop.f32.mrb[0].mxu0
        %v5784 = vadd.f32 %v5559, %v5783
        %v5785 = vpop.f32.mrb[0].mxu0
        %5786 = vmatprep.mubr.f32.mxu0 0.0
        %5787 = vmatmul.mubr.f32.gmra.mrb[0].mxu0 %v4559
        %v5788 = vpop.f32.mrb[0].mxu0
        %v5789 = vadd.f32 %v5564, %v5788
        %v5790 = vpop.f32.mrb[0].mxu0
        %5791 = vmatprep.mubr.f32.mxu0 0.0
        %5792 = vmatmul.mubr.f32.gmra.mrb[0].mxu0 %v4560
        %v5793 = vpop.f32.mrb[0].mxu0
        %v5794 = vadd.f32 %v5569, %v5793
        %v5795 = vpop.f32.mrb[0].mxu0
        %5796 = vmatprep.mubr.f32.mxu0 0.0
        %5797 = vmatmul.mubr.f32.gmra.mrb[0].mxu0 %v4561
        %v5798 = vpop.f32.mrb[0].mxu0
        %v5799 = vadd.f32 %v5574, %v5798
        %v5800 = vpop.f32.mrb[0].mxu0
        %5801 = vmatprep.mubr.f32.mxu0 0.0
        %5802 = vmatmul.mubr.f32.gmra.mrb[0].mxu0 %v4562
        %v5803 = vpop.f32.mrb[0].mxu0
        %v5804 = vadd.f32 %v5579, %v5803
        %v5805 = vpop.f32.mrb[0].mxu0
        %5806 = vmatprep.mubr.f32.mxu0 0.0
        %5807 = vmatmul.mubr.f32.gmra.mrb[0].mxu0 %v4563
        %v5808 = vpop.f32.mrb[0].mxu0
        %v5809 = vadd.f32 %v5584, %v5808
        %v5810 = vpop.f32.mrb[0].mxu0
        %5811 = vmatprep.mubr.f32.mxu0 0.0
        %5812 = vmatmul.mubr.f32.gmra.mrb[0].mxu0 %v4564
        %v5813 = vpop.f32.mrb[0].mxu0
        %v5814 = vadd.f32 %v5589, %v5813
        %v5815 = vpop.f32.mrb[0].mxu0
        %5816 = vmatprep.mubr.f32.mxu0 0.0
        %5817 = vmatmul.mubr.f32.gmra.mrb[0].mxu0 %v4565
        %v5818 = vpop.f32.mrb[0].mxu0
        %v5819 = vadd.f32 %v5594, %v5818
        %v5820 = vpop.f32.mrb[0].mxu0
        %5821 = vmatprep.mubr.f32.mxu0 0.0
        %5822 = vmatmul.mubr.f32.gmra.mrb[0].mxu0 %v4566
        %v5823 = vpop.f32.mrb[0].mxu0
        %v5824 = vadd.f32 %v5599, %v5823
        %v5825 = vpop.f32.mrb[0].mxu0
        %5826 = vmatprep.mubr.f32.mxu0 0.0
        %5827 = vmatmul.mubr.f32.gmra.mrb[0].mxu0 %v4567
        %v5828 = vpop.f32.mrb[0].mxu0
        %v5829 = vadd.f32 %v5604, %v5828
        %v5830 = vpop.f32.mrb[0].mxu0
        %5831 = vmatprep.mubr.f32.mxu0 0.0
        %5832 = vmatmul.mubr.f32.gmra.mrb[0].mxu0 %v4568
        %v5833 = vpop.f32.mrb[0].mxu0
        %v5834 = vadd.f32 %v5609, %v5833
        %v5835 = vpop.f32.mrb[0].mxu0
        %5836 = vmatprep.mubr.f32.mxu0 0.0
        %5837 = vmatmul.mubr.f32.gmra.mrb[0].mxu0 %v4569
        %v5838 = vpop.f32.mrb[0].mxu0
        %v5839 = vadd.f32 %v5614, %v5838
        %v5840 = vpop.f32.mrb[0].mxu0
        %5841 = vmatprep.mubr.f32.mxu0 0.0
        %5842 = vmatmul.mubr.f32.gmra.mrb[0].mxu0 %v4570
        %v5843 = vpop.f32.mrb[0].mxu0
        %v5844 = vadd.f32 %v5619, %v5843
        %v5845 = vpop.f32.mrb[0].mxu0
        %5846 = vdwg.mxu0
        %v5847 = vmax.f32 %v5689, 0.0
        %v5848 = vmax.f32 %v5694, 0.0
        %v5849 = vmax.f32 %v5699, 0.0
        %v5850 = vmax.f32 %v5704, 0.0
        %v5851 = vmax.f32 %v5709, 0.0
        %v5852 = vmax.f32 %v5714, 0.0
        %v5853 = vmax.f32 %v5719, 0.0
        %v5854 = vmax.f32 %v5724, 0.0
        %v5855 = vmax.f32 %v5729, 0.0
        %v5856 = vmax.f32 %v5734, 0.0
        %v5857 = vmax.f32 %v5739, 0.0
        %v5858 = vmax.f32 %v5744, 0.0
        %v5859 = vmax.f32 %v5749, 0.0
        %v5860 = vmax.f32 %v5754, 0.0
        %v5861 = vmax.f32 %v5759, 0.0
        %v5862 = vmax.f32 %v5764, 0.0
        %v5863 = vmax.f32 %v5769, 0.0
        %v5864 = vmax.f32 %v5774, 0.0
        %v5865 = vmax.f32 %v5779, 0.0
        %v5866 = vmax.f32 %v5784, 0.0
        %v5867 = vmax.f32 %v5789, 0.0
        %v5868 = vmax.f32 %v5794, 0.0
        %v5869 = vmax.f32 %v5799, 0.0
        %v5870 = vmax.f32 %v5804, 0.0
        %v5871 = vmax.f32 %v5809, 0.0
        %v5872 = vmax.f32 %v5814, 0.0
        %v5873 = vmax.f32 %v5819, 0.0
        %v5874 = vmax.f32 %v5824, 0.0
        %v5875 = vmax.f32 %v5829, 0.0
        %v5876 = vmax.f32 %v5834, 0.0
        %v5877 = vmax.f32 %v5839, 0.0
        %v5878 = vmax.f32 %v5844, 0.0
        %5879 = vst.msk [vmem:[%s503 + $0x1] sm:$0xff] %vm2348, %v5847
        %5880 = vst.msk [vmem:[%s503 + $0x11] sm:$0xff] %vm2348, %v5848
        %5881 = vst.msk [vmem:[%s503 + $0x21] sm:$0xff] %vm2348, %v5849
        %5882 = vst.msk [vmem:[%s503 + $0x31] sm:$0xff] %vm2348, %v5850
        %5883 = vst.msk [vmem:[%s503 + $0x41] sm:$0xff] %vm2348, %v5851
        %5884 = vst.msk [vmem:[%s503 + $0x51] sm:$0xff] %vm2348, %v5852
        %5885 = vst.msk [vmem:[%s503 + $0x61] sm:$0xff] %vm2348, %v5853
        %5886 = vst.msk [vmem:[%s503 + $0x71] sm:$0xff] %vm2348, %v5854
        %5887 = vst.msk [vmem:[%s503 + $0xa1] sm:$0xff] %vm2348, %v5855
        %5888 = vst.msk [vmem:[%s503 + $0xb1] sm:$0xff] %vm2348, %v5856
        %5889 = vst.msk [vmem:[%s503 + $0xc1] sm:$0xff] %vm2348, %v5857
        %5890 = vst.msk [vmem:[%s503 + $0xd1] sm:$0xff] %vm2348, %v5858
        %5891 = vst.msk [vmem:[%s503 + $0xe1] sm:$0xff] %vm2348, %v5859
        %5892 = vst.msk [vmem:[%s503 + $0xf1] sm:$0xff] %vm2348, %v5860
        %5893 = vst.msk [vmem:[%s503 + $0x101] sm:$0xff] %vm2348, %v5861
        %5894 = vst.msk [vmem:[%s503 + $0x111] sm:$0xff] %vm2348, %v5862
        %5895 = vst.msk [vmem:[%s503 + $0x141] sm:$0xff] %vm2348, %v5863
        %5896 = vst.msk [vmem:[%s503 + $0x151] sm:$0xff] %vm2348, %v5864
        %5897 = vst.msk [vmem:[%s503 + $0x161] sm:$0xff] %vm2348, %v5865
        %5898 = vst.msk [vmem:[%s503 + $0x171] sm:$0xff] %vm2348, %v5866
        %5899 = vst.msk [vmem:[%s503 + $0x181] sm:$0xff] %vm2348, %v5867
        %5900 = vst.msk [vmem:[%s503 + $0x191] sm:$0xff] %vm2348, %v5868
        %5901 = vst.msk [vmem:[%s503 + $0x1a1] sm:$0xff] %vm2348, %v5869
        %5902 = vst.msk [vmem:[%s503 + $0x1b1] sm:$0xff] %vm2348, %v5870
        %5903 = vst.msk [vmem:[%s503 + $0x1e1] sm:$0xff] %vm2348, %v5871
        %5904 = vst.msk [vmem:[%s503 + $0x1f1] sm:$0xff] %vm2348, %v5872
        %5905 = vst.msk [vmem:[%s503 + $0x201] sm:$0xff] %vm2348, %v5873
        %5906 = vst.msk [vmem:[%s503 + $0x211] sm:$0xff] %vm2348, %v5874
        %5907 = vst.msk [vmem:[%s503 + $0x221] sm:$0xff] %vm2348, %v5875
        %5908 = vst.msk [vmem:[%s503 + $0x231] sm:$0xff] %vm2348, %v5876
        %5909 = vst.msk [vmem:[%s503 + $0x241] sm:$0xff] %vm2348, %v5877
        %5910 = vst.msk [vmem:[%s503 + $0x251] sm:$0xff] %vm2348, %v5878
        %v5911 = vld [vmem:[#allocation2] sm:$0xff]
        %v5912 = vld [vmem:[#allocation2 + $0x10] sm:$0xff]
        %v5913 = vld [vmem:[#allocation2 + $0x20] sm:$0xff]
        %v5914 = vld [vmem:[#allocation2 + $0x30] sm:$0xff]
        %v5915 = vld [vmem:[#allocation2 + $0x40] sm:$0xff]
        %v5916 = vld [vmem:[#allocation2 + $0x50] sm:$0xff]
        %v5917 = vld [vmem:[#allocation2 + $0x60] sm:$0xff]
        %v5918 = vld [vmem:[#allocation2 + $0x70] sm:$0xff]
        %v5919 = vld [vmem:[#allocation2 + $0xa0] sm:$0xff]
        %v5920 = vld [vmem:[#allocation2 + $0xb0] sm:$0xff]
        %v5921 = vld [vmem:[#allocation2 + $0xc0] sm:$0xff]
        %v5922 = vld [vmem:[#allocation2 + $0xd0] sm:$0xff]
        %v5923 = vld [vmem:[#allocation2 + $0xe0] sm:$0xff]
        %v5924 = vld [vmem:[#allocation2 + $0xf0] sm:$0xff]
        %v5925 = vld [vmem:[#allocation2 + $0x100] sm:$0xff]
        %v5926 = vld [vmem:[#allocation2 + $0x110] sm:$0xff]
        %v5927 = vld [vmem:[#allocation2 + $0x140] sm:$0xff]
        %v5928 = vld [vmem:[#allocation2 + $0x150] sm:$0xff]
        %v5929 = vld [vmem:[#allocation2 + $0x160] sm:$0xff]
        %v5930 = vld [vmem:[#allocation2 + $0x170] sm:$0xff]
        %v5931 = vld [vmem:[#allocation2 + $0x180] sm:$0xff]
        %v5932 = vld [vmem:[#allocation2 + $0x190] sm:$0xff]
        %v5933 = vld [vmem:[#allocation2 + $0x1a0] sm:$0xff]
        %v5934 = vld [vmem:[#allocation2 + $0x1b0] sm:$0xff]
        %v5935 = vld [vmem:[#allocation2 + $0x1e0] sm:$0xff]
        %v5936 = vld [vmem:[#allocation2 + $0x1f0] sm:$0xff]
        %v5937 = vld [vmem:[#allocation2 + $0x200] sm:$0xff]
        %v5938 = vld [vmem:[#allocation2 + $0x210] sm:$0xff]
        %v5939 = vld [vmem:[#allocation2 + $0x220] sm:$0xff]
        %v5940 = vld [vmem:[#allocation2 + $0x230] sm:$0xff]
        %v5941 = vld [vmem:[#allocation2 + $0x240] sm:$0xff]
        %v5942 = vld [vmem:[#allocation2 + $0x250] sm:$0xff]
        %v5943 = vld [vmem:[#allocation2 + $0x1] sm:$0xff]
        %v5944 = vld [vmem:[#allocation2 + $0x11] sm:$0xff]
        %v5945 = vld [vmem:[#allocation2 + $0x21] sm:$0xff]
        %v5946 = vld [vmem:[#allocation2 + $0x31] sm:$0xff]
        %v5947 = vld [vmem:[#allocation2 + $0x41] sm:$0xff]
        %v5948 = vld [vmem:[#allocation2 + $0x51] sm:$0xff]
        %v5949 = vld [vmem:[#allocation2 + $0x61] sm:$0xff]
        %v5950 = vld [vmem:[#allocation2 + $0x71] sm:$0xff]
        %v5951 = vld [vmem:[#allocation2 + $0xa1] sm:$0xff]
        %v5952 = vld [vmem:[#allocation2 + $0xb1] sm:$0xff]
        %v5953 = vld [vmem:[#allocation2 + $0xc1] sm:$0xff]
        %v5954 = vld [vmem:[#allocation2 + $0xd1] sm:$0xff]
        %v5955 = vld [vmem:[#allocation2 + $0xe1] sm:$0xff]
        %v5956 = vld [vmem:[#allocation2 + $0xf1] sm:$0xff]
        %v5957 = vld [vmem:[#allocation2 + $0x101] sm:$0xff]
        %v5958 = vld [vmem:[#allocation2 + $0x111] sm:$0xff]
        %v5959 = vld [vmem:[#allocation2 + $0x141] sm:$0xff]
        %v5960 = vld [vmem:[#allocation2 + $0x151] sm:$0xff]
        %v5961 = vld [vmem:[#allocation2 + $0x161] sm:$0xff]
        %v5962 = vld [vmem:[#allocation2 + $0x171] sm:$0xff]
        %v5963 = vld [vmem:[#allocation2 + $0x181] sm:$0xff]
        %v5964 = vld [vmem:[#allocation2 + $0x191] sm:$0xff]
        %v5965 = vld [vmem:[#allocation2 + $0x1a1] sm:$0xff]
        %v5966 = vld [vmem:[#allocation2 + $0x1b1] sm:$0xff]
        %v5967 = vld [vmem:[#allocation2 + $0x1e1] sm:$0xff]
        %v5968 = vld [vmem:[#allocation2 + $0x1f1] sm:$0xff]
        %v5969 = vld [vmem:[#allocation2 + $0x201] sm:$0xff]
        %v5970 = vld [vmem:[#allocation2 + $0x211] sm:$0xff]
        %v5971 = vld [vmem:[#allocation2 + $0x221] sm:$0xff]
        %v5972 = vld [vmem:[#allocation2 + $0x231] sm:$0xff]
        %v5973 = vld [vmem:[#allocation2 + $0x241] sm:$0xff]
        %v5974 = vld [vmem:[#allocation2 + $0x251] sm:$0xff]
        %v5975 = vld [vmem:[#allocation2 + $0x2] sm:$0xff]
        %v5976 = vld [vmem:[#allocation2 + $0x12] sm:$0xff]
        %v5977 = vld [vmem:[#allocation2 + $0x22] sm:$0xff]
        %v5978 = vld [vmem:[#allocation2 + $0x32] sm:$0xff]
        %v5979 = vld [vmem:[#allocation2 + $0x42] sm:$0xff]
        %v5980 = vld [vmem:[#allocation2 + $0x52] sm:$0xff]
        %v5981 = vld [vmem:[#allocation2 + $0x62] sm:$0xff]
        %v5982 = vld [vmem:[#allocation2 + $0x72] sm:$0xff]
        %v5983 = vld [vmem:[#allocation2 + $0xa2] sm:$0xff]
        %v5984 = vld [vmem:[#allocation2 + $0xb2] sm:$0xff]
        %v5985 = vld [vmem:[#allocation2 + $0xc2] sm:$0xff]
        %v5986 = vld [vmem:[#allocation2 + $0xd2] sm:$0xff]
        %v5987 = vld [vmem:[#allocation2 + $0xe2] sm:$0xff]
        %v5988 = vld [vmem:[#allocation2 + $0xf2] sm:$0xff]
        %v5989 = vld [vmem:[#allocation2 + $0x102] sm:$0xff]
        %v5990 = vld [vmem:[#allocation2 + $0x112] sm:$0xff]
        %v5991 = vld [vmem:[#allocation2 + $0x142] sm:$0xff]
        %v5992 = vld [vmem:[#allocation2 + $0x152] sm:$0xff]
        %v5993 = vld [vmem:[#allocation2 + $0x162] sm:$0xff]
        %v5994 = vld [vmem:[#allocation2 + $0x172] sm:$0xff]
        %v5995 = vld [vmem:[#allocation2 + $0x182] sm:$0xff]
        %v5996 = vld [vmem:[#allocation2 + $0x192] sm:$0xff]
        %v5997 = vld [vmem:[#allocation2 + $0x1a2] sm:$0xff]
        %v5998 = vld [vmem:[#allocation2 + $0x1b2] sm:$0xff]
        %v5999 = vld [vmem:[#allocation2 + $0x1e2] sm:$0xff]
        %v6000 = vld [vmem:[#allocation2 + $0x1f2] sm:$0xff]
        %v6001 = vld [vmem:[#allocation2 + $0x202] sm:$0xff]
        %v6002 = vld [vmem:[#allocation2 + $0x212] sm:$0xff]
        %v6003 = vld [vmem:[#allocation2 + $0x222] sm:$0xff]
        %v6004 = vld [vmem:[#allocation2 + $0x232] sm:$0xff]
        %v6005 = vld [vmem:[#allocation2 + $0x242] sm:$0xff]
        %v6006 = vld [vmem:[#allocation2 + $0x252] sm:$0xff]
        %v6007 = vld [vmem:[%s503] sm:$0xff]
        %v6008 = vld [vmem:[%s503 + $0x10] sm:$0xff]
        %v6009 = vld [vmem:[%s503 + $0x20] sm:$0xff]
        %v6010 = vld [vmem:[%s503 + $0x30] sm:$0xff]
        %v6011 = vld [vmem:[%s503 + $0x40] sm:$0xff]
        %v6012 = vld [vmem:[%s503 + $0x50] sm:$0xff]
        %v6013 = vld [vmem:[%s503 + $0x60] sm:$0xff]
        %v6014 = vld [vmem:[%s503 + $0x70] sm:$0xff]
        %v6015 = vld [vmem:[%s503 + $0xa0] sm:$0xff]
        %v6016 = vld [vmem:[%s503 + $0xb0] sm:$0xff]
        %v6017 = vld [vmem:[%s503 + $0xc0] sm:$0xff]
        %v6018 = vld [vmem:[%s503 + $0xd0] sm:$0xff]
        %v6019 = vld [vmem:[%s503 + $0xe0] sm:$0xff]
        %v6020 = vld [vmem:[%s503 + $0xf0] sm:$0xff]
        %v6021 = vld [vmem:[%s503 + $0x100] sm:$0xff]
        %v6022 = vld [vmem:[%s503 + $0x110] sm:$0xff]
        %v6023 = vld [vmem:[%s503 + $0x140] sm:$0xff]
        %v6024 = vld [vmem:[%s503 + $0x150] sm:$0xff]
        %v6025 = vld [vmem:[%s503 + $0x160] sm:$0xff]
        %v6026 = vld [vmem:[%s503 + $0x170] sm:$0xff]
        %v6027 = vld [vmem:[%s503 + $0x180] sm:$0xff]
        %v6028 = vld [vmem:[%s503 + $0x190] sm:$0xff]
        %v6029 = vld [vmem:[%s503 + $0x1a0] sm:$0xff]
        %v6030 = vld [vmem:[%s503 + $0x1b0] sm:$0xff]
        %v6031 = vld [vmem:[%s503 + $0x1e0] sm:$0xff]
        %v6032 = vld [vmem:[%s503 + $0x1f0] sm:$0xff]
        %v6033 = vld [vmem:[%s503 + $0x200] sm:$0xff]
        %v6034 = vld [vmem:[%s503 + $0x210] sm:$0xff]
        %v6035 = vld [vmem:[%s503 + $0x220] sm:$0xff]
        %v6036 = vld [vmem:[%s503 + $0x230] sm:$0xff]
        %v6037 = vld [vmem:[%s503 + $0x240] sm:$0xff]
        %v6038 = vld [vmem:[%s503 + $0x250] sm:$0xff]
        %v6039 = vld [vmem:[%s503 + $0x1] sm:$0xff]
        %v6040 = vld [vmem:[%s503 + $0x11] sm:$0xff]
        %v6041 = vld [vmem:[%s503 + $0x21] sm:$0xff]
        %v6042 = vld [vmem:[%s503 + $0x31] sm:$0xff]
        %v6043 = vld [vmem:[%s503 + $0x41] sm:$0xff]
        %v6044 = vld [vmem:[%s503 + $0x51] sm:$0xff]
        %v6045 = vld [vmem:[%s503 + $0x61] sm:$0xff]
        %v6046 = vld [vmem:[%s503 + $0x71] sm:$0xff]
        %v6047 = vld [vmem:[%s503 + $0xa1] sm:$0xff]
        %v6048 = vld [vmem:[%s503 + $0xb1] sm:$0xff]
        %v6049 = vld [vmem:[%s503 + $0xc1] sm:$0xff]
        %v6050 = vld [vmem:[%s503 + $0xd1] sm:$0xff]
        %v6051 = vld [vmem:[%s503 + $0xe1] sm:$0xff]
        %v6052 = vld [vmem:[%s503 + $0xf1] sm:$0xff]
        %v6053 = vld [vmem:[%s503 + $0x101] sm:$0xff]
        %v6054 = vld [vmem:[%s503 + $0x111] sm:$0xff]
        %v6055 = vld [vmem:[%s503 + $0x141] sm:$0xff]
        %v6056 = vld [vmem:[%s503 + $0x151] sm:$0xff]
        %v6057 = vld [vmem:[%s503 + $0x161] sm:$0xff]
        %v6058 = vld [vmem:[%s503 + $0x171] sm:$0xff]
        %v6059 = vld [vmem:[%s503 + $0x181] sm:$0xff]
        %v6060 = vld [vmem:[%s503 + $0x191] sm:$0xff]
        %v6061 = vld [vmem:[%s503 + $0x1a1] sm:$0xff]
        %v6062 = vld [vmem:[%s503 + $0x1b1] sm:$0xff]
        %v6063 = vld [vmem:[%s503 + $0x1e1] sm:$0xff]
        %v6064 = vld [vmem:[%s503 + $0x1f1] sm:$0xff]
        %v6065 = vld [vmem:[%s503 + $0x201] sm:$0xff]
        %v6066 = vld [vmem:[%s503 + $0x211] sm:$0xff]
        %v6067 = vld [vmem:[%s503 + $0x221] sm:$0xff]
        %v6068 = vld [vmem:[%s503 + $0x231] sm:$0xff]
        %v6069 = vld [vmem:[%s503 + $0x241] sm:$0xff]
        %v6070 = vld [vmem:[%s503 + $0x251] sm:$0xff]
        %v6071 = vld [vmem:[%s503 + $0x2] sm:$0xff]
        %v6072 = vld [vmem:[%s503 + $0x12] sm:$0xff]
        %v6073 = vld [vmem:[%s503 + $0x22] sm:$0xff]
        %v6074 = vld [vmem:[%s503 + $0x32] sm:$0xff]
        %v6075 = vld [vmem:[%s503 + $0x42] sm:$0xff]
        %v6076 = vld [vmem:[%s503 + $0x52] sm:$0xff]
        %v6077 = vld [vmem:[%s503 + $0x62] sm:$0xff]
        %v6078 = vld [vmem:[%s503 + $0x72] sm:$0xff]
        %v6079 = vld [vmem:[%s503 + $0xa2] sm:$0xff]
        %v6080 = vld [vmem:[%s503 + $0xb2] sm:$0xff]
        %v6081 = vld [vmem:[%s503 + $0xc2] sm:$0xff]
        %v6082 = vld [vmem:[%s503 + $0xd2] sm:$0xff]
        %v6083 = vld [vmem:[%s503 + $0xe2] sm:$0xff]
        %v6084 = vld [vmem:[%s503 + $0xf2] sm:$0xff]
        %v6085 = vld [vmem:[%s503 + $0x102] sm:$0xff]
        %v6086 = vld [vmem:[%s503 + $0x112] sm:$0xff]
        %v6087 = vld [vmem:[%s503 + $0x142] sm:$0xff]
        %v6088 = vld [vmem:[%s503 + $0x152] sm:$0xff]
        %v6089 = vld [vmem:[%s503 + $0x162] sm:$0xff]
        %v6090 = vld [vmem:[%s503 + $0x172] sm:$0xff]
        %v6091 = vld [vmem:[%s503 + $0x182] sm:$0xff]
        %v6092 = vld [vmem:[%s503 + $0x192] sm:$0xff]
        %v6093 = vld [vmem:[%s503 + $0x1a2] sm:$0xff]
        %v6094 = vld [vmem:[%s503 + $0x1b2] sm:$0xff]
        %v6095 = vld [vmem:[%s503 + $0x1e2] sm:$0xff]
        %v6096 = vld [vmem:[%s503 + $0x1f2] sm:$0xff]
        %v6097 = vld [vmem:[%s503 + $0x202] sm:$0xff]
        %v6098 = vld [vmem:[%s503 + $0x212] sm:$0xff]
        %v6099 = vld [vmem:[%s503 + $0x222] sm:$0xff]
        %v6100 = vld [vmem:[%s503 + $0x232] sm:$0xff]
        %v6101 = vld [vmem:[%s503 + $0x242] sm:$0xff]
        %v6102 = vld [vmem:[%s503 + $0x252] sm:$0xff]
        %v6103 = vld [vmem:[%s729] sm:$0xff]
        %v6104 = vld [vmem:[%s729 + $0x10] sm:$0xff]
        %v6105 = vld [vmem:[%s729 + $0x20] sm:$0xff]
        %v6106 = vld [vmem:[%s729 + $0x30] sm:$0xff]
        %v6107 = vld [vmem:[%s729 + $0x40] sm:$0xff]
        %v6108 = vld [vmem:[%s729 + $0x50] sm:$0xff]
        %v6109 = vld [vmem:[%s729 + $0x60] sm:$0xff]
        %v6110 = vld [vmem:[%s729 + $0x70] sm:$0xff]
        %v6111 = vld [vmem:[%s729 + $0xa0] sm:$0xff]
        %v6112 = vld [vmem:[%s729 + $0xb0] sm:$0xff]
        %v6113 = vld [vmem:[%s729 + $0xc0] sm:$0xff]
        %v6114 = vld [vmem:[%s729 + $0xd0] sm:$0xff]
        %v6115 = vld [vmem:[%s729 + $0xe0] sm:$0xff]
        %v6116 = vld [vmem:[%s729 + $0xf0] sm:$0xff]
        %v6117 = vld [vmem:[%s729 + $0x100] sm:$0xff]
        %v6118 = vld [vmem:[%s729 + $0x110] sm:$0xff]
        %v6119 = vld [vmem:[%s729 + $0x140] sm:$0xff]
        %v6120 = vld [vmem:[%s729 + $0x150] sm:$0xff]
        %v6121 = vld [vmem:[%s729 + $0x160] sm:$0xff]
        %v6122 = vld [vmem:[%s729 + $0x170] sm:$0xff]
        %v6123 = vld [vmem:[%s729 + $0x180] sm:$0xff]
        %v6124 = vld [vmem:[%s729 + $0x190] sm:$0xff]
        %v6125 = vld [vmem:[%s729 + $0x1a0] sm:$0xff]
        %v6126 = vld [vmem:[%s729 + $0x1b0] sm:$0xff]
        %v6127 = vld [vmem:[%s729 + $0x1e0] sm:$0xff]
        %v6128 = vld [vmem:[%s729 + $0x1f0] sm:$0xff]
        %v6129 = vld [vmem:[%s729 + $0x200] sm:$0xff]
        %v6130 = vld [vmem:[%s729 + $0x210] sm:$0xff]
        %v6131 = vld [vmem:[%s729 + $0x220] sm:$0xff]
        %v6132 = vld [vmem:[%s729 + $0x230] sm:$0xff]
        %v6133 = vld [vmem:[%s729 + $0x240] sm:$0xff]
        %v6134 = vld [vmem:[%s729 + $0x250] sm:$0xff]
        %v6135 = vld [vmem:[%s729 + $0x1] sm:$0xff]
        %v6136 = vld [vmem:[%s729 + $0x11] sm:$0xff]
        %v6137 = vld [vmem:[%s729 + $0x21] sm:$0xff]
        %v6138 = vld [vmem:[%s729 + $0x31] sm:$0xff]
        %v6139 = vld [vmem:[%s729 + $0x41] sm:$0xff]
        %v6140 = vld [vmem:[%s729 + $0x51] sm:$0xff]
        %v6141 = vld [vmem:[%s729 + $0x61] sm:$0xff]
        %v6142 = vld [vmem:[%s729 + $0x71] sm:$0xff]
        %v6143 = vld [vmem:[%s729 + $0xa1] sm:$0xff]
        %v6144 = vld [vmem:[%s729 + $0xb1] sm:$0xff]
        %v6145 = vld [vmem:[%s729 + $0xc1] sm:$0xff]
        %v6146 = vld [vmem:[%s729 + $0xd1] sm:$0xff]
        %v6147 = vld [vmem:[%s729 + $0xe1] sm:$0xff]
        %v6148 = vld [vmem:[%s729 + $0xf1] sm:$0xff]
        %v6149 = vld [vmem:[%s729 + $0x101] sm:$0xff]
        %v6150 = vld [vmem:[%s729 + $0x111] sm:$0xff]
        %v6151 = vld [vmem:[%s729 + $0x141] sm:$0xff]
        %v6152 = vld [vmem:[%s729 + $0x151] sm:$0xff]
        %v6153 = vld [vmem:[%s729 + $0x161] sm:$0xff]
        %v6154 = vld [vmem:[%s729 + $0x171] sm:$0xff]
        %v6155 = vld [vmem:[%s729 + $0x181] sm:$0xff]
        %v6156 = vld [vmem:[%s729 + $0x191] sm:$0xff]
        %v6157 = vld [vmem:[%s729 + $0x1a1] sm:$0xff]
        %v6158 = vld [vmem:[%s729 + $0x1b1] sm:$0xff]
        %v6159 = vld [vmem:[%s729 + $0x1e1] sm:$0xff]
        %v6160 = vld [vmem:[%s729 + $0x1f1] sm:$0xff]
        %v6161 = vld [vmem:[%s729 + $0x201] sm:$0xff]
        %v6162 = vld [vmem:[%s729 + $0x211] sm:$0xff]
        %v6163 = vld [vmem:[%s729 + $0x221] sm:$0xff]
        %v6164 = vld [vmem:[%s729 + $0x231] sm:$0xff]
        %v6165 = vld [vmem:[%s729 + $0x241] sm:$0xff]
        %v6166 = vld [vmem:[%s729 + $0x251] sm:$0xff]
        %v6167 = vld [vmem:[%s729 + $0x2] sm:$0xff]
        %v6168 = vld [vmem:[%s729 + $0x12] sm:$0xff]
        %v6169 = vld [vmem:[%s729 + $0x22] sm:$0xff]
        %v6170 = vld [vmem:[%s729 + $0x32] sm:$0xff]
        %v6171 = vld [vmem:[%s729 + $0x42] sm:$0xff]
        %v6172 = vld [vmem:[%s729 + $0x52] sm:$0xff]
        %v6173 = vld [vmem:[%s729 + $0x62] sm:$0xff]
        %v6174 = vld [vmem:[%s729 + $0x72] sm:$0xff]
        %v6175 = vld [vmem:[%s729 + $0xa2] sm:$0xff]
        %v6176 = vld [vmem:[%s729 + $0xb2] sm:$0xff]
        %v6177 = vld [vmem:[%s729 + $0xc2] sm:$0xff]
        %v6178 = vld [vmem:[%s729 + $0xd2] sm:$0xff]
        %v6179 = vld [vmem:[%s729 + $0xe2] sm:$0xff]
        %v6180 = vld [vmem:[%s729 + $0xf2] sm:$0xff]
        %v6181 = vld [vmem:[%s729 + $0x102] sm:$0xff]
        %v6182 = vld [vmem:[%s729 + $0x112] sm:$0xff]
        %v6183 = vld [vmem:[%s729 + $0x142] sm:$0xff]
        %v6184 = vld [vmem:[%s729 + $0x152] sm:$0xff]
        %v6185 = vld [vmem:[%s729 + $0x162] sm:$0xff]
        %v6186 = vld [vmem:[%s729 + $0x172] sm:$0xff]
        %v6187 = vld [vmem:[%s729 + $0x182] sm:$0xff]
        %v6188 = vld [vmem:[%s729 + $0x192] sm:$0xff]
        %v6189 = vld [vmem:[%s729 + $0x1a2] sm:$0xff]
        %v6190 = vld [vmem:[%s729 + $0x1b2] sm:$0xff]
        %v6191 = vld [vmem:[%s729 + $0x1e2] sm:$0xff]
        %v6192 = vld [vmem:[%s729 + $0x1f2] sm:$0xff]
        %v6193 = vld [vmem:[%s729 + $0x202] sm:$0xff]
        %v6194 = vld [vmem:[%s729 + $0x212] sm:$0xff]
        %v6195 = vld [vmem:[%s729 + $0x222] sm:$0xff]
        %v6196 = vld [vmem:[%s729 + $0x232] sm:$0xff]
        %v6197 = vld [vmem:[%s729 + $0x242] sm:$0xff]
        %v6198 = vld [vmem:[%s729 + $0x252] sm:$0xff]
        %6231 = vrot.lane.b32.xlu0 %v5943, 32
        %v6232 = vpop.permute.xlu0 %6231
        %6233 = vrot.lane.b32.xlu0 %v5944, 32
        %v6234 = vpop.permute.xlu0 %6233
        %6235 = vrot.lane.b32.xlu0 %v5945, 32
        %v6236 = vpop.permute.xlu0 %6235
        %6237 = vrot.lane.b32.xlu0 %v5946, 32
        %v6238 = vpop.permute.xlu0 %6237
        %6239 = vrot.lane.b32.xlu0 %v5947, 32
        %v6240 = vpop.permute.xlu0 %6239
        %6241 = vrot.lane.b32.xlu0 %v5948, 32
        %v6242 = vpop.permute.xlu0 %6241
        %6243 = vrot.lane.b32.xlu0 %v5949, 32
        %v6244 = vpop.permute.xlu0 %6243
        %6245 = vrot.lane.b32.xlu0 %v5950, 32
        %v6246 = vpop.permute.xlu0 %6245
        %6247 = vrot.lane.b32.xlu0 %v5951, 32
        %v6248 = vpop.permute.xlu0 %6247
        %6249 = vrot.lane.b32.xlu0 %v5952, 32
        %v6250 = vpop.permute.xlu0 %6249
        %6251 = vrot.lane.b32.xlu0 %v5953, 32
        %v6252 = vpop.permute.xlu0 %6251
        %6253 = vrot.lane.b32.xlu0 %v5954, 32
        %v6254 = vpop.permute.xlu0 %6253
        %6255 = vrot.lane.b32.xlu0 %v5955, 32
        %v6256 = vpop.permute.xlu0 %6255
        %6257 = vrot.lane.b32.xlu0 %v5956, 32
        %v6258 = vpop.permute.xlu0 %6257
        %6259 = vrot.lane.b32.xlu0 %v5957, 32
        %v6260 = vpop.permute.xlu0 %6259
        %6261 = vrot.lane.b32.xlu0 %v5958, 32
        %v6262 = vpop.permute.xlu0 %6261
        %6263 = vrot.lane.b32.xlu0 %v5959, 32
        %v6264 = vpop.permute.xlu0 %6263
        %6265 = vrot.lane.b32.xlu0 %v5960, 32
        %v6266 = vpop.permute.xlu0 %6265
        %6267 = vrot.lane.b32.xlu0 %v5961, 32
        %v6268 = vpop.permute.xlu0 %6267
        %6269 = vrot.lane.b32.xlu0 %v5962, 32
        %v6270 = vpop.permute.xlu0 %6269
        %6271 = vrot.lane.b32.xlu0 %v5963, 32
        %v6272 = vpop.permute.xlu0 %6271
        %6273 = vrot.lane.b32.xlu0 %v5964, 32
        %v6274 = vpop.permute.xlu0 %6273
        %6275 = vrot.lane.b32.xlu0 %v5965, 32
        %v6276 = vpop.permute.xlu0 %6275
        %6277 = vrot.lane.b32.xlu0 %v5966, 32
        %v6278 = vpop.permute.xlu0 %6277
        %6279 = vrot.lane.b32.xlu0 %v5967, 32
        %v6280 = vpop.permute.xlu0 %6279
        %6281 = vrot.lane.b32.xlu0 %v5968, 32
        %v6282 = vpop.permute.xlu0 %6281
        %6283 = vrot.lane.b32.xlu0 %v5969, 32
        %v6284 = vpop.permute.xlu0 %6283
        %6285 = vrot.lane.b32.xlu0 %v5970, 32
        %v6286 = vpop.permute.xlu0 %6285
        %6287 = vrot.lane.b32.xlu0 %v5971, 32
        %v6288 = vpop.permute.xlu0 %6287
        %6289 = vrot.lane.b32.xlu0 %v5972, 32
        %v6290 = vpop.permute.xlu0 %6289
        %6291 = vrot.lane.b32.xlu0 %v5973, 32
        %v6292 = vpop.permute.xlu0 %6291
        %6293 = vrot.lane.b32.xlu0 %v5974, 32
        %v6294 = vpop.permute.xlu0 %6293
        %6359 = vrot.lane.b32.xlu0 %v5975, 64
        %v6360 = vpop.permute.xlu0 %6359
        %6361 = vrot.lane.b32.xlu0 %v5976, 64
        %v6362 = vpop.permute.xlu0 %6361
        %6363 = vrot.lane.b32.xlu0 %v5977, 64
        %v6364 = vpop.permute.xlu0 %6363
        %6365 = vrot.lane.b32.xlu0 %v5978, 64
        %v6366 = vpop.permute.xlu0 %6365
        %6367 = vrot.lane.b32.xlu0 %v5979, 64
        %v6368 = vpop.permute.xlu0 %6367
        %6369 = vrot.lane.b32.xlu0 %v5980, 64
        %v6370 = vpop.permute.xlu0 %6369
        %6371 = vrot.lane.b32.xlu0 %v5981, 64
        %v6372 = vpop.permute.xlu0 %6371
        %6373 = vrot.lane.b32.xlu0 %v5982, 64
        %v6374 = vpop.permute.xlu0 %6373
        %6375 = vrot.lane.b32.xlu0 %v5983, 64
        %v6376 = vpop.permute.xlu0 %6375
        %6377 = vrot.lane.b32.xlu0 %v5984, 64
        %v6378 = vpop.permute.xlu0 %6377
        %6379 = vrot.lane.b32.xlu0 %v5985, 64
        %v6380 = vpop.permute.xlu0 %6379
        %6381 = vrot.lane.b32.xlu0 %v5986, 64
        %v6382 = vpop.permute.xlu0 %6381
        %6383 = vrot.lane.b32.xlu0 %v5987, 64
        %v6384 = vpop.permute.xlu0 %6383
        %6385 = vrot.lane.b32.xlu0 %v5988, 64
        %v6386 = vpop.permute.xlu0 %6385
        %6387 = vrot.lane.b32.xlu0 %v5989, 64
        %v6388 = vpop.permute.xlu0 %6387
        %6389 = vrot.lane.b32.xlu0 %v5990, 64
        %v6390 = vpop.permute.xlu0 %6389
        %6391 = vrot.lane.b32.xlu0 %v5991, 64
        %v6392 = vpop.permute.xlu0 %6391
        %6393 = vrot.lane.b32.xlu0 %v5992, 64
        %v6394 = vpop.permute.xlu0 %6393
        %6395 = vrot.lane.b32.xlu0 %v5993, 64
        %v6396 = vpop.permute.xlu0 %6395
        %6397 = vrot.lane.b32.xlu0 %v5994, 64
        %v6398 = vpop.permute.xlu0 %6397
        %6399 = vrot.lane.b32.xlu0 %v5995, 64
        %v6400 = vpop.permute.xlu0 %6399
        %6401 = vrot.lane.b32.xlu0 %v5996, 64
        %v6402 = vpop.permute.xlu0 %6401
        %6403 = vrot.lane.b32.xlu0 %v5997, 64
        %v6404 = vpop.permute.xlu0 %6403
        %6405 = vrot.lane.b32.xlu0 %v5998, 64
        %v6406 = vpop.permute.xlu0 %6405
        %6407 = vrot.lane.b32.xlu0 %v5999, 64
        %v6408 = vpop.permute.xlu0 %6407
        %6409 = vrot.lane.b32.xlu0 %v6000, 64
        %v6410 = vpop.permute.xlu0 %6409
        %6411 = vrot.lane.b32.xlu0 %v6001, 64
        %v6412 = vpop.permute.xlu0 %6411
        %6413 = vrot.lane.b32.xlu0 %v6002, 64
        %v6414 = vpop.permute.xlu0 %6413
        %6415 = vrot.lane.b32.xlu0 %v6003, 64
        %v6416 = vpop.permute.xlu0 %6415
        %6417 = vrot.lane.b32.xlu0 %v6004, 64
        %v6418 = vpop.permute.xlu0 %6417
        %6419 = vrot.lane.b32.xlu0 %v6005, 64
        %v6420 = vpop.permute.xlu0 %6419
        %6421 = vrot.lane.b32.xlu0 %v6006, 64
        %v6422 = vpop.permute.xlu0 %6421
        %6487 = vrot.lane.b32.xlu0 %v6007, 96
        %v6488 = vpop.permute.xlu0 %6487
        %6489 = vrot.lane.b32.xlu0 %v6008, 96
        %v6490 = vpop.permute.xlu0 %6489
        %6491 = vrot.lane.b32.xlu0 %v6009, 96
        %v6492 = vpop.permute.xlu0 %6491
        %6493 = vrot.lane.b32.xlu0 %v6010, 96
        %v6494 = vpop.permute.xlu0 %6493
        %6495 = vrot.lane.b32.xlu0 %v6011, 96
        %v6496 = vpop.permute.xlu0 %6495
        %6497 = vrot.lane.b32.xlu0 %v6012, 96
        %v6498 = vpop.permute.xlu0 %6497
        %6499 = vrot.lane.b32.xlu0 %v6013, 96
        %v6500 = vpop.permute.xlu0 %6499
        %6501 = vrot.lane.b32.xlu0 %v6014, 96
        %v6502 = vpop.permute.xlu0 %6501
        %6503 = vrot.lane.b32.xlu0 %v6015, 96
        %v6504 = vpop.permute.xlu0 %6503
        %6505 = vrot.lane.b32.xlu0 %v6016, 96
        %v6506 = vpop.permute.xlu0 %6505
        %6507 = vrot.lane.b32.xlu0 %v6017, 96
        %v6508 = vpop.permute.xlu0 %6507
        %6509 = vrot.lane.b32.xlu0 %v6018, 96
        %v6510 = vpop.permute.xlu0 %6509
        %6511 = vrot.lane.b32.xlu0 %v6019, 96
        %v6512 = vpop.permute.xlu0 %6511
        %6513 = vrot.lane.b32.xlu0 %v6020, 96
        %v6514 = vpop.permute.xlu0 %6513
        %6515 = vrot.lane.b32.xlu0 %v6021, 96
        %v6516 = vpop.permute.xlu0 %6515
        %6517 = vrot.lane.b32.xlu0 %v6022, 96
        %v6518 = vpop.permute.xlu0 %6517
        %6519 = vrot.lane.b32.xlu0 %v6023, 96
        %v6520 = vpop.permute.xlu0 %6519
        %6521 = vrot.lane.b32.xlu0 %v6024, 96
        %v6522 = vpop.permute.xlu0 %6521
        %6523 = vrot.lane.b32.xlu0 %v6025, 96
        %v6524 = vpop.permute.xlu0 %6523
        %6525 = vrot.lane.b32.xlu0 %v6026, 96
        %v6526 = vpop.permute.xlu0 %6525
        %6527 = vrot.lane.b32.xlu0 %v6027, 96
        %v6528 = vpop.permute.xlu0 %6527
        %6529 = vrot.lane.b32.xlu0 %v6028, 96
        %v6530 = vpop.permute.xlu0 %6529
        %6531 = vrot.lane.b32.xlu0 %v6029, 96
        %v6532 = vpop.permute.xlu0 %6531
        %6533 = vrot.lane.b32.xlu0 %v6030, 96
        %v6534 = vpop.permute.xlu0 %6533
        %6535 = vrot.lane.b32.xlu0 %v6031, 96
        %v6536 = vpop.permute.xlu0 %6535
        %6537 = vrot.lane.b32.xlu0 %v6032, 96
        %v6538 = vpop.permute.xlu0 %6537
        %6539 = vrot.lane.b32.xlu0 %v6033, 96
        %v6540 = vpop.permute.xlu0 %6539
        %6541 = vrot.lane.b32.xlu0 %v6034, 96
        %v6542 = vpop.permute.xlu0 %6541
        %6543 = vrot.lane.b32.xlu0 %v6035, 96
        %v6544 = vpop.permute.xlu0 %6543
        %6545 = vrot.lane.b32.xlu0 %v6036, 96
        %v6546 = vpop.permute.xlu0 %6545
        %6547 = vrot.lane.b32.xlu0 %v6037, 96
        %v6548 = vpop.permute.xlu0 %6547
        %6549 = vrot.lane.b32.xlu0 %v6038, 96
        %v6550 = vpop.permute.xlu0 %6549
        %6615 = vrot.lane.b32.xlu0 %v6071, 32
        %v6616 = vpop.permute.xlu0 %6615
        %6617 = vrot.lane.b32.xlu0 %v6072, 32
        %v6618 = vpop.permute.xlu0 %6617
        %6619 = vrot.lane.b32.xlu0 %v6073, 32
        %v6620 = vpop.permute.xlu0 %6619
        %6621 = vrot.lane.b32.xlu0 %v6074, 32
        %v6622 = vpop.permute.xlu0 %6621
        %6623 = vrot.lane.b32.xlu0 %v6075, 32
        %v6624 = vpop.permute.xlu0 %6623
        %6625 = vrot.lane.b32.xlu0 %v6076, 32
        %v6626 = vpop.permute.xlu0 %6625
        %6627 = vrot.lane.b32.xlu0 %v6077, 32
        %v6628 = vpop.permute.xlu0 %6627
        %6629 = vrot.lane.b32.xlu0 %v6078, 32
        %v6630 = vpop.permute.xlu0 %6629
        %6631 = vrot.lane.b32.xlu0 %v6079, 32
        %v6632 = vpop.permute.xlu0 %6631
        %6633 = vrot.lane.b32.xlu0 %v6080, 32
        %v6634 = vpop.permute.xlu0 %6633
        %6635 = vrot.lane.b32.xlu0 %v6081, 32
        %v6636 = vpop.permute.xlu0 %6635
        %6637 = vrot.lane.b32.xlu0 %v6082, 32
        %v6638 = vpop.permute.xlu0 %6637
        %6639 = vrot.lane.b32.xlu0 %v6083, 32
        %v6640 = vpop.permute.xlu0 %6639
        %6641 = vrot.lane.b32.xlu0 %v6084, 32
        %v6642 = vpop.permute.xlu0 %6641
        %6643 = vrot.lane.b32.xlu0 %v6085, 32
        %v6644 = vpop.permute.xlu0 %6643
        %6645 = vrot.lane.b32.xlu0 %v6086, 32
        %v6646 = vpop.permute.xlu0 %6645
        %6647 = vrot.lane.b32.xlu0 %v6087, 32
        %v6648 = vpop.permute.xlu0 %6647
        %6649 = vrot.lane.b32.xlu0 %v6088, 32
        %v6650 = vpop.permute.xlu0 %6649
        %6651 = vrot.lane.b32.xlu0 %v6089, 32
        %v6652 = vpop.permute.xlu0 %6651
        %6653 = vrot.lane.b32.xlu0 %v6090, 32
        %v6654 = vpop.permute.xlu0 %6653
        %6655 = vrot.lane.b32.xlu0 %v6091, 32
        %v6656 = vpop.permute.xlu0 %6655
        %6657 = vrot.lane.b32.xlu0 %v6092, 32
        %v6658 = vpop.permute.xlu0 %6657
        %6659 = vrot.lane.b32.xlu0 %v6093, 32
        %v6660 = vpop.permute.xlu0 %6659
        %6661 = vrot.lane.b32.xlu0 %v6094, 32
        %v6662 = vpop.permute.xlu0 %6661
        %6663 = vrot.lane.b32.xlu0 %v6095, 32
        %v6664 = vpop.permute.xlu0 %6663
        %6665 = vrot.lane.b32.xlu0 %v6096, 32
        %v6666 = vpop.permute.xlu0 %6665
        %6667 = vrot.lane.b32.xlu0 %v6097, 32
        %v6668 = vpop.permute.xlu0 %6667
        %6669 = vrot.lane.b32.xlu0 %v6098, 32
        %v6670 = vpop.permute.xlu0 %6669
        %6671 = vrot.lane.b32.xlu0 %v6099, 32
        %v6672 = vpop.permute.xlu0 %6671
        %6673 = vrot.lane.b32.xlu0 %v6100, 32
        %v6674 = vpop.permute.xlu0 %6673
        %6675 = vrot.lane.b32.xlu0 %v6101, 32
        %v6676 = vpop.permute.xlu0 %6675
        %6677 = vrot.lane.b32.xlu0 %v6102, 32
        %v6678 = vpop.permute.xlu0 %6677
        %6743 = vrot.lane.b32.xlu0 %v6103, 64
        %v6744 = vpop.permute.xlu0 %6743
        %6745 = vrot.lane.b32.xlu0 %v6104, 64
        %v6746 = vpop.permute.xlu0 %6745
        %6747 = vrot.lane.b32.xlu0 %v6105, 64
        %v6748 = vpop.permute.xlu0 %6747
        %6749 = vrot.lane.b32.xlu0 %v6106, 64
        %v6750 = vpop.permute.xlu0 %6749
        %6751 = vrot.lane.b32.xlu0 %v6107, 64
        %v6752 = vpop.permute.xlu0 %6751
        %6753 = vrot.lane.b32.xlu0 %v6108, 64
        %v6754 = vpop.permute.xlu0 %6753
        %6755 = vrot.lane.b32.xlu0 %v6109, 64
        %v6756 = vpop.permute.xlu0 %6755
        %6757 = vrot.lane.b32.xlu0 %v6110, 64
        %v6758 = vpop.permute.xlu0 %6757
        %6759 = vrot.lane.b32.xlu0 %v6111, 64
        %v6760 = vpop.permute.xlu0 %6759
        %6761 = vrot.lane.b32.xlu0 %v6112, 64
        %v6762 = vpop.permute.xlu0 %6761
        %6763 = vrot.lane.b32.xlu0 %v6113, 64
        %v6764 = vpop.permute.xlu0 %6763
        %6765 = vrot.lane.b32.xlu0 %v6114, 64
        %v6766 = vpop.permute.xlu0 %6765
        %6767 = vrot.lane.b32.xlu0 %v6115, 64
        %v6768 = vpop.permute.xlu0 %6767
        %6769 = vrot.lane.b32.xlu0 %v6116, 64
        %v6770 = vpop.permute.xlu0 %6769
        %6771 = vrot.lane.b32.xlu0 %v6117, 64
        %v6772 = vpop.permute.xlu0 %6771
        %6773 = vrot.lane.b32.xlu0 %v6118, 64
        %v6774 = vpop.permute.xlu0 %6773
        %6775 = vrot.lane.b32.xlu0 %v6119, 64
        %v6776 = vpop.permute.xlu0 %6775
        %6777 = vrot.lane.b32.xlu0 %v6120, 64
        %v6778 = vpop.permute.xlu0 %6777
        %6779 = vrot.lane.b32.xlu0 %v6121, 64
        %v6780 = vpop.permute.xlu0 %6779
        %6781 = vrot.lane.b32.xlu0 %v6122, 64
        %v6782 = vpop.permute.xlu0 %6781
        %6783 = vrot.lane.b32.xlu0 %v6123, 64
        %v6784 = vpop.permute.xlu0 %6783
        %6785 = vrot.lane.b32.xlu0 %v6124, 64
        %v6786 = vpop.permute.xlu0 %6785
        %6787 = vrot.lane.b32.xlu0 %v6125, 64
        %v6788 = vpop.permute.xlu0 %6787
        %6789 = vrot.lane.b32.xlu0 %v6126, 64
        %v6790 = vpop.permute.xlu0 %6789
        %6791 = vrot.lane.b32.xlu0 %v6127, 64
        %v6792 = vpop.permute.xlu0 %6791
        %6793 = vrot.lane.b32.xlu0 %v6128, 64
        %v6794 = vpop.permute.xlu0 %6793
        %6795 = vrot.lane.b32.xlu0 %v6129, 64
        %v6796 = vpop.permute.xlu0 %6795
        %6797 = vrot.lane.b32.xlu0 %v6130, 64
        %v6798 = vpop.permute.xlu0 %6797
        %6799 = vrot.lane.b32.xlu0 %v6131, 64
        %v6800 = vpop.permute.xlu0 %6799
        %6801 = vrot.lane.b32.xlu0 %v6132, 64
        %v6802 = vpop.permute.xlu0 %6801
        %6803 = vrot.lane.b32.xlu0 %v6133, 64
        %v6804 = vpop.permute.xlu0 %6803
        %6805 = vrot.lane.b32.xlu0 %v6134, 64
        %v6806 = vpop.permute.xlu0 %6805
        %6871 = vrot.lane.b32.xlu0 %v6135, 96
        %v6872 = vpop.permute.xlu0 %6871
        %6873 = vrot.lane.b32.xlu0 %v6136, 96
        %v6874 = vpop.permute.xlu0 %6873
        %6875 = vrot.lane.b32.xlu0 %v6137, 96
        %v6876 = vpop.permute.xlu0 %6875
        %6877 = vrot.lane.b32.xlu0 %v6138, 96
        %v6878 = vpop.permute.xlu0 %6877
        %6879 = vrot.lane.b32.xlu0 %v6139, 96
        %v6880 = vpop.permute.xlu0 %6879
        %6881 = vrot.lane.b32.xlu0 %v6140, 96
        %v6882 = vpop.permute.xlu0 %6881
        %6883 = vrot.lane.b32.xlu0 %v6141, 96
        %v6884 = vpop.permute.xlu0 %6883
        %6885 = vrot.lane.b32.xlu0 %v6142, 96
        %v6886 = vpop.permute.xlu0 %6885
        %6887 = vrot.lane.b32.xlu0 %v6143, 96
        %v6888 = vpop.permute.xlu0 %6887
        %6889 = vrot.lane.b32.xlu0 %v6144, 96
        %v6890 = vpop.permute.xlu0 %6889
        %6891 = vrot.lane.b32.xlu0 %v6145, 96
        %v6892 = vpop.permute.xlu0 %6891
        %6893 = vrot.lane.b32.xlu0 %v6146, 96
        %v6894 = vpop.permute.xlu0 %6893
        %6895 = vrot.lane.b32.xlu0 %v6147, 96
        %v6896 = vpop.permute.xlu0 %6895
        %6897 = vrot.lane.b32.xlu0 %v6148, 96
        %v6898 = vpop.permute.xlu0 %6897
        %6899 = vrot.lane.b32.xlu0 %v6149, 96
        %v6900 = vpop.permute.xlu0 %6899
        %6901 = vrot.lane.b32.xlu0 %v6150, 96
        %v6902 = vpop.permute.xlu0 %6901
        %6903 = vrot.lane.b32.xlu0 %v6151, 96
        %v6904 = vpop.permute.xlu0 %6903
        %6905 = vrot.lane.b32.xlu0 %v6152, 96
        %v6906 = vpop.permute.xlu0 %6905
        %6907 = vrot.lane.b32.xlu0 %v6153, 96
        %v6908 = vpop.permute.xlu0 %6907
        %6909 = vrot.lane.b32.xlu0 %v6154, 96
        %v6910 = vpop.permute.xlu0 %6909
        %6911 = vrot.lane.b32.xlu0 %v6155, 96
        %v6912 = vpop.permute.xlu0 %6911
        %6913 = vrot.lane.b32.xlu0 %v6156, 96
        %v6914 = vpop.permute.xlu0 %6913
        %6915 = vrot.lane.b32.xlu0 %v6157, 96
        %v6916 = vpop.permute.xlu0 %6915
        %6917 = vrot.lane.b32.xlu0 %v6158, 96
        %v6918 = vpop.permute.xlu0 %6917
        %6919 = vrot.lane.b32.xlu0 %v6159, 96
        %v6920 = vpop.permute.xlu0 %6919
        %6921 = vrot.lane.b32.xlu0 %v6160, 96
        %v6922 = vpop.permute.xlu0 %6921
        %6923 = vrot.lane.b32.xlu0 %v6161, 96
        %v6924 = vpop.permute.xlu0 %6923
        %6925 = vrot.lane.b32.xlu0 %v6162, 96
        %v6926 = vpop.permute.xlu0 %6925
        %6927 = vrot.lane.b32.xlu0 %v6163, 96
        %v6928 = vpop.permute.xlu0 %6927
        %6929 = vrot.lane.b32.xlu0 %v6164, 96
        %v6930 = vpop.permute.xlu0 %6929
        %6931 = vrot.lane.b32.xlu0 %v6165, 96
        %v6932 = vpop.permute.xlu0 %6931
        %6933 = vrot.lane.b32.xlu0 %v6166, 96
        %v6934 = vpop.permute.xlu0 %6933
        %v6967 = vsel %vm2348, %v5911, %v6232
        %v6968 = vsel %vm2348, %v5912, %v6234
        %v6969 = vsel %vm2348, %v5913, %v6236
        %v6970 = vsel %vm2348, %v5914, %v6238
        %v6971 = vsel %vm2348, %v5915, %v6240
        %v6972 = vsel %vm2348, %v5916, %v6242
        %v6973 = vsel %vm2348, %v5917, %v6244
        %v6974 = vsel %vm2348, %v5918, %v6246
        %v6975 = vsel %vm2348, %v5919, %v6248
        %v6976 = vsel %vm2348, %v5920, %v6250
        %v6977 = vsel %vm2348, %v5921, %v6252
        %v6978 = vsel %vm2348, %v5922, %v6254
        %v6979 = vsel %vm2348, %v5923, %v6256
        %v6980 = vsel %vm2348, %v5924, %v6258
        %v6981 = vsel %vm2348, %v5925, %v6260
        %v6982 = vsel %vm2348, %v5926, %v6262
        %v6983 = vsel %vm2348, %v5927, %v6264
        %v6984 = vsel %vm2348, %v5928, %v6266
        %v6985 = vsel %vm2348, %v5929, %v6268
        %v6986 = vsel %vm2348, %v5930, %v6270
        %v6987 = vsel %vm2348, %v5931, %v6272
        %v6988 = vsel %vm2348, %v5932, %v6274
        %v6989 = vsel %vm2348, %v5933, %v6276
        %v6990 = vsel %vm2348, %v5934, %v6278
        %v6991 = vsel %vm2348, %v5935, %v6280
        %v6992 = vsel %vm2348, %v5936, %v6282
        %v6993 = vsel %vm2348, %v5937, %v6284
        %v6994 = vsel %vm2348, %v5938, %v6286
        %v6995 = vsel %vm2348, %v5939, %v6288
        %v6996 = vsel %vm2348, %v5940, %v6290
        %v6997 = vsel %vm2348, %v5941, %v6292
        %v6998 = vsel %vm2348, %v5942, %v6294
        %v6999 = vsel %vm504, %v6967, %v6360
        %v7000 = vsel %vm504, %v6968, %v6362
        %v7001 = vsel %vm504, %v6969, %v6364
        %v7002 = vsel %vm504, %v6970, %v6366
        %v7003 = vsel %vm504, %v6971, %v6368
        %v7004 = vsel %vm504, %v6972, %v6370
        %v7005 = vsel %vm504, %v6973, %v6372
        %v7006 = vsel %vm504, %v6974, %v6374
        %v7007 = vsel %vm504, %v6975, %v6376
        %v7008 = vsel %vm504, %v6976, %v6378
        %v7009 = vsel %vm504, %v6977, %v6380
        %v7010 = vsel %vm504, %v6978, %v6382
        %v7011 = vsel %vm504, %v6979, %v6384
        %v7012 = vsel %vm504, %v6980, %v6386
        %v7013 = vsel %vm504, %v6981, %v6388
        %v7014 = vsel %vm504, %v6982, %v6390
        %v7015 = vsel %vm504, %v6983, %v6392
        %v7016 = vsel %vm504, %v6984, %v6394
        %v7017 = vsel %vm504, %v6985, %v6396
        %v7018 = vsel %vm504, %v6986, %v6398
        %v7019 = vsel %vm504, %v6987, %v6400
        %v7020 = vsel %vm504, %v6988, %v6402
        %v7021 = vsel %vm504, %v6989, %v6404
        %v7022 = vsel %vm504, %v6990, %v6406
        %v7023 = vsel %vm504, %v6991, %v6408
        %v7024 = vsel %vm504, %v6992, %v6410
        %v7025 = vsel %vm504, %v6993, %v6412
        %v7026 = vsel %vm504, %v6994, %v6414
        %v7027 = vsel %vm504, %v6995, %v6416
        %v7028 = vsel %vm504, %v6996, %v6418
        %v7029 = vsel %vm504, %v6997, %v6420
        %v7030 = vsel %vm504, %v6998, %v6422
        %v7031 = vsel %vm3501, %v6999, %v6488
        %v7032 = vsel %vm3501, %v7000, %v6490
        %v7033 = vsel %vm3501, %v7001, %v6492
        %v7034 = vsel %vm3501, %v7002, %v6494
        %v7035 = vsel %vm3501, %v7003, %v6496
        %v7036 = vsel %vm3501, %v7004, %v6498
        %v7037 = vsel %vm3501, %v7005, %v6500
        %v7038 = vsel %vm3501, %v7006, %v6502
        %v7039 = vsel %vm3501, %v7007, %v6504
        %v7040 = vsel %vm3501, %v7008, %v6506
        %v7041 = vsel %vm3501, %v7009, %v6508
        %v7042 = vsel %vm3501, %v7010, %v6510
        %v7043 = vsel %vm3501, %v7011, %v6512
        %v7044 = vsel %vm3501, %v7012, %v6514
        %v7045 = vsel %vm3501, %v7013, %v6516
        %v7046 = vsel %vm3501, %v7014, %v6518
        %v7047 = vsel %vm3501, %v7015, %v6520
        %v7048 = vsel %vm3501, %v7016, %v6522
        %v7049 = vsel %vm3501, %v7017, %v6524
        %v7050 = vsel %vm3501, %v7018, %v6526
        %v7051 = vsel %vm3501, %v7019, %v6528
        %v7052 = vsel %vm3501, %v7020, %v6530
        %v7053 = vsel %vm3501, %v7021, %v6532
        %v7054 = vsel %vm3501, %v7022, %v6534
        %v7055 = vsel %vm3501, %v7023, %v6536
        %v7056 = vsel %vm3501, %v7024, %v6538
        %v7057 = vsel %vm3501, %v7025, %v6540
        %v7058 = vsel %vm3501, %v7026, %v6542
        %v7059 = vsel %vm3501, %v7027, %v6544
        %v7060 = vsel %vm3501, %v7028, %v6546
        %v7061 = vsel %vm3501, %v7029, %v6548
        %v7062 = vsel %vm3501, %v7030, %v6550
        %v7063 = vsel %vm2348, %v6039, %v6616
        %v7064 = vsel %vm2348, %v6040, %v6618
        %v7065 = vsel %vm2348, %v6041, %v6620
        %v7066 = vsel %vm2348, %v6042, %v6622
        %v7067 = vsel %vm2348, %v6043, %v6624
        %v7068 = vsel %vm2348, %v6044, %v6626
        %v7069 = vsel %vm2348, %v6045, %v6628
        %v7070 = vsel %vm2348, %v6046, %v6630
        %v7071 = vsel %vm2348, %v6047, %v6632
        %v7072 = vsel %vm2348, %v6048, %v6634
        %v7073 = vsel %vm2348, %v6049, %v6636
        %v7074 = vsel %vm2348, %v6050, %v6638
        %v7075 = vsel %vm2348, %v6051, %v6640
        %v7076 = vsel %vm2348, %v6052, %v6642
        %v7077 = vsel %vm2348, %v6053, %v6644
        %v7078 = vsel %vm2348, %v6054, %v6646
        %v7079 = vsel %vm2348, %v6055, %v6648
        %v7080 = vsel %vm2348, %v6056, %v6650
        %v7081 = vsel %vm2348, %v6057, %v6652
        %v7082 = vsel %vm2348, %v6058, %v6654
        %v7083 = vsel %vm2348, %v6059, %v6656
        %v7084 = vsel %vm2348, %v6060, %v6658
        %v7085 = vsel %vm2348, %v6061, %v6660
        %v7086 = vsel %vm2348, %v6062, %v6662
        %v7087 = vsel %vm2348, %v6063, %v6664
        %v7088 = vsel %vm2348, %v6064, %v6666
        %v7089 = vsel %vm2348, %v6065, %v6668
        %v7090 = vsel %vm2348, %v6066, %v6670
        %v7091 = vsel %vm2348, %v6067, %v6672
        %v7092 = vsel %vm2348, %v6068, %v6674
        %v7093 = vsel %vm2348, %v6069, %v6676
        %v7094 = vsel %vm2348, %v6070, %v6678
        %v7095 = vsel %vm504, %v7063, %v6744
        %v7096 = vsel %vm504, %v7064, %v6746
        %v7097 = vsel %vm504, %v7065, %v6748
        %v7098 = vsel %vm504, %v7066, %v6750
        %v7099 = vsel %vm504, %v7067, %v6752
        %v7100 = vsel %vm504, %v7068, %v6754
        %v7101 = vsel %vm504, %v7069, %v6756
        %v7102 = vsel %vm504, %v7070, %v6758
        %v7103 = vsel %vm504, %v7071, %v6760
        %v7104 = vsel %vm504, %v7072, %v6762
        %v7105 = vsel %vm504, %v7073, %v6764
        %v7106 = vsel %vm504, %v7074, %v6766
        %v7107 = vsel %vm504, %v7075, %v6768
        %v7108 = vsel %vm504, %v7076, %v6770
        %v7109 = vsel %vm504, %v7077, %v6772
        %v7110 = vsel %vm504, %v7078, %v6774
        %v7111 = vsel %vm504, %v7079, %v6776
        %v7112 = vsel %vm504, %v7080, %v6778
        %v7113 = vsel %vm504, %v7081, %v6780
        %v7114 = vsel %vm504, %v7082, %v6782
        %v7115 = vsel %vm504, %v7083, %v6784
        %v7116 = vsel %vm504, %v7084, %v6786
        %v7117 = vsel %vm504, %v7085, %v6788
        %v7118 = vsel %vm504, %v7086, %v6790
        %v7119 = vsel %vm504, %v7087, %v6792
        %v7120 = vsel %vm504, %v7088, %v6794
        %v7121 = vsel %vm504, %v7089, %v6796
        %v7122 = vsel %vm504, %v7090, %v6798
        %v7123 = vsel %vm504, %v7091, %v6800
        %v7124 = vsel %vm504, %v7092, %v6802
        %v7125 = vsel %vm504, %v7093, %v6804
        %v7126 = vsel %vm504, %v7094, %v6806
        %v7127 = vsel %vm3501, %v7095, %v6872
        %v7128 = vsel %vm3501, %v7096, %v6874
        %v7129 = vsel %vm3501, %v7097, %v6876
        %v7130 = vsel %vm3501, %v7098, %v6878
        %v7131 = vsel %vm3501, %v7099, %v6880
        %v7132 = vsel %vm3501, %v7100, %v6882
        %v7133 = vsel %vm3501, %v7101, %v6884
        %v7134 = vsel %vm3501, %v7102, %v6886
        %v7135 = vsel %vm3501, %v7103, %v6888
        %v7136 = vsel %vm3501, %v7104, %v6890
        %v7137 = vsel %vm3501, %v7105, %v6892
        %v7138 = vsel %vm3501, %v7106, %v6894
        %v7139 = vsel %vm3501, %v7107, %v6896
        %v7140 = vsel %vm3501, %v7108, %v6898
        %v7141 = vsel %vm3501, %v7109, %v6900
        %v7142 = vsel %vm3501, %v7110, %v6902
        %v7143 = vsel %vm3501, %v7111, %v6904
        %v7144 = vsel %vm3501, %v7112, %v6906
        %v7145 = vsel %vm3501, %v7113, %v6908
        %v7146 = vsel %vm3501, %v7114, %v6910
        %v7147 = vsel %vm3501, %v7115, %v6912
        %v7148 = vsel %vm3501, %v7116, %v6914
        %v7149 = vsel %vm3501, %v7117, %v6916
        %v7150 = vsel %vm3501, %v7118, %v6918
        %v7151 = vsel %vm3501, %v7119, %v6920
        %v7152 = vsel %vm3501, %v7120, %v6922
        %v7153 = vsel %vm3501, %v7121, %v6924
        %v7154 = vsel %vm3501, %v7122, %v6926
        %v7155 = vsel %vm3501, %v7123, %v6928
        %v7156 = vsel %vm3501, %v7124, %v6930
        %v7157 = vsel %vm3501, %v7125, %v6932
        %v7158 = vsel %vm3501, %v7126, %v6934
        %v7159 = vld [vmem:[%s7] sm:$0xff]
        %v7160 = vld [vmem:[%s7 + $0x8] sm:$0xff]
        %v7161 = vld [vmem:[%s7 + $0x10] sm:$0xff]
        %v7162 = vld [vmem:[%s7 + $0x18] sm:$0xff]
        %v7163 = vld [vmem:[%s7 + $0x20] sm:$0xff]
        %v7164 = vld [vmem:[%s7 + $0x28] sm:$0xff]
        %v7165 = vld [vmem:[%s7 + $0x30] sm:$0xff]
        %v7166 = vld [vmem:[%s7 + $0x38] sm:$0xff]
        %v7167 = vld [vmem:[%s7 + $0x40] sm:$0xff]
        %v7168 = vld [vmem:[%s7 + $0x48] sm:$0xff]
        %v7169 = vld [vmem:[%s7 + $0x50] sm:$0xff]
        %v7170 = vld [vmem:[%s7 + $0x58] sm:$0xff]
        %v7171 = vld [vmem:[%s7 + $0x60] sm:$0xff]
        %v7172 = vld [vmem:[%s7 + $0x68] sm:$0xff]
        %v7173 = vld [vmem:[%s7 + $0x70] sm:$0xff]
        %v7174 = vld [vmem:[%s7 + $0x78] sm:$0xff]
        %v7175 = vld [vmem:[%s7 + $0x80] sm:$0xff]
        %v7176 = vld [vmem:[%s7 + $0x88] sm:$0xff]
        %v7177 = vld [vmem:[%s7 + $0x90] sm:$0xff]
        %v7178 = vld [vmem:[%s7 + $0x98] sm:$0xff]
        %v7179 = vld [vmem:[%s7 + $0xa0] sm:$0xff]
        %v7180 = vld [vmem:[%s7 + $0xa8] sm:$0xff]
        %v7181 = vld [vmem:[%s7 + $0xb0] sm:$0xff]
        %v7182 = vld [vmem:[%s7 + $0xb8] sm:$0xff]
        %v7183 = vld [vmem:[%s7 + $0xc0] sm:$0xff]
        %v7184 = vld [vmem:[%s7 + $0xc8] sm:$0xff]
        %v7185 = vld [vmem:[%s7 + $0xd0] sm:$0xff]
        %v7186 = vld [vmem:[%s7 + $0xd8] sm:$0xff]
        %v7187 = vld [vmem:[%s7 + $0xe0] sm:$0xff]
        %v7188 = vld [vmem:[%s7 + $0xe8] sm:$0xff]
        %v7189 = vld [vmem:[%s7 + $0xf0] sm:$0xff]
        %v7190 = vld [vmem:[%s7 + $0xf8] sm:$0xff]
        %v7191 = vld [vmem:[%s7 + $0x100] sm:$0xff]
        %v7192 = vld [vmem:[%s7 + $0x108] sm:$0xff]
        %v7193 = vld [vmem:[%s7 + $0x110] sm:$0xff]
        %v7194 = vld [vmem:[%s7 + $0x118] sm:$0xff]
        %v7195 = vld [vmem:[%s8] sm:$0x1]
        %v7197 = vlaneseq
        %v7198 = vshrl.u32 %v7197, 7
        %v7199 = vsub.s32 0, %v7198
        %v7200 = vrot.slane %v7195, %v7199
        %v7203 = vsel %vm2348, %v6167, 0
        %v7206 = vsel %vm2348, %v6168, 0
        %v7209 = vsel %vm2348, %v6169, 0
        %v7212 = vsel %vm2348, %v6170, 0
        %v7215 = vsel %vm2348, %v6171, 0
        %v7218 = vsel %vm2348, %v6172, 0
        %v7221 = vsel %vm2348, %v6173, 0
        %v7224 = vsel %vm2348, %v6174, 0
        %v7227 = vsel %vm2348, %v6175, 0
        %v7230 = vsel %vm2348, %v6176, 0
        %v7233 = vsel %vm2348, %v6177, 0
        %v7236 = vsel %vm2348, %v6178, 0
        %v7239 = vsel %vm2348, %v6179, 0
        %v7242 = vsel %vm2348, %v6180, 0
        %v7245 = vsel %vm2348, %v6181, 0
        %v7248 = vsel %vm2348, %v6182, 0
        %v7251 = vsel %vm2348, %v6183, 0
        %v7254 = vsel %vm2348, %v6184, 0
        %v7257 = vsel %vm2348, %v6185, 0
        %v7260 = vsel %vm2348, %v6186, 0
        %v7263 = vsel %vm2348, %v6187, 0
        %v7266 = vsel %vm2348, %v6188, 0
        %v7269 = vsel %vm2348, %v6189, 0
        %v7272 = vsel %vm2348, %v6190, 0
        %v7275 = vsel %vm2348, %v6191, 0
        %v7278 = vsel %vm2348, %v6192, 0
        %v7281 = vsel %vm2348, %v6193, 0
        %v7284 = vsel %vm2348, %v6194, 0
        %v7287 = vsel %vm2348, %v6195, 0
        %v7290 = vsel %vm2348, %v6196, 0
        %v7293 = vsel %vm2348, %v6197, 0
        %v7296 = vsel %vm2348, %v6198, 0
        %7298 = vmatprep.subr.mxu0 0.0
        %7299 = vmatpush1.msra.mxu0 %v7159
        %7300 = vmatprep.subr.mxu0 0.0
        %7301 = vmatpush1.msra.mxu0 %v7160
        %7302 = vmatprep.subr.mxu0 0.0
        %7303 = vmatpush1.msra.mxu0 %v7161
        %7304 = vmatprep.subr.mxu0 0.0
        %7305 = vmatpush1.msra.mxu0 %v7162
        %7306 = vmatprep.subr.mxu0 0.0
        %7307 = vmatpush1.msra.mxu0 %v7163
        %7308 = vmatprep.subr.mxu0 0.0
        %7309 = vmatpush1.msra.mxu0 %v7164
        %7310 = vmatprep.subr.mxu0 0.0
        %7311 = vmatpush1.msra.mxu0 %v7165
        %7312 = vmatprep.subr.mxu0 0.0
        %7313 = vmatpush1.msra.mxu0 %v7166
        %7314 = vmatprep.subr.mxu0 0.0
        %7315 = vmatpush1.msra.mxu0 %v7167
        %7316 = vmatprep.subr.mxu0 0.0
        %7317 = vmatpush1.msra.mxu0 %v7168
        %7318 = vmatprep.subr.mxu0 0.0
        %7319 = vmatpush1.msra.mxu0 %v7169
        %7320 = vmatprep.subr.mxu0 0.0
        %7321 = vmatpush1.msra.mxu0 %v7170
        %7322 = vmatprep.subr.mxu0 0.0
        %7323 = vmatpush1.msra.mxu0 %v7171
        %7324 = vmatprep.subr.mxu0 0.0
        %7325 = vmatpush1.msra.mxu0 %v7172
        %7326 = vmatprep.subr.mxu0 0.0
        %7327 = vmatpush1.msra.mxu0 %v7173
        %7328 = vmatprep.subr.mxu0 0.0
        %7329 = vmatpush1.msra.mxu0 %v7174
        %7330 = vmatprep.subr.mxu0 0.0
        %7331 = vmatpush1.msra.mxu0 %v7175
        %7332 = vmatprep.subr.mxu0 0.0
        %7333 = vmatpush1.msra.mxu0 %v7176
        %7334 = vmatprep.subr.mxu0 0.0
        %7335 = vmatpush1.msra.mxu0 %v7177
        %7336 = vmatprep.subr.mxu0 0.0
        %7337 = vmatpush1.msra.mxu0 %v7178
        %7338 = vmatprep.subr.mxu0 0.0
        %7339 = vmatpush1.msra.mxu0 %v7179
        %7340 = vmatprep.subr.mxu0 0.0
        %7341 = vmatpush1.msra.mxu0 %v7180
        %7342 = vmatprep.subr.mxu0 0.0
        %7343 = vmatpush1.msra.mxu0 %v7181
        %7344 = vmatprep.subr.mxu0 0.0
        %7345 = vmatpush1.msra.mxu0 %v7182
        %7346 = vmatprep.subr.mxu0 0.0
        %7347 = vmatpush1.msra.mxu0 %v7183
        %7348 = vmatprep.subr.mxu0 0.0
        %7349 = vmatpush1.msra.mxu0 %v7184
        %7350 = vmatprep.subr.mxu0 0.0
        %7351 = vmatpush1.msra.mxu0 %v7185
        %7352 = vmatprep.subr.mxu0 0.0
        %7353 = vmatpush1.msra.mxu0 %v7186
        %7354 = vmatprep.subr.mxu0 0.0
        %7355 = vmatpush1.msra.mxu0 %v7187
        %7356 = vmatprep.subr.mxu0 0.0
        %7357 = vmatpush1.msra.mxu0 %v7188
        %7358 = vmatprep.subr.mxu0 0.0
        %7359 = vmatpush1.msra.mxu0 %v7189
        %7360 = vmatprep.subr.mxu0 0.0
        %7361 = vmatpush1.msra.mxu0 %v7190
        %7362 = vmatprep.mubr.f32.mxu0 %v7127
        %7363 = vmatmul.mubr.f32.gmra.mrb[0].mxu0 %v7031
        %v7364 = vpop.f32.mrb[0].mxu0
        %v7365 = vadd.f32 %v7200, %v7364
        %v7366 = vpop.f32.mrb[0].mxu0
        %7367 = vmatprep.mubr.f32.mxu0 %v7128
        %7368 = vmatmul.mubr.f32.gmra.mrb[0].mxu0 %v7032
        %v7369 = vpop.f32.mrb[0].mxu0
        %v7370 = vadd.f32 %v7200, %v7369
        %v7371 = vpop.f32.mrb[0].mxu0
        %7372 = vmatprep.mubr.f32.mxu0 %v7129
        %7373 = vmatmul.mubr.f32.gmra.mrb[0].mxu0 %v7033
        %v7374 = vpop.f32.mrb[0].mxu0
        %v7375 = vadd.f32 %v7200, %v7374
        %v7376 = vpop.f32.mrb[0].mxu0
        %7377 = vmatprep.mubr.f32.mxu0 %v7130
        %7378 = vmatmul.mubr.f32.gmra.mrb[0].mxu0 %v7034
        %v7379 = vpop.f32.mrb[0].mxu0
        %v7380 = vadd.f32 %v7200, %v7379
        %v7381 = vpop.f32.mrb[0].mxu0
        %7382 = vmatprep.mubr.f32.mxu0 %v7131
        %7383 = vmatmul.mubr.f32.gmra.mrb[0].mxu0 %v7035
        %v7384 = vpop.f32.mrb[0].mxu0
        %v7385 = vadd.f32 %v7200, %v7384
        %v7386 = vpop.f32.mrb[0].mxu0
        %7387 = vmatprep.mubr.f32.mxu0 %v7132
        %7388 = vmatmul.mubr.f32.gmra.mrb[0].mxu0 %v7036
        %v7389 = vpop.f32.mrb[0].mxu0
        %v7390 = vadd.f32 %v7200, %v7389
        %v7391 = vpop.f32.mrb[0].mxu0
        %7392 = vmatprep.mubr.f32.mxu0 %v7133
        %7393 = vmatmul.mubr.f32.gmra.mrb[0].mxu0 %v7037
        %v7394 = vpop.f32.mrb[0].mxu0
        %v7395 = vadd.f32 %v7200, %v7394
        %v7396 = vpop.f32.mrb[0].mxu0
        %7397 = vmatprep.mubr.f32.mxu0 %v7134
        %7398 = vmatmul.mubr.f32.gmra.mrb[0].mxu0 %v7038
        %v7399 = vpop.f32.mrb[0].mxu0
        %v7400 = vadd.f32 %v7200, %v7399
        %v7401 = vpop.f32.mrb[0].mxu0
        %7402 = vmatprep.mubr.f32.mxu0 %v7135
        %7403 = vmatmul.mubr.f32.gmra.mrb[0].mxu0 %v7039
        %v7404 = vpop.f32.mrb[0].mxu0
        %v7405 = vadd.f32 %v7200, %v7404
        %v7406 = vpop.f32.mrb[0].mxu0
        %7407 = vmatprep.mubr.f32.mxu0 %v7136
        %7408 = vmatmul.mubr.f32.gmra.mrb[0].mxu0 %v7040
        %v7409 = vpop.f32.mrb[0].mxu0
        %v7410 = vadd.f32 %v7200, %v7409
        %v7411 = vpop.f32.mrb[0].mxu0
        %7412 = vmatprep.mubr.f32.mxu0 %v7137
        %7413 = vmatmul.mubr.f32.gmra.mrb[0].mxu0 %v7041
        %v7414 = vpop.f32.mrb[0].mxu0
        %v7415 = vadd.f32 %v7200, %v7414
        %v7416 = vpop.f32.mrb[0].mxu0
        %7417 = vmatprep.mubr.f32.mxu0 %v7138
        %7418 = vmatmul.mubr.f32.gmra.mrb[0].mxu0 %v7042
        %v7419 = vpop.f32.mrb[0].mxu0
        %v7420 = vadd.f32 %v7200, %v7419
        %v7421 = vpop.f32.mrb[0].mxu0
        %7422 = vmatprep.mubr.f32.mxu0 %v7139
        %7423 = vmatmul.mubr.f32.gmra.mrb[0].mxu0 %v7043
        %v7424 = vpop.f32.mrb[0].mxu0
        %v7425 = vadd.f32 %v7200, %v7424
        %v7426 = vpop.f32.mrb[0].mxu0
        %7427 = vmatprep.mubr.f32.mxu0 %v7140
        %7428 = vmatmul.mubr.f32.gmra.mrb[0].mxu0 %v7044
        %v7429 = vpop.f32.mrb[0].mxu0
        %v7430 = vadd.f32 %v7200, %v7429
        %v7431 = vpop.f32.mrb[0].mxu0
        %7432 = vmatprep.mubr.f32.mxu0 %v7141
        %7433 = vmatmul.mubr.f32.gmra.mrb[0].mxu0 %v7045
        %v7434 = vpop.f32.mrb[0].mxu0
        %v7435 = vadd.f32 %v7200, %v7434
        %v7436 = vpop.f32.mrb[0].mxu0
        %7437 = vmatprep.mubr.f32.mxu0 %v7142
        %7438 = vmatmul.mubr.f32.gmra.mrb[0].mxu0 %v7046
        %v7439 = vpop.f32.mrb[0].mxu0
        %v7440 = vadd.f32 %v7200, %v7439
        %v7441 = vpop.f32.mrb[0].mxu0
        %7442 = vmatprep.mubr.f32.mxu0 %v7143
        %7443 = vmatmul.mubr.f32.gmra.mrb[0].mxu0 %v7047
        %v7444 = vpop.f32.mrb[0].mxu0
        %v7445 = vadd.f32 %v7200, %v7444
        %v7446 = vpop.f32.mrb[0].mxu0
        %7447 = vmatprep.mubr.f32.mxu0 %v7144
        %7448 = vmatmul.mubr.f32.gmra.mrb[0].mxu0 %v7048
        %v7449 = vpop.f32.mrb[0].mxu0
        %v7450 = vadd.f32 %v7200, %v7449
        %v7451 = vpop.f32.mrb[0].mxu0
        %7452 = vmatprep.mubr.f32.mxu0 %v7145
        %7453 = vmatmul.mubr.f32.gmra.mrb[0].mxu0 %v7049
        %v7454 = vpop.f32.mrb[0].mxu0
        %v7455 = vadd.f32 %v7200, %v7454
        %v7456 = vpop.f32.mrb[0].mxu0
        %7457 = vmatprep.mubr.f32.mxu0 %v7146
        %7458 = vmatmul.mubr.f32.gmra.mrb[0].mxu0 %v7050
        %v7459 = vpop.f32.mrb[0].mxu0
        %v7460 = vadd.f32 %v7200, %v7459
        %v7461 = vpop.f32.mrb[0].mxu0
        %7462 = vmatprep.mubr.f32.mxu0 %v7147
        %7463 = vmatmul.mubr.f32.gmra.mrb[0].mxu0 %v7051
        %v7464 = vpop.f32.mrb[0].mxu0
        %v7465 = vadd.f32 %v7200, %v7464
        %v7466 = vpop.f32.mrb[0].mxu0
        %7467 = vmatprep.mubr.f32.mxu0 %v7148
        %7468 = vmatmul.mubr.f32.gmra.mrb[0].mxu0 %v7052
        %v7469 = vpop.f32.mrb[0].mxu0
        %v7470 = vadd.f32 %v7200, %v7469
        %v7471 = vpop.f32.mrb[0].mxu0
        %7472 = vmatprep.mubr.f32.mxu0 %v7149
        %7473 = vmatmul.mubr.f32.gmra.mrb[0].mxu0 %v7053
        %v7474 = vpop.f32.mrb[0].mxu0
        %v7475 = vadd.f32 %v7200, %v7474
        %v7476 = vpop.f32.mrb[0].mxu0
        %7477 = vmatprep.mubr.f32.mxu0 %v7150
        %7478 = vmatmul.mubr.f32.gmra.mrb[0].mxu0 %v7054
        %v7479 = vpop.f32.mrb[0].mxu0
        %v7480 = vadd.f32 %v7200, %v7479
        %v7481 = vpop.f32.mrb[0].mxu0
        %7482 = vmatprep.mubr.f32.mxu0 %v7151
        %7483 = vmatmul.mubr.f32.gmra.mrb[0].mxu0 %v7055
        %v7484 = vpop.f32.mrb[0].mxu0
        %v7485 = vadd.f32 %v7200, %v7484
        %v7486 = vpop.f32.mrb[0].mxu0
        %7487 = vmatprep.mubr.f32.mxu0 %v7152
        %7488 = vmatmul.mubr.f32.gmra.mrb[0].mxu0 %v7056
        %v7489 = vpop.f32.mrb[0].mxu0
        %v7490 = vadd.f32 %v7200, %v7489
        %v7491 = vpop.f32.mrb[0].mxu0
        %7492 = vmatprep.mubr.f32.mxu0 %v7153
        %7493 = vmatmul.mubr.f32.gmra.mrb[0].mxu0 %v7057
        %v7494 = vpop.f32.mrb[0].mxu0
        %v7495 = vadd.f32 %v7200, %v7494
        %v7496 = vpop.f32.mrb[0].mxu0
        %7497 = vmatprep.mubr.f32.mxu0 %v7154
        %7498 = vmatmul.mubr.f32.gmra.mrb[0].mxu0 %v7058
        %v7499 = vpop.f32.mrb[0].mxu0
        %v7500 = vadd.f32 %v7200, %v7499
        %v7501 = vpop.f32.mrb[0].mxu0
        %7502 = vmatprep.mubr.f32.mxu0 %v7155
        %7503 = vmatmul.mubr.f32.gmra.mrb[0].mxu0 %v7059
        %v7504 = vpop.f32.mrb[0].mxu0
        %v7505 = vadd.f32 %v7200, %v7504
        %v7506 = vpop.f32.mrb[0].mxu0
        %7507 = vmatprep.mubr.f32.mxu0 %v7156
        %7508 = vmatmul.mubr.f32.gmra.mrb[0].mxu0 %v7060
        %v7509 = vpop.f32.mrb[0].mxu0
        %v7510 = vadd.f32 %v7200, %v7509
        %v7511 = vpop.f32.mrb[0].mxu0
        %7512 = vmatprep.mubr.f32.mxu0 %v7157
        %7513 = vmatmul.mubr.f32.gmra.mrb[0].mxu0 %v7061
        %v7514 = vpop.f32.mrb[0].mxu0
        %v7515 = vadd.f32 %v7200, %v7514
        %v7516 = vpop.f32.mrb[0].mxu0
        %7517 = vmatprep.mubr.f32.mxu0 %v7158
        %7518 = vmatmul.mubr.f32.gmra.mrb[0].mxu0 %v7062
        %v7519 = vpop.f32.mrb[0].mxu0
        %v7520 = vadd.f32 %v7200, %v7519
        %v7521 = vpop.f32.mrb[0].mxu0
        %7522 = vdwg.mxu0
        %7523 = vmatprep.subr.mxu0 0.0
        %7524 = vmatpush1.msra.mxu0 %v7191
        %7525 = vmatprep.subr.mxu0 0.0
        %7526 = vmatpush1.msra.mxu0 %v7192
        %7527 = vmatprep.subr.mxu0 0.0
        %7528 = vmatpush1.msra.mxu0 %v7193
        %7529 = vmatprep.subr.mxu0 0.0
        %7530 = vmatpush1.msra.mxu0 %v7194
        %7531 = vmatprep.subr.mxu0 0.0
        %7532 = vmatpush1.msra.mxu0 0.0
        %7533 = vmatprep.subr.mxu0 0.0
        %7534 = vmatpush1.msra.mxu0 0.0
        %7535 = vmatprep.subr.mxu0 0.0
        %7536 = vmatpush1.msra.mxu0 0.0
        %7537 = vmatprep.subr.mxu0 0.0
        %7538 = vmatpush1.msra.mxu0 0.0
        %7539 = vmatprep.subr.mxu0 0.0
        %7540 = vmatpush1.msra.mxu0 0.0
        %7541 = vmatprep.subr.mxu0 0.0
        %7542 = vmatpush1.msra.mxu0 0.0
        %7543 = vmatprep.subr.mxu0 0.0
        %7544 = vmatpush1.msra.mxu0 0.0
        %7545 = vmatprep.subr.mxu0 0.0
        %7546 = vmatpush1.msra.mxu0 0.0
        %7547 = vmatprep.subr.mxu0 0.0
        %7548 = vmatpush1.msra.mxu0 0.0
        %7549 = vmatprep.subr.mxu0 0.0
        %7550 = vmatpush1.msra.mxu0 0.0
        %7551 = vmatprep.subr.mxu0 0.0
        %7552 = vmatpush1.msra.mxu0 0.0
        %7553 = vmatprep.subr.mxu0 0.0
        %7554 = vmatpush1.msra.mxu0 0.0
        %7555 = vmatprep.subr.mxu0 0.0
        %7556 = vmatpush1.msra.mxu0 0.0
        %7557 = vmatprep.subr.mxu0 0.0
        %7558 = vmatpush1.msra.mxu0 0.0
        %7559 = vmatprep.subr.mxu0 0.0
        %7560 = vmatpush1.msra.mxu0 0.0
        %7561 = vmatprep.subr.mxu0 0.0
        %7562 = vmatpush1.msra.mxu0 0.0
        %7563 = vmatprep.subr.mxu0 0.0
        %7564 = vmatpush1.msra.mxu0 0.0
        %7565 = vmatprep.subr.mxu0 0.0
        %7566 = vmatpush1.msra.mxu0 0.0
        %7567 = vmatprep.subr.mxu0 0.0
        %7568 = vmatpush1.msra.mxu0 0.0
        %7569 = vmatprep.subr.mxu0 0.0
        %7570 = vmatpush1.msra.mxu0 0.0
        %7571 = vmatprep.subr.mxu0 0.0
        %7572 = vmatpush1.msra.mxu0 0.0
        %7573 = vmatprep.subr.mxu0 0.0
        %7574 = vmatpush1.msra.mxu0 0.0
        %7575 = vmatprep.subr.mxu0 0.0
        %7576 = vmatpush1.msra.mxu0 0.0
        %7577 = vmatprep.subr.mxu0 0.0
        %7578 = vmatpush1.msra.mxu0 0.0
        %7579 = vmatprep.subr.mxu0 0.0
        %7580 = vmatpush1.msra.mxu0 0.0
        %7581 = vmatprep.subr.mxu0 0.0
        %7582 = vmatpush1.msra.mxu0 0.0
        %7583 = vmatprep.subr.mxu0 0.0
        %7584 = vmatpush1.msra.mxu0 0.0
        %7585 = vmatprep.subr.mxu0 0.0
        %7586 = vmatpush1.msra.mxu0 0.0
        %7587 = vmatprep.mubr.f32.mxu0 0.0
        %7588 = vmatmul.mubr.f32.gmra.mrb[0].mxu0 %v7203
        %v7589 = vpop.f32.mrb[0].mxu0
        %v7590 = vadd.f32 %v7365, %v7589
        %v7591 = vpop.f32.mrb[0].mxu0
        %7592 = vmatprep.mubr.f32.mxu0 0.0
        %7593 = vmatmul.mubr.f32.gmra.mrb[0].mxu0 %v7206
        %v7594 = vpop.f32.mrb[0].mxu0
        %v7595 = vadd.f32 %v7370, %v7594
        %v7596 = vpop.f32.mrb[0].mxu0
        %7597 = vmatprep.mubr.f32.mxu0 0.0
        %7598 = vmatmul.mubr.f32.gmra.mrb[0].mxu0 %v7209
        %v7599 = vpop.f32.mrb[0].mxu0
        %v7600 = vadd.f32 %v7375, %v7599
        %v7601 = vpop.f32.mrb[0].mxu0
        %7602 = vmatprep.mubr.f32.mxu0 0.0
        %7603 = vmatmul.mubr.f32.gmra.mrb[0].mxu0 %v7212
        %v7604 = vpop.f32.mrb[0].mxu0
        %v7605 = vadd.f32 %v7380, %v7604
        %v7606 = vpop.f32.mrb[0].mxu0
        %7607 = vmatprep.mubr.f32.mxu0 0.0
        %7608 = vmatmul.mubr.f32.gmra.mrb[0].mxu0 %v7215
        %v7609 = vpop.f32.mrb[0].mxu0
        %v7610 = vadd.f32 %v7385, %v7609
        %v7611 = vpop.f32.mrb[0].mxu0
        %7612 = vmatprep.mubr.f32.mxu0 0.0
        %7613 = vmatmul.mubr.f32.gmra.mrb[0].mxu0 %v7218
        %v7614 = vpop.f32.mrb[0].mxu0
        %v7615 = vadd.f32 %v7390, %v7614
        %v7616 = vpop.f32.mrb[0].mxu0
        %7617 = vmatprep.mubr.f32.mxu0 0.0
        %7618 = vmatmul.mubr.f32.gmra.mrb[0].mxu0 %v7221
        %v7619 = vpop.f32.mrb[0].mxu0
        %v7620 = vadd.f32 %v7395, %v7619
        %v7621 = vpop.f32.mrb[0].mxu0
        %7622 = vmatprep.mubr.f32.mxu0 0.0
        %7623 = vmatmul.mubr.f32.gmra.mrb[0].mxu0 %v7224
        %v7624 = vpop.f32.mrb[0].mxu0
        %v7625 = vadd.f32 %v7400, %v7624
        %v7626 = vpop.f32.mrb[0].mxu0
        %7627 = vmatprep.mubr.f32.mxu0 0.0
        %7628 = vmatmul.mubr.f32.gmra.mrb[0].mxu0 %v7227
        %v7629 = vpop.f32.mrb[0].mxu0
        %v7630 = vadd.f32 %v7405, %v7629
        %v7631 = vpop.f32.mrb[0].mxu0
        %7632 = vmatprep.mubr.f32.mxu0 0.0
        %7633 = vmatmul.mubr.f32.gmra.mrb[0].mxu0 %v7230
        %v7634 = vpop.f32.mrb[0].mxu0
        %v7635 = vadd.f32 %v7410, %v7634
        %v7636 = vpop.f32.mrb[0].mxu0
        %7637 = vmatprep.mubr.f32.mxu0 0.0
        %7638 = vmatmul.mubr.f32.gmra.mrb[0].mxu0 %v7233
        %v7639 = vpop.f32.mrb[0].mxu0
        %v7640 = vadd.f32 %v7415, %v7639
        %v7641 = vpop.f32.mrb[0].mxu0
        %7642 = vmatprep.mubr.f32.mxu0 0.0
        %7643 = vmatmul.mubr.f32.gmra.mrb[0].mxu0 %v7236
        %v7644 = vpop.f32.mrb[0].mxu0
        %v7645 = vadd.f32 %v7420, %v7644
        %v7646 = vpop.f32.mrb[0].mxu0
        %7647 = vmatprep.mubr.f32.mxu0 0.0
        %7648 = vmatmul.mubr.f32.gmra.mrb[0].mxu0 %v7239
        %v7649 = vpop.f32.mrb[0].mxu0
        %v7650 = vadd.f32 %v7425, %v7649
        %v7651 = vpop.f32.mrb[0].mxu0
        %7652 = vmatprep.mubr.f32.mxu0 0.0
        %7653 = vmatmul.mubr.f32.gmra.mrb[0].mxu0 %v7242
        %v7654 = vpop.f32.mrb[0].mxu0
        %v7655 = vadd.f32 %v7430, %v7654
        %v7656 = vpop.f32.mrb[0].mxu0
        %7657 = vmatprep.mubr.f32.mxu0 0.0
        %7658 = vmatmul.mubr.f32.gmra.mrb[0].mxu0 %v7245
        %v7659 = vpop.f32.mrb[0].mxu0
        %v7660 = vadd.f32 %v7435, %v7659
        %v7661 = vpop.f32.mrb[0].mxu0
        %7662 = vmatprep.mubr.f32.mxu0 0.0
        %7663 = vmatmul.mubr.f32.gmra.mrb[0].mxu0 %v7248
        %v7664 = vpop.f32.mrb[0].mxu0
        %v7665 = vadd.f32 %v7440, %v7664
        %v7666 = vpop.f32.mrb[0].mxu0
        %7667 = vmatprep.mubr.f32.mxu0 0.0
        %7668 = vmatmul.mubr.f32.gmra.mrb[0].mxu0 %v7251
        %v7669 = vpop.f32.mrb[0].mxu0
        %v7670 = vadd.f32 %v7445, %v7669
        %v7671 = vpop.f32.mrb[0].mxu0
        %7672 = vmatprep.mubr.f32.mxu0 0.0
        %7673 = vmatmul.mubr.f32.gmra.mrb[0].mxu0 %v7254
        %v7674 = vpop.f32.mrb[0].mxu0
        %v7675 = vadd.f32 %v7450, %v7674
        %v7676 = vpop.f32.mrb[0].mxu0
        %7677 = vmatprep.mubr.f32.mxu0 0.0
        %7678 = vmatmul.mubr.f32.gmra.mrb[0].mxu0 %v7257
        %v7679 = vpop.f32.mrb[0].mxu0
        %v7680 = vadd.f32 %v7455, %v7679
        %v7681 = vpop.f32.mrb[0].mxu0
        %7682 = vmatprep.mubr.f32.mxu0 0.0
        %7683 = vmatmul.mubr.f32.gmra.mrb[0].mxu0 %v7260
        %v7684 = vpop.f32.mrb[0].mxu0
        %v7685 = vadd.f32 %v7460, %v7684
        %v7686 = vpop.f32.mrb[0].mxu0
        %7687 = vmatprep.mubr.f32.mxu0 0.0
        %7688 = vmatmul.mubr.f32.gmra.mrb[0].mxu0 %v7263
        %v7689 = vpop.f32.mrb[0].mxu0
        %v7690 = vadd.f32 %v7465, %v7689
        %v7691 = vpop.f32.mrb[0].mxu0
        %7692 = vmatprep.mubr.f32.mxu0 0.0
        %7693 = vmatmul.mubr.f32.gmra.mrb[0].mxu0 %v7266
        %v7694 = vpop.f32.mrb[0].mxu0
        %v7695 = vadd.f32 %v7470, %v7694
        %v7696 = vpop.f32.mrb[0].mxu0
        %7697 = vmatprep.mubr.f32.mxu0 0.0
        %7698 = vmatmul.mubr.f32.gmra.mrb[0].mxu0 %v7269
        %v7699 = vpop.f32.mrb[0].mxu0
        %v7700 = vadd.f32 %v7475, %v7699
        %v7701 = vpop.f32.mrb[0].mxu0
        %7702 = vmatprep.mubr.f32.mxu0 0.0
        %7703 = vmatmul.mubr.f32.gmra.mrb[0].mxu0 %v7272
        %v7704 = vpop.f32.mrb[0].mxu0
        %v7705 = vadd.f32 %v7480, %v7704
        %v7706 = vpop.f32.mrb[0].mxu0
        %7707 = vmatprep.mubr.f32.mxu0 0.0
        %7708 = vmatmul.mubr.f32.gmra.mrb[0].mxu0 %v7275
        %v7709 = vpop.f32.mrb[0].mxu0
        %v7710 = vadd.f32 %v7485, %v7709
        %v7711 = vpop.f32.mrb[0].mxu0
        %7712 = vmatprep.mubr.f32.mxu0 0.0
        %7713 = vmatmul.mubr.f32.gmra.mrb[0].mxu0 %v7278
        %v7714 = vpop.f32.mrb[0].mxu0
        %v7715 = vadd.f32 %v7490, %v7714
        %v7716 = vpop.f32.mrb[0].mxu0
        %7717 = vmatprep.mubr.f32.mxu0 0.0
        %7718 = vmatmul.mubr.f32.gmra.mrb[0].mxu0 %v7281
        %v7719 = vpop.f32.mrb[0].mxu0
        %v7720 = vadd.f32 %v7495, %v7719
        %v7721 = vpop.f32.mrb[0].mxu0
        %7722 = vmatprep.mubr.f32.mxu0 0.0
        %7723 = vmatmul.mubr.f32.gmra.mrb[0].mxu0 %v7284
        %v7724 = vpop.f32.mrb[0].mxu0
        %v7725 = vadd.f32 %v7500, %v7724
        %v7726 = vpop.f32.mrb[0].mxu0
        %7727 = vmatprep.mubr.f32.mxu0 0.0
        %7728 = vmatmul.mubr.f32.gmra.mrb[0].mxu0 %v7287
        %v7729 = vpop.f32.mrb[0].mxu0
        %v7730 = vadd.f32 %v7505, %v7729
        %v7731 = vpop.f32.mrb[0].mxu0
        %7732 = vmatprep.mubr.f32.mxu0 0.0
        %7733 = vmatmul.mubr.f32.gmra.mrb[0].mxu0 %v7290
        %v7734 = vpop.f32.mrb[0].mxu0
        %v7735 = vadd.f32 %v7510, %v7734
        %v7736 = vpop.f32.mrb[0].mxu0
        %7737 = vmatprep.mubr.f32.mxu0 0.0
        %7738 = vmatmul.mubr.f32.gmra.mrb[0].mxu0 %v7293
        %v7739 = vpop.f32.mrb[0].mxu0
        %v7740 = vadd.f32 %v7515, %v7739
        %v7741 = vpop.f32.mrb[0].mxu0
        %7742 = vmatprep.mubr.f32.mxu0 0.0
        %7743 = vmatmul.mubr.f32.gmra.mrb[0].mxu0 %v7296
        %v7744 = vpop.f32.mrb[0].mxu0
        %v7745 = vadd.f32 %v7520, %v7744
        %v7746 = vpop.f32.mrb[0].mxu0
        %7747 = vdwg.mxu0
        %v7748 = vxor.u32 %v7590, 2147483648
        %v7749 = vxor.u32 %v7595, 2147483648
        %v7750 = vxor.u32 %v7600, 2147483648
        %v7751 = vxor.u32 %v7605, 2147483648
        %v7752 = vxor.u32 %v7610, 2147483648
        %v7753 = vxor.u32 %v7615, 2147483648
        %v7754 = vxor.u32 %v7620, 2147483648
        %v7755 = vxor.u32 %v7625, 2147483648
        %v7756 = vxor.u32 %v7630, 2147483648
        %v7757 = vxor.u32 %v7635, 2147483648
        %v7758 = vxor.u32 %v7640, 2147483648
        %v7759 = vxor.u32 %v7645, 2147483648
        %v7760 = vxor.u32 %v7650, 2147483648
        %v7761 = vxor.u32 %v7655, 2147483648
        %v7762 = vxor.u32 %v7660, 2147483648
        %v7763 = vxor.u32 %v7665, 2147483648
        %v7764 = vxor.u32 %v7670, 2147483648
        %v7765 = vxor.u32 %v7675, 2147483648
        %v7766 = vxor.u32 %v7680, 2147483648
        %v7767 = vxor.u32 %v7685, 2147483648
        %v7768 = vxor.u32 %v7690, 2147483648
        %v7769 = vxor.u32 %v7695, 2147483648
        %v7770 = vxor.u32 %v7700, 2147483648
        %v7771 = vxor.u32 %v7705, 2147483648
        %v7772 = vxor.u32 %v7710, 2147483648
        %v7773 = vxor.u32 %v7715, 2147483648
        %v7774 = vxor.u32 %v7720, 2147483648
        %v7775 = vxor.u32 %v7725, 2147483648
        %v7776 = vxor.u32 %v7730, 2147483648
        %v7777 = vxor.u32 %v7735, 2147483648
        %v7778 = vxor.u32 %v7740, 2147483648
        %v7779 = vxor.u32 %v7745, 2147483648
        %v7780 = vmul.f32 %v7748, 1.442695
        %v7781 = vpow.pop %v7780
        %v7782 = vmul.f32 %v7749, 1.442695
        %v7783 = vpow.pop %v7782
        %v7784 = vmul.f32 %v7750, 1.442695
        %v7785 = vpow.pop %v7784
        %v7786 = vmul.f32 %v7751, 1.442695
        %v7787 = vpow.pop %v7786
        %v7788 = vmul.f32 %v7752, 1.442695
        %v7789 = vpow.pop %v7788
        %v7790 = vmul.f32 %v7753, 1.442695
        %v7791 = vpow.pop %v7790
        %v7792 = vmul.f32 %v7754, 1.442695
        %v7793 = vpow.pop %v7792
        %v7794 = vmul.f32 %v7755, 1.442695
        %v7795 = vpow.pop %v7794
        %v7796 = vmul.f32 %v7756, 1.442695
        %v7797 = vpow.pop %v7796
        %v7798 = vmul.f32 %v7757, 1.442695
        %v7799 = vpow.pop %v7798
        %v7800 = vmul.f32 %v7758, 1.442695
        %v7801 = vpow.pop %v7800
        %v7802 = vmul.f32 %v7759, 1.442695
        %v7803 = vpow.pop %v7802
        %v7804 = vmul.f32 %v7760, 1.442695
        %v7805 = vpow.pop %v7804
        %v7806 = vmul.f32 %v7761, 1.442695
        %v7807 = vpow.pop %v7806
        %v7808 = vmul.f32 %v7762, 1.442695
        %v7809 = vpow.pop %v7808
        %v7810 = vmul.f32 %v7763, 1.442695
        %v7811 = vpow.pop %v7810
        %v7812 = vmul.f32 %v7764, 1.442695
        %v7813 = vpow.pop %v7812
        %v7814 = vmul.f32 %v7765, 1.442695
        %v7815 = vpow.pop %v7814
        %v7816 = vmul.f32 %v7766, 1.442695
        %v7817 = vpow.pop %v7816
        %v7818 = vmul.f32 %v7767, 1.442695
        %v7819 = vpow.pop %v7818
        %v7820 = vmul.f32 %v7768, 1.442695
        %v7821 = vpow.pop %v7820
        %v7822 = vmul.f32 %v7769, 1.442695
        %v7823 = vpow.pop %v7822
        %v7824 = vmul.f32 %v7770, 1.442695
        %v7825 = vpow.pop %v7824
        %v7826 = vmul.f32 %v7771, 1.442695
        %v7827 = vpow.pop %v7826
        %v7828 = vmul.f32 %v7772, 1.442695
        %v7829 = vpow.pop %v7828
        %v7830 = vmul.f32 %v7773, 1.442695
        %v7831 = vpow.pop %v7830
        %v7832 = vmul.f32 %v7774, 1.442695
        %v7833 = vpow.pop %v7832
        %v7834 = vmul.f32 %v7775, 1.442695
        %v7835 = vpow.pop %v7834
        %v7836 = vmul.f32 %v7776, 1.442695
        %v7837 = vpow.pop %v7836
        %v7838 = vmul.f32 %v7777, 1.442695
        %v7839 = vpow.pop %v7838
        %v7840 = vmul.f32 %v7778, 1.442695
        %v7841 = vpow.pop %v7840
        %v7842 = vmul.f32 %v7779, 1.442695
        %v7843 = vpow.pop %v7842
        %v7844 = vadd.f32 %v7781, 1.0
        %v7845 = vadd.f32 %v7783, 1.0
        %v7846 = vadd.f32 %v7785, 1.0
        %v7847 = vadd.f32 %v7787, 1.0
        %v7848 = vadd.f32 %v7789, 1.0
        %v7849 = vadd.f32 %v7791, 1.0
        %v7850 = vadd.f32 %v7793, 1.0
        %v7851 = vadd.f32 %v7795, 1.0
        %v7852 = vadd.f32 %v7797, 1.0
        %v7853 = vadd.f32 %v7799, 1.0
        %v7854 = vadd.f32 %v7801, 1.0
        %v7855 = vadd.f32 %v7803, 1.0
        %v7856 = vadd.f32 %v7805, 1.0
        %v7857 = vadd.f32 %v7807, 1.0
        %v7858 = vadd.f32 %v7809, 1.0
        %v7859 = vadd.f32 %v7811, 1.0
        %v7860 = vadd.f32 %v7813, 1.0
        %v7861 = vadd.f32 %v7815, 1.0
        %v7862 = vadd.f32 %v7817, 1.0
        %v7863 = vadd.f32 %v7819, 1.0
        %v7864 = vadd.f32 %v7821, 1.0
        %v7865 = vadd.f32 %v7823, 1.0
        %v7866 = vadd.f32 %v7825, 1.0
        %v7867 = vadd.f32 %v7827, 1.0
        %v7868 = vadd.f32 %v7829, 1.0
        %v7869 = vadd.f32 %v7831, 1.0
        %v7870 = vadd.f32 %v7833, 1.0
        %v7871 = vadd.f32 %v7835, 1.0
        %v7872 = vadd.f32 %v7837, 1.0
        %v7873 = vadd.f32 %v7839, 1.0
        %v7874 = vadd.f32 %v7841, 1.0
        %v7875 = vadd.f32 %v7843, 1.0
        %v7876 = vrcp.pop %v7844
        %v7877 = vmul.f32 1.0, %v7876
        %v7878 = vrcp.pop %v7845
        %v7879 = vmul.f32 1.0, %v7878
        %v7880 = vrcp.pop %v7846
        %v7881 = vmul.f32 1.0, %v7880
        %v7882 = vrcp.pop %v7847
        %v7883 = vmul.f32 1.0, %v7882
        %v7884 = vrcp.pop %v7848
        %v7885 = vmul.f32 1.0, %v7884
        %v7886 = vrcp.pop %v7849
        %v7887 = vmul.f32 1.0, %v7886
        %v7888 = vrcp.pop %v7850
        %v7889 = vmul.f32 1.0, %v7888
        %v7890 = vrcp.pop %v7851
        %v7891 = vmul.f32 1.0, %v7890
        %v7892 = vrcp.pop %v7852
        %v7893 = vmul.f32 1.0, %v7892
        %v7894 = vrcp.pop %v7853
        %v7895 = vmul.f32 1.0, %v7894
        %v7896 = vrcp.pop %v7854
        %v7897 = vmul.f32 1.0, %v7896
        %v7898 = vrcp.pop %v7855
        %v7899 = vmul.f32 1.0, %v7898
        %v7900 = vrcp.pop %v7856
        %v7901 = vmul.f32 1.0, %v7900
        %v7902 = vrcp.pop %v7857
        %v7903 = vmul.f32 1.0, %v7902
        %v7904 = vrcp.pop %v7858
        %v7905 = vmul.f32 1.0, %v7904
        %v7906 = vrcp.pop %v7859
        %v7907 = vmul.f32 1.0, %v7906
        %v7908 = vrcp.pop %v7860
        %v7909 = vmul.f32 1.0, %v7908
        %v7910 = vrcp.pop %v7861
        %v7911 = vmul.f32 1.0, %v7910
        %v7912 = vrcp.pop %v7862
        %v7913 = vmul.f32 1.0, %v7912
        %v7914 = vrcp.pop %v7863
        %v7915 = vmul.f32 1.0, %v7914
        %v7916 = vrcp.pop %v7864
        %v7917 = vmul.f32 1.0, %v7916
        %v7918 = vrcp.pop %v7865
        %v7919 = vmul.f32 1.0, %v7918
        %v7920 = vrcp.pop %v7866
        %v7921 = vmul.f32 1.0, %v7920
        %v7922 = vrcp.pop %v7867
        %v7923 = vmul.f32 1.0, %v7922
        %v7924 = vrcp.pop %v7868
        %v7925 = vmul.f32 1.0, %v7924
        %v7926 = vrcp.pop %v7869
        %v7927 = vmul.f32 1.0, %v7926
        %v7928 = vrcp.pop %v7870
        %v7929 = vmul.f32 1.0, %v7928
        %v7930 = vrcp.pop %v7871
        %v7931 = vmul.f32 1.0, %v7930
        %v7932 = vrcp.pop %v7872
        %v7933 = vmul.f32 1.0, %v7932
        %v7934 = vrcp.pop %v7873
        %v7935 = vmul.f32 1.0, %v7934
        %v7936 = vrcp.pop %v7874
        %v7937 = vmul.f32 1.0, %v7936
        %v7938 = vrcp.pop %v7875
        %v7939 = vmul.f32 1.0, %v7938
        %v7940 = vsel %vm504, %v7877, 0.0
        %v7941 = vsel %vm504, %v7879, 0.0
        %v7942 = vadd.f32 %v7940, %v7941
        %v7943 = vsel %vm504, %v7881, 0.0
        %v7944 = vadd.f32 %v7942, %v7943
        %v7945 = vsel %vm504, %v7883, 0.0
        %v7946 = vadd.f32 %v7944, %v7945
        %v7947 = vsel %vm504, %v7885, 0.0
        %v7948 = vadd.f32 %v7946, %v7947
        %v7949 = vsel %vm504, %v7887, 0.0
        %v7950 = vadd.f32 %v7948, %v7949
        %v7951 = vsel %vm504, %v7889, 0.0
        %v7952 = vadd.f32 %v7950, %v7951
        %v7953 = vsel %vm504, %v7891, 0.0
        %v7954 = vadd.f32 %v7952, %v7953
        %v7955 = vrot.slane %v7954, 4
        %v7956 = vadd.f32 %v7954, %v7955
        %v7957 = vrot.slane %v7956, 2
        %v7958 = vadd.f32 %v7956, %v7957
        %v7959 = vrot.slane %v7958, 1
        %v7960 = vadd.f32 %v7958, %v7959
        %v7961 = vsel %vm504, %v7893, 0.0
        %v7962 = vsel %vm504, %v7895, 0.0
        %v7963 = vadd.f32 %v7961, %v7962
        %v7964 = vsel %vm504, %v7897, 0.0
        %v7965 = vadd.f32 %v7963, %v7964
        %v7966 = vsel %vm504, %v7899, 0.0
        %v7967 = vadd.f32 %v7965, %v7966
        %v7968 = vsel %vm504, %v7901, 0.0
        %v7969 = vadd.f32 %v7967, %v7968
        %v7970 = vsel %vm504, %v7903, 0.0
        %v7971 = vadd.f32 %v7969, %v7970
        %v7972 = vsel %vm504, %v7905, 0.0
        %v7973 = vadd.f32 %v7971, %v7972
        %v7974 = vsel %vm504, %v7907, 0.0
        %v7975 = vadd.f32 %v7973, %v7974
        %v7976 = vrot.slane %v7975, 4
        %v7977 = vadd.f32 %v7975, %v7976
        %v7978 = vrot.slane %v7977, 2
        %v7979 = vadd.f32 %v7977, %v7978
        %v7980 = vrot.slane %v7979, 1
        %v7981 = vadd.f32 %v7979, %v7980
        %v7982 = vsel %vm504, %v7909, 0.0
        %v7983 = vsel %vm504, %v7911, 0.0
        %v7984 = vadd.f32 %v7982, %v7983
        %v7985 = vsel %vm504, %v7913, 0.0
        %v7986 = vadd.f32 %v7984, %v7985
        %v7987 = vsel %vm504, %v7915, 0.0
        %v7988 = vadd.f32 %v7986, %v7987
        %v7989 = vsel %vm504, %v7917, 0.0
        %v7990 = vadd.f32 %v7988, %v7989
        %v7991 = vsel %vm504, %v7919, 0.0
        %v7992 = vadd.f32 %v7990, %v7991
        %v7993 = vsel %vm504, %v7921, 0.0
        %v7994 = vadd.f32 %v7992, %v7993
        %v7995 = vsel %vm504, %v7923, 0.0
        %v7996 = vadd.f32 %v7994, %v7995
        %v7997 = vrot.slane %v7996, 4
        %v7998 = vadd.f32 %v7996, %v7997
        %v7999 = vrot.slane %v7998, 2
        %v8000 = vadd.f32 %v7998, %v7999
        %v8001 = vrot.slane %v8000, 1
        %v8002 = vadd.f32 %v8000, %v8001
        %v8003 = vsel %vm504, %v7925, 0.0
        %v8004 = vsel %vm504, %v7927, 0.0
        %v8005 = vadd.f32 %v8003, %v8004
        %v8006 = vsel %vm504, %v7929, 0.0
        %v8007 = vadd.f32 %v8005, %v8006
        %v8008 = vsel %vm504, %v7931, 0.0
        %v8009 = vadd.f32 %v8007, %v8008
        %v8010 = vsel %vm504, %v7933, 0.0
        %v8011 = vadd.f32 %v8009, %v8010
        %v8012 = vsel %vm504, %v7935, 0.0
        %v8013 = vadd.f32 %v8011, %v8012
        %v8014 = vsel %vm504, %v7937, 0.0
        %v8015 = vadd.f32 %v8013, %v8014
        %v8016 = vsel %vm504, %v7939, 0.0
        %v8017 = vadd.f32 %v8015, %v8016
        %v8018 = vrot.slane %v8017, 4
        %v8019 = vadd.f32 %v8017, %v8018
        %v8020 = vrot.slane %v8019, 2
        %v8021 = vadd.f32 %v8019, %v8020
        %v8022 = vrot.slane %v8021, 1
        %v8023 = vadd.f32 %v8021, %v8022
        %v8024 = vmul.f32 %v7960, 0.015625
        %v8025 = vmul.f32 %v7981, 0.015625
        %v8026 = vmul.f32 %v8002, 0.015625
        %v8027 = vmul.f32 %v8023, 0.015625
        %v8028 = vld [vmem:[%s9] sm:$0xff]
        %v8029 = vld [vmem:[%s9 + $0x8] sm:$0xff]
        %v8030 = vld [vmem:[%s9 + $0x10] sm:$0xff]
        %v8031 = vld [vmem:[%s9 + $0x18] sm:$0xff]
        %v8032 = vld [vmem:[%s9 + $0x20] sm:$0xff]
        %v8033 = vld [vmem:[%s9 + $0x28] sm:$0xff]
        %v8034 = vld [vmem:[%s9 + $0x30] sm:$0xff]
        %v8035 = vld [vmem:[%s9 + $0x38] sm:$0xff]
        %vm8040 = vcmask 1041409
        %v8041 = vsel %vm8040, %v8025, %v8024
        %vm8042 = vcmask 1042434
        %v8043 = vsel %vm8042, %v8026, %v8041
        %vm8044 = vcmask 1043459
        %v8045 = vsel %vm8044, %v8027, %v8043
        %v8046 = vsel %vm504, %v8045, 0
        %8048 = vmatprep.subr.mxu0 0.0
        %8049 = vmatpush1.msra.mxu0 %v8028
        %8050 = vmatprep.subr.mxu0 0.0
        %8051 = vmatpush1.msra.mxu0 %v8029
        %8052 = vmatprep.subr.mxu0 0.0
        %8053 = vmatpush1.msra.mxu0 %v8030
        %8054 = vmatprep.subr.mxu0 0.0
        %8055 = vmatpush1.msra.mxu0 %v8031
        %8056 = vmatprep.subr.mxu0 0.0
        %8057 = vmatpush1.msra.mxu0 %v8032
        %8058 = vmatprep.subr.mxu0 0.0
        %8059 = vmatpush1.msra.mxu0 %v8033
        %8060 = vmatprep.subr.mxu0 0.0
        %8061 = vmatpush1.msra.mxu0 %v8034
        %8062 = vmatprep.subr.mxu0 0.0
        %8063 = vmatpush1.msra.mxu0 %v8035
        %8064 = vmatprep.subr.mxu0 0.0
        %8065 = vmatpush1.msra.mxu0 0.0
        %8066 = vmatprep.subr.mxu0 0.0
        %8067 = vmatpush1.msra.mxu0 0.0
        %8068 = vmatprep.subr.mxu0 0.0
        %8069 = vmatpush1.msra.mxu0 0.0
        %8070 = vmatprep.subr.mxu0 0.0
        %8071 = vmatpush1.msra.mxu0 0.0
        %8072 = vmatprep.subr.mxu0 0.0
        %8073 = vmatpush1.msra.mxu0 0.0
        %8074 = vmatprep.subr.mxu0 0.0
        %8075 = vmatpush1.msra.mxu0 0.0
        %8076 = vmatprep.subr.mxu0 0.0
        %8077 = vmatpush1.msra.mxu0 0.0
        %8078 = vmatprep.subr.mxu0 0.0
        %8079 = vmatpush1.msra.mxu0 0.0
        %8080 = vmatprep.subr.mxu0 0.0
        %8081 = vmatpush1.msra.mxu0 0.0
        %8082 = vmatprep.subr.mxu0 0.0
        %8083 = vmatpush1.msra.mxu0 0.0
        %8084 = vmatprep.subr.mxu0 0.0
        %8085 = vmatpush1.msra.mxu0 0.0
        %8086 = vmatprep.subr.mxu0 0.0
        %8087 = vmatpush1.msra.mxu0 0.0
        %8088 = vmatprep.subr.mxu0 0.0
        %8089 = vmatpush1.msra.mxu0 0.0
        %8090 = vmatprep.subr.mxu0 0.0
        %8091 = vmatpush1.msra.mxu0 0.0
        %8092 = vmatprep.subr.mxu0 0.0
        %8093 = vmatpush1.msra.mxu0 0.0
        %8094 = vmatprep.subr.mxu0 0.0
        %8095 = vmatpush1.msra.mxu0 0.0
        %8096 = vmatprep.subr.mxu0 0.0
        %8097 = vmatpush1.msra.mxu0 0.0
        %8098 = vmatprep.subr.mxu0 0.0
        %8099 = vmatpush1.msra.mxu0 0.0
        %8100 = vmatprep.subr.mxu0 0.0
        %8101 = vmatpush1.msra.mxu0 0.0
        %8102 = vmatprep.subr.mxu0 0.0
        %8103 = vmatpush1.msra.mxu0 0.0
        %8104 = vmatprep.subr.mxu0 0.0
        %8105 = vmatpush1.msra.mxu0 0.0
        %8106 = vmatprep.subr.mxu0 0.0
        %8107 = vmatpush1.msra.mxu0 0.0
        %8108 = vmatprep.subr.mxu0 0.0
        %8109 = vmatpush1.msra.mxu0 0.0
        %8110 = vmatprep.subr.mxu0 0.0
        %8111 = vmatpush1.msra.mxu0 0.0
        %8112 = vmatprep.mubr.f32.mxu0 0.0
        %8113 = vmatmul.mubr.f32.gmra.mrb[0].mxu0 %v8046
        %v8114 = vpop.f32.mrb[0].mxu0
        %v8115 = vadd.f32 0.0, %v8114
        %v8116 = vpop.f32.mrb[0].mxu0
        %8117 = vdwg.mxu0
        %v8118 = vmax.f32 %v8115, 0.0
        %v8119 = vld [vmem:[%s10] sm:$0xf]
        %vm8120 = vcmask 31744
        %v8122 = vsel %vm8120, %v8118, 0
        %vm8124 = vcmask 1043456
        %v8126 = vsel %vm8124, %v8119, 0
        %8128 = vmatprep.subr.mxu0 0.0
        %8129 = vmatpush1.msra.mxu0 %v8126
        %8130 = vmatprep.subr.mxu0 0.0
        %8131 = vmatpush1.msra.mxu0 0.0
        %8132 = vmatprep.subr.mxu0 0.0
        %8133 = vmatpush1.msra.mxu0 0.0
        %8134 = vmatprep.subr.mxu0 0.0
        %8135 = vmatpush1.msra.mxu0 0.0
        %8136 = vmatprep.subr.mxu0 0.0
        %8137 = vmatpush1.msra.mxu0 0.0
        %8138 = vmatprep.subr.mxu0 0.0
        %8139 = vmatpush1.msra.mxu0 0.0
        %8140 = vmatprep.subr.mxu0 0.0
        %8141 = vmatpush1.msra.mxu0 0.0
        %8142 = vmatprep.subr.mxu0 0.0
        %8143 = vmatpush1.msra.mxu0 0.0
        %8144 = vmatprep.subr.mxu0 0.0
        %8145 = vmatpush1.msra.mxu0 0.0
        %8146 = vmatprep.subr.mxu0 0.0
        %8147 = vmatpush1.msra.mxu0 0.0
        %8148 = vmatprep.subr.mxu0 0.0
        %8149 = vmatpush1.msra.mxu0 0.0
        %8150 = vmatprep.subr.mxu0 0.0
        %8151 = vmatpush1.msra.mxu0 0.0
        %8152 = vmatprep.subr.mxu0 0.0
        %8153 = vmatpush1.msra.mxu0 0.0
        %8154 = vmatprep.subr.mxu0 0.0
        %8155 = vmatpush1.msra.mxu0 0.0
        %8156 = vmatprep.subr.mxu0 0.0
        %8157 = vmatpush1.msra.mxu0 0.0
        %8158 = vmatprep.subr.mxu0 0.0
        %8159 = vmatpush1.msra.mxu0 0.0
        %8160 = vmatprep.subr.mxu0 0.0
        %8161 = vmatpush1.msra.mxu0 0.0
        %8162 = vmatprep.subr.mxu0 0.0
        %8163 = vmatpush1.msra.mxu0 0.0
        %8164 = vmatprep.subr.mxu0 0.0
        %8165 = vmatpush1.msra.mxu0 0.0
        %8166 = vmatprep.subr.mxu0 0.0
        %8167 = vmatpush1.msra.mxu0 0.0
        %8168 = vmatprep.subr.mxu0 0.0
        %8169 = vmatpush1.msra.mxu0 0.0
        %8170 = vmatprep.subr.mxu0 0.0
        %8171 = vmatpush1.msra.mxu0 0.0
        %8172 = vmatprep.subr.mxu0 0.0
        %8173 = vmatpush1.msra.mxu0 0.0
        %8174 = vmatprep.subr.mxu0 0.0
        %8175 = vmatpush1.msra.mxu0 0.0
        %8176 = vmatprep.subr.mxu0 0.0
        %8177 = vmatpush1.msra.mxu0 0.0
        %8178 = vmatprep.subr.mxu0 0.0
        %8179 = vmatpush1.msra.mxu0 0.0
        %8180 = vmatprep.subr.mxu0 0.0
        %8181 = vmatpush1.msra.mxu0 0.0
        %8182 = vmatprep.subr.mxu0 0.0
        %8183 = vmatpush1.msra.mxu0 0.0
        %8184 = vmatprep.subr.mxu0 0.0
        %8185 = vmatpush1.msra.mxu0 0.0
        %8186 = vmatprep.subr.mxu0 0.0
        %8187 = vmatpush1.msra.mxu0 0.0
        %8188 = vmatprep.subr.mxu0 0.0
        %8189 = vmatpush1.msra.mxu0 0.0
        %8190 = vmatprep.subr.mxu0 0.0
        %8191 = vmatpush1.msra.mxu0 0.0
        %8192 = vmatprep.mubr.f32.mxu0 0.0
        %8193 = vmatmul.mubr.f32.gmra.mrb[0].mxu0 %v8122
        %v8194 = vpop.f32.mrb[0].mxu0
        %v8195 = vadd.f32 0.0, %v8194
        %v8196 = vpop.f32.mrb[0].mxu0
        %8197 = vdwg.mxu0
        %v8198 = vxor.u32 %v8195, 2147483648
        %v8199 = vmul.f32 %v8198, 1.442695
        %v8200 = vpow.pop %v8199
        %v8201 = vadd.f32 %v8200, 1.0
        %v8202 = vrcp.pop %v8201
        %v8203 = vmul.f32 1.0, %v8202
        %v8206 = vunpack.c.l.s4 1966171168
        %v8207 = vunpack.c.0.s8 %v8206
        %v8208 = vlaneseq
        %v8209 = vshrl.u32 %v8208, 7
        %v8210 = vsub.s32 %v8207, %v8209
        %v8211 = vrot.slane %v8203, %v8210
        %v8212 = vcombine.high %v8211, %v8211
        %v8214 = vunpack.c.l.s4 1966171168
        %v8215 = vunpack.c.0.s8 %v8214
        %v8216 = vlaneseq
        %v8217 = vshrl.u32 %v8216, 7
        %v8218 = vsub.s32 %v8215, %v8217
        %v8219 = vrot.slane %v8211, %v8218
        %v8221 = vunpack.c.l.s4 1966171168
        %v8222 = vunpack.c.0.s8 %v8221
        %v8223 = vlaneseq
        %v8224 = vshrl.u32 %v8223, 7
        %v8225 = vsub.s32 %v8222, %v8224
        %v8226 = vrot.slane %v8212, %v8225
        %v8227 = vcombine.high %v8219, %v8219
        %v8228 = vcombine.high %v8226, %v8226
        %v8229 = vlaneseq
        %v8230 = vshrl.u32 %v8229, 7
        %v8231 = vsub.s32 0, %v8230
        %v8232 = vrot.slane %v8219, %v8231
        %v8233 = vlaneseq
        %v8234 = vshrl.u32 %v8233, 7
        %v8235 = vsub.s32 0, %v8234
        %v8236 = vrot.slane %v8226, %v8235
        %v8237 = vlaneseq
        %v8238 = vshrl.u32 %v8237, 7
        %v8239 = vsub.s32 0, %v8238
        %v8240 = vrot.slane %v8227, %v8239
        %v8241 = vlaneseq
        %v8242 = vshrl.u32 %v8241, 7
        %v8243 = vsub.s32 0, %v8242
        %v8244 = vrot.slane %v8228, %v8243
        %v8249 = vmul.f32 %v7877, %v8232
        %v8250 = vmul.f32 %v7879, %v8232
        %v8251 = vmul.f32 %v7881, %v8232
        %v8252 = vmul.f32 %v7883, %v8232
        %v8253 = vmul.f32 %v7885, %v8232
        %v8254 = vmul.f32 %v7887, %v8232
        %v8255 = vmul.f32 %v7889, %v8232
        %v8256 = vmul.f32 %v7891, %v8232
        %v8257 = vmul.f32 %v7893, %v8236
        %v8258 = vmul.f32 %v7895, %v8236
        %v8259 = vmul.f32 %v7897, %v8236
        %v8260 = vmul.f32 %v7899, %v8236
        %v8261 = vmul.f32 %v7901, %v8236
        %v8262 = vmul.f32 %v7903, %v8236
        %v8263 = vmul.f32 %v7905, %v8236
        %v8264 = vmul.f32 %v7907, %v8236
        %v8265 = vmul.f32 %v7909, %v8240
        %v8266 = vmul.f32 %v7911, %v8240
        %v8267 = vmul.f32 %v7913, %v8240
        %v8268 = vmul.f32 %v7915, %v8240
        %v8269 = vmul.f32 %v7917, %v8240
        %v8270 = vmul.f32 %v7919, %v8240
        %v8271 = vmul.f32 %v7921, %v8240
        %v8272 = vmul.f32 %v7923, %v8240
        %v8273 = vmul.f32 %v7925, %v8244
        %v8274 = vmul.f32 %v7927, %v8244
        %v8275 = vmul.f32 %v7929, %v8244
        %v8276 = vmul.f32 %v7931, %v8244
        %v8277 = vmul.f32 %v7933, %v8244
        %v8278 = vmul.f32 %v7935, %v8244
        %v8279 = vmul.f32 %v7937, %v8244
        %v8280 = vmul.f32 %v7939, %v8244
        %8281 = vst.msk [vmem:[%s382] sm:$0xff] %vm504, %v8249
        %8282 = vst.msk [vmem:[%s382 + $0x8] sm:$0xff] %vm504, %v8250
        %8283 = vst.msk [vmem:[%s382 + $0x10] sm:$0xff] %vm504, %v8251
        %8284 = vst.msk [vmem:[%s382 + $0x18] sm:$0xff] %vm504, %v8252
        %8285 = vst.msk [vmem:[%s382 + $0x20] sm:$0xff] %vm504, %v8253
        %8286 = vst.msk [vmem:[%s382 + $0x28] sm:$0xff] %vm504, %v8254
        %8287 = vst.msk [vmem:[%s382 + $0x30] sm:$0xff] %vm504, %v8255
        %8288 = vst.msk [vmem:[%s382 + $0x38] sm:$0xff] %vm504, %v8256
        %8289 = vst.msk [vmem:[%s382 + $0x40] sm:$0xff] %vm504, %v8257
        %8290 = vst.msk [vmem:[%s382 + $0x48] sm:$0xff] %vm504, %v8258
        %8291 = vst.msk [vmem:[%s382 + $0x50] sm:$0xff] %vm504, %v8259
        %8292 = vst.msk [vmem:[%s382 + $0x58] sm:$0xff] %vm504, %v8260
        %8293 = vst.msk [vmem:[%s382 + $0x60] sm:$0xff] %vm504, %v8261
        %8294 = vst.msk [vmem:[%s382 + $0x68] sm:$0xff] %vm504, %v8262
        %8295 = vst.msk [vmem:[%s382 + $0x70] sm:$0xff] %vm504, %v8263
        %8296 = vst.msk [vmem:[%s382 + $0x78] sm:$0xff] %vm504, %v8264
        %8297 = vst.msk [vmem:[%s382 + $0x80] sm:$0xff] %vm504, %v8265
        %8298 = vst.msk [vmem:[%s382 + $0x88] sm:$0xff] %vm504, %v8266
        %8299 = vst.msk [vmem:[%s382 + $0x90] sm:$0xff] %vm504, %v8267
        %8300 = vst.msk [vmem:[%s382 + $0x98] sm:$0xff] %vm504, %v8268
        %8301 = vst.msk [vmem:[%s382 + $0xa0] sm:$0xff] %vm504, %v8269
        %8302 = vst.msk [vmem:[%s382 + $0xa8] sm:$0xff] %vm504, %v8270
        %8303 = vst.msk [vmem:[%s382 + $0xb0] sm:$0xff] %vm504, %v8271
        %8304 = vst.msk [vmem:[%s382 + $0xb8] sm:$0xff] %vm504, %v8272
        %8305 = vst.msk [vmem:[%s382 + $0xc0] sm:$0xff] %vm504, %v8273
        %8306 = vst.msk [vmem:[%s382 + $0xc8] sm:$0xff] %vm504, %v8274
        %8307 = vst.msk [vmem:[%s382 + $0xd0] sm:$0xff] %vm504, %v8275
        %8308 = vst.msk [vmem:[%s382 + $0xd8] sm:$0xff] %vm504, %v8276
        %8309 = vst.msk [vmem:[%s382 + $0xe0] sm:$0xff] %vm504, %v8277
        %8310 = vst.msk [vmem:[%s382 + $0xe8] sm:$0xff] %vm504, %v8278
        %8311 = vst.msk [vmem:[%s382 + $0xf0] sm:$0xff] %vm504, %v8279
        %8312 = vst.msk [vmem:[%s382 + $0xf8] sm:$0xff] %vm504, %v8280
        %s8313 = sand.u32 %s269, 1
        %s8314 = scalar_lea.sflag [#allocation4], %s8313
        %s8315 = sand.u32 %s269, 1
        %s8316 = smul.addr %s8315, 256
        %s8317 = scalar_lea.vmem [#allocation3], %s8316
        // Predicated region
        $region65: #{se_attention_forward.1} parent=63 // pred_check
          %p8318 = pneg %p279
        $region66: #{se_attention_forward.1} parent=63 // pred_check_branch
          %8320 = sbr.rel (%p8318) target = $region68
        $region67: #{se_attention_forward.1} parent=63 // pred_region
          %s8321 = smul.u32 4, %s25
          %s8323 = ssub.s32 4096, 4096
          %8324 = vsyncadd %s8314, %s8323
          %s8325 = smul.addr %s8321, 8
          %s8326 = smul.addr %s8325, 128
          %s8327 = scalar_lea.hbm %s11, %s8326
          %s8328 = sshll.u32 %s8317, 4
          %s8329 = int_to_ptr.vmem [resolvable:$true] %s8328
          %8334 = dma.vmem_to_hbm [thread:$0]  %s8329, 4096, %s8327, %s8314, 128, 128, 8
        $region68: #{se_attention_forward.1} parent=63 // pred_fallthru
          _
      $region64: #{se_attention_forward.1} parent=5 // pred_fallthru
        _
      %p8335 = scmp.le.s32.totalorder 2, %s20
      // Predicated region
      $region69: #{se_attention_forward.1} parent=5 // pred_check
        %p8336 = pneg %p8335
      $region70: #{se_attention_forward.1} parent=5 // pred_check_branch
        %8338 = sbr.rel (%p8336) target = $region72
      $region71: #{se_attention_forward.1} parent=5 // pred_region
        %s8339 = ssub.s32 %s20, 2
        // Predicated region
        $region73: #{se_attention_forward.1} parent=71 // pred_check
          %p8340 = pneg %p285
        $region74: #{se_attention_forward.1} parent=71 // pred_check_branch
          %8342 = sbr.rel (%p8340) target = $region76
        $region75: #{se_attention_forward.1} parent=71 // pred_region
          %s8343 = sand.u32 %s270, 1
          %s8344 = scalar_lea.sflag [#allocation4], %s8343
          %s8345 = sand.u32 %s270, 1
          %s8346 = smul.addr %s8345, 256
          %s8347 = scalar_lea.vmem [#allocation3], %s8346
          %8348 = dma.done %s8344, 4096
        $region76: #{se_attention_forward.1} parent=71 // pred_fallthru
          _
      $region72: #{se_attention_forward.1} parent=5 // pred_fallthru
        _
    $region6: #{se_attention_forward.1} parent=1 // loop_footer
      %s24 = sadd.s32 1, %s20
    $region7: #{se_attention_forward.1} parent=1 // loop_footer_branch
      %19 = sbr.rel target = $region3
    $region8: #{se_attention_forward.1} parent=1 // loop_exit
      _
    %8349 = vsyncpa [#allocation4], 1
    %s8350 = scalar_lea.sflag [#allocation4], 1
    %8351 = vsyncpa %s8350, 1

</llo_original>
